<compile_context>
chip_gen: v5e
topology: v5e:2x2
jax: 0.10.0
libtpu: 0.0.40
codegen_flags: <defaults>
</compile_context>

<pallas_src>
import functools

import jax
import jax.numpy as jnp
from jax.experimental import pallas as pl
from jax.experimental.pallas import tpu as pltpu

# Conv hyper-parameters from the PyTorch module.
K0, S0 = 29, 13
K1, S1 = 15, 7
K2, S2 = 3, 1
N_LANE = 128
SUB = 8          # sublane granularity
B_BLK_MAX = 8    # samples per grid step


def _round_up(x, m):
    return ((x + m - 1) // m) * m


# ------------------------------ Pallas kernel -------------------------------

def _fused_cnn_kernel(p_ref, w0_ref, b0_ref, w1_ref, b1_ref, w2_ref, b2_ref,
                      wl_ref, bl_ref, o_ref, h0_ref, h1_ref, *,
                      b_blk, l0_pad, l1, l2):
    f32, bf16 = jnp.float32, jnp.bfloat16

    # ---- Conv1d #0 (BatchNorm pre-folded) + ReLU ----------------------------
    # p_ref: (b_blk*l0_pad, K0*C_pad) bf16 im2col patches (batch flattened into
    # the MXU M dimension); w0_ref: (K0*C_pad, 128) bf16.  Zero-padded rows /
    # lanes contribute exactly zero (weights padded with zeros).
    acc0 = jnp.dot(p_ref[...], w0_ref[...], preferred_element_type=f32)
    h0 = jnp.maximum(acc0 + b0_ref[...], 0.0)          # (b_blk*l0_pad, 128) f32
    for b in range(b_blk):                              # tile-aligned slice stores
        h0_ref[b] = h0[b * l0_pad:(b + 1) * l0_pad, :]
    # NOTE: padded time rows (>= l0) hold relu(b0) but are never read below
    # because (l1-1)*S1 + K1 - 1 <= l0 - 1 by construction.

    # ---- Conv1d #1 + ReLU: (l0, 128) -> (l1, 256) ---------------------------
    c1 = w1_ref.shape[-1]
    for j in range(l1):
        win = h0_ref[:, pl.ds(j * S1, K1), :]           # contiguous (b_blk,K1,128)
        acc1 = jnp.zeros((b_blk, c1), f32)
        for k in range(K1):                             # static unroll, M = b_blk
            acc1 = acc1 + jnp.dot(win[:, k, :].astype(bf16), w1_ref[k],
                                  preferred_element_type=f32)
        h1_ref[:, j, :] = jnp.maximum(acc1 + b1_ref[...], 0.0)

    # ---- Conv1d #2 + ReLU + running sum for the time-mean -------------------
    c2 = w2_ref.shape[-1]
    s = jnp.zeros((b_blk, c2), f32)
    for j in range(l2):
        win = h1_ref[:, pl.ds(j * S2, K2), :]           # contiguous (b_blk,K2,256)
        acc2 = jnp.zeros((b_blk, c2), f32)
        for k in range(K2):
            acc2 = acc2 + jnp.dot(win[:, k, :].astype(bf16), w2_ref[k],
                                  preferred_element_type=f32)
        s = s + jnp.maximum(acc2 + b2_ref[...], 0.0)

    # ---- mean over time + Linear (output lane-padded to 128) ----------------
    m = (s * (1.0 / l2)).astype(bf16)                   # (b_blk, 512)
    y = jnp.dot(m, wl_ref[...], preferred_element_type=f32) + bl_ref[...]
    o_ref[...] = y.astype(o_ref.dtype)


# --------------------------------- wrapper ----------------------------------

def cnn_1d_forward(params, x, *, dim_output):
    # x: (B, T, C_in) channel-last (the PyTorch module permutes to NCT; the
    # math here is identical).  Dropout = identity (eval mode).
    b, t, c = x.shape
    l0 = (t - K0) // S0 + 1
    l1 = (l0 - K1) // S1 + 1
    l2 = (l1 - K2) // S2 + 1
    assert l0 >= 1 and l1 >= 1 and l2 >= 1, "sequence too short for conv chain"

    kc = K0 * c
    kc_pad = params["w0"].shape[0]
    assert kc_pad == _round_up(kc, N_LANE), "params built for a different C_in"
    n_pad = params["w_lin"].shape[1]

    l0_pad = _round_up(l0, SUB)
    l1_pad = _round_up(l1, SUB)
    b_blk = min(B_BLK_MAX, b)
    b_pad = _round_up(b, b_blk)

    # im2col for conv0 done in XLA: lane-dense (k*C + c) patches, zero-padded so
    # every kernel-side tile is (8, 128)-aligned, batch flattened into MXU rows.
    idx = (jnp.arange(l0) * S0)[:, None] + jnp.arange(K0)[None, :]   # (l0, K0)
    patches = x[:, idx, :].reshape(b, l0, kc)                        # (b,l0,K0*C)
    patches = jnp.pad(patches,
                      ((0, b_pad - b), (0, l0_pad - l0), (0, kc_pad - kc)))
    patches = patches.reshape(b_pad * l0_pad, kc_pad).astype(jnp.bfloat16)

    kernel = functools.partial(_fused_cnn_kernel, b_blk=b_blk,
                               l0_pad=l0_pad, l1=l1, l2=l2)

    flops = 2 * b_pad * (l0_pad * kc_pad * 128 + l1 * K1 * 128 * 256
                         + l2 * K2 * 256 * 512 + 512 * n_pad)
    bytes_accessed = int(patches.size) * 2 + b_pad * n_pad * 4 + sum(
        int(p.size) * p.dtype.itemsize for p in params.values())

    out = pl.pallas_call(
        kernel,
        out_shape=jax.ShapeDtypeStruct((b_pad, n_pad), jnp.float32),
        grid_spec=pltpu.PrefetchScalarGridSpec(
            num_scalar_prefetch=0,
            grid=(b_pad // b_blk,),
            in_specs=[
                pl.BlockSpec((b_blk * l0_pad, kc_pad), lambda i: (i, 0)),
                pl.BlockSpec(params["w0"].shape, lambda i: (0, 0)),
                pl.BlockSpec(params["b0"].shape, lambda i: (0, 0)),
                pl.BlockSpec(params["w1"].shape, lambda i: (0, 0, 0)),
                pl.BlockSpec(params["b1"].shape, lambda i: (0, 0)),
                pl.BlockSpec(params["w2"].shape, lambda i: (0, 0, 0)),
                pl.BlockSpec(params["b2"].shape, lambda i: (0, 0)),
                pl.BlockSpec(params["w_lin"].shape, lambda i: (0, 0)),
                pl.BlockSpec(params["b_lin"].shape, lambda i: (0, 0)),
            ],
            out_specs=pl.BlockSpec((b_blk, n_pad), lambda i: (i, 0)),
            scratch_shapes=[
                pltpu.VMEM((b_blk, l0_pad, 128), jnp.float32),   # conv0 act
                pltpu.VMEM((b_blk, l1_pad, 256), jnp.float32),   # conv1 act
            ],
        ),
        compiler_params=pltpu.CompilerParams(
            dimension_semantics=("parallel",)),
        cost_estimate=pl.CostEstimate(flops=flops, transcendentals=0,
                                      bytes_accessed=bytes_accessed),
    )(patches, params["w0"], params["b0"], params["w1"], params["b1"],
      params["w2"], params["b2"], params["w_lin"], params["b_lin"])

    return out[:b, :dim_output]


# ------------------------------ initialization ------------------------------

def xavier_uniform(key, shape, fan_in, fan_out):
    bound = (6.0 / (fan_in + fan_out)) ** 0.5
    return jax.random.uniform(key, shape, jnp.float32, -bound, bound)


def bias_uniform(key, shape, fan_in):
    bound = 1.0 / (fan_in ** 0.5)
    return jax.random.uniform(key, shape, jnp.float32, -bound, bound)


def init_params(key, dim_input, dim_output):
    keys = jax.random.split(key, 8)
    # PyTorch layouts: Conv1d weight (C_out, C_in, K); Linear weight (out, in).
    w0 = xavier_uniform(keys[0], (128, dim_input, K0), dim_input * K0, 128 * K0)
    w1 = xavier_uniform(keys[1], (256, 128, K1), 128 * K1, 256 * K1)
    w2 = xavier_uniform(keys[2], (512, 256, K2), 256 * K2, 512 * K2)
    w_lin = xavier_uniform(keys[3], (dim_output, 512), 512, dim_output)
    b0 = bias_uniform(keys[4], (128,), dim_input * K0)
    b1 = bias_uniform(keys[5], (256,), 128 * K1)
    b2 = bias_uniform(keys[6], (512,), 256 * K2)
    b_lin = bias_uniform(keys[7], (dim_output,), 512)

    # Fold eval-mode BatchNorm1d (freshly-initialized running stats) into conv0:
    #   BN(x)_c = scale_c * x_c + shift_c  =>  conv0(BN(x)) = conv0'(x)
    # TODO(synk): trained checkpoints must re-fold their running stats here;
    # train-mode batch statistics and stochastic Dropout are not modelled.
    gamma = jnp.ones((dim_input,), jnp.float32)
    beta = jnp.zeros((dim_input,), jnp.float32)
    run_mean = jnp.zeros((dim_input,), jnp.float32)
    run_var = jnp.ones((dim_input,), jnp.float32)
    eps = 1e-5
    scale = gamma * jax.lax.rsqrt(run_var + eps)            # (C_in,)
    shift = beta - run_mean * scale                         # (C_in,)
    w0_f = w0 * scale[None, :, None]                        # (128, C_in, K0)
    b0_f = b0 + jnp.einsum("ock,c->o", w0, shift)

    # Kernel-friendly layouts:
    #   conv0: im2col weight matrix (K0*C_in, 128), rows ordered k*C_in + c,
    #          zero-padded to a 128 multiple; conv1/conv2: per-tap (K, Cin, Cout);
    #   Linear: transposed and zero-padded to a 128-lane multiple.
    kc = K0 * dim_input
    kc_pad = _round_up(kc, N_LANE)
    w0_m = jnp.transpose(w0_f, (2, 1, 0)).reshape(kc, 128)
    w0_m = jnp.pad(w0_m, ((0, kc_pad - kc), (0, 0)))

    n_pad = _round_up(dim_output, N_LANE)
    w_lin_p = jnp.zeros((512, n_pad), jnp.float32).at[:, :dim_output].set(w_lin.T)
    b_lin_p = jnp.zeros((1, n_pad), jnp.float32).at[:, :dim_output].set(b_lin)

    return {
        "w0": w0_m.astype(jnp.bfloat16),                          # (K0*C_pad, 128)
        "b0": b0_f.reshape(1, 128),                               # f32
        "w1": jnp.transpose(w1, (2, 1, 0)).astype(jnp.bfloat16),  # (K1, 128, 256)
        "b1": b1.reshape(1, 256),
        "w2": jnp.transpose(w2, (2, 1, 0)).astype(jnp.bfloat16),  # (K2, 256, 512)
        "b2": b2.reshape(1, 512),
        "w_lin": w_lin_p.astype(jnp.bfloat16),                    # (512, n_pad)
        "b_lin": b_lin_p,                                         # (1, n_pad) f32
    }


if __name__ == "__main__":
    # T=400 gives l0=29, l1=3, l2=1 (minimum viable conv chain).
    # B=12 exercises batch blocking: B_BLK=8, batch padded to 16 -> 2 grid steps.
    B, T, C_IN, DIM_OUT = 12, 400, 16, 10
    key = jax.random.PRNGKey(0)
    k_param, k_x = jax.random.split(key)
    params = init_params(k_param, C_IN, DIM_OUT)
    x = jax.random.normal(k_x, (B, T, C_IN), jnp.float32)

    fwd = jax.jit(functools.partial(cnn_1d_forward, dim_output=DIM_OUT))
    out = jax.block_until_ready(fwd(params, x))
    assert out.shape == (B, DIM_OUT), out.shape
    assert bool(jnp.all(jnp.isfinite(out)))
    print("KERNEL_OK")
</pallas_src>

<mosaic_0001>
module attributes {stable_mosaic.version = 11 : i64} {
  func.func @_fused_cnn_kernel(%arg0: i32, %arg1: memref<256x512xbf16, #tpu.memory_space<vmem>>, %arg2: memref<512x128xbf16, #tpu.memory_space<vmem>>, %arg3: memref<1x128xf32, #tpu.memory_space<vmem>>, %arg4: memref<15x128x256xbf16, #tpu.memory_space<vmem>>, %arg5: memref<1x256xf32, #tpu.memory_space<vmem>>, %arg6: memref<3x256x512xbf16, #tpu.memory_space<vmem>>, %arg7: memref<1x512xf32, #tpu.memory_space<vmem>>, %arg8: memref<512x128xbf16, #tpu.memory_space<vmem>>, %arg9: memref<1x128xf32, #tpu.memory_space<vmem>>, %arg10: memref<8x128xf32, #tpu.memory_space<vmem>>, %arg11: memref<8x32x128xf32, #tpu.memory_space<vmem>>, %arg12: memref<8x8x256xf32, #tpu.memory_space<vmem>>) attributes {dimension_semantics = [#tpu.dimension_semantics<parallel>], iteration_bounds = array<i64: 2>, scalar_prefetch = 0 : i64, scratch_operands = 2 : i64, tpu.core_type = #tpu.core_type<tc>, window_params = [{transform_indices = @transform_0, window_bounds = array<i64: 256, 512>}, {pipeline_mode = #tpu.pipeline_mode<synchronous>, transform_indices = @transform_1, window_bounds = array<i64: 512, 128>}, {pipeline_mode = #tpu.pipeline_mode<synchronous>, transform_indices = @transform_2, window_bounds = array<i64: 1, 128>}, {pipeline_mode = #tpu.pipeline_mode<synchronous>, transform_indices = @transform_3, window_bounds = array<i64: 15, 128, 256>}, {pipeline_mode = #tpu.pipeline_mode<synchronous>, transform_indices = @transform_4, window_bounds = array<i64: 1, 256>}, {pipeline_mode = #tpu.pipeline_mode<synchronous>, transform_indices = @transform_5, window_bounds = array<i64: 3, 256, 512>}, {pipeline_mode = #tpu.pipeline_mode<synchronous>, transform_indices = @transform_6, window_bounds = array<i64: 1, 512>}, {pipeline_mode = #tpu.pipeline_mode<synchronous>, transform_indices = @transform_7, window_bounds = array<i64: 512, 128>}, {pipeline_mode = #tpu.pipeline_mode<synchronous>, transform_indices = @transform_8, window_bounds = array<i64: 1, 128>}, {transform_indices = @transform_9, window_bounds = array<i64: 8, 128>}]} {
    %c0 = arith.constant 0 : index
    %c0_0 = arith.constant 0 : index
    %0 = vector.load %arg1[%c0, %c0_0] : memref<256x512xbf16, #tpu.memory_space<vmem>>, vector<256x512xbf16>
    %c0_1 = arith.constant 0 : index
    %c0_2 = arith.constant 0 : index
    %1 = vector.load %arg2[%c0_1, %c0_2] : memref<512x128xbf16, #tpu.memory_space<vmem>>, vector<512x128xbf16>
    %cst = arith.constant dense<0.000000e+00> : vector<256x128xf32>
    %2 = tpu.matmul %0, %1, %cst {dimension_numbers = #tpu.dot_dimension_numbers<[1], [0], [0], [1], [0, 0, 1, 1], [], []>} : vector<256x512xbf16>, vector<512x128xbf16>, vector<256x128xf32> -> vector<256x128xf32>
    %c0_3 = arith.constant 0 : index
    %c0_4 = arith.constant 0 : index
    %3 = vector.load %arg3[%c0_3, %c0_4] : memref<1x128xf32, #tpu.memory_space<vmem>>, vector<1x128xf32>
    %4 = vector.broadcast %3 : vector<1x128xf32> to vector<256x128xf32>
    %5 = arith.addf %2, %4 : vector<256x128xf32>
    %cst_5 = arith.constant 0.000000e+00 : f32
    %6 = vector.broadcast %cst_5 : f32 to vector<256x128xf32>
    %7 = arith.maximumf %5, %6 : vector<256x128xf32>
    %8 = vector.extract_strided_slice %7 {offsets = [0, 0], sizes = [32, 128], strides = [1, 1]} : vector<256x128xf32> to vector<32x128xf32>
    %c0_6 = arith.constant 0 : index
    %c0_7 = arith.constant 0 : index
    %c0_8 = arith.constant 0 : index
    %9 = vector.load %arg11[%c0_6, %c0_7, %c0_8] : memref<8x32x128xf32, #tpu.memory_space<vmem>>, vector<1x32x128xf32>
    %10 = vector.shape_cast %9 : vector<1x32x128xf32> to vector<32x128xf32>
    %11 = vector.shape_cast %8 : vector<32x128xf32> to vector<1x32x128xf32>
    tpu.vector_store %arg11[%c0_6, %c0_7, %c0_8], %11 {strides = array<i32>} : memref<8x32x128xf32, #tpu.memory_space<vmem>>, vector<1x32x128xf32>,
    %12 = vector.extract_strided_slice %7 {offsets = [32, 0], sizes = [32, 128], strides = [1, 1]} : vector<256x128xf32> to vector<32x128xf32>
    %c1 = arith.constant 1 : index
    %c0_9 = arith.constant 0 : index
    %c0_10 = arith.constant 0 : index
    %13 = vector.load %arg11[%c1, %c0_9, %c0_10] : memref<8x32x128xf32, #tpu.memory_space<vmem>>, vector<1x32x128xf32>
    %14 = vector.shape_cast %13 : vector<1x32x128xf32> to vector<32x128xf32>
    %15 = vector.shape_cast %12 : vector<32x128xf32> to vector<1x32x128xf32>
    tpu.vector_store %arg11[%c1, %c0_9, %c0_10], %15 {strides = array<i32>} : memref<8x32x128xf32, #tpu.memory_space<vmem>>, vector<1x32x128xf32>,
    %16 = vector.extract_strided_slice %7 {offsets = [64, 0], sizes = [32, 128], strides = [1, 1]} : vector<256x128xf32> to vector<32x128xf32>
    %c2 = arith.constant 2 : index
    %c0_11 = arith.constant 0 : index
    %c0_12 = arith.constant 0 : index
    %17 = vector.load %arg11[%c2, %c0_11, %c0_12] : memref<8x32x128xf32, #tpu.memory_space<vmem>>, vector<1x32x128xf32>
    %18 = vector.shape_cast %17 : vector<1x32x128xf32> to vector<32x128xf32>
    %19 = vector.shape_cast %16 : vector<32x128xf32> to vector<1x32x128xf32>
    tpu.vector_store %arg11[%c2, %c0_11, %c0_12], %19 {strides = array<i32>} : memref<8x32x128xf32, #tpu.memory_space<vmem>>, vector<1x32x128xf32>,
    %20 = vector.extract_strided_slice %7 {offsets = [96, 0], sizes = [32, 128], strides = [1, 1]} : vector<256x128xf32> to vector<32x128xf32>
    %c3 = arith.constant 3 : index
    %c0_13 = arith.constant 0 : index
    %c0_14 = arith.constant 0 : index
    %21 = vector.load %arg11[%c3, %c0_13, %c0_14] : memref<8x32x128xf32, #tpu.memory_space<vmem>>, vector<1x32x128xf32>
    %22 = vector.shape_cast %21 : vector<1x32x128xf32> to vector<32x128xf32>
    %23 = vector.shape_cast %20 : vector<32x128xf32> to vector<1x32x128xf32>
    tpu.vector_store %arg11[%c3, %c0_13, %c0_14], %23 {strides = array<i32>} : memref<8x32x128xf32, #tpu.memory_space<vmem>>, vector<1x32x128xf32>,
    %24 = vector.extract_strided_slice %7 {offsets = [128, 0], sizes = [32, 128], strides = [1, 1]} : vector<256x128xf32> to vector<32x128xf32>
    %c4 = arith.constant 4 : index
    %c0_15 = arith.constant 0 : index
    %c0_16 = arith.constant 0 : index
    %25 = vector.load %arg11[%c4, %c0_15, %c0_16] : memref<8x32x128xf32, #tpu.memory_space<vmem>>, vector<1x32x128xf32>
    %26 = vector.shape_cast %25 : vector<1x32x128xf32> to vector<32x128xf32>
    %27 = vector.shape_cast %24 : vector<32x128xf32> to vector<1x32x128xf32>
    tpu.vector_store %arg11[%c4, %c0_15, %c0_16], %27 {strides = array<i32>} : memref<8x32x128xf32, #tpu.memory_space<vmem>>, vector<1x32x128xf32>,
    %28 = vector.extract_strided_slice %7 {offsets = [160, 0], sizes = [32, 128], strides = [1, 1]} : vector<256x128xf32> to vector<32x128xf32>
    %c5 = arith.constant 5 : index
    %c0_17 = arith.constant 0 : index
    %c0_18 = arith.constant 0 : index
    %29 = vector.load %arg11[%c5, %c0_17, %c0_18] : memref<8x32x128xf32, #tpu.memory_space<vmem>>, vector<1x32x128xf32>
    %30 = vector.shape_cast %29 : vector<1x32x128xf32> to vector<32x128xf32>
    %31 = vector.shape_cast %28 : vector<32x128xf32> to vector<1x32x128xf32>
    tpu.vector_store %arg11[%c5, %c0_17, %c0_18], %31 {strides = array<i32>} : memref<8x32x128xf32, #tpu.memory_space<vmem>>, vector<1x32x128xf32>,
    %32 = vector.extract_strided_slice %7 {offsets = [192, 0], sizes = [32, 128], strides = [1, 1]} : vector<256x128xf32> to vector<32x128xf32>
    %c6 = arith.constant 6 : index
    %c0_19 = arith.constant 0 : index
    %c0_20 = arith.constant 0 : index
    %33 = vector.load %arg11[%c6, %c0_19, %c0_20] : memref<8x32x128xf32, #tpu.memory_space<vmem>>, vector<1x32x128xf32>
    %34 = vector.shape_cast %33 : vector<1x32x128xf32> to vector<32x128xf32>
    %35 = vector.shape_cast %32 : vector<32x128xf32> to vector<1x32x128xf32>
    tpu.vector_store %arg11[%c6, %c0_19, %c0_20], %35 {strides = array<i32>} : memref<8x32x128xf32, #tpu.memory_space<vmem>>, vector<1x32x128xf32>,
    %36 = vector.extract_strided_slice %7 {offsets = [224, 0], sizes = [32, 128], strides = [1, 1]} : vector<256x128xf32> to vector<32x128xf32>
    %c7 = arith.constant 7 : index
    %c0_21 = arith.constant 0 : index
    %c0_22 = arith.constant 0 : index
    %37 = vector.load %arg11[%c7, %c0_21, %c0_22] : memref<8x32x128xf32, #tpu.memory_space<vmem>>, vector<1x32x128xf32>
    %38 = vector.shape_cast %37 : vector<1x32x128xf32> to vector<32x128xf32>
    %39 = vector.shape_cast %36 : vector<32x128xf32> to vector<1x32x128xf32>
    tpu.vector_store %arg11[%c7, %c0_21, %c0_22], %39 {strides = array<i32>} : memref<8x32x128xf32, #tpu.memory_space<vmem>>, vector<1x32x128xf32>,
    %c0_23 = arith.constant 0 : index
    %c0_24 = arith.constant 0 : index
    %c0_25 = arith.constant 0 : index
    %40 = vector.load %arg11[%c0_23, %c0_24, %c0_25] : memref<8x32x128xf32, #tpu.memory_space<vmem>>, vector<8x15x128xf32>
    %cst_26 = arith.constant 0.000000e+00 : f32
    %41 = vector.broadcast %cst_26 : f32 to vector<8x256xf32>
    %42 = vector.extract_strided_slice %40 {offsets = [0, 0, 0], sizes = [8, 1, 128], strides = [1, 1, 1]} : vector<8x15x128xf32> to vector<8x1x128xf32>
    %43 = vector.shape_cast %42 : vector<8x1x128xf32> to vector<8x128xf32>
    %44 = arith.truncf %43 : vector<8x128xf32> to vector<8x128xbf16>
    %c0_27 = arith.constant 0 : index
    %c0_28 = arith.constant 0 : index
    %c0_29 = arith.constant 0 : index
    %45 = vector.load %arg4[%c0_27, %c0_28, %c0_29] : memref<15x128x256xbf16, #tpu.memory_space<vmem>>, vector<1x128x256xbf16>
    %46 = vector.shape_cast %45 : vector<1x128x256xbf16> to vector<128x256xbf16>
    %cst_30 = arith.constant dense<0.000000e+00> : vector<8x256xf32>
    %47 = tpu.matmul %44, %46, %cst_30 {dimension_numbers = #tpu.dot_dimension_numbers<[1], [0], [0], [1], [0, 0, 1, 1], [], []>} : vector<8x128xbf16>, vector<128x256xbf16>, vector<8x256xf32> -> vector<8x256xf32>
    %48 = arith.addf %41, %47 : vector<8x256xf32>
    %49 = vector.extract_strided_slice %40 {offsets = [0, 1, 0], sizes = [8, 1, 128], strides = [1, 1, 1]} : vector<8x15x128xf32> to vector<8x1x128xf32>
    %50 = vector.shape_cast %49 : vector<8x1x128xf32> to vector<8x128xf32>
    %51 = arith.truncf %50 : vector<8x128xf32> to vector<8x128xbf16>
    %c1_31 = arith.constant 1 : index
    %c0_32 = arith.constant 0 : index
    %c0_33 = arith.constant 0 : index
    %52 = vector.load %arg4[%c1_31, %c0_32, %c0_33] : memref<15x128x256xbf16, #tpu.memory_space<vmem>>, vector<1x128x256xbf16>
    %53 = vector.shape_cast %52 : vector<1x128x256xbf16> to vector<128x256xbf16>
    %cst_34 = arith.constant dense<0.000000e+00> : vector<8x256xf32>
    %54 = tpu.matmul %51, %53, %cst_34 {dimension_numbers = #tpu.dot_dimension_numbers<[1], [0], [0], [1], [0, 0, 1, 1], [], []>} : vector<8x128xbf16>, vector<128x256xbf16>, vector<8x256xf32> -> vector<8x256xf32>
    %55 = arith.addf %48, %54 : vector<8x256xf32>
    %56 = vector.extract_strided_slice %40 {offsets = [0, 2, 0], sizes = [8, 1, 128], strides = [1, 1, 1]} : vector<8x15x128xf32> to vector<8x1x128xf32>
    %57 = vector.shape_cast %56 : vector<8x1x128xf32> to vector<8x128xf32>
    %58 = arith.truncf %57 : vector<8x128xf32> to vector<8x128xbf16>
    %c2_35 = arith.constant 2 : index
    %c0_36 = arith.constant 0 : index
    %c0_37 = arith.constant 0 : index
    %59 = vector.load %arg4[%c2_35, %c0_36, %c0_37] : memref<15x128x256xbf16, #tpu.memory_space<vmem>>, vector<1x128x256xbf16>
    %60 = vector.shape_cast %59 : vector<1x128x256xbf16> to vector<128x256xbf16>
    %cst_38 = arith.constant dense<0.000000e+00> : vector<8x256xf32>
    %61 = tpu.matmul %58, %60, %cst_38 {dimension_numbers = #tpu.dot_dimension_numbers<[1], [0], [0], [1], [0, 0, 1, 1], [], []>} : vector<8x128xbf16>, vector<128x256xbf16>, vector<8x256xf32> -> vector<8x256xf32>
    %62 = arith.addf %55, %61 : vector<8x256xf32>
    %63 = vector.extract_strided_slice %40 {offsets = [0, 3, 0], sizes = [8, 1, 128], strides = [1, 1, 1]} : vector<8x15x128xf32> to vector<8x1x128xf32>
    %64 = vector.shape_cast %63 : vector<8x1x128xf32> to vector<8x128xf32>
    %65 = arith.truncf %64 : vector<8x128xf32> to vector<8x128xbf16>
    %c3_39 = arith.constant 3 : index
    %c0_40 = arith.constant 0 : index
    %c0_41 = arith.constant 0 : index
    %66 = vector.load %arg4[%c3_39, %c0_40, %c0_41] : memref<15x128x256xbf16, #tpu.memory_space<vmem>>, vector<1x128x256xbf16>
    %67 = vector.shape_cast %66 : vector<1x128x256xbf16> to vector<128x256xbf16>
    %cst_42 = arith.constant dense<0.000000e+00> : vector<8x256xf32>
    %68 = tpu.matmul %65, %67, %cst_42 {dimension_numbers = #tpu.dot_dimension_numbers<[1], [0], [0], [1], [0, 0, 1, 1], [], []>} : vector<8x128xbf16>, vector<128x256xbf16>, vector<8x256xf32> -> vector<8x256xf32>
    %69 = arith.addf %62, %68 : vector<8x256xf32>
    %70 = vector.extract_strided_slice %40 {offsets = [0, 4, 0], sizes = [8, 1, 128], strides = [1, 1, 1]} : vector<8x15x128xf32> to vector<8x1x128xf32>
    %71 = vector.shape_cast %70 : vector<8x1x128xf32> to vector<8x128xf32>
    %72 = arith.truncf %71 : vector<8x128xf32> to vector<8x128xbf16>
    %c4_43 = arith.constant 4 : index
    %c0_44 = arith.constant 0 : index
    %c0_45 = arith.constant 0 : index
    %73 = vector.load %arg4[%c4_43, %c0_44, %c0_45] : memref<15x128x256xbf16, #tpu.memory_space<vmem>>, vector<1x128x256xbf16>
    %74 = vector.shape_cast %73 : vector<1x128x256xbf16> to vector<128x256xbf16>
    %cst_46 = arith.constant dense<0.000000e+00> : vector<8x256xf32>
    %75 = tpu.matmul %72, %74, %cst_46 {dimension_numbers = #tpu.dot_dimension_numbers<[1], [0], [0], [1], [0, 0, 1, 1], [], []>} : vector<8x128xbf16>, vector<128x256xbf16>, vector<8x256xf32> -> vector<8x256xf32>
    %76 = arith.addf %69, %75 : vector<8x256xf32>
    %77 = vector.extract_strided_slice %40 {offsets = [0, 5, 0], sizes = [8, 1, 128], strides = [1, 1, 1]} : vector<8x15x128xf32> to vector<8x1x128xf32>
    %78 = vector.shape_cast %77 : vector<8x1x128xf32> to vector<8x128xf32>
    %79 = arith.truncf %78 : vector<8x128xf32> to vector<8x128xbf16>
    %c5_47 = arith.constant 5 : index
    %c0_48 = arith.constant 0 : index
    %c0_49 = arith.constant 0 : index
    %80 = vector.load %arg4[%c5_47, %c0_48, %c0_49] : memref<15x128x256xbf16, #tpu.memory_space<vmem>>, vector<1x128x256xbf16>
    %81 = vector.shape_cast %80 : vector<1x128x256xbf16> to vector<128x256xbf16>
    %cst_50 = arith.constant dense<0.000000e+00> : vector<8x256xf32>
    %82 = tpu.matmul %79, %81, %cst_50 {dimension_numbers = #tpu.dot_dimension_numbers<[1], [0], [0], [1], [0, 0, 1, 1], [], []>} : vector<8x128xbf16>, vector<128x256xbf16>, vector<8x256xf32> -> vector<8x256xf32>
    %83 = arith.addf %76, %82 : vector<8x256xf32>
    %84 = vector.extract_strided_slice %40 {offsets = [0, 6, 0], sizes = [8, 1, 128], strides = [1, 1, 1]} : vector<8x15x128xf32> to vector<8x1x128xf32>
    %85 = vector.shape_cast %84 : vector<8x1x128xf32> to vector<8x128xf32>
    %86 = arith.truncf %85 : vector<8x128xf32> to vector<8x128xbf16>
    %c6_51 = arith.constant 6 : index
    %c0_52 = arith.constant 0 : index
    %c0_53 = arith.constant 0 : index
    %87 = vector.load %arg4[%c6_51, %c0_52, %c0_53] : memref<15x128x256xbf16, #tpu.memory_space<vmem>>, vector<1x128x256xbf16>
    %88 = vector.shape_cast %87 : vector<1x128x256xbf16> to vector<128x256xbf16>
    %cst_54 = arith.constant dense<0.000000e+00> : vector<8x256xf32>
    %89 = tpu.matmul %86, %88, %cst_54 {dimension_numbers = #tpu.dot_dimension_numbers<[1], [0], [0], [1], [0, 0, 1, 1], [], []>} : vector<8x128xbf16>, vector<128x256xbf16>, vector<8x256xf32> -> vector<8x256xf32>
    %90 = arith.addf %83, %89 : vector<8x256xf32>
    %91 = vector.extract_strided_slice %40 {offsets = [0, 7, 0], sizes = [8, 1, 128], strides = [1, 1, 1]} : vector<8x15x128xf32> to vector<8x1x128xf32>
    %92 = vector.shape_cast %91 : vector<8x1x128xf32> to vector<8x128xf32>
    %93 = arith.truncf %92 : vector<8x128xf32> to vector<8x128xbf16>
    %c7_55 = arith.constant 7 : index
    %c0_56 = arith.constant 0 : index
    %c0_57 = arith.constant 0 : index
    %94 = vector.load %arg4[%c7_55, %c0_56, %c0_57] : memref<15x128x256xbf16, #tpu.memory_space<vmem>>, vector<1x128x256xbf16>
    %95 = vector.shape_cast %94 : vector<1x128x256xbf16> to vector<128x256xbf16>
    %cst_58 = arith.constant dense<0.000000e+00> : vector<8x256xf32>
    %96 = tpu.matmul %93, %95, %cst_58 {dimension_numbers = #tpu.dot_dimension_numbers<[1], [0], [0], [1], [0, 0, 1, 1], [], []>} : vector<8x128xbf16>, vector<128x256xbf16>, vector<8x256xf32> -> vector<8x256xf32>
    %97 = arith.addf %90, %96 : vector<8x256xf32>
    %98 = vector.extract_strided_slice %40 {offsets = [0, 8, 0], sizes = [8, 1, 128], strides = [1, 1, 1]} : vector<8x15x128xf32> to vector<8x1x128xf32>
    %99 = vector.shape_cast %98 : vector<8x1x128xf32> to vector<8x128xf32>
    %100 = arith.truncf %99 : vector<8x128xf32> to vector<8x128xbf16>
    %c8 = arith.constant 8 : index
    %c0_59 = arith.constant 0 : index
    %c0_60 = arith.constant 0 : index
    %101 = vector.load %arg4[%c8, %c0_59, %c0_60] : memref<15x128x256xbf16, #tpu.memory_space<vmem>>, vector<1x128x256xbf16>
    %102 = vector.shape_cast %101 : vector<1x128x256xbf16> to vector<128x256xbf16>
    %cst_61 = arith.constant dense<0.000000e+00> : vector<8x256xf32>
    %103 = tpu.matmul %100, %102, %cst_61 {dimension_numbers = #tpu.dot_dimension_numbers<[1], [0], [0], [1], [0, 0, 1, 1], [], []>} : vector<8x128xbf16>, vector<128x256xbf16>, vector<8x256xf32> -> vector<8x256xf32>
    %104 = arith.addf %97, %103 : vector<8x256xf32>
    %105 = vector.extract_strided_slice %40 {offsets = [0, 9, 0], sizes = [8, 1, 128], strides = [1, 1, 1]} : vector<8x15x128xf32> to vector<8x1x128xf32>
    %106 = vector.shape_cast %105 : vector<8x1x128xf32> to vector<8x128xf32>
    %107 = arith.truncf %106 : vector<8x128xf32> to vector<8x128xbf16>
    %c9 = arith.constant 9 : index
    %c0_62 = arith.constant 0 : index
    %c0_63 = arith.constant 0 : index
    %108 = vector.load %arg4[%c9, %c0_62, %c0_63] : memref<15x128x256xbf16, #tpu.memory_space<vmem>>, vector<1x128x256xbf16>
    %109 = vector.shape_cast %108 : vector<1x128x256xbf16> to vector<128x256xbf16>
    %cst_64 = arith.constant dense<0.000000e+00> : vector<8x256xf32>
    %110 = tpu.matmul %107, %109, %cst_64 {dimension_numbers = #tpu.dot_dimension_numbers<[1], [0], [0], [1], [0, 0, 1, 1], [], []>} : vector<8x128xbf16>, vector<128x256xbf16>, vector<8x256xf32> -> vector<8x256xf32>
    %111 = arith.addf %104, %110 : vector<8x256xf32>
    %112 = vector.extract_strided_slice %40 {offsets = [0, 10, 0], sizes = [8, 1, 128], strides = [1, 1, 1]} : vector<8x15x128xf32> to vector<8x1x128xf32>
    %113 = vector.shape_cast %112 : vector<8x1x128xf32> to vector<8x128xf32>
    %114 = arith.truncf %113 : vector<8x128xf32> to vector<8x128xbf16>
    %c10 = arith.constant 10 : index
    %c0_65 = arith.constant 0 : index
    %c0_66 = arith.constant 0 : index
    %115 = vector.load %arg4[%c10, %c0_65, %c0_66] : memref<15x128x256xbf16, #tpu.memory_space<vmem>>, vector<1x128x256xbf16>
    %116 = vector.shape_cast %115 : vector<1x128x256xbf16> to vector<128x256xbf16>
    %cst_67 = arith.constant dense<0.000000e+00> : vector<8x256xf32>
    %117 = tpu.matmul %114, %116, %cst_67 {dimension_numbers = #tpu.dot_dimension_numbers<[1], [0], [0], [1], [0, 0, 1, 1], [], []>} : vector<8x128xbf16>, vector<128x256xbf16>, vector<8x256xf32> -> vector<8x256xf32>
    %118 = arith.addf %111, %117 : vector<8x256xf32>
    %119 = vector.extract_strided_slice %40 {offsets = [0, 11, 0], sizes = [8, 1, 128], strides = [1, 1, 1]} : vector<8x15x128xf32> to vector<8x1x128xf32>
    %120 = vector.shape_cast %119 : vector<8x1x128xf32> to vector<8x128xf32>
    %121 = arith.truncf %120 : vector<8x128xf32> to vector<8x128xbf16>
    %c11 = arith.constant 11 : index
    %c0_68 = arith.constant 0 : index
    %c0_69 = arith.constant 0 : index
    %122 = vector.load %arg4[%c11, %c0_68, %c0_69] : memref<15x128x256xbf16, #tpu.memory_space<vmem>>, vector<1x128x256xbf16>
    %123 = vector.shape_cast %122 : vector<1x128x256xbf16> to vector<128x256xbf16>
    %cst_70 = arith.constant dense<0.000000e+00> : vector<8x256xf32>
    %124 = tpu.matmul %121, %123, %cst_70 {dimension_numbers = #tpu.dot_dimension_numbers<[1], [0], [0], [1], [0, 0, 1, 1], [], []>} : vector<8x128xbf16>, vector<128x256xbf16>, vector<8x256xf32> -> vector<8x256xf32>
    %125 = arith.addf %118, %124 : vector<8x256xf32>
    %126 = vector.extract_strided_slice %40 {offsets = [0, 12, 0], sizes = [8, 1, 128], strides = [1, 1, 1]} : vector<8x15x128xf32> to vector<8x1x128xf32>
    %127 = vector.shape_cast %126 : vector<8x1x128xf32> to vector<8x128xf32>
    %128 = arith.truncf %127 : vector<8x128xf32> to vector<8x128xbf16>
    %c12 = arith.constant 12 : index
    %c0_71 = arith.constant 0 : index
    %c0_72 = arith.constant 0 : index
    %129 = vector.load %arg4[%c12, %c0_71, %c0_72] : memref<15x128x256xbf16, #tpu.memory_space<vmem>>, vector<1x128x256xbf16>
    %130 = vector.shape_cast %129 : vector<1x128x256xbf16> to vector<128x256xbf16>
    %cst_73 = arith.constant dense<0.000000e+00> : vector<8x256xf32>
    %131 = tpu.matmul %128, %130, %cst_73 {dimension_numbers = #tpu.dot_dimension_numbers<[1], [0], [0], [1], [0, 0, 1, 1], [], []>} : vector<8x128xbf16>, vector<128x256xbf16>, vector<8x256xf32> -> vector<8x256xf32>
    %132 = arith.addf %125, %131 : vector<8x256xf32>
    %133 = vector.extract_strided_slice %40 {offsets = [0, 13, 0], sizes = [8, 1, 128], strides = [1, 1, 1]} : vector<8x15x128xf32> to vector<8x1x128xf32>
    %134 = vector.shape_cast %133 : vector<8x1x128xf32> to vector<8x128xf32>
    %135 = arith.truncf %134 : vector<8x128xf32> to vector<8x128xbf16>
    %c13 = arith.constant 13 : index
    %c0_74 = arith.constant 0 : index
    %c0_75 = arith.constant 0 : index
    %136 = vector.load %arg4[%c13, %c0_74, %c0_75] : memref<15x128x256xbf16, #tpu.memory_space<vmem>>, vector<1x128x256xbf16>
    %137 = vector.shape_cast %136 : vector<1x128x256xbf16> to vector<128x256xbf16>
    %cst_76 = arith.constant dense<0.000000e+00> : vector<8x256xf32>
    %138 = tpu.matmul %135, %137, %cst_76 {dimension_numbers = #tpu.dot_dimension_numbers<[1], [0], [0], [1], [0, 0, 1, 1], [], []>} : vector<8x128xbf16>, vector<128x256xbf16>, vector<8x256xf32> -> vector<8x256xf32>
    %139 = arith.addf %132, %138 : vector<8x256xf32>
    %140 = vector.extract_strided_slice %40 {offsets = [0, 14, 0], sizes = [8, 1, 128], strides = [1, 1, 1]} : vector<8x15x128xf32> to vector<8x1x128xf32>
    %141 = vector.shape_cast %140 : vector<8x1x128xf32> to vector<8x128xf32>
    %142 = arith.truncf %141 : vector<8x128xf32> to vector<8x128xbf16>
    %c14 = arith.constant 14 : index
    %c0_77 = arith.constant 0 : index
    %c0_78 = arith.constant 0 : index
    %143 = vector.load %arg4[%c14, %c0_77, %c0_78] : memref<15x128x256xbf16, #tpu.memory_space<vmem>>, vector<1x128x256xbf16>
    %144 = vector.shape_cast %143 : vector<1x128x256xbf16> to vector<128x256xbf16>
    %cst_79 = arith.constant dense<0.000000e+00> : vector<8x256xf32>
    %145 = tpu.matmul %142, %144, %cst_79 {dimension_numbers = #tpu.dot_dimension_numbers<[1], [0], [0], [1], [0, 0, 1, 1], [], []>} : vector<8x128xbf16>, vector<128x256xbf16>, vector<8x256xf32> -> vector<8x256xf32>
    %146 = arith.addf %139, %145 : vector<8x256xf32>
    %c0_80 = arith.constant 0 : index
    %c0_81 = arith.constant 0 : index
    %147 = vector.load %arg5[%c0_80, %c0_81] : memref<1x256xf32, #tpu.memory_space<vmem>>, vector<1x256xf32>
    %148 = vector.broadcast %147 : vector<1x256xf32> to vector<8x256xf32>
    %149 = arith.addf %146, %148 : vector<8x256xf32>
    %cst_82 = arith.constant 0.000000e+00 : f32
    %150 = vector.broadcast %cst_82 : f32 to vector<8x256xf32>
    %151 = arith.maximumf %149, %150 : vector<8x256xf32>
    %c0_83 = arith.constant 0 : index
    %c0_84 = arith.constant 0 : index
    %c0_85 = arith.constant 0 : index
    %152 = vector.load %arg12[%c0_83, %c0_84, %c0_85] : memref<8x8x256xf32, #tpu.memory_space<vmem>>, vector<8x1x256xf32>
    %153 = vector.shape_cast %152 : vector<8x1x256xf32> to vector<8x256xf32>
    %154 = vector.shape_cast %151 : vector<8x256xf32> to vector<8x1x256xf32>
    tpu.vector_store %arg12[%c0_83, %c0_84, %c0_85], %154 {strides = array<i32>} : memref<8x8x256xf32, #tpu.memory_space<vmem>>, vector<8x1x256xf32>,
    %c0_86 = arith.constant 0 : index
    %c7_87 = arith.constant 7 : index
    %c0_88 = arith.constant 0 : index
    %155 = vector.load %arg11[%c0_86, %c7_87, %c0_88] : memref<8x32x128xf32, #tpu.memory_space<vmem>>, vector<8x15x128xf32>
    %cst_89 = arith.constant 0.000000e+00 : f32
    %156 = vector.broadcast %cst_89 : f32 to vector<8x256xf32>
    %157 = vector.extract_strided_slice %155 {offsets = [0, 0, 0], sizes = [8, 1, 128], strides = [1, 1, 1]} : vector<8x15x128xf32> to vector<8x1x128xf32>
    %158 = vector.shape_cast %157 : vector<8x1x128xf32> to vector<8x128xf32>
    %159 = arith.truncf %158 : vector<8x128xf32> to vector<8x128xbf16>
    %c0_90 = arith.constant 0 : index
    %c0_91 = arith.constant 0 : index
    %c0_92 = arith.constant 0 : index
    %160 = vector.load %arg4[%c0_90, %c0_91, %c0_92] : memref<15x128x256xbf16, #tpu.memory_space<vmem>>, vector<1x128x256xbf16>
    %161 = vector.shape_cast %160 : vector<1x128x256xbf16> to vector<128x256xbf16>
    %cst_93 = arith.constant dense<0.000000e+00> : vector<8x256xf32>
    %162 = tpu.matmul %159, %161, %cst_93 {dimension_numbers = #tpu.dot_dimension_numbers<[1], [0], [0], [1], [0, 0, 1, 1], [], []>} : vector<8x128xbf16>, vector<128x256xbf16>, vector<8x256xf32> -> vector<8x256xf32>
    %163 = arith.addf %156, %162 : vector<8x256xf32>
    %164 = vector.extract_strided_slice %155 {offsets = [0, 1, 0], sizes = [8, 1, 128], strides = [1, 1, 1]} : vector<8x15x128xf32> to vector<8x1x128xf32>
    %165 = vector.shape_cast %164 : vector<8x1x128xf32> to vector<8x128xf32>
    %166 = arith.truncf %165 : vector<8x128xf32> to vector<8x128xbf16>
    %c1_94 = arith.constant 1 : index
    %c0_95 = arith.constant 0 : index
    %c0_96 = arith.constant 0 : index
    %167 = vector.load %arg4[%c1_94, %c0_95, %c0_96] : memref<15x128x256xbf16, #tpu.memory_space<vmem>>, vector<1x128x256xbf16>
    %168 = vector.shape_cast %167 : vector<1x128x256xbf16> to vector<128x256xbf16>
    %cst_97 = arith.constant dense<0.000000e+00> : vector<8x256xf32>
    %169 = tpu.matmul %166, %168, %cst_97 {dimension_numbers = #tpu.dot_dimension_numbers<[1], [0], [0], [1], [0, 0, 1, 1], [], []>} : vector<8x128xbf16>, vector<128x256xbf16>, vector<8x256xf32> -> vector<8x256xf32>
    %170 = arith.addf %163, %169 : vector<8x256xf32>
    %171 = vector.extract_strided_slice %155 {offsets = [0, 2, 0], sizes = [8, 1, 128], strides = [1, 1, 1]} : vector<8x15x128xf32> to vector<8x1x128xf32>
    %172 = vector.shape_cast %171 : vector<8x1x128xf32> to vector<8x128xf32>
    %173 = arith.truncf %172 : vector<8x128xf32> to vector<8x128xbf16>
    %c2_98 = arith.constant 2 : index
    %c0_99 = arith.constant 0 : index
    %c0_100 = arith.constant 0 : index
    %174 = vector.load %arg4[%c2_98, %c0_99, %c0_100] : memref<15x128x256xbf16, #tpu.memory_space<vmem>>, vector<1x128x256xbf16>
    %175 = vector.shape_cast %174 : vector<1x128x256xbf16> to vector<128x256xbf16>
    %cst_101 = arith.constant dense<0.000000e+00> : vector<8x256xf32>
    %176 = tpu.matmul %173, %175, %cst_101 {dimension_numbers = #tpu.dot_dimension_numbers<[1], [0], [0], [1], [0, 0, 1, 1], [], []>} : vector<8x128xbf16>, vector<128x256xbf16>, vector<8x256xf32> -> vector<8x256xf32>
    %177 = arith.addf %170, %176 : vector<8x256xf32>
    %178 = vector.extract_strided_slice %155 {offsets = [0, 3, 0], sizes = [8, 1, 128], strides = [1, 1, 1]} : vector<8x15x128xf32> to vector<8x1x128xf32>
    %179 = vector.shape_cast %178 : vector<8x1x128xf32> to vector<8x128xf32>
    %180 = arith.truncf %179 : vector<8x128xf32> to vector<8x128xbf16>
    %c3_102 = arith.constant 3 : index
    %c0_103 = arith.constant 0 : index
    %c0_104 = arith.constant 0 : index
    %181 = vector.load %arg4[%c3_102, %c0_103, %c0_104] : memref<15x128x256xbf16, #tpu.memory_space<vmem>>, vector<1x128x256xbf16>
    %182 = vector.shape_cast %181 : vector<1x128x256xbf16> to vector<128x256xbf16>
    %cst_105 = arith.constant dense<0.000000e+00> : vector<8x256xf32>
    %183 = tpu.matmul %180, %182, %cst_105 {dimension_numbers = #tpu.dot_dimension_numbers<[1], [0], [0], [1], [0, 0, 1, 1], [], []>} : vector<8x128xbf16>, vector<128x256xbf16>, vector<8x256xf32> -> vector<8x256xf32>
    %184 = arith.addf %177, %183 : vector<8x256xf32>
    %185 = vector.extract_strided_slice %155 {offsets = [0, 4, 0], sizes = [8, 1, 128], strides = [1, 1, 1]} : vector<8x15x128xf32> to vector<8x1x128xf32>
    %186 = vector.shape_cast %185 : vector<8x1x128xf32> to vector<8x128xf32>
    %187 = arith.truncf %186 : vector<8x128xf32> to vector<8x128xbf16>
    %c4_106 = arith.constant 4 : index
    %c0_107 = arith.constant 0 : index
    %c0_108 = arith.constant 0 : index
    %188 = vector.load %arg4[%c4_106, %c0_107, %c0_108] : memref<15x128x256xbf16, #tpu.memory_space<vmem>>, vector<1x128x256xbf16>
    %189 = vector.shape_cast %188 : vector<1x128x256xbf16> to vector<128x256xbf16>
    %cst_109 = arith.constant dense<0.000000e+00> : vector<8x256xf32>
    %190 = tpu.matmul %187, %189, %cst_109 {dimension_numbers = #tpu.dot_dimension_numbers<[1], [0], [0], [1], [0, 0, 1, 1], [], []>} : vector<8x128xbf16>, vector<128x256xbf16>, vector<8x256xf32> -> vector<8x256xf32>
    %191 = arith.addf %184, %190 : vector<8x256xf32>
    %192 = vector.extract_strided_slice %155 {offsets = [0, 5, 0], sizes = [8, 1, 128], strides = [1, 1, 1]} : vector<8x15x128xf32> to vector<8x1x128xf32>
    %193 = vector.shape_cast %192 : vector<8x1x128xf32> to vector<8x128xf32>
    %194 = arith.truncf %193 : vector<8x128xf32> to vector<8x128xbf16>
    %c5_110 = arith.constant 5 : index
    %c0_111 = arith.constant 0 : index
    %c0_112 = arith.constant 0 : index
    %195 = vector.load %arg4[%c5_110, %c0_111, %c0_112] : memref<15x128x256xbf16, #tpu.memory_space<vmem>>, vector<1x128x256xbf16>
    %196 = vector.shape_cast %195 : vector<1x128x256xbf16> to vector<128x256xbf16>
    %cst_113 = arith.constant dense<0.000000e+00> : vector<8x256xf32>
    %197 = tpu.matmul %194, %196, %cst_113 {dimension_numbers = #tpu.dot_dimension_numbers<[1], [0], [0], [1], [0, 0, 1, 1], [], []>} : vector<8x128xbf16>, vector<128x256xbf16>, vector<8x256xf32> -> vector<8x256xf32>
    %198 = arith.addf %191, %197 : vector<8x256xf32>
    %199 = vector.extract_strided_slice %155 {offsets = [0, 6, 0], sizes = [8, 1, 128], strides = [1, 1, 1]} : vector<8x15x128xf32> to vector<8x1x128xf32>
    %200 = vector.shape_cast %199 : vector<8x1x128xf32> to vector<8x128xf32>
    %201 = arith.truncf %200 : vector<8x128xf32> to vector<8x128xbf16>
    %c6_114 = arith.constant 6 : index
    %c0_115 = arith.constant 0 : index
    %c0_116 = arith.constant 0 : index
    %202 = vector.load %arg4[%c6_114, %c0_115, %c0_116] : memref<15x128x256xbf16, #tpu.memory_space<vmem>>, vector<1x128x256xbf16>
    %203 = vector.shape_cast %202 : vector<1x128x256xbf16> to vector<128x256xbf16>
    %cst_117 = arith.constant dense<0.000000e+00> : vector<8x256xf32>
    %204 = tpu.matmul %201, %203, %cst_117 {dimension_numbers = #tpu.dot_dimension_numbers<[1], [0], [0], [1], [0, 0, 1, 1], [], []>} : vector<8x128xbf16>, vector<128x256xbf16>, vector<8x256xf32> -> vector<8x256xf32>
    %205 = arith.addf %198, %204 : vector<8x256xf32>
    %206 = vector.extract_strided_slice %155 {offsets = [0, 7, 0], sizes = [8, 1, 128], strides = [1, 1, 1]} : vector<8x15x128xf32> to vector<8x1x128xf32>
    %207 = vector.shape_cast %206 : vector<8x1x128xf32> to vector<8x128xf32>
    %208 = arith.truncf %207 : vector<8x128xf32> to vector<8x128xbf16>
    %c7_118 = arith.constant 7 : index
    %c0_119 = arith.constant 0 : index
    %c0_120 = arith.constant 0 : index
    %209 = vector.load %arg4[%c7_118, %c0_119, %c0_120] : memref<15x128x256xbf16, #tpu.memory_space<vmem>>, vector<1x128x256xbf16>
    %210 = vector.shape_cast %209 : vector<1x128x256xbf16> to vector<128x256xbf16>
    %cst_121 = arith.constant dense<0.000000e+00> : vector<8x256xf32>
    %211 = tpu.matmul %208, %210, %cst_121 {dimension_numbers = #tpu.dot_dimension_numbers<[1], [0], [0], [1], [0, 0, 1, 1], [], []>} : vector<8x128xbf16>, vector<128x256xbf16>, vector<8x256xf32> -> vector<8x256xf32>
    %212 = arith.addf %205, %211 : vector<8x256xf32>
    %213 = vector.extract_strided_slice %155 {offsets = [0, 8, 0], sizes = [8, 1, 128], strides = [1, 1, 1]} : vector<8x15x128xf32> to vector<8x1x128xf32>
    %214 = vector.shape_cast %213 : vector<8x1x128xf32> to vector<8x128xf32>
    %215 = arith.truncf %214 : vector<8x128xf32> to vector<8x128xbf16>
    %c8_122 = arith.constant 8 : index
    %c0_123 = arith.constant 0 : index
    %c0_124 = arith.constant 0 : index
    %216 = vector.load %arg4[%c8_122, %c0_123, %c0_124] : memref<15x128x256xbf16, #tpu.memory_space<vmem>>, vector<1x128x256xbf16>
    %217 = vector.shape_cast %216 : vector<1x128x256xbf16> to vector<128x256xbf16>
    %cst_125 = arith.constant dense<0.000000e+00> : vector<8x256xf32>
    %218 = tpu.matmul %215, %217, %cst_125 {dimension_numbers = #tpu.dot_dimension_numbers<[1], [0], [0], [1], [0, 0, 1, 1], [], []>} : vector<8x128xbf16>, vector<128x256xbf16>, vector<8x256xf32> -> vector<8x256xf32>
    %219 = arith.addf %212, %218 : vector<8x256xf32>
    %220 = vector.extract_strided_slice %155 {offsets = [0, 9, 0], sizes = [8, 1, 128], strides = [1, 1, 1]} : vector<8x15x128xf32> to vector<8x1x128xf32>
    %221 = vector.shape_cast %220 : vector<8x1x128xf32> to vector<8x128xf32>
    %222 = arith.truncf %221 : vector<8x128xf32> to vector<8x128xbf16>
    %c9_126 = arith.constant 9 : index
    %c0_127 = arith.constant 0 : index
    %c0_128 = arith.constant 0 : index
    %223 = vector.load %arg4[%c9_126, %c0_127, %c0_128] : memref<15x128x256xbf16, #tpu.memory_space<vmem>>, vector<1x128x256xbf16>
    %224 = vector.shape_cast %223 : vector<1x128x256xbf16> to vector<128x256xbf16>
    %cst_129 = arith.constant dense<0.000000e+00> : vector<8x256xf32>
    %225 = tpu.matmul %222, %224, %cst_129 {dimension_numbers = #tpu.dot_dimension_numbers<[1], [0], [0], [1], [0, 0, 1, 1], [], []>} : vector<8x128xbf16>, vector<128x256xbf16>, vector<8x256xf32> -> vector<8x256xf32>
    %226 = arith.addf %219, %225 : vector<8x256xf32>
    %227 = vector.extract_strided_slice %155 {offsets = [0, 10, 0], sizes = [8, 1, 128], strides = [1, 1, 1]} : vector<8x15x128xf32> to vector<8x1x128xf32>
    %228 = vector.shape_cast %227 : vector<8x1x128xf32> to vector<8x128xf32>
    %229 = arith.truncf %228 : vector<8x128xf32> to vector<8x128xbf16>
    %c10_130 = arith.constant 10 : index
    %c0_131 = arith.constant 0 : index
    %c0_132 = arith.constant 0 : index
    %230 = vector.load %arg4[%c10_130, %c0_131, %c0_132] : memref<15x128x256xbf16, #tpu.memory_space<vmem>>, vector<1x128x256xbf16>
    %231 = vector.shape_cast %230 : vector<1x128x256xbf16> to vector<128x256xbf16>
    %cst_133 = arith.constant dense<0.000000e+00> : vector<8x256xf32>
    %232 = tpu.matmul %229, %231, %cst_133 {dimension_numbers = #tpu.dot_dimension_numbers<[1], [0], [0], [1], [0, 0, 1, 1], [], []>} : vector<8x128xbf16>, vector<128x256xbf16>, vector<8x256xf32> -> vector<8x256xf32>
    %233 = arith.addf %226, %232 : vector<8x256xf32>
    %234 = vector.extract_strided_slice %155 {offsets = [0, 11, 0], sizes = [8, 1, 128], strides = [1, 1, 1]} : vector<8x15x128xf32> to vector<8x1x128xf32>
    %235 = vector.shape_cast %234 : vector<8x1x128xf32> to vector<8x128xf32>
    %236 = arith.truncf %235 : vector<8x128xf32> to vector<8x128xbf16>
    %c11_134 = arith.constant 11 : index
    %c0_135 = arith.constant 0 : index
    %c0_136 = arith.constant 0 : index
    %237 = vector.load %arg4[%c11_134, %c0_135, %c0_136] : memref<15x128x256xbf16, #tpu.memory_space<vmem>>, vector<1x128x256xbf16>
    %238 = vector.shape_cast %237 : vector<1x128x256xbf16> to vector<128x256xbf16>
    %cst_137 = arith.constant dense<0.000000e+00> : vector<8x256xf32>
    %239 = tpu.matmul %236, %238, %cst_137 {dimension_numbers = #tpu.dot_dimension_numbers<[1], [0], [0], [1], [0, 0, 1, 1], [], []>} : vector<8x128xbf16>, vector<128x256xbf16>, vector<8x256xf32> -> vector<8x256xf32>
    %240 = arith.addf %233, %239 : vector<8x256xf32>
    %241 = vector.extract_strided_slice %155 {offsets = [0, 12, 0], sizes = [8, 1, 128], strides = [1, 1, 1]} : vector<8x15x128xf32> to vector<8x1x128xf32>
    %242 = vector.shape_cast %241 : vector<8x1x128xf32> to vector<8x128xf32>
    %243 = arith.truncf %242 : vector<8x128xf32> to vector<8x128xbf16>
    %c12_138 = arith.constant 12 : index
    %c0_139 = arith.constant 0 : index
    %c0_140 = arith.constant 0 : index
    %244 = vector.load %arg4[%c12_138, %c0_139, %c0_140] : memref<15x128x256xbf16, #tpu.memory_space<vmem>>, vector<1x128x256xbf16>
    %245 = vector.shape_cast %244 : vector<1x128x256xbf16> to vector<128x256xbf16>
    %cst_141 = arith.constant dense<0.000000e+00> : vector<8x256xf32>
    %246 = tpu.matmul %243, %245, %cst_141 {dimension_numbers = #tpu.dot_dimension_numbers<[1], [0], [0], [1], [0, 0, 1, 1], [], []>} : vector<8x128xbf16>, vector<128x256xbf16>, vector<8x256xf32> -> vector<8x256xf32>
    %247 = arith.addf %240, %246 : vector<8x256xf32>
    %248 = vector.extract_strided_slice %155 {offsets = [0, 13, 0], sizes = [8, 1, 128], strides = [1, 1, 1]} : vector<8x15x128xf32> to vector<8x1x128xf32>
    %249 = vector.shape_cast %248 : vector<8x1x128xf32> to vector<8x128xf32>
    %250 = arith.truncf %249 : vector<8x128xf32> to vector<8x128xbf16>
    %c13_142 = arith.constant 13 : index
    %c0_143 = arith.constant 0 : index
    %c0_144 = arith.constant 0 : index
    %251 = vector.load %arg4[%c13_142, %c0_143, %c0_144] : memref<15x128x256xbf16, #tpu.memory_space<vmem>>, vector<1x128x256xbf16>
    %252 = vector.shape_cast %251 : vector<1x128x256xbf16> to vector<128x256xbf16>
    %cst_145 = arith.constant dense<0.000000e+00> : vector<8x256xf32>
    %253 = tpu.matmul %250, %252, %cst_145 {dimension_numbers = #tpu.dot_dimension_numbers<[1], [0], [0], [1], [0, 0, 1, 1], [], []>} : vector<8x128xbf16>, vector<128x256xbf16>, vector<8x256xf32> -> vector<8x256xf32>
    %254 = arith.addf %247, %253 : vector<8x256xf32>
    %255 = vector.extract_strided_slice %155 {offsets = [0, 14, 0], sizes = [8, 1, 128], strides = [1, 1, 1]} : vector<8x15x128xf32> to vector<8x1x128xf32>
    %256 = vector.shape_cast %255 : vector<8x1x128xf32> to vector<8x128xf32>
    %257 = arith.truncf %256 : vector<8x128xf32> to vector<8x128xbf16>
    %c14_146 = arith.constant 14 : index
    %c0_147 = arith.constant 0 : index
    %c0_148 = arith.constant 0 : index
    %258 = vector.load %arg4[%c14_146, %c0_147, %c0_148] : memref<15x128x256xbf16, #tpu.memory_space<vmem>>, vector<1x128x256xbf16>
    %259 = vector.shape_cast %258 : vector<1x128x256xbf16> to vector<128x256xbf16>
    %cst_149 = arith.constant dense<0.000000e+00> : vector<8x256xf32>
    %260 = tpu.matmul %257, %259, %cst_149 {dimension_numbers = #tpu.dot_dimension_numbers<[1], [0], [0], [1], [0, 0, 1, 1], [], []>} : vector<8x128xbf16>, vector<128x256xbf16>, vector<8x256xf32> -> vector<8x256xf32>
    %261 = arith.addf %254, %260 : vector<8x256xf32>
    %c0_150 = arith.constant 0 : index
    %c0_151 = arith.constant 0 : index
    %262 = vector.load %arg5[%c0_150, %c0_151] : memref<1x256xf32, #tpu.memory_space<vmem>>, vector<1x256xf32>
    %263 = vector.broadcast %262 : vector<1x256xf32> to vector<8x256xf32>
    %264 = arith.addf %261, %263 : vector<8x256xf32>
    %cst_152 = arith.constant 0.000000e+00 : f32
    %265 = vector.broadcast %cst_152 : f32 to vector<8x256xf32>
    %266 = arith.maximumf %264, %265 : vector<8x256xf32>
    %c0_153 = arith.constant 0 : index
    %c1_154 = arith.constant 1 : index
    %c0_155 = arith.constant 0 : index
    %267 = vector.load %arg12[%c0_153, %c1_154, %c0_155] : memref<8x8x256xf32, #tpu.memory_space<vmem>>, vector<8x1x256xf32>
    %268 = vector.shape_cast %267 : vector<8x1x256xf32> to vector<8x256xf32>
    %269 = vector.shape_cast %266 : vector<8x256xf32> to vector<8x1x256xf32>
    tpu.vector_store %arg12[%c0_153, %c1_154, %c0_155], %269 {strides = array<i32>} : memref<8x8x256xf32, #tpu.memory_space<vmem>>, vector<8x1x256xf32>,
    %c0_156 = arith.constant 0 : index
    %c14_157 = arith.constant 14 : index
    %c0_158 = arith.constant 0 : index
    %270 = vector.load %arg11[%c0_156, %c14_157, %c0_158] : memref<8x32x128xf32, #tpu.memory_space<vmem>>, vector<8x15x128xf32>
    %cst_159 = arith.constant 0.000000e+00 : f32
    %271 = vector.broadcast %cst_159 : f32 to vector<8x256xf32>
    %272 = vector.extract_strided_slice %270 {offsets = [0, 0, 0], sizes = [8, 1, 128], strides = [1, 1, 1]} : vector<8x15x128xf32> to vector<8x1x128xf32>
    %273 = vector.shape_cast %272 : vector<8x1x128xf32> to vector<8x128xf32>
    %274 = arith.truncf %273 : vector<8x128xf32> to vector<8x128xbf16>
    %c0_160 = arith.constant 0 : index
    %c0_161 = arith.constant 0 : index
    %c0_162 = arith.constant 0 : index
    %275 = vector.load %arg4[%c0_160, %c0_161, %c0_162] : memref<15x128x256xbf16, #tpu.memory_space<vmem>>, vector<1x128x256xbf16>
    %276 = vector.shape_cast %275 : vector<1x128x256xbf16> to vector<128x256xbf16>
    %cst_163 = arith.constant dense<0.000000e+00> : vector<8x256xf32>
    %277 = tpu.matmul %274, %276, %cst_163 {dimension_numbers = #tpu.dot_dimension_numbers<[1], [0], [0], [1], [0, 0, 1, 1], [], []>} : vector<8x128xbf16>, vector<128x256xbf16>, vector<8x256xf32> -> vector<8x256xf32>
    %278 = arith.addf %271, %277 : vector<8x256xf32>
    %279 = vector.extract_strided_slice %270 {offsets = [0, 1, 0], sizes = [8, 1, 128], strides = [1, 1, 1]} : vector<8x15x128xf32> to vector<8x1x128xf32>
    %280 = vector.shape_cast %279 : vector<8x1x128xf32> to vector<8x128xf32>
    %281 = arith.truncf %280 : vector<8x128xf32> to vector<8x128xbf16>
    %c1_164 = arith.constant 1 : index
    %c0_165 = arith.constant 0 : index
    %c0_166 = arith.constant 0 : index
    %282 = vector.load %arg4[%c1_164, %c0_165, %c0_166] : memref<15x128x256xbf16, #tpu.memory_space<vmem>>, vector<1x128x256xbf16>
    %283 = vector.shape_cast %282 : vector<1x128x256xbf16> to vector<128x256xbf16>
    %cst_167 = arith.constant dense<0.000000e+00> : vector<8x256xf32>
    %284 = tpu.matmul %281, %283, %cst_167 {dimension_numbers = #tpu.dot_dimension_numbers<[1], [0], [0], [1], [0, 0, 1, 1], [], []>} : vector<8x128xbf16>, vector<128x256xbf16>, vector<8x256xf32> -> vector<8x256xf32>
    %285 = arith.addf %278, %284 : vector<8x256xf32>
    %286 = vector.extract_strided_slice %270 {offsets = [0, 2, 0], sizes = [8, 1, 128], strides = [1, 1, 1]} : vector<8x15x128xf32> to vector<8x1x128xf32>
    %287 = vector.shape_cast %286 : vector<8x1x128xf32> to vector<8x128xf32>
    %288 = arith.truncf %287 : vector<8x128xf32> to vector<8x128xbf16>
    %c2_168 = arith.constant 2 : index
    %c0_169 = arith.constant 0 : index
    %c0_170 = arith.constant 0 : index
    %289 = vector.load %arg4[%c2_168, %c0_169, %c0_170] : memref<15x128x256xbf16, #tpu.memory_space<vmem>>, vector<1x128x256xbf16>
    %290 = vector.shape_cast %289 : vector<1x128x256xbf16> to vector<128x256xbf16>
    %cst_171 = arith.constant dense<0.000000e+00> : vector<8x256xf32>
    %291 = tpu.matmul %288, %290, %cst_171 {dimension_numbers = #tpu.dot_dimension_numbers<[1], [0], [0], [1], [0, 0, 1, 1], [], []>} : vector<8x128xbf16>, vector<128x256xbf16>, vector<8x256xf32> -> vector<8x256xf32>
    %292 = arith.addf %285, %291 : vector<8x256xf32>
    %293 = vector.extract_strided_slice %270 {offsets = [0, 3, 0], sizes = [8, 1, 128], strides = [1, 1, 1]} : vector<8x15x128xf32> to vector<8x1x128xf32>
    %294 = vector.shape_cast %293 : vector<8x1x128xf32> to vector<8x128xf32>
    %295 = arith.truncf %294 : vector<8x128xf32> to vector<8x128xbf16>
    %c3_172 = arith.constant 3 : index
    %c0_173 = arith.constant 0 : index
    %c0_174 = arith.constant 0 : index
    %296 = vector.load %arg4[%c3_172, %c0_173, %c0_174] : memref<15x128x256xbf16, #tpu.memory_space<vmem>>, vector<1x128x256xbf16>
    %297 = vector.shape_cast %296 : vector<1x128x256xbf16> to vector<128x256xbf16>
    %cst_175 = arith.constant dense<0.000000e+00> : vector<8x256xf32>
    %298 = tpu.matmul %295, %297, %cst_175 {dimension_numbers = #tpu.dot_dimension_numbers<[1], [0], [0], [1], [0, 0, 1, 1], [], []>} : vector<8x128xbf16>, vector<128x256xbf16>, vector<8x256xf32> -> vector<8x256xf32>
    %299 = arith.addf %292, %298 : vector<8x256xf32>
    %300 = vector.extract_strided_slice %270 {offsets = [0, 4, 0], sizes = [8, 1, 128], strides = [1, 1, 1]} : vector<8x15x128xf32> to vector<8x1x128xf32>
    %301 = vector.shape_cast %300 : vector<8x1x128xf32> to vector<8x128xf32>
    %302 = arith.truncf %301 : vector<8x128xf32> to vector<8x128xbf16>
    %c4_176 = arith.constant 4 : index
    %c0_177 = arith.constant 0 : index
    %c0_178 = arith.constant 0 : index
    %303 = vector.load %arg4[%c4_176, %c0_177, %c0_178] : memref<15x128x256xbf16, #tpu.memory_space<vmem>>, vector<1x128x256xbf16>
    %304 = vector.shape_cast %303 : vector<1x128x256xbf16> to vector<128x256xbf16>
    %cst_179 = arith.constant dense<0.000000e+00> : vector<8x256xf32>
    %305 = tpu.matmul %302, %304, %cst_179 {dimension_numbers = #tpu.dot_dimension_numbers<[1], [0], [0], [1], [0, 0, 1, 1], [], []>} : vector<8x128xbf16>, vector<128x256xbf16>, vector<8x256xf32> -> vector<8x256xf32>
    %306 = arith.addf %299, %305 : vector<8x256xf32>
    %307 = vector.extract_strided_slice %270 {offsets = [0, 5, 0], sizes = [8, 1, 128], strides = [1, 1, 1]} : vector<8x15x128xf32> to vector<8x1x128xf32>
    %308 = vector.shape_cast %307 : vector<8x1x128xf32> to vector<8x128xf32>
    %309 = arith.truncf %308 : vector<8x128xf32> to vector<8x128xbf16>
    %c5_180 = arith.constant 5 : index
    %c0_181 = arith.constant 0 : index
    %c0_182 = arith.constant 0 : index
    %310 = vector.load %arg4[%c5_180, %c0_181, %c0_182] : memref<15x128x256xbf16, #tpu.memory_space<vmem>>, vector<1x128x256xbf16>
    %311 = vector.shape_cast %310 : vector<1x128x256xbf16> to vector<128x256xbf16>
    %cst_183 = arith.constant dense<0.000000e+00> : vector<8x256xf32>
    %312 = tpu.matmul %309, %311, %cst_183 {dimension_numbers = #tpu.dot_dimension_numbers<[1], [0], [0], [1], [0, 0, 1, 1], [], []>} : vector<8x128xbf16>, vector<128x256xbf16>, vector<8x256xf32> -> vector<8x256xf32>
    %313 = arith.addf %306, %312 : vector<8x256xf32>
    %314 = vector.extract_strided_slice %270 {offsets = [0, 6, 0], sizes = [8, 1, 128], strides = [1, 1, 1]} : vector<8x15x128xf32> to vector<8x1x128xf32>
    %315 = vector.shape_cast %314 : vector<8x1x128xf32> to vector<8x128xf32>
    %316 = arith.truncf %315 : vector<8x128xf32> to vector<8x128xbf16>
    %c6_184 = arith.constant 6 : index
    %c0_185 = arith.constant 0 : index
    %c0_186 = arith.constant 0 : index
    %317 = vector.load %arg4[%c6_184, %c0_185, %c0_186] : memref<15x128x256xbf16, #tpu.memory_space<vmem>>, vector<1x128x256xbf16>
    %318 = vector.shape_cast %317 : vector<1x128x256xbf16> to vector<128x256xbf16>
    %cst_187 = arith.constant dense<0.000000e+00> : vector<8x256xf32>
    %319 = tpu.matmul %316, %318, %cst_187 {dimension_numbers = #tpu.dot_dimension_numbers<[1], [0], [0], [1], [0, 0, 1, 1], [], []>} : vector<8x128xbf16>, vector<128x256xbf16>, vector<8x256xf32> -> vector<8x256xf32>
    %320 = arith.addf %313, %319 : vector<8x256xf32>
    %321 = vector.extract_strided_slice %270 {offsets = [0, 7, 0], sizes = [8, 1, 128], strides = [1, 1, 1]} : vector<8x15x128xf32> to vector<8x1x128xf32>
    %322 = vector.shape_cast %321 : vector<8x1x128xf32> to vector<8x128xf32>
    %323 = arith.truncf %322 : vector<8x128xf32> to vector<8x128xbf16>
    %c7_188 = arith.constant 7 : index
    %c0_189 = arith.constant 0 : index
    %c0_190 = arith.constant 0 : index
    %324 = vector.load %arg4[%c7_188, %c0_189, %c0_190] : memref<15x128x256xbf16, #tpu.memory_space<vmem>>, vector<1x128x256xbf16>
    %325 = vector.shape_cast %324 : vector<1x128x256xbf16> to vector<128x256xbf16>
    %cst_191 = arith.constant dense<0.000000e+00> : vector<8x256xf32>
    %326 = tpu.matmul %323, %325, %cst_191 {dimension_numbers = #tpu.dot_dimension_numbers<[1], [0], [0], [1], [0, 0, 1, 1], [], []>} : vector<8x128xbf16>, vector<128x256xbf16>, vector<8x256xf32> -> vector<8x256xf32>
    %327 = arith.addf %320, %326 : vector<8x256xf32>
    %328 = vector.extract_strided_slice %270 {offsets = [0, 8, 0], sizes = [8, 1, 128], strides = [1, 1, 1]} : vector<8x15x128xf32> to vector<8x1x128xf32>
    %329 = vector.shape_cast %328 : vector<8x1x128xf32> to vector<8x128xf32>
    %330 = arith.truncf %329 : vector<8x128xf32> to vector<8x128xbf16>
    %c8_192 = arith.constant 8 : index
    %c0_193 = arith.constant 0 : index
    %c0_194 = arith.constant 0 : index
    %331 = vector.load %arg4[%c8_192, %c0_193, %c0_194] : memref<15x128x256xbf16, #tpu.memory_space<vmem>>, vector<1x128x256xbf16>
    %332 = vector.shape_cast %331 : vector<1x128x256xbf16> to vector<128x256xbf16>
    %cst_195 = arith.constant dense<0.000000e+00> : vector<8x256xf32>
    %333 = tpu.matmul %330, %332, %cst_195 {dimension_numbers = #tpu.dot_dimension_numbers<[1], [0], [0], [1], [0, 0, 1, 1], [], []>} : vector<8x128xbf16>, vector<128x256xbf16>, vector<8x256xf32> -> vector<8x256xf32>
    %334 = arith.addf %327, %333 : vector<8x256xf32>
    %335 = vector.extract_strided_slice %270 {offsets = [0, 9, 0], sizes = [8, 1, 128], strides = [1, 1, 1]} : vector<8x15x128xf32> to vector<8x1x128xf32>
    %336 = vector.shape_cast %335 : vector<8x1x128xf32> to vector<8x128xf32>
    %337 = arith.truncf %336 : vector<8x128xf32> to vector<8x128xbf16>
    %c9_196 = arith.constant 9 : index
    %c0_197 = arith.constant 0 : index
    %c0_198 = arith.constant 0 : index
    %338 = vector.load %arg4[%c9_196, %c0_197, %c0_198] : memref<15x128x256xbf16, #tpu.memory_space<vmem>>, vector<1x128x256xbf16>
    %339 = vector.shape_cast %338 : vector<1x128x256xbf16> to vector<128x256xbf16>
    %cst_199 = arith.constant dense<0.000000e+00> : vector<8x256xf32>
    %340 = tpu.matmul %337, %339, %cst_199 {dimension_numbers = #tpu.dot_dimension_numbers<[1], [0], [0], [1], [0, 0, 1, 1], [], []>} : vector<8x128xbf16>, vector<128x256xbf16>, vector<8x256xf32> -> vector<8x256xf32>
    %341 = arith.addf %334, %340 : vector<8x256xf32>
    %342 = vector.extract_strided_slice %270 {offsets = [0, 10, 0], sizes = [8, 1, 128], strides = [1, 1, 1]} : vector<8x15x128xf32> to vector<8x1x128xf32>
    %343 = vector.shape_cast %342 : vector<8x1x128xf32> to vector<8x128xf32>
    %344 = arith.truncf %343 : vector<8x128xf32> to vector<8x128xbf16>
    %c10_200 = arith.constant 10 : index
    %c0_201 = arith.constant 0 : index
    %c0_202 = arith.constant 0 : index
    %345 = vector.load %arg4[%c10_200, %c0_201, %c0_202] : memref<15x128x256xbf16, #tpu.memory_space<vmem>>, vector<1x128x256xbf16>
    %346 = vector.shape_cast %345 : vector<1x128x256xbf16> to vector<128x256xbf16>
    %cst_203 = arith.constant dense<0.000000e+00> : vector<8x256xf32>
    %347 = tpu.matmul %344, %346, %cst_203 {dimension_numbers = #tpu.dot_dimension_numbers<[1], [0], [0], [1], [0, 0, 1, 1], [], []>} : vector<8x128xbf16>, vector<128x256xbf16>, vector<8x256xf32> -> vector<8x256xf32>
    %348 = arith.addf %341, %347 : vector<8x256xf32>
    %349 = vector.extract_strided_slice %270 {offsets = [0, 11, 0], sizes = [8, 1, 128], strides = [1, 1, 1]} : vector<8x15x128xf32> to vector<8x1x128xf32>
    %350 = vector.shape_cast %349 : vector<8x1x128xf32> to vector<8x128xf32>
    %351 = arith.truncf %350 : vector<8x128xf32> to vector<8x128xbf16>
    %c11_204 = arith.constant 11 : index
    %c0_205 = arith.constant 0 : index
    %c0_206 = arith.constant 0 : index
    %352 = vector.load %arg4[%c11_204, %c0_205, %c0_206] : memref<15x128x256xbf16, #tpu.memory_space<vmem>>, vector<1x128x256xbf16>
    %353 = vector.shape_cast %352 : vector<1x128x256xbf16> to vector<128x256xbf16>
    %cst_207 = arith.constant dense<0.000000e+00> : vector<8x256xf32>
    %354 = tpu.matmul %351, %353, %cst_207 {dimension_numbers = #tpu.dot_dimension_numbers<[1], [0], [0], [1], [0, 0, 1, 1], [], []>} : vector<8x128xbf16>, vector<128x256xbf16>, vector<8x256xf32> -> vector<8x256xf32>
    %355 = arith.addf %348, %354 : vector<8x256xf32>
    %356 = vector.extract_strided_slice %270 {offsets = [0, 12, 0], sizes = [8, 1, 128], strides = [1, 1, 1]} : vector<8x15x128xf32> to vector<8x1x128xf32>
    %357 = vector.shape_cast %356 : vector<8x1x128xf32> to vector<8x128xf32>
    %358 = arith.truncf %357 : vector<8x128xf32> to vector<8x128xbf16>
    %c12_208 = arith.constant 12 : index
    %c0_209 = arith.constant 0 : index
    %c0_210 = arith.constant 0 : index
    %359 = vector.load %arg4[%c12_208, %c0_209, %c0_210] : memref<15x128x256xbf16, #tpu.memory_space<vmem>>, vector<1x128x256xbf16>
    %360 = vector.shape_cast %359 : vector<1x128x256xbf16> to vector<128x256xbf16>
    %cst_211 = arith.constant dense<0.000000e+00> : vector<8x256xf32>
    %361 = tpu.matmul %358, %360, %cst_211 {dimension_numbers = #tpu.dot_dimension_numbers<[1], [0], [0], [1], [0, 0, 1, 1], [], []>} : vector<8x128xbf16>, vector<128x256xbf16>, vector<8x256xf32> -> vector<8x256xf32>
    %362 = arith.addf %355, %361 : vector<8x256xf32>
    %363 = vector.extract_strided_slice %270 {offsets = [0, 13, 0], sizes = [8, 1, 128], strides = [1, 1, 1]} : vector<8x15x128xf32> to vector<8x1x128xf32>
    %364 = vector.shape_cast %363 : vector<8x1x128xf32> to vector<8x128xf32>
    %365 = arith.truncf %364 : vector<8x128xf32> to vector<8x128xbf16>
    %c13_212 = arith.constant 13 : index
    %c0_213 = arith.constant 0 : index
    %c0_214 = arith.constant 0 : index
    %366 = vector.load %arg4[%c13_212, %c0_213, %c0_214] : memref<15x128x256xbf16, #tpu.memory_space<vmem>>, vector<1x128x256xbf16>
    %367 = vector.shape_cast %366 : vector<1x128x256xbf16> to vector<128x256xbf16>
    %cst_215 = arith.constant dense<0.000000e+00> : vector<8x256xf32>
    %368 = tpu.matmul %365, %367, %cst_215 {dimension_numbers = #tpu.dot_dimension_numbers<[1], [0], [0], [1], [0, 0, 1, 1], [], []>} : vector<8x128xbf16>, vector<128x256xbf16>, vector<8x256xf32> -> vector<8x256xf32>
    %369 = arith.addf %362, %368 : vector<8x256xf32>
    %370 = vector.extract_strided_slice %270 {offsets = [0, 14, 0], sizes = [8, 1, 128], strides = [1, 1, 1]} : vector<8x15x128xf32> to vector<8x1x128xf32>
    %371 = vector.shape_cast %370 : vector<8x1x128xf32> to vector<8x128xf32>
    %372 = arith.truncf %371 : vector<8x128xf32> to vector<8x128xbf16>
    %c14_216 = arith.constant 14 : index
    %c0_217 = arith.constant 0 : index
    %c0_218 = arith.constant 0 : index
    %373 = vector.load %arg4[%c14_216, %c0_217, %c0_218] : memref<15x128x256xbf16, #tpu.memory_space<vmem>>, vector<1x128x256xbf16>
    %374 = vector.shape_cast %373 : vector<1x128x256xbf16> to vector<128x256xbf16>
    %cst_219 = arith.constant dense<0.000000e+00> : vector<8x256xf32>
    %375 = tpu.matmul %372, %374, %cst_219 {dimension_numbers = #tpu.dot_dimension_numbers<[1], [0], [0], [1], [0, 0, 1, 1], [], []>} : vector<8x128xbf16>, vector<128x256xbf16>, vector<8x256xf32> -> vector<8x256xf32>
    %376 = arith.addf %369, %375 : vector<8x256xf32>
    %c0_220 = arith.constant 0 : index
    %c0_221 = arith.constant 0 : index
    %377 = vector.load %arg5[%c0_220, %c0_221] : memref<1x256xf32, #tpu.memory_space<vmem>>, vector<1x256xf32>
    %378 = vector.broadcast %377 : vector<1x256xf32> to vector<8x256xf32>
    %379 = arith.addf %376, %378 : vector<8x256xf32>
    %cst_222 = arith.constant 0.000000e+00 : f32
    %380 = vector.broadcast %cst_222 : f32 to vector<8x256xf32>
    %381 = arith.maximumf %379, %380 : vector<8x256xf32>
    %c0_223 = arith.constant 0 : index
    %c2_224 = arith.constant 2 : index
    %c0_225 = arith.constant 0 : index
    %382 = vector.load %arg12[%c0_223, %c2_224, %c0_225] : memref<8x8x256xf32, #tpu.memory_space<vmem>>, vector<8x1x256xf32>
    %383 = vector.shape_cast %382 : vector<8x1x256xf32> to vector<8x256xf32>
    %384 = vector.shape_cast %381 : vector<8x256xf32> to vector<8x1x256xf32>
    tpu.vector_store %arg12[%c0_223, %c2_224, %c0_225], %384 {strides = array<i32>} : memref<8x8x256xf32, #tpu.memory_space<vmem>>, vector<8x1x256xf32>,
    %cst_226 = arith.constant 0.000000e+00 : f32
    %385 = vector.broadcast %cst_226 : f32 to vector<8x512xf32>
    %c0_227 = arith.constant 0 : index
    %c0_228 = arith.constant 0 : index
    %c0_229 = arith.constant 0 : index
    %386 = vector.load %arg12[%c0_227, %c0_228, %c0_229] : memref<8x8x256xf32, #tpu.memory_space<vmem>>, vector<8x3x256xf32>
    %cst_230 = arith.constant 0.000000e+00 : f32
    %387 = vector.broadcast %cst_230 : f32 to vector<8x512xf32>
    %388 = vector.extract_strided_slice %386 {offsets = [0, 0, 0], sizes = [8, 1, 256], strides = [1, 1, 1]} : vector<8x3x256xf32> to vector<8x1x256xf32>
    %389 = vector.shape_cast %388 : vector<8x1x256xf32> to vector<8x256xf32>
    %390 = arith.truncf %389 : vector<8x256xf32> to vector<8x256xbf16>
    %c0_231 = arith.constant 0 : index
    %c0_232 = arith.constant 0 : index
    %c0_233 = arith.constant 0 : index
    %391 = vector.load %arg6[%c0_231, %c0_232, %c0_233] : memref<3x256x512xbf16, #tpu.memory_space<vmem>>, vector<1x256x512xbf16>
    %392 = vector.shape_cast %391 : vector<1x256x512xbf16> to vector<256x512xbf16>
    %cst_234 = arith.constant dense<0.000000e+00> : vector<8x512xf32>
    %393 = tpu.matmul %390, %392, %cst_234 {dimension_numbers = #tpu.dot_dimension_numbers<[1], [0], [0], [1], [0, 0, 1, 1], [], []>} : vector<8x256xbf16>, vector<256x512xbf16>, vector<8x512xf32> -> vector<8x512xf32>
    %394 = arith.addf %387, %393 : vector<8x512xf32>
    %395 = vector.extract_strided_slice %386 {offsets = [0, 1, 0], sizes = [8, 1, 256], strides = [1, 1, 1]} : vector<8x3x256xf32> to vector<8x1x256xf32>
    %396 = vector.shape_cast %395 : vector<8x1x256xf32> to vector<8x256xf32>
    %397 = arith.truncf %396 : vector<8x256xf32> to vector<8x256xbf16>
    %c1_235 = arith.constant 1 : index
    %c0_236 = arith.constant 0 : index
    %c0_237 = arith.constant 0 : index
    %398 = vector.load %arg6[%c1_235, %c0_236, %c0_237] : memref<3x256x512xbf16, #tpu.memory_space<vmem>>, vector<1x256x512xbf16>
    %399 = vector.shape_cast %398 : vector<1x256x512xbf16> to vector<256x512xbf16>
    %cst_238 = arith.constant dense<0.000000e+00> : vector<8x512xf32>
    %400 = tpu.matmul %397, %399, %cst_238 {dimension_numbers = #tpu.dot_dimension_numbers<[1], [0], [0], [1], [0, 0, 1, 1], [], []>} : vector<8x256xbf16>, vector<256x512xbf16>, vector<8x512xf32> -> vector<8x512xf32>
    %401 = arith.addf %394, %400 : vector<8x512xf32>
    %402 = vector.extract_strided_slice %386 {offsets = [0, 2, 0], sizes = [8, 1, 256], strides = [1, 1, 1]} : vector<8x3x256xf32> to vector<8x1x256xf32>
    %403 = vector.shape_cast %402 : vector<8x1x256xf32> to vector<8x256xf32>
    %404 = arith.truncf %403 : vector<8x256xf32> to vector<8x256xbf16>
    %c2_239 = arith.constant 2 : index
    %c0_240 = arith.constant 0 : index
    %c0_241 = arith.constant 0 : index
    %405 = vector.load %arg6[%c2_239, %c0_240, %c0_241] : memref<3x256x512xbf16, #tpu.memory_space<vmem>>, vector<1x256x512xbf16>
    %406 = vector.shape_cast %405 : vector<1x256x512xbf16> to vector<256x512xbf16>
    %cst_242 = arith.constant dense<0.000000e+00> : vector<8x512xf32>
    %407 = tpu.matmul %404, %406, %cst_242 {dimension_numbers = #tpu.dot_dimension_numbers<[1], [0], [0], [1], [0, 0, 1, 1], [], []>} : vector<8x256xbf16>, vector<256x512xbf16>, vector<8x512xf32> -> vector<8x512xf32>
    %408 = arith.addf %401, %407 : vector<8x512xf32>
    %c0_243 = arith.constant 0 : index
    %c0_244 = arith.constant 0 : index
    %409 = vector.load %arg7[%c0_243, %c0_244] : memref<1x512xf32, #tpu.memory_space<vmem>>, vector<1x512xf32>
    %410 = vector.broadcast %409 : vector<1x512xf32> to vector<8x512xf32>
    %411 = arith.addf %408, %410 : vector<8x512xf32>
    %cst_245 = arith.constant 0.000000e+00 : f32
    %412 = vector.broadcast %cst_245 : f32 to vector<8x512xf32>
    %413 = arith.maximumf %411, %412 : vector<8x512xf32>
    %414 = arith.addf %385, %413 : vector<8x512xf32>
    %cst_246 = arith.constant 1.000000e+00 : f32
    %415 = vector.broadcast %cst_246 : f32 to vector<8x512xf32>
    %416 = arith.mulf %414, %415 : vector<8x512xf32>
    %417 = arith.truncf %416 : vector<8x512xf32> to vector<8x512xbf16>
    %c0_247 = arith.constant 0 : index
    %c0_248 = arith.constant 0 : index
    %418 = vector.load %arg8[%c0_247, %c0_248] : memref<512x128xbf16, #tpu.memory_space<vmem>>, vector<512x128xbf16>
    %cst_249 = arith.constant dense<0.000000e+00> : vector<8x128xf32>
    %419 = tpu.matmul %417, %418, %cst_249 {dimension_numbers = #tpu.dot_dimension_numbers<[1], [0], [0], [1], [0, 0, 1, 1], [], []>} : vector<8x512xbf16>, vector<512x128xbf16>, vector<8x128xf32> -> vector<8x128xf32>
    %c0_250 = arith.constant 0 : index
    %c0_251 = arith.constant 0 : index
    %420 = vector.load %arg9[%c0_250, %c0_251] : memref<1x128xf32, #tpu.memory_space<vmem>>, vector<1x128xf32>
    %421 = vector.broadcast %420 : vector<1x128xf32> to vector<8x128xf32>
    %422 = arith.addf %419, %421 : vector<8x128xf32>
    %c0_252 = arith.constant 0 : index
    %c0_253 = arith.constant 0 : index
    %423 = vector.load %arg10[%c0_252, %c0_253] : memref<8x128xf32, #tpu.memory_space<vmem>>, vector<8x128xf32>
    tpu.vector_store %arg10[%c0_252, %c0_253], %422 {strides = array<i32>} : memref<8x128xf32, #tpu.memory_space<vmem>>, vector<8x128xf32>,
    return
  }
  func.func @transform_0(%arg0: i32) -> (i32, i32) {
    %c0_i32 = arith.constant 0 : i32
    %c0_i32_0 = arith.constant 0 : i32
    return %arg0, %c0_i32 : i32, i32
  }
  func.func @transform_1(%arg0: i32) -> (i32, i32) {
    %c0_i32 = arith.constant 0 : i32
    %c0_i32_0 = arith.constant 0 : i32
    %c0_i32_1 = arith.constant 0 : i32
    return %c0_i32, %c0_i32_0 : i32, i32
  }
  func.func @transform_2(%arg0: i32) -> (i32, i32) {
    %c0_i32 = arith.constant 0 : i32
    %c0_i32_0 = arith.constant 0 : i32
    %c0_i32_1 = arith.constant 0 : i32
    return %c0_i32, %c0_i32_0 : i32, i32
  }
  func.func @transform_3(%arg0: i32) -> (i32, i32, i32) {
    %c0_i32 = arith.constant 0 : i32
    %c0_i32_0 = arith.constant 0 : i32
    %c0_i32_1 = arith.constant 0 : i32
    %c0_i32_2 = arith.constant 0 : i32
    return %c0_i32, %c0_i32_0, %c0_i32_1 : i32, i32, i32
  }
  func.func @transform_4(%arg0: i32) -> (i32, i32) {
    %c0_i32 = arith.constant 0 : i32
    %c0_i32_0 = arith.constant 0 : i32
    %c0_i32_1 = arith.constant 0 : i32
    return %c0_i32, %c0_i32_0 : i32, i32
  }
  func.func @transform_5(%arg0: i32) -> (i32, i32, i32) {
    %c0_i32 = arith.constant 0 : i32
    %c0_i32_0 = arith.constant 0 : i32
    %c0_i32_1 = arith.constant 0 : i32
    %c0_i32_2 = arith.constant 0 : i32
    return %c0_i32, %c0_i32_0, %c0_i32_1 : i32, i32, i32
  }
  func.func @transform_6(%arg0: i32) -> (i32, i32) {
    %c0_i32 = arith.constant 0 : i32
    %c0_i32_0 = arith.constant 0 : i32
    %c0_i32_1 = arith.constant 0 : i32
    return %c0_i32, %c0_i32_0 : i32, i32
  }
  func.func @transform_7(%arg0: i32) -> (i32, i32) {
    %c0_i32 = arith.constant 0 : i32
    %c0_i32_0 = arith.constant 0 : i32
    %c0_i32_1 = arith.constant 0 : i32
    return %c0_i32, %c0_i32_0 : i32, i32
  }
  func.func @transform_8(%arg0: i32) -> (i32, i32) {
    %c0_i32 = arith.constant 0 : i32
    %c0_i32_0 = arith.constant 0 : i32
    %c0_i32_1 = arith.constant 0 : i32
    return %c0_i32, %c0_i32_0 : i32, i32
  }
  func.func @transform_9(%arg0: i32) -> (i32, i32) {
    %c0_i32 = arith.constant 0 : i32
    %c0_i32_0 = arith.constant 0 : i32
    return %arg0, %c0_i32 : i32, i32
  }
}

</mosaic_0001>

<llo_original>
// kernel: cnn_1d_forward.1
$region0: #{cnn_1d_forward.1}
  #allocation0 [shape = 'u32[]', space=smem, size = 0x4, offset = 0x4, fixed_abs, tag = 'smem constant byte address 0x4 - core index']
  #allocation1 [shape = 'u32[72,128]{1,0:T(1,128)}', space=vmem, size = 0x9000, scoped, tag = 'internal scratch']
  #allocation2 [shape = 'f32[8,32,128]{2,1,0:T(8,128)}', space=vmem, size = 0x20000, scoped, tag = 'scratch operand']
  #allocation3 [shape = 'f32[8,8,256]{2,1,0:T(8,128)}', space=vmem, size = 0x10000, scoped, tag = 'scratch operand']
  %s0 = inlined_call_operand.vmem [shape: bf16[512,512], index: 0, kind: input, shape index: {}]
  %s1 = inlined_call_operand.vmem [shape: bf16[512,128], index: 1, kind: input, shape index: {}]
  %s2 = inlined_call_operand.vmem [shape: f32[1,128], index: 2, kind: input, shape index: {}]
  %s3 = inlined_call_operand.vmem [shape: bf16[15,128,256], index: 3, kind: input, shape index: {}]
  %s4 = inlined_call_operand.vmem [shape: f32[1,256], index: 4, kind: input, shape index: {}]
  %s5 = inlined_call_operand.vmem [shape: bf16[3,256,512], index: 5, kind: input, shape index: {}]
  %s6 = inlined_call_operand.vmem [shape: f32[1,512], index: 6, kind: input, shape index: {}]
  %s7 = inlined_call_operand.vmem [shape: bf16[512,128], index: 7, kind: input, shape index: {}]
  %s8 = inlined_call_operand.vmem [shape: f32[1,128], index: 8, kind: input, shape index: {}]
  %s9 = inlined_call_operand.hbm [shape: f32[16,128], index: 9, kind: output, shape index: {}]
  %s10 = sld [smem:[#allocation0]]
  $region69: #{cnn_1d_forward.1} parent=0
    _
  %s12 = ssub.s32 1, %s10
  %s13 = scalar_select 0, %s12, %s10
  $region1: #{cnn_1d_forward.1} parent=0
    #allocation4 [shape = 'u8[8192]{0}', space=vmem, size = 0x2000, scoped, tag = 'output window, operand 0']
    #allocation5 [shape = 's32[2]{0}', space=sflag, size = 0x8, scoped, tag = 'scoped memory for cnn_1d_forward.1']
    %14 = vsyncpa [#allocation5], 0
    %s15 = scalar_lea.sflag [#allocation5], 1
    %16 = vsyncpa %s15, 0
    loop: start=0, step=1, limit=4
    $region2: #{cnn_1d_forward.1} parent=1 // loop_pre_header
      _
    $region3: #{cnn_1d_forward.1} parent=1 // loop_header
      %s18 = sphi 0, %s22
      %p19 = scmp.ge.s32.totalorder %s18, 4
      %s28 = sphi 0, %s30
      %s31 = sphi 0, %s28
      %s32 = sphi 0, %s31
      %s48 = sphi 0, %s32
      %s52 = sphi 0, %s52
      %s54 = sphi 0, %s52
      %s55 = sphi 0, %s54
      %s69 = sphi 0, %s55
      %s73 = sphi 0, %s73
      %s75 = sphi 0, %s73
      %s76 = sphi 0, %s75
      %s90 = sphi 0, %s76
      %s94 = sphi 0, %s94
      %s96 = sphi 0, %s94
      %s97 = sphi 0, %s96
      %s111 = sphi 0, %s97
      %s115 = sphi 0, %s115
      %s117 = sphi 0, %s115
      %s118 = sphi 0, %s117
      %s132 = sphi 0, %s118
      %s136 = sphi 0, %s136
      %s138 = sphi 0, %s136
      %s139 = sphi 0, %s138
      %s153 = sphi 0, %s139
      %s157 = sphi 0, %s157
      %s159 = sphi 0, %s157
      %s160 = sphi 0, %s159
      %s174 = sphi 0, %s160
      %s178 = sphi 0, %s178
      %s180 = sphi 0, %s178
      %s181 = sphi 0, %s180
      %s195 = sphi 0, %s181
      %s199 = sphi 0, %s199
      %s201 = sphi 0, %s199
      %s202 = sphi 0, %s201
      %s216 = sphi 0, %s202
      %s222 = sphi 0, %s224
      %s225 = sphi 0, %s222
      %s226 = sphi 0, %s225
      %s242 = sphi 0, %s226
    $region4: #{cnn_1d_forward.1} parent=1 // loop_header_branch
      %21 = sbr.rel (%p19) target = $region8
    $region5: #{cnn_1d_forward.1} parent=1 // loop_body
      %s23 = ssub.s32 %s18, 1
      %s24 = ssub.s32 %s18, 2
      %s25 = sadd.s32 %s18, 1
      %s26 = ssub.s32 %s18, %s25
      %p27 = scmp.eq.s32.totalorder %s26, 0
      %s29 = sadd.s32 %s28, 1
      %s30 = scalar_select %p27, %s28, %s29
      %p33 = pneg %p27
      %p34 = scmp.eq.s32.totalorder %s18, 1
      %p35 = por %p33, %p34
      %p36 = scmp.ne.s32.totalorder %s28, %s31
      %p37 = scmp.eq.s32.totalorder %s18, 0
      %p38 = por %p36, %p37
      %p39 = scmp.ne.s32.totalorder %s28, %s31
      %p40 = scmp.eq.s32.totalorder %s23, 1
      %p41 = por %p39, %p40
      %p42 = scmp.ne.s32.totalorder %s31, %s32
      %p43 = scmp.eq.s32.totalorder %s23, 0
      %p44 = por %p42, %p43
      %p45 = scmp.ne.s32.totalorder %s31, %s32
      %p46 = scmp.eq.s32.totalorder %s24, 1
      %p47 = por %p45, %p46
      %p49 = scmp.ne.s32.totalorder %s32, %s48
      %p50 = scmp.eq.s32.totalorder %s24, 0
      %p51 = por %p49, %p50
      %s53 = sadd.s32 %s52, 1
      %p56 = scmp.eq.s32.totalorder %s18, 1
      %p57 = scmp.ne.s32.totalorder %s52, %s54
      %p58 = scmp.eq.s32.totalorder %s18, 0
      %p59 = por %p57, %p58
      %p60 = scmp.ne.s32.totalorder %s52, %s54
      %p61 = scmp.eq.s32.totalorder %s23, 1
      %p62 = por %p60, %p61
      %p63 = scmp.ne.s32.totalorder %s54, %s55
      %p64 = scmp.eq.s32.totalorder %s23, 0
      %p65 = por %p63, %p64
      %p66 = scmp.ne.s32.totalorder %s54, %s55
      %p67 = scmp.eq.s32.totalorder %s24, 1
      %p68 = por %p66, %p67
      %p70 = scmp.ne.s32.totalorder %s55, %s69
      %p71 = scmp.eq.s32.totalorder %s24, 0
      %p72 = por %p70, %p71
      %s74 = sadd.s32 %s73, 1
      %p77 = scmp.eq.s32.totalorder %s18, 1
      %p78 = scmp.ne.s32.totalorder %s73, %s75
      %p79 = scmp.eq.s32.totalorder %s18, 0
      %p80 = por %p78, %p79
      %p81 = scmp.ne.s32.totalorder %s73, %s75
      %p82 = scmp.eq.s32.totalorder %s23, 1
      %p83 = por %p81, %p82
      %p84 = scmp.ne.s32.totalorder %s75, %s76
      %p85 = scmp.eq.s32.totalorder %s23, 0
      %p86 = por %p84, %p85
      %p87 = scmp.ne.s32.totalorder %s75, %s76
      %p88 = scmp.eq.s32.totalorder %s24, 1
      %p89 = por %p87, %p88
      %p91 = scmp.ne.s32.totalorder %s76, %s90
      %p92 = scmp.eq.s32.totalorder %s24, 0
      %p93 = por %p91, %p92
      %s95 = sadd.s32 %s94, 1
      %p98 = scmp.eq.s32.totalorder %s18, 1
      %p99 = scmp.ne.s32.totalorder %s94, %s96
      %p100 = scmp.eq.s32.totalorder %s18, 0
      %p101 = por %p99, %p100
      %p102 = scmp.ne.s32.totalorder %s94, %s96
      %p103 = scmp.eq.s32.totalorder %s23, 1
      %p104 = por %p102, %p103
      %p105 = scmp.ne.s32.totalorder %s96, %s97
      %p106 = scmp.eq.s32.totalorder %s23, 0
      %p107 = por %p105, %p106
      %p108 = scmp.ne.s32.totalorder %s96, %s97
      %p109 = scmp.eq.s32.totalorder %s24, 1
      %p110 = por %p108, %p109
      %p112 = scmp.ne.s32.totalorder %s97, %s111
      %p113 = scmp.eq.s32.totalorder %s24, 0
      %p114 = por %p112, %p113
      %s116 = sadd.s32 %s115, 1
      %p119 = scmp.eq.s32.totalorder %s18, 1
      %p120 = scmp.ne.s32.totalorder %s115, %s117
      %p121 = scmp.eq.s32.totalorder %s18, 0
      %p122 = por %p120, %p121
      %p123 = scmp.ne.s32.totalorder %s115, %s117
      %p124 = scmp.eq.s32.totalorder %s23, 1
      %p125 = por %p123, %p124
      %p126 = scmp.ne.s32.totalorder %s117, %s118
      %p127 = scmp.eq.s32.totalorder %s23, 0
      %p128 = por %p126, %p127
      %p129 = scmp.ne.s32.totalorder %s117, %s118
      %p130 = scmp.eq.s32.totalorder %s24, 1
      %p131 = por %p129, %p130
      %p133 = scmp.ne.s32.totalorder %s118, %s132
      %p134 = scmp.eq.s32.totalorder %s24, 0
      %p135 = por %p133, %p134
      %s137 = sadd.s32 %s136, 1
      %p140 = scmp.eq.s32.totalorder %s18, 1
      %p141 = scmp.ne.s32.totalorder %s136, %s138
      %p142 = scmp.eq.s32.totalorder %s18, 0
      %p143 = por %p141, %p142
      %p144 = scmp.ne.s32.totalorder %s136, %s138
      %p145 = scmp.eq.s32.totalorder %s23, 1
      %p146 = por %p144, %p145
      %p147 = scmp.ne.s32.totalorder %s138, %s139
      %p148 = scmp.eq.s32.totalorder %s23, 0
      %p149 = por %p147, %p148
      %p150 = scmp.ne.s32.totalorder %s138, %s139
      %p151 = scmp.eq.s32.totalorder %s24, 1
      %p152 = por %p150, %p151
      %p154 = scmp.ne.s32.totalorder %s139, %s153
      %p155 = scmp.eq.s32.totalorder %s24, 0
      %p156 = por %p154, %p155
      %s158 = sadd.s32 %s157, 1
      %p161 = scmp.eq.s32.totalorder %s18, 1
      %p162 = scmp.ne.s32.totalorder %s157, %s159
      %p163 = scmp.eq.s32.totalorder %s18, 0
      %p164 = por %p162, %p163
      %p165 = scmp.ne.s32.totalorder %s157, %s159
      %p166 = scmp.eq.s32.totalorder %s23, 1
      %p167 = por %p165, %p166
      %p168 = scmp.ne.s32.totalorder %s159, %s160
      %p169 = scmp.eq.s32.totalorder %s23, 0
      %p170 = por %p168, %p169
      %p171 = scmp.ne.s32.totalorder %s159, %s160
      %p172 = scmp.eq.s32.totalorder %s24, 1
      %p173 = por %p171, %p172
      %p175 = scmp.ne.s32.totalorder %s160, %s174
      %p176 = scmp.eq.s32.totalorder %s24, 0
      %p177 = por %p175, %p176
      %s179 = sadd.s32 %s178, 1
      %p182 = scmp.eq.s32.totalorder %s18, 1
      %p183 = scmp.ne.s32.totalorder %s178, %s180
      %p184 = scmp.eq.s32.totalorder %s18, 0
      %p185 = por %p183, %p184
      %p186 = scmp.ne.s32.totalorder %s178, %s180
      %p187 = scmp.eq.s32.totalorder %s23, 1
      %p188 = por %p186, %p187
      %p189 = scmp.ne.s32.totalorder %s180, %s181
      %p190 = scmp.eq.s32.totalorder %s23, 0
      %p191 = por %p189, %p190
      %p192 = scmp.ne.s32.totalorder %s180, %s181
      %p193 = scmp.eq.s32.totalorder %s24, 1
      %p194 = por %p192, %p193
      %p196 = scmp.ne.s32.totalorder %s181, %s195
      %p197 = scmp.eq.s32.totalorder %s24, 0
      %p198 = por %p196, %p197
      %s200 = sadd.s32 %s199, 1
      %p203 = scmp.eq.s32.totalorder %s18, 1
      %p204 = scmp.ne.s32.totalorder %s199, %s201
      %p205 = scmp.eq.s32.totalorder %s18, 0
      %p206 = por %p204, %p205
      %p207 = scmp.ne.s32.totalorder %s199, %s201
      %p208 = scmp.eq.s32.totalorder %s23, 1
      %p209 = por %p207, %p208
      %p210 = scmp.ne.s32.totalorder %s201, %s202
      %p211 = scmp.eq.s32.totalorder %s23, 0
      %p212 = por %p210, %p211
      %p213 = scmp.ne.s32.totalorder %s201, %s202
      %p214 = scmp.eq.s32.totalorder %s24, 1
      %p215 = por %p213, %p214
      %p217 = scmp.ne.s32.totalorder %s202, %s216
      %p218 = scmp.eq.s32.totalorder %s24, 0
      %p219 = por %p217, %p218
      %s220 = ssub.s32 %s18, %s25
      %p221 = scmp.eq.s32.totalorder %s220, 0
      %s223 = sadd.s32 %s222, 1
      %s224 = scalar_select %p221, %s222, %s223
      %p227 = pneg %p221
      %p228 = scmp.eq.s32.totalorder %s18, 1
      %p229 = por %p227, %p228
      %p230 = scmp.ne.s32.totalorder %s222, %s225
      %p231 = scmp.eq.s32.totalorder %s18, 0
      %p232 = por %p230, %p231
      %p233 = scmp.ne.s32.totalorder %s222, %s225
      %p234 = scmp.eq.s32.totalorder %s23, 1
      %p235 = por %p233, %p234
      %p236 = scmp.ne.s32.totalorder %s225, %s226
      %p237 = scmp.eq.s32.totalorder %s23, 0
      %p238 = por %p236, %p237
      %p239 = scmp.ne.s32.totalorder %s225, %s226
      %p240 = scmp.eq.s32.totalorder %s24, 1
      %p241 = por %p239, %p240
      %p243 = scmp.ne.s32.totalorder %s226, %s242
      %p244 = scmp.eq.s32.totalorder %s24, 0
      %p245 = por %p243, %p244
      %p246 = scmp.le.s32.totalorder 1, %s18
      %p247 = scmp.lt.s32.totalorder %s18, 3
      %p248 = pnand %p246, %p247
      %p249 = pneg %p248
      // Predicated region
      $region9: #{cnn_1d_forward.1} parent=5 // pred_check
        _
      $region10: #{cnn_1d_forward.1} parent=5 // pred_check_branch
        %251 = sbr.rel (%p248) target = $region12
      $region11: #{cnn_1d_forward.1} parent=5 // pred_region
        %s252 = ssub.s32 %s18, 1
        // Predicated region
        $region13: #{cnn_1d_forward.1} parent=11 // pred_check
          %p253 = pneg %p65
        $region14: #{cnn_1d_forward.1} parent=11 // pred_check_branch
          %255 = sbr.rel (%p253) target = $region16
        $region15: #{cnn_1d_forward.1} parent=11 // pred_region
          _
        $region16: #{cnn_1d_forward.1} parent=11 // pred_fallthru
          _
        // Predicated region
        $region17: #{cnn_1d_forward.1} parent=11 // pred_check
          %p256 = pneg %p86
        $region18: #{cnn_1d_forward.1} parent=11 // pred_check_branch
          %258 = sbr.rel (%p256) target = $region20
        $region19: #{cnn_1d_forward.1} parent=11 // pred_region
          _
        $region20: #{cnn_1d_forward.1} parent=11 // pred_fallthru
          _
        // Predicated region
        $region21: #{cnn_1d_forward.1} parent=11 // pred_check
          %p259 = pneg %p107
        $region22: #{cnn_1d_forward.1} parent=11 // pred_check_branch
          %261 = sbr.rel (%p259) target = $region24
        $region23: #{cnn_1d_forward.1} parent=11 // pred_region
          _
        $region24: #{cnn_1d_forward.1} parent=11 // pred_fallthru
          _
        // Predicated region
        $region25: #{cnn_1d_forward.1} parent=11 // pred_check
          %p262 = pneg %p128
        $region26: #{cnn_1d_forward.1} parent=11 // pred_check_branch
          %264 = sbr.rel (%p262) target = $region28
        $region27: #{cnn_1d_forward.1} parent=11 // pred_region
          _
        $region28: #{cnn_1d_forward.1} parent=11 // pred_fallthru
          _
        // Predicated region
        $region29: #{cnn_1d_forward.1} parent=11 // pred_check
          %p265 = pneg %p149
        $region30: #{cnn_1d_forward.1} parent=11 // pred_check_branch
          %267 = sbr.rel (%p265) target = $region32
        $region31: #{cnn_1d_forward.1} parent=11 // pred_region
          _
        $region32: #{cnn_1d_forward.1} parent=11 // pred_fallthru
          _
        // Predicated region
        $region33: #{cnn_1d_forward.1} parent=11 // pred_check
          %p268 = pneg %p170
        $region34: #{cnn_1d_forward.1} parent=11 // pred_check_branch
          %270 = sbr.rel (%p268) target = $region36
        $region35: #{cnn_1d_forward.1} parent=11 // pred_region
          _
        $region36: #{cnn_1d_forward.1} parent=11 // pred_fallthru
          _
        // Predicated region
        $region37: #{cnn_1d_forward.1} parent=11 // pred_check
          %p271 = pneg %p191
        $region38: #{cnn_1d_forward.1} parent=11 // pred_check_branch
          %273 = sbr.rel (%p271) target = $region40
        $region39: #{cnn_1d_forward.1} parent=11 // pred_region
          _
        $region40: #{cnn_1d_forward.1} parent=11 // pred_fallthru
          _
        // Predicated region
        $region41: #{cnn_1d_forward.1} parent=11 // pred_check
          %p274 = pneg %p212
        $region42: #{cnn_1d_forward.1} parent=11 // pred_check_branch
          %276 = sbr.rel (%p274) target = $region44
        $region43: #{cnn_1d_forward.1} parent=11 // pred_region
          _
        $region44: #{cnn_1d_forward.1} parent=11 // pred_fallthru
          _
      $region12: #{cnn_1d_forward.1} parent=5 // pred_fallthru
        _
      %p277 = scmp.lt.s32.totalorder %s18, 2
      // Predicated region
      $region45: #{cnn_1d_forward.1} parent=5 // pred_check
        %p278 = pneg %p277
      $region46: #{cnn_1d_forward.1} parent=5 // pred_check_branch
        %280 = sbr.rel (%p278) target = $region48
      $region47: #{cnn_1d_forward.1} parent=5 // pred_region
        // Predicated region
        $region49: #{cnn_1d_forward.1} parent=47 // pred_check
          %p281 = pneg %p38
        $region50: #{cnn_1d_forward.1} parent=47 // pred_check_branch
          %283 = sbr.rel (%p281) target = $region52
        $region51: #{cnn_1d_forward.1} parent=47 // pred_region
          %s284 = smul.u32 32, %s18
          %p285 = scmp.lt.s32.totalorder %s284, 63
          %s286 = scalar_select %p285, %s284, 63
          %s287 = smul.addr %s286, 4
          %s288 = smul.addr %s287, 4
          %s289 = scalar_lea.vmem %s0, %s288
          %s290 = smul.u32 32, %s18
        $region52: #{cnn_1d_forward.1} parent=47 // pred_fallthru
          _
      $region48: #{cnn_1d_forward.1} parent=5 // pred_fallthru
        _
      %p291 = scmp.le.s32.totalorder 1, %s18
      %p292 = scmp.lt.s32.totalorder %s18, 3
      %p293 = pnand %p291, %p292
      %p294 = pneg %p293
      // Predicated region
      $region53: #{cnn_1d_forward.1} parent=5 // pred_check
        _
      $region54: #{cnn_1d_forward.1} parent=5 // pred_check_branch
        %296 = sbr.rel (%p293) target = $region56
      $region55: #{cnn_1d_forward.1} parent=5 // pred_region
        %s297 = ssub.s32 %s18, 1
        %s298 = smul.u32 32, %s23
        %p299 = scmp.lt.s32.totalorder %s298, 63
        %s300 = scalar_select %p299, %s298, 63
        %s301 = smul.addr %s300, 4
        %s302 = smul.addr %s301, 4
        %s303 = scalar_lea.vmem %s0, %s302
        %p304 = pneg %p44
        %p305 = pneg %p41
        %p306 = pneg %p65
        %p307 = pneg %p62
        %p308 = pneg %p86
        %p309 = pneg %p83
        %p310 = pneg %p107
        %p311 = pneg %p104
        %p312 = pneg %p128
        %p313 = pneg %p125
        %p314 = pneg %p149
        %p315 = pneg %p146
        %p316 = pneg %p170
        %p317 = pneg %p167
        %p318 = pneg %p191
        %p319 = pneg %p188
        %p320 = pneg %p212
        %p321 = pneg %p209
        %p322 = pneg %p238
        %p323 = pneg %p235
        %s324 = sand.u32 %s225, 1
        %s325 = scalar_lea.sflag [#allocation5], %s324
        %s326 = sand.u32 %s225, 1
        %s327 = smul.addr %s326, 8
        %s328 = scalar_lea.vmem [#allocation4], %s327
        %s329 = smul.u32 32, %s23
        %p330 = scmp.lt.s32.totalorder %s329, 63
        %s331 = scalar_select %p330, %s329, 63
        %s332 = smul.addr %s331, 4
        %s333 = smul.addr %s332, 4
        %s334 = scalar_lea.vmem %s0, %s333
        %s335 = smul.u32 32, %s23
        %v336 = vld [vmem:[%s334] sm:$0xff]
        %v337 = vld [vmem:[%s334 + $0x8] sm:$0xff]
        %v338 = vld [vmem:[%s334 + $0x10] sm:$0xff]
        %v339 = vld [vmem:[%s334 + $0x18] sm:$0xff]
        %v340 = vld [vmem:[%s334 + $0x20] sm:$0xff]
        %v341 = vld [vmem:[%s334 + $0x28] sm:$0xff]
        %v342 = vld [vmem:[%s334 + $0x30] sm:$0xff]
        %v343 = vld [vmem:[%s334 + $0x38] sm:$0xff]
        %v344 = vld [vmem:[%s334 + $0x40] sm:$0xff]
        %v345 = vld [vmem:[%s334 + $0x48] sm:$0xff]
        %v346 = vld [vmem:[%s334 + $0x50] sm:$0xff]
        %v347 = vld [vmem:[%s334 + $0x58] sm:$0xff]
        %v348 = vld [vmem:[%s334 + $0x60] sm:$0xff]
        %v349 = vld [vmem:[%s334 + $0x68] sm:$0xff]
        %v350 = vld [vmem:[%s334 + $0x70] sm:$0xff]
        %v351 = vld [vmem:[%s334 + $0x78] sm:$0xff]
        %v352 = vld [vmem:[%s334 + $0x80] sm:$0xff]
        %v353 = vld [vmem:[%s334 + $0x88] sm:$0xff]
        %v354 = vld [vmem:[%s334 + $0x90] sm:$0xff]
        %v355 = vld [vmem:[%s334 + $0x98] sm:$0xff]
        %v356 = vld [vmem:[%s334 + $0xa0] sm:$0xff]
        %v357 = vld [vmem:[%s334 + $0xa8] sm:$0xff]
        %v358 = vld [vmem:[%s334 + $0xb0] sm:$0xff]
        %v359 = vld [vmem:[%s334 + $0xb8] sm:$0xff]
        %v360 = vld [vmem:[%s334 + $0xc0] sm:$0xff]
        %v361 = vld [vmem:[%s334 + $0xc8] sm:$0xff]
        %v362 = vld [vmem:[%s334 + $0xd0] sm:$0xff]
        %v363 = vld [vmem:[%s334 + $0xd8] sm:$0xff]
        %v364 = vld [vmem:[%s334 + $0xe0] sm:$0xff]
        %v365 = vld [vmem:[%s334 + $0xe8] sm:$0xff]
        %v366 = vld [vmem:[%s334 + $0xf0] sm:$0xff]
        %v367 = vld [vmem:[%s334 + $0xf8] sm:$0xff]
        %v368 = vld [vmem:[%s334 + $0x100] sm:$0xff]
        %v369 = vld [vmem:[%s334 + $0x108] sm:$0xff]
        %v370 = vld [vmem:[%s334 + $0x110] sm:$0xff]
        %v371 = vld [vmem:[%s334 + $0x118] sm:$0xff]
        %v372 = vld [vmem:[%s334 + $0x120] sm:$0xff]
        %v373 = vld [vmem:[%s334 + $0x128] sm:$0xff]
        %v374 = vld [vmem:[%s334 + $0x130] sm:$0xff]
        %v375 = vld [vmem:[%s334 + $0x138] sm:$0xff]
        %v376 = vld [vmem:[%s334 + $0x140] sm:$0xff]
        %v377 = vld [vmem:[%s334 + $0x148] sm:$0xff]
        %v378 = vld [vmem:[%s334 + $0x150] sm:$0xff]
        %v379 = vld [vmem:[%s334 + $0x158] sm:$0xff]
        %v380 = vld [vmem:[%s334 + $0x160] sm:$0xff]
        %v381 = vld [vmem:[%s334 + $0x168] sm:$0xff]
        %v382 = vld [vmem:[%s334 + $0x170] sm:$0xff]
        %v383 = vld [vmem:[%s334 + $0x178] sm:$0xff]
        %v384 = vld [vmem:[%s334 + $0x180] sm:$0xff]
        %v385 = vld [vmem:[%s334 + $0x188] sm:$0xff]
        %v386 = vld [vmem:[%s334 + $0x190] sm:$0xff]
        %v387 = vld [vmem:[%s334 + $0x198] sm:$0xff]
        %v388 = vld [vmem:[%s334 + $0x1a0] sm:$0xff]
        %v389 = vld [vmem:[%s334 + $0x1a8] sm:$0xff]
        %v390 = vld [vmem:[%s334 + $0x1b0] sm:$0xff]
        %v391 = vld [vmem:[%s334 + $0x1b8] sm:$0xff]
        %v392 = vld [vmem:[%s334 + $0x1c0] sm:$0xff]
        %v393 = vld [vmem:[%s334 + $0x1c8] sm:$0xff]
        %v394 = vld [vmem:[%s334 + $0x1d0] sm:$0xff]
        %v395 = vld [vmem:[%s334 + $0x1d8] sm:$0xff]
        %v396 = vld [vmem:[%s334 + $0x1e0] sm:$0xff]
        %v397 = vld [vmem:[%s334 + $0x1e8] sm:$0xff]
        %v398 = vld [vmem:[%s334 + $0x1f0] sm:$0xff]
        %v399 = vld [vmem:[%s334 + $0x1f8] sm:$0xff]
        %v400 = vld [vmem:[%s1] sm:$0xf]
        %v401 = vld [vmem:[%s1 + $0x4] sm:$0xf]
        %v402 = vld [vmem:[%s1 + $0x8] sm:$0xf]
        %v403 = vld [vmem:[%s1 + $0xc] sm:$0xf]
        %v404 = vld [vmem:[%s1 + $0x10] sm:$0xf]
        %v405 = vld [vmem:[%s1 + $0x14] sm:$0xf]
        %v406 = vld [vmem:[%s1 + $0x18] sm:$0xf]
        %v407 = vld [vmem:[%s1 + $0x1c] sm:$0xf]
        %v408 = vld [vmem:[%s1 + $0x20] sm:$0xf]
        %v409 = vld [vmem:[%s1 + $0x24] sm:$0xf]
        %v410 = vld [vmem:[%s1 + $0x28] sm:$0xf]
        %v411 = vld [vmem:[%s1 + $0x2c] sm:$0xf]
        %v412 = vld [vmem:[%s1 + $0x30] sm:$0xf]
        %v413 = vld [vmem:[%s1 + $0x34] sm:$0xf]
        %v414 = vld [vmem:[%s1 + $0x38] sm:$0xf]
        %v415 = vld [vmem:[%s1 + $0x3c] sm:$0xf]
        %v416 = vld [vmem:[%s1 + $0x40] sm:$0xf]
        %v417 = vld [vmem:[%s1 + $0x44] sm:$0xf]
        %v418 = vld [vmem:[%s1 + $0x48] sm:$0xf]
        %v419 = vld [vmem:[%s1 + $0x4c] sm:$0xf]
        %v420 = vld [vmem:[%s1 + $0x50] sm:$0xf]
        %v421 = vld [vmem:[%s1 + $0x54] sm:$0xf]
        %v422 = vld [vmem:[%s1 + $0x58] sm:$0xf]
        %v423 = vld [vmem:[%s1 + $0x5c] sm:$0xf]
        %v424 = vld [vmem:[%s1 + $0x60] sm:$0xf]
        %v425 = vld [vmem:[%s1 + $0x64] sm:$0xf]
        %v426 = vld [vmem:[%s1 + $0x68] sm:$0xf]
        %v427 = vld [vmem:[%s1 + $0x6c] sm:$0xf]
        %v428 = vld [vmem:[%s1 + $0x70] sm:$0xf]
        %v429 = vld [vmem:[%s1 + $0x74] sm:$0xf]
        %v430 = vld [vmem:[%s1 + $0x78] sm:$0xf]
        %v431 = vld [vmem:[%s1 + $0x7c] sm:$0xf]
        %v432 = vld [vmem:[%s1 + $0x80] sm:$0xf]
        %v433 = vld [vmem:[%s1 + $0x84] sm:$0xf]
        %v434 = vld [vmem:[%s1 + $0x88] sm:$0xf]
        %v435 = vld [vmem:[%s1 + $0x8c] sm:$0xf]
        %v436 = vld [vmem:[%s1 + $0x90] sm:$0xf]
        %v437 = vld [vmem:[%s1 + $0x94] sm:$0xf]
        %v438 = vld [vmem:[%s1 + $0x98] sm:$0xf]
        %v439 = vld [vmem:[%s1 + $0x9c] sm:$0xf]
        %v440 = vld [vmem:[%s1 + $0xa0] sm:$0xf]
        %v441 = vld [vmem:[%s1 + $0xa4] sm:$0xf]
        %v442 = vld [vmem:[%s1 + $0xa8] sm:$0xf]
        %v443 = vld [vmem:[%s1 + $0xac] sm:$0xf]
        %v444 = vld [vmem:[%s1 + $0xb0] sm:$0xf]
        %v445 = vld [vmem:[%s1 + $0xb4] sm:$0xf]
        %v446 = vld [vmem:[%s1 + $0xb8] sm:$0xf]
        %v447 = vld [vmem:[%s1 + $0xbc] sm:$0xf]
        %v448 = vld [vmem:[%s1 + $0xc0] sm:$0xf]
        %v449 = vld [vmem:[%s1 + $0xc4] sm:$0xf]
        %v450 = vld [vmem:[%s1 + $0xc8] sm:$0xf]
        %v451 = vld [vmem:[%s1 + $0xcc] sm:$0xf]
        %v452 = vld [vmem:[%s1 + $0xd0] sm:$0xf]
        %v453 = vld [vmem:[%s1 + $0xd4] sm:$0xf]
        %v454 = vld [vmem:[%s1 + $0xd8] sm:$0xf]
        %v455 = vld [vmem:[%s1 + $0xdc] sm:$0xf]
        %v456 = vld [vmem:[%s1 + $0xe0] sm:$0xf]
        %v457 = vld [vmem:[%s1 + $0xe4] sm:$0xf]
        %v458 = vld [vmem:[%s1 + $0xe8] sm:$0xf]
        %v459 = vld [vmem:[%s1 + $0xec] sm:$0xf]
        %v460 = vld [vmem:[%s1 + $0xf0] sm:$0xf]
        %v461 = vld [vmem:[%s1 + $0xf4] sm:$0xf]
        %v462 = vld [vmem:[%s1 + $0xf8] sm:$0xf]
        %v463 = vld [vmem:[%s1 + $0xfc] sm:$0xf]
        %v464 = vld [vmem:[%s2] sm:$0x1]
        %v466 = vperm.slane %v464, 0
        %v532 = vunpack.c.l.b16 %v336
        %v533 = vunpack.c.h.b16 %v336
        %v534 = vunpack.c.l.b16 %v337
        %v535 = vunpack.c.h.b16 %v337
        %v536 = vunpack.c.l.b16 %v338
        %v537 = vunpack.c.h.b16 %v338
        %v538 = vunpack.c.l.b16 %v339
        %v539 = vunpack.c.h.b16 %v339
        %v540 = vunpack.c.l.b16 %v340
        %v541 = vunpack.c.h.b16 %v340
        %v542 = vunpack.c.l.b16 %v341
        %v543 = vunpack.c.h.b16 %v341
        %v544 = vunpack.c.l.b16 %v342
        %v545 = vunpack.c.h.b16 %v342
        %v546 = vunpack.c.l.b16 %v343
        %v547 = vunpack.c.h.b16 %v343
        %v548 = vunpack.c.l.b16 %v344
        %v549 = vunpack.c.h.b16 %v344
        %v550 = vunpack.c.l.b16 %v345
        %v551 = vunpack.c.h.b16 %v345
        %v552 = vunpack.c.l.b16 %v346
        %v553 = vunpack.c.h.b16 %v346
        %v554 = vunpack.c.l.b16 %v347
        %v555 = vunpack.c.h.b16 %v347
        %v556 = vunpack.c.l.b16 %v348
        %v557 = vunpack.c.h.b16 %v348
        %v558 = vunpack.c.l.b16 %v349
        %v559 = vunpack.c.h.b16 %v349
        %v560 = vunpack.c.l.b16 %v350
        %v561 = vunpack.c.h.b16 %v350
        %v562 = vunpack.c.l.b16 %v351
        %v563 = vunpack.c.h.b16 %v351
        %v564 = vunpack.c.l.b16 %v352
        %v565 = vunpack.c.h.b16 %v352
        %v566 = vunpack.c.l.b16 %v353
        %v567 = vunpack.c.h.b16 %v353
        %v568 = vunpack.c.l.b16 %v354
        %v569 = vunpack.c.h.b16 %v354
        %v570 = vunpack.c.l.b16 %v355
        %v571 = vunpack.c.h.b16 %v355
        %v572 = vunpack.c.l.b16 %v356
        %v573 = vunpack.c.h.b16 %v356
        %v574 = vunpack.c.l.b16 %v357
        %v575 = vunpack.c.h.b16 %v357
        %v576 = vunpack.c.l.b16 %v358
        %v577 = vunpack.c.h.b16 %v358
        %v578 = vunpack.c.l.b16 %v359
        %v579 = vunpack.c.h.b16 %v359
        %v580 = vunpack.c.l.b16 %v360
        %v581 = vunpack.c.h.b16 %v360
        %v582 = vunpack.c.l.b16 %v361
        %v583 = vunpack.c.h.b16 %v361
        %v584 = vunpack.c.l.b16 %v362
        %v585 = vunpack.c.h.b16 %v362
        %v586 = vunpack.c.l.b16 %v363
        %v587 = vunpack.c.h.b16 %v363
        %v588 = vunpack.c.l.b16 %v364
        %v589 = vunpack.c.h.b16 %v364
        %v590 = vunpack.c.l.b16 %v365
        %v591 = vunpack.c.h.b16 %v365
        %v592 = vunpack.c.l.b16 %v366
        %v593 = vunpack.c.h.b16 %v366
        %v594 = vunpack.c.l.b16 %v367
        %v595 = vunpack.c.h.b16 %v367
        %v596 = vunpack.c.l.b16 %v368
        %v597 = vunpack.c.h.b16 %v368
        %v598 = vunpack.c.l.b16 %v369
        %v599 = vunpack.c.h.b16 %v369
        %v600 = vunpack.c.l.b16 %v370
        %v601 = vunpack.c.h.b16 %v370
        %v602 = vunpack.c.l.b16 %v371
        %v603 = vunpack.c.h.b16 %v371
        %v604 = vunpack.c.l.b16 %v372
        %v605 = vunpack.c.h.b16 %v372
        %v606 = vunpack.c.l.b16 %v373
        %v607 = vunpack.c.h.b16 %v373
        %v608 = vunpack.c.l.b16 %v374
        %v609 = vunpack.c.h.b16 %v374
        %v610 = vunpack.c.l.b16 %v375
        %v611 = vunpack.c.h.b16 %v375
        %v612 = vunpack.c.l.b16 %v376
        %v613 = vunpack.c.h.b16 %v376
        %v614 = vunpack.c.l.b16 %v377
        %v615 = vunpack.c.h.b16 %v377
        %v616 = vunpack.c.l.b16 %v378
        %v617 = vunpack.c.h.b16 %v378
        %v618 = vunpack.c.l.b16 %v379
        %v619 = vunpack.c.h.b16 %v379
        %v620 = vunpack.c.l.b16 %v380
        %v621 = vunpack.c.h.b16 %v380
        %v622 = vunpack.c.l.b16 %v381
        %v623 = vunpack.c.h.b16 %v381
        %v624 = vunpack.c.l.b16 %v382
        %v625 = vunpack.c.h.b16 %v382
        %v626 = vunpack.c.l.b16 %v383
        %v627 = vunpack.c.h.b16 %v383
        %v628 = vunpack.c.l.b16 %v384
        %v629 = vunpack.c.h.b16 %v384
        %v630 = vunpack.c.l.b16 %v385
        %v631 = vunpack.c.h.b16 %v385
        %v632 = vunpack.c.l.b16 %v386
        %v633 = vunpack.c.h.b16 %v386
        %v634 = vunpack.c.l.b16 %v387
        %v635 = vunpack.c.h.b16 %v387
        %v636 = vunpack.c.l.b16 %v388
        %v637 = vunpack.c.h.b16 %v388
        %v638 = vunpack.c.l.b16 %v389
        %v639 = vunpack.c.h.b16 %v389
        %v640 = vunpack.c.l.b16 %v390
        %v641 = vunpack.c.h.b16 %v390
        %v642 = vunpack.c.l.b16 %v391
        %v643 = vunpack.c.h.b16 %v391
        %v644 = vunpack.c.l.b16 %v392
        %v645 = vunpack.c.h.b16 %v392
        %v646 = vunpack.c.l.b16 %v393
        %v647 = vunpack.c.h.b16 %v393
        %v648 = vunpack.c.l.b16 %v394
        %v649 = vunpack.c.h.b16 %v394
        %v650 = vunpack.c.l.b16 %v395
        %v651 = vunpack.c.h.b16 %v395
        %v652 = vunpack.c.l.b16 %v396
        %v653 = vunpack.c.h.b16 %v396
        %v654 = vunpack.c.l.b16 %v397
        %v655 = vunpack.c.h.b16 %v397
        %v656 = vunpack.c.l.b16 %v398
        %v657 = vunpack.c.h.b16 %v398
        %v658 = vunpack.c.l.b16 %v399
        %v659 = vunpack.c.h.b16 %v399
        %v660 = vpack.c.b16 %v536, %v532
        %v661 = vpack.c.b16 %v537, %v533
        %v662 = vpack.c.b16 %v538, %v534
        %v663 = vpack.c.b16 %v539, %v535
        %v664 = vpack.c.b16 %v544, %v540
        %v665 = vpack.c.b16 %v545, %v541
        %v666 = vpack.c.b16 %v546, %v542
        %v667 = vpack.c.b16 %v547, %v543
        %v668 = vpack.c.b16 %v552, %v548
        %v669 = vpack.c.b16 %v553, %v549
        %v670 = vpack.c.b16 %v554, %v550
        %v671 = vpack.c.b16 %v555, %v551
        %v672 = vpack.c.b16 %v560, %v556
        %v673 = vpack.c.b16 %v561, %v557
        %v674 = vpack.c.b16 %v562, %v558
        %v675 = vpack.c.b16 %v563, %v559
        %v676 = vpack.c.b16 %v568, %v564
        %v677 = vpack.c.b16 %v569, %v565
        %v678 = vpack.c.b16 %v570, %v566
        %v679 = vpack.c.b16 %v571, %v567
        %v680 = vpack.c.b16 %v576, %v572
        %v681 = vpack.c.b16 %v577, %v573
        %v682 = vpack.c.b16 %v578, %v574
        %v683 = vpack.c.b16 %v579, %v575
        %v684 = vpack.c.b16 %v584, %v580
        %v685 = vpack.c.b16 %v585, %v581
        %v686 = vpack.c.b16 %v586, %v582
        %v687 = vpack.c.b16 %v587, %v583
        %v688 = vpack.c.b16 %v592, %v588
        %v689 = vpack.c.b16 %v593, %v589
        %v690 = vpack.c.b16 %v594, %v590
        %v691 = vpack.c.b16 %v595, %v591
        %v692 = vpack.c.b16 %v600, %v596
        %v693 = vpack.c.b16 %v601, %v597
        %v694 = vpack.c.b16 %v602, %v598
        %v695 = vpack.c.b16 %v603, %v599
        %v696 = vpack.c.b16 %v608, %v604
        %v697 = vpack.c.b16 %v609, %v605
        %v698 = vpack.c.b16 %v610, %v606
        %v699 = vpack.c.b16 %v611, %v607
        %v700 = vpack.c.b16 %v616, %v612
        %v701 = vpack.c.b16 %v617, %v613
        %v702 = vpack.c.b16 %v618, %v614
        %v703 = vpack.c.b16 %v619, %v615
        %v704 = vpack.c.b16 %v624, %v620
        %v705 = vpack.c.b16 %v625, %v621
        %v706 = vpack.c.b16 %v626, %v622
        %v707 = vpack.c.b16 %v627, %v623
        %v708 = vpack.c.b16 %v632, %v628
        %v709 = vpack.c.b16 %v633, %v629
        %v710 = vpack.c.b16 %v634, %v630
        %v711 = vpack.c.b16 %v635, %v631
        %v712 = vpack.c.b16 %v640, %v636
        %v713 = vpack.c.b16 %v641, %v637
        %v714 = vpack.c.b16 %v642, %v638
        %v715 = vpack.c.b16 %v643, %v639
        %v716 = vpack.c.b16 %v648, %v644
        %v717 = vpack.c.b16 %v649, %v645
        %v718 = vpack.c.b16 %v650, %v646
        %v719 = vpack.c.b16 %v651, %v647
        %v720 = vpack.c.b16 %v656, %v652
        %v721 = vpack.c.b16 %v657, %v653
        %v722 = vpack.c.b16 %v658, %v654
        %v723 = vpack.c.b16 %v659, %v655
        %v852 = vunpack.c.l.b16 %v400
        %v853 = vunpack.c.l.b16 %v401
        %v854 = vunpack.c.l.b16 %v402
        %v855 = vunpack.c.l.b16 %v403
        %v856 = vunpack.c.l.b16 %v404
        %v857 = vunpack.c.l.b16 %v405
        %v858 = vunpack.c.l.b16 %v406
        %v859 = vunpack.c.l.b16 %v407
        %v860 = vunpack.c.l.b16 %v408
        %v861 = vunpack.c.l.b16 %v409
        %v862 = vunpack.c.l.b16 %v410
        %v863 = vunpack.c.l.b16 %v411
        %v864 = vunpack.c.l.b16 %v412
        %v865 = vunpack.c.l.b16 %v413
        %v866 = vunpack.c.l.b16 %v414
        %v867 = vunpack.c.l.b16 %v415
        %v868 = vunpack.c.l.b16 %v416
        %v869 = vunpack.c.l.b16 %v417
        %v870 = vunpack.c.l.b16 %v418
        %v871 = vunpack.c.l.b16 %v419
        %v872 = vunpack.c.l.b16 %v420
        %v873 = vunpack.c.l.b16 %v421
        %v874 = vunpack.c.l.b16 %v422
        %v875 = vunpack.c.l.b16 %v423
        %v876 = vunpack.c.l.b16 %v424
        %v877 = vunpack.c.l.b16 %v425
        %v878 = vunpack.c.l.b16 %v426
        %v879 = vunpack.c.l.b16 %v427
        %v880 = vunpack.c.l.b16 %v428
        %v881 = vunpack.c.l.b16 %v429
        %v882 = vunpack.c.l.b16 %v430
        %v883 = vunpack.c.l.b16 %v431
        %v884 = vunpack.c.l.b16 %v432
        %v885 = vunpack.c.l.b16 %v433
        %v886 = vunpack.c.l.b16 %v434
        %v887 = vunpack.c.l.b16 %v435
        %v888 = vunpack.c.l.b16 %v436
        %v889 = vunpack.c.l.b16 %v437
        %v890 = vunpack.c.l.b16 %v438
        %v891 = vunpack.c.l.b16 %v439
        %v892 = vunpack.c.l.b16 %v440
        %v893 = vunpack.c.l.b16 %v441
        %v894 = vunpack.c.l.b16 %v442
        %v895 = vunpack.c.l.b16 %v443
        %v896 = vunpack.c.l.b16 %v444
        %v897 = vunpack.c.l.b16 %v445
        %v898 = vunpack.c.l.b16 %v446
        %v899 = vunpack.c.l.b16 %v447
        %v900 = vunpack.c.l.b16 %v448
        %v901 = vunpack.c.l.b16 %v449
        %v902 = vunpack.c.l.b16 %v450
        %v903 = vunpack.c.l.b16 %v451
        %v904 = vunpack.c.l.b16 %v452
        %v905 = vunpack.c.l.b16 %v453
        %v906 = vunpack.c.l.b16 %v454
        %v907 = vunpack.c.l.b16 %v455
        %v908 = vunpack.c.l.b16 %v456
        %v909 = vunpack.c.l.b16 %v457
        %v910 = vunpack.c.l.b16 %v458
        %v911 = vunpack.c.l.b16 %v459
        %v912 = vunpack.c.l.b16 %v460
        %v913 = vunpack.c.l.b16 %v461
        %v914 = vunpack.c.l.b16 %v462
        %v915 = vunpack.c.l.b16 %v463
        %v916 = vpack.c.b16 %v853, %v852
        %v917 = vpack.c.b16 %v855, %v854
        %v918 = vpack.c.b16 %v857, %v856
        %v919 = vpack.c.b16 %v859, %v858
        %v920 = vpack.c.b16 %v861, %v860
        %v921 = vpack.c.b16 %v863, %v862
        %v922 = vpack.c.b16 %v865, %v864
        %v923 = vpack.c.b16 %v867, %v866
        %v924 = vpack.c.b16 %v869, %v868
        %v925 = vpack.c.b16 %v871, %v870
        %v926 = vpack.c.b16 %v873, %v872
        %v927 = vpack.c.b16 %v875, %v874
        %v928 = vpack.c.b16 %v877, %v876
        %v929 = vpack.c.b16 %v879, %v878
        %v930 = vpack.c.b16 %v881, %v880
        %v931 = vpack.c.b16 %v883, %v882
        %v932 = vpack.c.b16 %v885, %v884
        %v933 = vpack.c.b16 %v887, %v886
        %v934 = vpack.c.b16 %v889, %v888
        %v935 = vpack.c.b16 %v891, %v890
        %v936 = vpack.c.b16 %v893, %v892
        %v937 = vpack.c.b16 %v895, %v894
        %v938 = vpack.c.b16 %v897, %v896
        %v939 = vpack.c.b16 %v899, %v898
        %v940 = vpack.c.b16 %v901, %v900
        %v941 = vpack.c.b16 %v903, %v902
        %v942 = vpack.c.b16 %v905, %v904
        %v943 = vpack.c.b16 %v907, %v906
        %v944 = vpack.c.b16 %v909, %v908
        %v945 = vpack.c.b16 %v911, %v910
        %v946 = vpack.c.b16 %v913, %v912
        %v947 = vpack.c.b16 %v915, %v914
        %980 = vmatpush.bf16.msra.mxu0 %v923
        %981 = vmatpush.bf16.msra.mxu0 %v922
        %982 = vmatpush.bf16.msra.mxu0 %v921
        %983 = vmatpush.bf16.msra.mxu0 %v920
        %984 = vmatpush.bf16.msra.mxu0 %v919
        %985 = vmatpush.bf16.msra.mxu0 %v918
        %986 = vmatpush.bf16.msra.mxu0 %v917
        %987 = vmatpush.bf16.msra.mxu0 %v916
        %988 = vmatmul.bf16.gmra.mxu0 %v660
        %v989 = vpop.f32.mrf.mxu0
        %v990 = vadd.f32 %v466, %v989
        %v991 = vpop.f32.mrf.mxu0
        %v992 = vadd.f32 %v466, %v991
        %993 = vmatmul.bf16.gmra.mxu0 %v664
        %v994 = vpop.f32.mrf.mxu0
        %v995 = vadd.f32 %v466, %v994
        %v996 = vpop.f32.mrf.mxu0
        %v997 = vadd.f32 %v466, %v996
        %998 = vmatmul.bf16.gmra.mxu0 %v668
        %v999 = vpop.f32.mrf.mxu0
        %v1000 = vadd.f32 %v466, %v999
        %v1001 = vpop.f32.mrf.mxu0
        %v1002 = vadd.f32 %v466, %v1001
        %1003 = vmatmul.bf16.gmra.mxu0 %v672
        %v1004 = vpop.f32.mrf.mxu0
        %v1005 = vadd.f32 %v466, %v1004
        %v1006 = vpop.f32.mrf.mxu0
        %v1007 = vadd.f32 %v466, %v1006
        %1008 = vmatmul.bf16.gmra.mxu0 %v676
        %v1009 = vpop.f32.mrf.mxu0
        %v1010 = vadd.f32 %v466, %v1009
        %v1011 = vpop.f32.mrf.mxu0
        %v1012 = vadd.f32 %v466, %v1011
        %1013 = vmatmul.bf16.gmra.mxu0 %v680
        %v1014 = vpop.f32.mrf.mxu0
        %v1015 = vadd.f32 %v466, %v1014
        %v1016 = vpop.f32.mrf.mxu0
        %v1017 = vadd.f32 %v466, %v1016
        %1018 = vmatmul.bf16.gmra.mxu0 %v684
        %v1019 = vpop.f32.mrf.mxu0
        %v1020 = vadd.f32 %v466, %v1019
        %v1021 = vpop.f32.mrf.mxu0
        %v1022 = vadd.f32 %v466, %v1021
        %1023 = vmatmul.bf16.gmra.mxu0 %v688
        %v1024 = vpop.f32.mrf.mxu0
        %v1025 = vadd.f32 %v466, %v1024
        %v1026 = vpop.f32.mrf.mxu0
        %v1027 = vadd.f32 %v466, %v1026
        %1028 = vmatmul.bf16.gmra.mxu0 %v692
        %v1029 = vpop.f32.mrf.mxu0
        %v1030 = vadd.f32 %v466, %v1029
        %v1031 = vpop.f32.mrf.mxu0
        %v1032 = vadd.f32 %v466, %v1031
        %1033 = vmatmul.bf16.gmra.mxu0 %v696
        %v1034 = vpop.f32.mrf.mxu0
        %v1035 = vadd.f32 %v466, %v1034
        %v1036 = vpop.f32.mrf.mxu0
        %v1037 = vadd.f32 %v466, %v1036
        %1038 = vmatmul.bf16.gmra.mxu0 %v700
        %v1039 = vpop.f32.mrf.mxu0
        %v1040 = vadd.f32 %v466, %v1039
        %v1041 = vpop.f32.mrf.mxu0
        %v1042 = vadd.f32 %v466, %v1041
        %1043 = vmatmul.bf16.gmra.mxu0 %v704
        %v1044 = vpop.f32.mrf.mxu0
        %v1045 = vadd.f32 %v466, %v1044
        %v1046 = vpop.f32.mrf.mxu0
        %v1047 = vadd.f32 %v466, %v1046
        %1048 = vmatmul.bf16.gmra.mxu0 %v708
        %v1049 = vpop.f32.mrf.mxu0
        %v1050 = vadd.f32 %v466, %v1049
        %v1051 = vpop.f32.mrf.mxu0
        %v1052 = vadd.f32 %v466, %v1051
        %1053 = vmatmul.bf16.gmra.mxu0 %v712
        %v1054 = vpop.f32.mrf.mxu0
        %v1055 = vadd.f32 %v466, %v1054
        %v1056 = vpop.f32.mrf.mxu0
        %v1057 = vadd.f32 %v466, %v1056
        %1058 = vmatmul.bf16.gmra.mxu0 %v716
        %v1059 = vpop.f32.mrf.mxu0
        %v1060 = vadd.f32 %v466, %v1059
        %v1061 = vpop.f32.mrf.mxu0
        %v1062 = vadd.f32 %v466, %v1061
        %1063 = vmatmul.bf16.gmra.mxu0 %v720
        %v1064 = vpop.f32.mrf.mxu0
        %v1065 = vadd.f32 %v466, %v1064
        %v1066 = vpop.f32.mrf.mxu0
        %v1067 = vadd.f32 %v466, %v1066
        %1068 = vdwg.mxu0
        %1069 = vmatpush.bf16.msra.mxu0 %v931
        %1070 = vmatpush.bf16.msra.mxu0 %v930
        %1071 = vmatpush.bf16.msra.mxu0 %v929
        %1072 = vmatpush.bf16.msra.mxu0 %v928
        %1073 = vmatpush.bf16.msra.mxu0 %v927
        %1074 = vmatpush.bf16.msra.mxu0 %v926
        %1075 = vmatpush.bf16.msra.mxu0 %v925
        %1076 = vmatpush.bf16.msra.mxu0 %v924
        %1077 = vmatmul.bf16.gmra.mxu0 %v661
        %v1078 = vpop.f32.mrf.mxu0
        %v1079 = vadd.f32 %v990, %v1078
        %v1080 = vpop.f32.mrf.mxu0
        %v1081 = vadd.f32 %v992, %v1080
        %1082 = vmatmul.bf16.gmra.mxu0 %v665
        %v1083 = vpop.f32.mrf.mxu0
        %v1084 = vadd.f32 %v995, %v1083
        %v1085 = vpop.f32.mrf.mxu0
        %v1086 = vadd.f32 %v997, %v1085
        %1087 = vmatmul.bf16.gmra.mxu0 %v669
        %v1088 = vpop.f32.mrf.mxu0
        %v1089 = vadd.f32 %v1000, %v1088
        %v1090 = vpop.f32.mrf.mxu0
        %v1091 = vadd.f32 %v1002, %v1090
        %1092 = vmatmul.bf16.gmra.mxu0 %v673
        %v1093 = vpop.f32.mrf.mxu0
        %v1094 = vadd.f32 %v1005, %v1093
        %v1095 = vpop.f32.mrf.mxu0
        %v1096 = vadd.f32 %v1007, %v1095
        %1097 = vmatmul.bf16.gmra.mxu0 %v677
        %v1098 = vpop.f32.mrf.mxu0
        %v1099 = vadd.f32 %v1010, %v1098
        %v1100 = vpop.f32.mrf.mxu0
        %v1101 = vadd.f32 %v1012, %v1100
        %1102 = vmatmul.bf16.gmra.mxu0 %v681
        %v1103 = vpop.f32.mrf.mxu0
        %v1104 = vadd.f32 %v1015, %v1103
        %v1105 = vpop.f32.mrf.mxu0
        %v1106 = vadd.f32 %v1017, %v1105
        %1107 = vmatmul.bf16.gmra.mxu0 %v685
        %v1108 = vpop.f32.mrf.mxu0
        %v1109 = vadd.f32 %v1020, %v1108
        %v1110 = vpop.f32.mrf.mxu0
        %v1111 = vadd.f32 %v1022, %v1110
        %1112 = vmatmul.bf16.gmra.mxu0 %v689
        %v1113 = vpop.f32.mrf.mxu0
        %v1114 = vadd.f32 %v1025, %v1113
        %v1115 = vpop.f32.mrf.mxu0
        %v1116 = vadd.f32 %v1027, %v1115
        %1117 = vmatmul.bf16.gmra.mxu0 %v693
        %v1118 = vpop.f32.mrf.mxu0
        %v1119 = vadd.f32 %v1030, %v1118
        %v1120 = vpop.f32.mrf.mxu0
        %v1121 = vadd.f32 %v1032, %v1120
        %1122 = vmatmul.bf16.gmra.mxu0 %v697
        %v1123 = vpop.f32.mrf.mxu0
        %v1124 = vadd.f32 %v1035, %v1123
        %v1125 = vpop.f32.mrf.mxu0
        %v1126 = vadd.f32 %v1037, %v1125
        %1127 = vmatmul.bf16.gmra.mxu0 %v701
        %v1128 = vpop.f32.mrf.mxu0
        %v1129 = vadd.f32 %v1040, %v1128
        %v1130 = vpop.f32.mrf.mxu0
        %v1131 = vadd.f32 %v1042, %v1130
        %1132 = vmatmul.bf16.gmra.mxu0 %v705
        %v1133 = vpop.f32.mrf.mxu0
        %v1134 = vadd.f32 %v1045, %v1133
        %v1135 = vpop.f32.mrf.mxu0
        %v1136 = vadd.f32 %v1047, %v1135
        %1137 = vmatmul.bf16.gmra.mxu0 %v709
        %v1138 = vpop.f32.mrf.mxu0
        %v1139 = vadd.f32 %v1050, %v1138
        %v1140 = vpop.f32.mrf.mxu0
        %v1141 = vadd.f32 %v1052, %v1140
        %1142 = vmatmul.bf16.gmra.mxu0 %v713
        %v1143 = vpop.f32.mrf.mxu0
        %v1144 = vadd.f32 %v1055, %v1143
        %v1145 = vpop.f32.mrf.mxu0
        %v1146 = vadd.f32 %v1057, %v1145
        %1147 = vmatmul.bf16.gmra.mxu0 %v717
        %v1148 = vpop.f32.mrf.mxu0
        %v1149 = vadd.f32 %v1060, %v1148
        %v1150 = vpop.f32.mrf.mxu0
        %v1151 = vadd.f32 %v1062, %v1150
        %1152 = vmatmul.bf16.gmra.mxu0 %v721
        %v1153 = vpop.f32.mrf.mxu0
        %v1154 = vadd.f32 %v1065, %v1153
        %v1155 = vpop.f32.mrf.mxu0
        %v1156 = vadd.f32 %v1067, %v1155
        %1157 = vdwg.mxu0
        %1158 = vmatpush.bf16.msra.mxu0 %v939
        %1159 = vmatpush.bf16.msra.mxu0 %v938
        %1160 = vmatpush.bf16.msra.mxu0 %v937
        %1161 = vmatpush.bf16.msra.mxu0 %v936
        %1162 = vmatpush.bf16.msra.mxu0 %v935
        %1163 = vmatpush.bf16.msra.mxu0 %v934
        %1164 = vmatpush.bf16.msra.mxu0 %v933
        %1165 = vmatpush.bf16.msra.mxu0 %v932
        %1166 = vmatmul.bf16.gmra.mxu0 %v662
        %v1167 = vpop.f32.mrf.mxu0
        %v1168 = vadd.f32 %v1079, %v1167
        %v1169 = vpop.f32.mrf.mxu0
        %v1170 = vadd.f32 %v1081, %v1169
        %1171 = vmatmul.bf16.gmra.mxu0 %v666
        %v1172 = vpop.f32.mrf.mxu0
        %v1173 = vadd.f32 %v1084, %v1172
        %v1174 = vpop.f32.mrf.mxu0
        %v1175 = vadd.f32 %v1086, %v1174
        %1176 = vmatmul.bf16.gmra.mxu0 %v670
        %v1177 = vpop.f32.mrf.mxu0
        %v1178 = vadd.f32 %v1089, %v1177
        %v1179 = vpop.f32.mrf.mxu0
        %v1180 = vadd.f32 %v1091, %v1179
        %1181 = vmatmul.bf16.gmra.mxu0 %v674
        %v1182 = vpop.f32.mrf.mxu0
        %v1183 = vadd.f32 %v1094, %v1182
        %v1184 = vpop.f32.mrf.mxu0
        %v1185 = vadd.f32 %v1096, %v1184
        %1186 = vmatmul.bf16.gmra.mxu0 %v678
        %v1187 = vpop.f32.mrf.mxu0
        %v1188 = vadd.f32 %v1099, %v1187
        %v1189 = vpop.f32.mrf.mxu0
        %v1190 = vadd.f32 %v1101, %v1189
        %1191 = vmatmul.bf16.gmra.mxu0 %v682
        %v1192 = vpop.f32.mrf.mxu0
        %v1193 = vadd.f32 %v1104, %v1192
        %v1194 = vpop.f32.mrf.mxu0
        %v1195 = vadd.f32 %v1106, %v1194
        %1196 = vmatmul.bf16.gmra.mxu0 %v686
        %v1197 = vpop.f32.mrf.mxu0
        %v1198 = vadd.f32 %v1109, %v1197
        %v1199 = vpop.f32.mrf.mxu0
        %v1200 = vadd.f32 %v1111, %v1199
        %1201 = vmatmul.bf16.gmra.mxu0 %v690
        %v1202 = vpop.f32.mrf.mxu0
        %v1203 = vadd.f32 %v1114, %v1202
        %v1204 = vpop.f32.mrf.mxu0
        %v1205 = vadd.f32 %v1116, %v1204
        %1206 = vmatmul.bf16.gmra.mxu0 %v694
        %v1207 = vpop.f32.mrf.mxu0
        %v1208 = vadd.f32 %v1119, %v1207
        %v1209 = vpop.f32.mrf.mxu0
        %v1210 = vadd.f32 %v1121, %v1209
        %1211 = vmatmul.bf16.gmra.mxu0 %v698
        %v1212 = vpop.f32.mrf.mxu0
        %v1213 = vadd.f32 %v1124, %v1212
        %v1214 = vpop.f32.mrf.mxu0
        %v1215 = vadd.f32 %v1126, %v1214
        %1216 = vmatmul.bf16.gmra.mxu0 %v702
        %v1217 = vpop.f32.mrf.mxu0
        %v1218 = vadd.f32 %v1129, %v1217
        %v1219 = vpop.f32.mrf.mxu0
        %v1220 = vadd.f32 %v1131, %v1219
        %1221 = vmatmul.bf16.gmra.mxu0 %v706
        %v1222 = vpop.f32.mrf.mxu0
        %v1223 = vadd.f32 %v1134, %v1222
        %v1224 = vpop.f32.mrf.mxu0
        %v1225 = vadd.f32 %v1136, %v1224
        %1226 = vmatmul.bf16.gmra.mxu0 %v710
        %v1227 = vpop.f32.mrf.mxu0
        %v1228 = vadd.f32 %v1139, %v1227
        %v1229 = vpop.f32.mrf.mxu0
        %v1230 = vadd.f32 %v1141, %v1229
        %1231 = vmatmul.bf16.gmra.mxu0 %v714
        %v1232 = vpop.f32.mrf.mxu0
        %v1233 = vadd.f32 %v1144, %v1232
        %v1234 = vpop.f32.mrf.mxu0
        %v1235 = vadd.f32 %v1146, %v1234
        %1236 = vmatmul.bf16.gmra.mxu0 %v718
        %v1237 = vpop.f32.mrf.mxu0
        %v1238 = vadd.f32 %v1149, %v1237
        %v1239 = vpop.f32.mrf.mxu0
        %v1240 = vadd.f32 %v1151, %v1239
        %1241 = vmatmul.bf16.gmra.mxu0 %v722
        %v1242 = vpop.f32.mrf.mxu0
        %v1243 = vadd.f32 %v1154, %v1242
        %v1244 = vpop.f32.mrf.mxu0
        %v1245 = vadd.f32 %v1156, %v1244
        %1246 = vdwg.mxu0
        %1247 = vmatpush.bf16.msra.mxu0 %v947
        %1248 = vmatpush.bf16.msra.mxu0 %v946
        %1249 = vmatpush.bf16.msra.mxu0 %v945
        %1250 = vmatpush.bf16.msra.mxu0 %v944
        %1251 = vmatpush.bf16.msra.mxu0 %v943
        %1252 = vmatpush.bf16.msra.mxu0 %v942
        %1253 = vmatpush.bf16.msra.mxu0 %v941
        %1254 = vmatpush.bf16.msra.mxu0 %v940
        %1255 = vmatmul.bf16.gmra.mxu0 %v663
        %v1256 = vpop.f32.mrf.mxu0
        %v1257 = vadd.f32 %v1168, %v1256
        %v1258 = vpop.f32.mrf.mxu0
        %v1259 = vadd.f32 %v1170, %v1258
        %1260 = vmatmul.bf16.gmra.mxu0 %v667
        %v1261 = vpop.f32.mrf.mxu0
        %v1262 = vadd.f32 %v1173, %v1261
        %v1263 = vpop.f32.mrf.mxu0
        %v1264 = vadd.f32 %v1175, %v1263
        %1265 = vmatmul.bf16.gmra.mxu0 %v671
        %v1266 = vpop.f32.mrf.mxu0
        %v1267 = vadd.f32 %v1178, %v1266
        %v1268 = vpop.f32.mrf.mxu0
        %v1269 = vadd.f32 %v1180, %v1268
        %1270 = vmatmul.bf16.gmra.mxu0 %v675
        %v1271 = vpop.f32.mrf.mxu0
        %v1272 = vadd.f32 %v1183, %v1271
        %v1273 = vpop.f32.mrf.mxu0
        %v1274 = vadd.f32 %v1185, %v1273
        %1275 = vmatmul.bf16.gmra.mxu0 %v679
        %v1276 = vpop.f32.mrf.mxu0
        %v1277 = vadd.f32 %v1188, %v1276
        %v1278 = vpop.f32.mrf.mxu0
        %v1279 = vadd.f32 %v1190, %v1278
        %1280 = vmatmul.bf16.gmra.mxu0 %v683
        %v1281 = vpop.f32.mrf.mxu0
        %v1282 = vadd.f32 %v1193, %v1281
        %v1283 = vpop.f32.mrf.mxu0
        %v1284 = vadd.f32 %v1195, %v1283
        %1285 = vmatmul.bf16.gmra.mxu0 %v687
        %v1286 = vpop.f32.mrf.mxu0
        %v1287 = vadd.f32 %v1198, %v1286
        %v1288 = vpop.f32.mrf.mxu0
        %v1289 = vadd.f32 %v1200, %v1288
        %1290 = vmatmul.bf16.gmra.mxu0 %v691
        %v1291 = vpop.f32.mrf.mxu0
        %v1292 = vadd.f32 %v1203, %v1291
        %v1293 = vpop.f32.mrf.mxu0
        %v1294 = vadd.f32 %v1205, %v1293
        %1295 = vmatmul.bf16.gmra.mxu0 %v695
        %v1296 = vpop.f32.mrf.mxu0
        %v1297 = vadd.f32 %v1208, %v1296
        %v1298 = vpop.f32.mrf.mxu0
        %v1299 = vadd.f32 %v1210, %v1298
        %1300 = vmatmul.bf16.gmra.mxu0 %v699
        %v1301 = vpop.f32.mrf.mxu0
        %v1302 = vadd.f32 %v1213, %v1301
        %v1303 = vpop.f32.mrf.mxu0
        %v1304 = vadd.f32 %v1215, %v1303
        %1305 = vmatmul.bf16.gmra.mxu0 %v703
        %v1306 = vpop.f32.mrf.mxu0
        %v1307 = vadd.f32 %v1218, %v1306
        %v1308 = vpop.f32.mrf.mxu0
        %v1309 = vadd.f32 %v1220, %v1308
        %1310 = vmatmul.bf16.gmra.mxu0 %v707
        %v1311 = vpop.f32.mrf.mxu0
        %v1312 = vadd.f32 %v1223, %v1311
        %v1313 = vpop.f32.mrf.mxu0
        %v1314 = vadd.f32 %v1225, %v1313
        %1315 = vmatmul.bf16.gmra.mxu0 %v711
        %v1316 = vpop.f32.mrf.mxu0
        %v1317 = vadd.f32 %v1228, %v1316
        %v1318 = vpop.f32.mrf.mxu0
        %v1319 = vadd.f32 %v1230, %v1318
        %1320 = vmatmul.bf16.gmra.mxu0 %v715
        %v1321 = vpop.f32.mrf.mxu0
        %v1322 = vadd.f32 %v1233, %v1321
        %v1323 = vpop.f32.mrf.mxu0
        %v1324 = vadd.f32 %v1235, %v1323
        %1325 = vmatmul.bf16.gmra.mxu0 %v719
        %v1326 = vpop.f32.mrf.mxu0
        %v1327 = vadd.f32 %v1238, %v1326
        %v1328 = vpop.f32.mrf.mxu0
        %v1329 = vadd.f32 %v1240, %v1328
        %1330 = vmatmul.bf16.gmra.mxu0 %v723
        %v1331 = vpop.f32.mrf.mxu0
        %v1332 = vadd.f32 %v1243, %v1331
        %v1333 = vpop.f32.mrf.mxu0
        %v1334 = vadd.f32 %v1245, %v1333
        %1335 = vdwg.mxu0
        %v1336 = vmax.f32 %v1257, 0.0
        %v1337 = vmax.f32 %v1259, 0.0
        %v1338 = vmax.f32 %v1262, 0.0
        %v1339 = vmax.f32 %v1264, 0.0
        %v1340 = vmax.f32 %v1267, 0.0
        %v1341 = vmax.f32 %v1269, 0.0
        %v1342 = vmax.f32 %v1272, 0.0
        %v1343 = vmax.f32 %v1274, 0.0
        %v1344 = vmax.f32 %v1277, 0.0
        %v1345 = vmax.f32 %v1279, 0.0
        %v1346 = vmax.f32 %v1282, 0.0
        %v1347 = vmax.f32 %v1284, 0.0
        %v1348 = vmax.f32 %v1287, 0.0
        %v1349 = vmax.f32 %v1289, 0.0
        %v1350 = vmax.f32 %v1292, 0.0
        %v1351 = vmax.f32 %v1294, 0.0
        %v1352 = vmax.f32 %v1297, 0.0
        %v1353 = vmax.f32 %v1299, 0.0
        %v1354 = vmax.f32 %v1302, 0.0
        %v1355 = vmax.f32 %v1304, 0.0
        %v1356 = vmax.f32 %v1307, 0.0
        %v1357 = vmax.f32 %v1309, 0.0
        %v1358 = vmax.f32 %v1312, 0.0
        %v1359 = vmax.f32 %v1314, 0.0
        %v1360 = vmax.f32 %v1317, 0.0
        %v1361 = vmax.f32 %v1319, 0.0
        %v1362 = vmax.f32 %v1322, 0.0
        %v1363 = vmax.f32 %v1324, 0.0
        %v1364 = vmax.f32 %v1327, 0.0
        %v1365 = vmax.f32 %v1329, 0.0
        %v1366 = vmax.f32 %v1332, 0.0
        %v1367 = vmax.f32 %v1334, 0.0
        %1368 = vst [vmem:[#allocation2] sm:$0xff] %v1336
        %1369 = vst [vmem:[#allocation2 + $0x8] sm:$0xff] %v1337
        %1370 = vst [vmem:[#allocation2 + $0x10] sm:$0xff] %v1338
        %1371 = vst [vmem:[#allocation2 + $0x18] sm:$0xff] %v1339
        %s1372 = scalar_lea.vmem [#allocation2], 32
        %1373 = vst [vmem:[%s1372] sm:$0xff] %v1340
        %1374 = vst [vmem:[%s1372 + $0x8] sm:$0xff] %v1341
        %1375 = vst [vmem:[%s1372 + $0x10] sm:$0xff] %v1342
        %1376 = vst [vmem:[%s1372 + $0x18] sm:$0xff] %v1343
        %s1377 = scalar_lea.vmem [#allocation2], 64
        %1378 = vst [vmem:[%s1377] sm:$0xff] %v1344
        %1379 = vst [vmem:[%s1377 + $0x8] sm:$0xff] %v1345
        %1380 = vst [vmem:[%s1377 + $0x10] sm:$0xff] %v1346
        %1381 = vst [vmem:[%s1377 + $0x18] sm:$0xff] %v1347
        %s1382 = scalar_lea.vmem [#allocation2], 96
        %1383 = vst [vmem:[%s1382] sm:$0xff] %v1348
        %1384 = vst [vmem:[%s1382 + $0x8] sm:$0xff] %v1349
        %1385 = vst [vmem:[%s1382 + $0x10] sm:$0xff] %v1350
        %1386 = vst [vmem:[%s1382 + $0x18] sm:$0xff] %v1351
        %s1387 = scalar_lea.vmem [#allocation2], 128
        %1388 = vst [vmem:[%s1387] sm:$0xff] %v1352
        %1389 = vst [vmem:[%s1387 + $0x8] sm:$0xff] %v1353
        %1390 = vst [vmem:[%s1387 + $0x10] sm:$0xff] %v1354
        %1391 = vst [vmem:[%s1387 + $0x18] sm:$0xff] %v1355
        %s1392 = scalar_lea.vmem [#allocation2], 160
        %1393 = vst [vmem:[%s1392] sm:$0xff] %v1356
        %1394 = vst [vmem:[%s1392 + $0x8] sm:$0xff] %v1357
        %1395 = vst [vmem:[%s1392 + $0x10] sm:$0xff] %v1358
        %1396 = vst [vmem:[%s1392 + $0x18] sm:$0xff] %v1359
        %s1397 = scalar_lea.vmem [#allocation2], 192
        %1398 = vst [vmem:[%s1397] sm:$0xff] %v1360
        %1399 = vst [vmem:[%s1397 + $0x8] sm:$0xff] %v1361
        %1400 = vst [vmem:[%s1397 + $0x10] sm:$0xff] %v1362
        %1401 = vst [vmem:[%s1397 + $0x18] sm:$0xff] %v1363
        %s1402 = scalar_lea.vmem [#allocation2], 224
        %1403 = vst [vmem:[%s1402] sm:$0xff] %v1364
        %1404 = vst [vmem:[%s1402 + $0x8] sm:$0xff] %v1365
        %1405 = vst [vmem:[%s1402 + $0x10] sm:$0xff] %v1366
        %1406 = vst [vmem:[%s1402 + $0x18] sm:$0xff] %v1367
        %v1407 = vld [vmem:[#allocation2] sm:$0xff]
        %v1408 = vld [vmem:[#allocation2 + $0x8] sm:$0x7f]
        %v1409 = vld [vmem:[#allocation2 + $0x20] sm:$0xff]
        %v1410 = vld [vmem:[#allocation2 + $0x28] sm:$0x7f]
        %v1411 = vld [vmem:[#allocation2 + $0x40] sm:$0xff]
        %v1412 = vld [vmem:[#allocation2 + $0x48] sm:$0x7f]
        %v1413 = vld [vmem:[#allocation2 + $0x60] sm:$0xff]
        %v1414 = vld [vmem:[#allocation2 + $0x68] sm:$0x7f]
        %v1415 = vld [vmem:[#allocation2 + $0x80] sm:$0xff]
        %v1416 = vld [vmem:[#allocation2 + $0x88] sm:$0x7f]
        %v1417 = vld [vmem:[#allocation2 + $0xa0] sm:$0xff]
        %v1418 = vld [vmem:[#allocation2 + $0xa8] sm:$0x7f]
        %v1419 = vld [vmem:[#allocation2 + $0xc0] sm:$0xff]
        %v1420 = vld [vmem:[#allocation2 + $0xc8] sm:$0x7f]
        %v1421 = vld [vmem:[#allocation2 + $0xe0] sm:$0xff]
        %v1422 = vld [vmem:[#allocation2 + $0xe8] sm:$0x7f]
        %v1423 = vpack.c.bf16 %v1407, %v1407
        %v1424 = vpack.c.bf16 %v1409, %v1409
        %v1425 = vpack.c.bf16 %v1411, %v1411
        %v1426 = vpack.c.bf16 %v1413, %v1413
        %v1427 = vpack.c.bf16 %v1415, %v1415
        %v1428 = vpack.c.bf16 %v1417, %v1417
        %v1429 = vpack.c.bf16 %v1419, %v1419
        %v1430 = vpack.c.bf16 %v1421, %v1421
        %v1431 = vld [vmem:[%s3] sm:$0xff]
        %v1432 = vld [vmem:[%s3 + $0x8] sm:$0xff]
        %v1433 = vld [vmem:[%s3 + $0x10] sm:$0xff]
        %v1434 = vld [vmem:[%s3 + $0x18] sm:$0xff]
        %v1435 = vld [vmem:[%s3 + $0x20] sm:$0xff]
        %v1436 = vld [vmem:[%s3 + $0x28] sm:$0xff]
        %v1437 = vld [vmem:[%s3 + $0x30] sm:$0xff]
        %v1438 = vld [vmem:[%s3 + $0x38] sm:$0xff]
        %v1439 = vld [vmem:[%s3 + $0x40] sm:$0xff]
        %v1440 = vld [vmem:[%s3 + $0x48] sm:$0xff]
        %v1441 = vld [vmem:[%s3 + $0x50] sm:$0xff]
        %v1442 = vld [vmem:[%s3 + $0x58] sm:$0xff]
        %v1443 = vld [vmem:[%s3 + $0x60] sm:$0xff]
        %v1444 = vld [vmem:[%s3 + $0x68] sm:$0xff]
        %v1445 = vld [vmem:[%s3 + $0x70] sm:$0xff]
        %v1446 = vld [vmem:[%s3 + $0x78] sm:$0xff]
        %s1447 = scalar_lea.vmem %s3, 128
        %v1448 = vld [vmem:[%s1447] sm:$0xff]
        %v1449 = vld [vmem:[%s1447 + $0x8] sm:$0xff]
        %v1450 = vld [vmem:[%s1447 + $0x10] sm:$0xff]
        %v1451 = vld [vmem:[%s1447 + $0x18] sm:$0xff]
        %v1452 = vld [vmem:[%s1447 + $0x20] sm:$0xff]
        %v1453 = vld [vmem:[%s1447 + $0x28] sm:$0xff]
        %v1454 = vld [vmem:[%s1447 + $0x30] sm:$0xff]
        %v1455 = vld [vmem:[%s1447 + $0x38] sm:$0xff]
        %v1456 = vld [vmem:[%s1447 + $0x40] sm:$0xff]
        %v1457 = vld [vmem:[%s1447 + $0x48] sm:$0xff]
        %v1458 = vld [vmem:[%s1447 + $0x50] sm:$0xff]
        %v1459 = vld [vmem:[%s1447 + $0x58] sm:$0xff]
        %v1460 = vld [vmem:[%s1447 + $0x60] sm:$0xff]
        %v1461 = vld [vmem:[%s1447 + $0x68] sm:$0xff]
        %v1462 = vld [vmem:[%s1447 + $0x70] sm:$0xff]
        %v1463 = vld [vmem:[%s1447 + $0x78] sm:$0xff]
        %v1472 = vunpack.c.l.b16 %v1423
        %v1473 = vunpack.c.l.b16 %v1424
        %v1474 = vunpack.c.l.b16 %v1425
        %v1475 = vunpack.c.l.b16 %v1426
        %v1476 = vunpack.c.l.b16 %v1427
        %v1477 = vunpack.c.l.b16 %v1428
        %v1478 = vunpack.c.l.b16 %v1429
        %v1479 = vunpack.c.l.b16 %v1430
        %v1480 = vrot.slane %v1472, 1
        %vm1481 = vcmask 1041409
        %v1482 = vsel %vm1481, %v1473, %v1480
        %v1483 = vrot.slane %v1474, 7
        %vm1484 = vcmask 1042434
        %v1485 = vsel %vm1484, %v1483, %v1482
        %v1486 = vrot.slane %v1475, 6
        %vm1487 = vcmask 1043459
        %v1488 = vsel %vm1487, %v1486, %v1485
        %v1489 = vrot.slane %v1476, 5
        %vm1490 = vcmask 1044484
        %v1491 = vsel %vm1490, %v1489, %v1488
        %v1492 = vrot.slane %v1477, 4
        %vm1493 = vcmask 1045509
        %v1494 = vsel %vm1493, %v1492, %v1491
        %v1495 = vrot.slane %v1478, 3
        %vm1496 = vcmask 1046534
        %v1497 = vsel %vm1496, %v1495, %v1494
        %v1498 = vrot.slane %v1479, 2
        %vm1499 = vcmask 1047559
        %v1500 = vsel %vm1499, %v1498, %v1497
        %v1501 = vpack.c.b16 %v1500, %v1500
        %v1519 = vunpack.c.l.b16 %v1448
        %v1520 = vunpack.c.h.b16 %v1448
        %v1521 = vunpack.c.l.b16 %v1449
        %v1522 = vunpack.c.h.b16 %v1449
        %v1523 = vunpack.c.l.b16 %v1450
        %v1524 = vunpack.c.h.b16 %v1450
        %v1525 = vunpack.c.l.b16 %v1451
        %v1526 = vunpack.c.h.b16 %v1451
        %v1527 = vunpack.c.l.b16 %v1452
        %v1528 = vunpack.c.h.b16 %v1452
        %v1529 = vunpack.c.l.b16 %v1453
        %v1530 = vunpack.c.h.b16 %v1453
        %v1531 = vunpack.c.l.b16 %v1454
        %v1532 = vunpack.c.h.b16 %v1454
        %v1533 = vunpack.c.l.b16 %v1455
        %v1534 = vunpack.c.h.b16 %v1455
        %v1535 = vunpack.c.l.b16 %v1456
        %v1536 = vunpack.c.h.b16 %v1456
        %v1537 = vunpack.c.l.b16 %v1457
        %v1538 = vunpack.c.h.b16 %v1457
        %v1539 = vunpack.c.l.b16 %v1458
        %v1540 = vunpack.c.h.b16 %v1458
        %v1541 = vunpack.c.l.b16 %v1459
        %v1542 = vunpack.c.h.b16 %v1459
        %v1543 = vunpack.c.l.b16 %v1460
        %v1544 = vunpack.c.h.b16 %v1460
        %v1545 = vunpack.c.l.b16 %v1461
        %v1546 = vunpack.c.h.b16 %v1461
        %v1547 = vunpack.c.l.b16 %v1462
        %v1548 = vunpack.c.h.b16 %v1462
        %v1549 = vunpack.c.l.b16 %v1463
        %v1550 = vunpack.c.h.b16 %v1463
        %v1551 = vpack.c.b16 %v1521, %v1519
        %v1552 = vpack.c.b16 %v1522, %v1520
        %v1553 = vpack.c.b16 %v1525, %v1523
        %v1554 = vpack.c.b16 %v1526, %v1524
        %v1555 = vpack.c.b16 %v1529, %v1527
        %v1556 = vpack.c.b16 %v1530, %v1528
        %v1557 = vpack.c.b16 %v1533, %v1531
        %v1558 = vpack.c.b16 %v1534, %v1532
        %v1559 = vpack.c.b16 %v1537, %v1535
        %v1560 = vpack.c.b16 %v1538, %v1536
        %v1561 = vpack.c.b16 %v1541, %v1539
        %v1562 = vpack.c.b16 %v1542, %v1540
        %v1563 = vpack.c.b16 %v1545, %v1543
        %v1564 = vpack.c.b16 %v1546, %v1544
        %v1565 = vpack.c.b16 %v1549, %v1547
        %v1566 = vpack.c.b16 %v1550, %v1548
        %1583 = vmatpush.bf16.msra.mxu0 %v1565
        %1584 = vmatpush.bf16.msra.mxu0 %v1563
        %1585 = vmatpush.bf16.msra.mxu0 %v1561
        %1586 = vmatpush.bf16.msra.mxu0 %v1559
        %1587 = vmatpush.bf16.msra.mxu0 %v1557
        %1588 = vmatpush.bf16.msra.mxu0 %v1555
        %1589 = vmatpush.bf16.msra.mxu0 %v1553
        %1590 = vmatpush.bf16.msra.mxu0 %v1551
        %1591 = vmatmul.bf16.gmra.mxu0 %v1501
        %v1592 = vpop.f32.mrf.mxu0
        %v1593 = vadd.f32 0.0, %v1592
        %v1594 = vpop.f32.mrf.mxu0
        %1595 = vdwg.mxu0
        %1596 = vmatpush.bf16.msra.mxu0 %v1566
        %1597 = vmatpush.bf16.msra.mxu0 %v1564
        %1598 = vmatpush.bf16.msra.mxu0 %v1562
        %1599 = vmatpush.bf16.msra.mxu0 %v1560
        %1600 = vmatpush.bf16.msra.mxu0 %v1558
        %1601 = vmatpush.bf16.msra.mxu0 %v1556
        %1602 = vmatpush.bf16.msra.mxu0 %v1554
        %1603 = vmatpush.bf16.msra.mxu0 %v1552
        %1604 = vmatmul.bf16.gmra.mxu0 %v1501
        %v1605 = vpop.f32.mrf.mxu0
        %v1606 = vadd.f32 0.0, %v1605
        %v1607 = vpop.f32.mrf.mxu0
        %1608 = vdwg.mxu0
        %v1609 = vrot.slane %v1473, 7
        %v1610 = vsel %vm1481, %v1609, %v1472
        %v1611 = vrot.slane %v1474, 6
        %v1612 = vsel %vm1484, %v1611, %v1610
        %v1613 = vrot.slane %v1475, 5
        %v1614 = vsel %vm1487, %v1613, %v1612
        %v1615 = vrot.slane %v1476, 4
        %v1616 = vsel %vm1490, %v1615, %v1614
        %v1617 = vrot.slane %v1477, 3
        %v1618 = vsel %vm1493, %v1617, %v1616
        %v1619 = vrot.slane %v1478, 2
        %v1620 = vsel %vm1496, %v1619, %v1618
        %v1621 = vrot.slane %v1479, 1
        %v1622 = vsel %vm1499, %v1621, %v1620
        %v1623 = vpack.c.b16 %v1622, %v1622
        %v1641 = vunpack.c.l.b16 %v1431
        %v1642 = vunpack.c.h.b16 %v1431
        %v1643 = vunpack.c.l.b16 %v1432
        %v1644 = vunpack.c.h.b16 %v1432
        %v1645 = vunpack.c.l.b16 %v1433
        %v1646 = vunpack.c.h.b16 %v1433
        %v1647 = vunpack.c.l.b16 %v1434
        %v1648 = vunpack.c.h.b16 %v1434
        %v1649 = vunpack.c.l.b16 %v1435
        %v1650 = vunpack.c.h.b16 %v1435
        %v1651 = vunpack.c.l.b16 %v1436
        %v1652 = vunpack.c.h.b16 %v1436
        %v1653 = vunpack.c.l.b16 %v1437
        %v1654 = vunpack.c.h.b16 %v1437
        %v1655 = vunpack.c.l.b16 %v1438
        %v1656 = vunpack.c.h.b16 %v1438
        %v1657 = vunpack.c.l.b16 %v1439
        %v1658 = vunpack.c.h.b16 %v1439
        %v1659 = vunpack.c.l.b16 %v1440
        %v1660 = vunpack.c.h.b16 %v1440
        %v1661 = vunpack.c.l.b16 %v1441
        %v1662 = vunpack.c.h.b16 %v1441
        %v1663 = vunpack.c.l.b16 %v1442
        %v1664 = vunpack.c.h.b16 %v1442
        %v1665 = vunpack.c.l.b16 %v1443
        %v1666 = vunpack.c.h.b16 %v1443
        %v1667 = vunpack.c.l.b16 %v1444
        %v1668 = vunpack.c.h.b16 %v1444
        %v1669 = vunpack.c.l.b16 %v1445
        %v1670 = vunpack.c.h.b16 %v1445
        %v1671 = vunpack.c.l.b16 %v1446
        %v1672 = vunpack.c.h.b16 %v1446
        %v1673 = vpack.c.b16 %v1643, %v1641
        %v1674 = vpack.c.b16 %v1644, %v1642
        %v1675 = vpack.c.b16 %v1647, %v1645
        %v1676 = vpack.c.b16 %v1648, %v1646
        %v1677 = vpack.c.b16 %v1651, %v1649
        %v1678 = vpack.c.b16 %v1652, %v1650
        %v1679 = vpack.c.b16 %v1655, %v1653
        %v1680 = vpack.c.b16 %v1656, %v1654
        %v1681 = vpack.c.b16 %v1659, %v1657
        %v1682 = vpack.c.b16 %v1660, %v1658
        %v1683 = vpack.c.b16 %v1663, %v1661
        %v1684 = vpack.c.b16 %v1664, %v1662
        %v1685 = vpack.c.b16 %v1667, %v1665
        %v1686 = vpack.c.b16 %v1668, %v1666
        %v1687 = vpack.c.b16 %v1671, %v1669
        %v1688 = vpack.c.b16 %v1672, %v1670
        %1705 = vmatpush.bf16.msra.mxu0 %v1687
        %1706 = vmatpush.bf16.msra.mxu0 %v1685
        %1707 = vmatpush.bf16.msra.mxu0 %v1683
        %1708 = vmatpush.bf16.msra.mxu0 %v1681
        %1709 = vmatpush.bf16.msra.mxu0 %v1679
        %1710 = vmatpush.bf16.msra.mxu0 %v1677
        %1711 = vmatpush.bf16.msra.mxu0 %v1675
        %1712 = vmatpush.bf16.msra.mxu0 %v1673
        %1713 = vmatmul.bf16.gmra.mxu0 %v1623
        %v1714 = vpop.f32.mrf.mxu0
        %v1715 = vadd.f32 %v1593, %v1714
        %v1716 = vpop.f32.mrf.mxu0
        %1717 = vdwg.mxu0
        %1718 = vmatpush.bf16.msra.mxu0 %v1688
        %1719 = vmatpush.bf16.msra.mxu0 %v1686
        %1720 = vmatpush.bf16.msra.mxu0 %v1684
        %1721 = vmatpush.bf16.msra.mxu0 %v1682
        %1722 = vmatpush.bf16.msra.mxu0 %v1680
        %1723 = vmatpush.bf16.msra.mxu0 %v1678
        %1724 = vmatpush.bf16.msra.mxu0 %v1676
        %1725 = vmatpush.bf16.msra.mxu0 %v1674
        %1726 = vmatmul.bf16.gmra.mxu0 %v1623
        %v1727 = vpop.f32.mrf.mxu0
        %v1728 = vadd.f32 %v1606, %v1727
        %v1729 = vpop.f32.mrf.mxu0
        %1730 = vdwg.mxu0
        %s1731 = scalar_lea.vmem %s3, 256
        %v1732 = vld [vmem:[%s1731] sm:$0xff]
        %v1733 = vld [vmem:[%s1731 + $0x8] sm:$0xff]
        %v1734 = vld [vmem:[%s1731 + $0x10] sm:$0xff]
        %v1735 = vld [vmem:[%s1731 + $0x18] sm:$0xff]
        %v1736 = vld [vmem:[%s1731 + $0x20] sm:$0xff]
        %v1737 = vld [vmem:[%s1731 + $0x28] sm:$0xff]
        %v1738 = vld [vmem:[%s1731 + $0x30] sm:$0xff]
        %v1739 = vld [vmem:[%s1731 + $0x38] sm:$0xff]
        %v1740 = vld [vmem:[%s1731 + $0x40] sm:$0xff]
        %v1741 = vld [vmem:[%s1731 + $0x48] sm:$0xff]
        %v1742 = vld [vmem:[%s1731 + $0x50] sm:$0xff]
        %v1743 = vld [vmem:[%s1731 + $0x58] sm:$0xff]
        %v1744 = vld [vmem:[%s1731 + $0x60] sm:$0xff]
        %v1745 = vld [vmem:[%s1731 + $0x68] sm:$0xff]
        %v1746 = vld [vmem:[%s1731 + $0x70] sm:$0xff]
        %v1747 = vld [vmem:[%s1731 + $0x78] sm:$0xff]
        %v1748 = vrot.slane %v1472, 2
        %v1749 = vrot.slane %v1473, 1
        %v1750 = vsel %vm1481, %v1749, %v1748
        %v1751 = vsel %vm1484, %v1474, %v1750
        %v1752 = vrot.slane %v1475, 7
        %v1753 = vsel %vm1487, %v1752, %v1751
        %v1754 = vrot.slane %v1476, 6
        %v1755 = vsel %vm1490, %v1754, %v1753
        %v1756 = vrot.slane %v1477, 5
        %v1757 = vsel %vm1493, %v1756, %v1755
        %v1758 = vrot.slane %v1478, 4
        %v1759 = vsel %vm1496, %v1758, %v1757
        %v1760 = vrot.slane %v1479, 3
        %v1761 = vsel %vm1499, %v1760, %v1759
        %v1762 = vpack.c.b16 %v1761, %v1761
        %v1780 = vunpack.c.l.b16 %v1732
        %v1781 = vunpack.c.h.b16 %v1732
        %v1782 = vunpack.c.l.b16 %v1733
        %v1783 = vunpack.c.h.b16 %v1733
        %v1784 = vunpack.c.l.b16 %v1734
        %v1785 = vunpack.c.h.b16 %v1734
        %v1786 = vunpack.c.l.b16 %v1735
        %v1787 = vunpack.c.h.b16 %v1735
        %v1788 = vunpack.c.l.b16 %v1736
        %v1789 = vunpack.c.h.b16 %v1736
        %v1790 = vunpack.c.l.b16 %v1737
        %v1791 = vunpack.c.h.b16 %v1737
        %v1792 = vunpack.c.l.b16 %v1738
        %v1793 = vunpack.c.h.b16 %v1738
        %v1794 = vunpack.c.l.b16 %v1739
        %v1795 = vunpack.c.h.b16 %v1739
        %v1796 = vunpack.c.l.b16 %v1740
        %v1797 = vunpack.c.h.b16 %v1740
        %v1798 = vunpack.c.l.b16 %v1741
        %v1799 = vunpack.c.h.b16 %v1741
        %v1800 = vunpack.c.l.b16 %v1742
        %v1801 = vunpack.c.h.b16 %v1742
        %v1802 = vunpack.c.l.b16 %v1743
        %v1803 = vunpack.c.h.b16 %v1743
        %v1804 = vunpack.c.l.b16 %v1744
        %v1805 = vunpack.c.h.b16 %v1744
        %v1806 = vunpack.c.l.b16 %v1745
        %v1807 = vunpack.c.h.b16 %v1745
        %v1808 = vunpack.c.l.b16 %v1746
        %v1809 = vunpack.c.h.b16 %v1746
        %v1810 = vunpack.c.l.b16 %v1747
        %v1811 = vunpack.c.h.b16 %v1747
        %v1812 = vpack.c.b16 %v1782, %v1780
        %v1813 = vpack.c.b16 %v1783, %v1781
        %v1814 = vpack.c.b16 %v1786, %v1784
        %v1815 = vpack.c.b16 %v1787, %v1785
        %v1816 = vpack.c.b16 %v1790, %v1788
        %v1817 = vpack.c.b16 %v1791, %v1789
        %v1818 = vpack.c.b16 %v1794, %v1792
        %v1819 = vpack.c.b16 %v1795, %v1793
        %v1820 = vpack.c.b16 %v1798, %v1796
        %v1821 = vpack.c.b16 %v1799, %v1797
        %v1822 = vpack.c.b16 %v1802, %v1800
        %v1823 = vpack.c.b16 %v1803, %v1801
        %v1824 = vpack.c.b16 %v1806, %v1804
        %v1825 = vpack.c.b16 %v1807, %v1805
        %v1826 = vpack.c.b16 %v1810, %v1808
        %v1827 = vpack.c.b16 %v1811, %v1809
        %1844 = vmatpush.bf16.msra.mxu0 %v1826
        %1845 = vmatpush.bf16.msra.mxu0 %v1824
        %1846 = vmatpush.bf16.msra.mxu0 %v1822
        %1847 = vmatpush.bf16.msra.mxu0 %v1820
        %1848 = vmatpush.bf16.msra.mxu0 %v1818
        %1849 = vmatpush.bf16.msra.mxu0 %v1816
        %1850 = vmatpush.bf16.msra.mxu0 %v1814
        %1851 = vmatpush.bf16.msra.mxu0 %v1812
        %1852 = vmatmul.bf16.gmra.mxu0 %v1762
        %v1853 = vpop.f32.mrf.mxu0
        %v1854 = vadd.f32 0.0, %v1853
        %v1855 = vpop.f32.mrf.mxu0
        %1856 = vdwg.mxu0
        %1857 = vmatpush.bf16.msra.mxu0 %v1827
        %1858 = vmatpush.bf16.msra.mxu0 %v1825
        %1859 = vmatpush.bf16.msra.mxu0 %v1823
        %1860 = vmatpush.bf16.msra.mxu0 %v1821
        %1861 = vmatpush.bf16.msra.mxu0 %v1819
        %1862 = vmatpush.bf16.msra.mxu0 %v1817
        %1863 = vmatpush.bf16.msra.mxu0 %v1815
        %1864 = vmatpush.bf16.msra.mxu0 %v1813
        %1865 = vmatmul.bf16.gmra.mxu0 %v1762
        %v1866 = vpop.f32.mrf.mxu0
        %v1867 = vadd.f32 0.0, %v1866
        %v1868 = vpop.f32.mrf.mxu0
        %1869 = vdwg.mxu0
        %v1870 = vadd.f32 %v1715, %v1854
        %v1871 = vadd.f32 %v1728, %v1867
        %s1872 = scalar_lea.vmem %s3, 384
        %v1873 = vld [vmem:[%s1872] sm:$0xff]
        %v1874 = vld [vmem:[%s1872 + $0x8] sm:$0xff]
        %v1875 = vld [vmem:[%s1872 + $0x10] sm:$0xff]
        %v1876 = vld [vmem:[%s1872 + $0x18] sm:$0xff]
        %v1877 = vld [vmem:[%s1872 + $0x20] sm:$0xff]
        %v1878 = vld [vmem:[%s1872 + $0x28] sm:$0xff]
        %v1879 = vld [vmem:[%s1872 + $0x30] sm:$0xff]
        %v1880 = vld [vmem:[%s1872 + $0x38] sm:$0xff]
        %v1881 = vld [vmem:[%s1872 + $0x40] sm:$0xff]
        %v1882 = vld [vmem:[%s1872 + $0x48] sm:$0xff]
        %v1883 = vld [vmem:[%s1872 + $0x50] sm:$0xff]
        %v1884 = vld [vmem:[%s1872 + $0x58] sm:$0xff]
        %v1885 = vld [vmem:[%s1872 + $0x60] sm:$0xff]
        %v1886 = vld [vmem:[%s1872 + $0x68] sm:$0xff]
        %v1887 = vld [vmem:[%s1872 + $0x70] sm:$0xff]
        %v1888 = vld [vmem:[%s1872 + $0x78] sm:$0xff]
        %v1889 = vrot.slane %v1472, 3
        %v1890 = vrot.slane %v1473, 2
        %v1891 = vsel %vm1481, %v1890, %v1889
        %v1892 = vrot.slane %v1474, 1
        %v1893 = vsel %vm1484, %v1892, %v1891
        %v1894 = vsel %vm1487, %v1475, %v1893
        %v1895 = vrot.slane %v1476, 7
        %v1896 = vsel %vm1490, %v1895, %v1894
        %v1897 = vrot.slane %v1477, 6
        %v1898 = vsel %vm1493, %v1897, %v1896
        %v1899 = vrot.slane %v1478, 5
        %v1900 = vsel %vm1496, %v1899, %v1898
        %v1901 = vrot.slane %v1479, 4
        %v1902 = vsel %vm1499, %v1901, %v1900
        %v1903 = vpack.c.b16 %v1902, %v1902
        %v1921 = vunpack.c.l.b16 %v1873
        %v1922 = vunpack.c.h.b16 %v1873
        %v1923 = vunpack.c.l.b16 %v1874
        %v1924 = vunpack.c.h.b16 %v1874
        %v1925 = vunpack.c.l.b16 %v1875
        %v1926 = vunpack.c.h.b16 %v1875
        %v1927 = vunpack.c.l.b16 %v1876
        %v1928 = vunpack.c.h.b16 %v1876
        %v1929 = vunpack.c.l.b16 %v1877
        %v1930 = vunpack.c.h.b16 %v1877
        %v1931 = vunpack.c.l.b16 %v1878
        %v1932 = vunpack.c.h.b16 %v1878
        %v1933 = vunpack.c.l.b16 %v1879
        %v1934 = vunpack.c.h.b16 %v1879
        %v1935 = vunpack.c.l.b16 %v1880
        %v1936 = vunpack.c.h.b16 %v1880
        %v1937 = vunpack.c.l.b16 %v1881
        %v1938 = vunpack.c.h.b16 %v1881
        %v1939 = vunpack.c.l.b16 %v1882
        %v1940 = vunpack.c.h.b16 %v1882
        %v1941 = vunpack.c.l.b16 %v1883
        %v1942 = vunpack.c.h.b16 %v1883
        %v1943 = vunpack.c.l.b16 %v1884
        %v1944 = vunpack.c.h.b16 %v1884
        %v1945 = vunpack.c.l.b16 %v1885
        %v1946 = vunpack.c.h.b16 %v1885
        %v1947 = vunpack.c.l.b16 %v1886
        %v1948 = vunpack.c.h.b16 %v1886
        %v1949 = vunpack.c.l.b16 %v1887
        %v1950 = vunpack.c.h.b16 %v1887
        %v1951 = vunpack.c.l.b16 %v1888
        %v1952 = vunpack.c.h.b16 %v1888
        %v1953 = vpack.c.b16 %v1923, %v1921
        %v1954 = vpack.c.b16 %v1924, %v1922
        %v1955 = vpack.c.b16 %v1927, %v1925
        %v1956 = vpack.c.b16 %v1928, %v1926
        %v1957 = vpack.c.b16 %v1931, %v1929
        %v1958 = vpack.c.b16 %v1932, %v1930
        %v1959 = vpack.c.b16 %v1935, %v1933
        %v1960 = vpack.c.b16 %v1936, %v1934
        %v1961 = vpack.c.b16 %v1939, %v1937
        %v1962 = vpack.c.b16 %v1940, %v1938
        %v1963 = vpack.c.b16 %v1943, %v1941
        %v1964 = vpack.c.b16 %v1944, %v1942
        %v1965 = vpack.c.b16 %v1947, %v1945
        %v1966 = vpack.c.b16 %v1948, %v1946
        %v1967 = vpack.c.b16 %v1951, %v1949
        %v1968 = vpack.c.b16 %v1952, %v1950
        %1985 = vmatpush.bf16.msra.mxu0 %v1967
        %1986 = vmatpush.bf16.msra.mxu0 %v1965
        %1987 = vmatpush.bf16.msra.mxu0 %v1963
        %1988 = vmatpush.bf16.msra.mxu0 %v1961
        %1989 = vmatpush.bf16.msra.mxu0 %v1959
        %1990 = vmatpush.bf16.msra.mxu0 %v1957
        %1991 = vmatpush.bf16.msra.mxu0 %v1955
        %1992 = vmatpush.bf16.msra.mxu0 %v1953
        %1993 = vmatmul.bf16.gmra.mxu0 %v1903
        %v1994 = vpop.f32.mrf.mxu0
        %v1995 = vadd.f32 0.0, %v1994
        %v1996 = vpop.f32.mrf.mxu0
        %1997 = vdwg.mxu0
        %1998 = vmatpush.bf16.msra.mxu0 %v1968
        %1999 = vmatpush.bf16.msra.mxu0 %v1966
        %2000 = vmatpush.bf16.msra.mxu0 %v1964
        %2001 = vmatpush.bf16.msra.mxu0 %v1962
        %2002 = vmatpush.bf16.msra.mxu0 %v1960
        %2003 = vmatpush.bf16.msra.mxu0 %v1958
        %2004 = vmatpush.bf16.msra.mxu0 %v1956
        %2005 = vmatpush.bf16.msra.mxu0 %v1954
        %2006 = vmatmul.bf16.gmra.mxu0 %v1903
        %v2007 = vpop.f32.mrf.mxu0
        %v2008 = vadd.f32 0.0, %v2007
        %v2009 = vpop.f32.mrf.mxu0
        %2010 = vdwg.mxu0
        %v2011 = vadd.f32 %v1870, %v1995
        %v2012 = vadd.f32 %v1871, %v2008
        %s2013 = scalar_lea.vmem %s3, 512
        %v2014 = vld [vmem:[%s2013] sm:$0xff]
        %v2015 = vld [vmem:[%s2013 + $0x8] sm:$0xff]
        %v2016 = vld [vmem:[%s2013 + $0x10] sm:$0xff]
        %v2017 = vld [vmem:[%s2013 + $0x18] sm:$0xff]
        %v2018 = vld [vmem:[%s2013 + $0x20] sm:$0xff]
        %v2019 = vld [vmem:[%s2013 + $0x28] sm:$0xff]
        %v2020 = vld [vmem:[%s2013 + $0x30] sm:$0xff]
        %v2021 = vld [vmem:[%s2013 + $0x38] sm:$0xff]
        %v2022 = vld [vmem:[%s2013 + $0x40] sm:$0xff]
        %v2023 = vld [vmem:[%s2013 + $0x48] sm:$0xff]
        %v2024 = vld [vmem:[%s2013 + $0x50] sm:$0xff]
        %v2025 = vld [vmem:[%s2013 + $0x58] sm:$0xff]
        %v2026 = vld [vmem:[%s2013 + $0x60] sm:$0xff]
        %v2027 = vld [vmem:[%s2013 + $0x68] sm:$0xff]
        %v2028 = vld [vmem:[%s2013 + $0x70] sm:$0xff]
        %v2029 = vld [vmem:[%s2013 + $0x78] sm:$0xff]
        %v2030 = vrot.slane %v1472, 4
        %v2031 = vrot.slane %v1473, 3
        %v2032 = vsel %vm1481, %v2031, %v2030
        %v2033 = vrot.slane %v1474, 2
        %v2034 = vsel %vm1484, %v2033, %v2032
        %v2035 = vrot.slane %v1475, 1
        %v2036 = vsel %vm1487, %v2035, %v2034
        %v2037 = vsel %vm1490, %v1476, %v2036
        %v2038 = vrot.slane %v1477, 7
        %v2039 = vsel %vm1493, %v2038, %v2037
        %v2040 = vrot.slane %v1478, 6
        %v2041 = vsel %vm1496, %v2040, %v2039
        %v2042 = vrot.slane %v1479, 5
        %v2043 = vsel %vm1499, %v2042, %v2041
        %v2044 = vpack.c.b16 %v2043, %v2043
        %v2062 = vunpack.c.l.b16 %v2014
        %v2063 = vunpack.c.h.b16 %v2014
        %v2064 = vunpack.c.l.b16 %v2015
        %v2065 = vunpack.c.h.b16 %v2015
        %v2066 = vunpack.c.l.b16 %v2016
        %v2067 = vunpack.c.h.b16 %v2016
        %v2068 = vunpack.c.l.b16 %v2017
        %v2069 = vunpack.c.h.b16 %v2017
        %v2070 = vunpack.c.l.b16 %v2018
        %v2071 = vunpack.c.h.b16 %v2018
        %v2072 = vunpack.c.l.b16 %v2019
        %v2073 = vunpack.c.h.b16 %v2019
        %v2074 = vunpack.c.l.b16 %v2020
        %v2075 = vunpack.c.h.b16 %v2020
        %v2076 = vunpack.c.l.b16 %v2021
        %v2077 = vunpack.c.h.b16 %v2021
        %v2078 = vunpack.c.l.b16 %v2022
        %v2079 = vunpack.c.h.b16 %v2022
        %v2080 = vunpack.c.l.b16 %v2023
        %v2081 = vunpack.c.h.b16 %v2023
        %v2082 = vunpack.c.l.b16 %v2024
        %v2083 = vunpack.c.h.b16 %v2024
        %v2084 = vunpack.c.l.b16 %v2025
        %v2085 = vunpack.c.h.b16 %v2025
        %v2086 = vunpack.c.l.b16 %v2026
        %v2087 = vunpack.c.h.b16 %v2026
        %v2088 = vunpack.c.l.b16 %v2027
        %v2089 = vunpack.c.h.b16 %v2027
        %v2090 = vunpack.c.l.b16 %v2028
        %v2091 = vunpack.c.h.b16 %v2028
        %v2092 = vunpack.c.l.b16 %v2029
        %v2093 = vunpack.c.h.b16 %v2029
        %v2094 = vpack.c.b16 %v2064, %v2062
        %v2095 = vpack.c.b16 %v2065, %v2063
        %v2096 = vpack.c.b16 %v2068, %v2066
        %v2097 = vpack.c.b16 %v2069, %v2067
        %v2098 = vpack.c.b16 %v2072, %v2070
        %v2099 = vpack.c.b16 %v2073, %v2071
        %v2100 = vpack.c.b16 %v2076, %v2074
        %v2101 = vpack.c.b16 %v2077, %v2075
        %v2102 = vpack.c.b16 %v2080, %v2078
        %v2103 = vpack.c.b16 %v2081, %v2079
        %v2104 = vpack.c.b16 %v2084, %v2082
        %v2105 = vpack.c.b16 %v2085, %v2083
        %v2106 = vpack.c.b16 %v2088, %v2086
        %v2107 = vpack.c.b16 %v2089, %v2087
        %v2108 = vpack.c.b16 %v2092, %v2090
        %v2109 = vpack.c.b16 %v2093, %v2091
        %2126 = vmatpush.bf16.msra.mxu0 %v2108
        %2127 = vmatpush.bf16.msra.mxu0 %v2106
        %2128 = vmatpush.bf16.msra.mxu0 %v2104
        %2129 = vmatpush.bf16.msra.mxu0 %v2102
        %2130 = vmatpush.bf16.msra.mxu0 %v2100
        %2131 = vmatpush.bf16.msra.mxu0 %v2098
        %2132 = vmatpush.bf16.msra.mxu0 %v2096
        %2133 = vmatpush.bf16.msra.mxu0 %v2094
        %2134 = vmatmul.bf16.gmra.mxu0 %v2044
        %v2135 = vpop.f32.mrf.mxu0
        %v2136 = vadd.f32 0.0, %v2135
        %v2137 = vpop.f32.mrf.mxu0
        %2138 = vdwg.mxu0
        %2139 = vmatpush.bf16.msra.mxu0 %v2109
        %2140 = vmatpush.bf16.msra.mxu0 %v2107
        %2141 = vmatpush.bf16.msra.mxu0 %v2105
        %2142 = vmatpush.bf16.msra.mxu0 %v2103
        %2143 = vmatpush.bf16.msra.mxu0 %v2101
        %2144 = vmatpush.bf16.msra.mxu0 %v2099
        %2145 = vmatpush.bf16.msra.mxu0 %v2097
        %2146 = vmatpush.bf16.msra.mxu0 %v2095
        %2147 = vmatmul.bf16.gmra.mxu0 %v2044
        %v2148 = vpop.f32.mrf.mxu0
        %v2149 = vadd.f32 0.0, %v2148
        %v2150 = vpop.f32.mrf.mxu0
        %2151 = vdwg.mxu0
        %v2152 = vadd.f32 %v2011, %v2136
        %v2153 = vadd.f32 %v2012, %v2149
        %s2154 = scalar_lea.vmem %s3, 640
        %v2155 = vld [vmem:[%s2154] sm:$0xff]
        %v2156 = vld [vmem:[%s2154 + $0x8] sm:$0xff]
        %v2157 = vld [vmem:[%s2154 + $0x10] sm:$0xff]
        %v2158 = vld [vmem:[%s2154 + $0x18] sm:$0xff]
        %v2159 = vld [vmem:[%s2154 + $0x20] sm:$0xff]
        %v2160 = vld [vmem:[%s2154 + $0x28] sm:$0xff]
        %v2161 = vld [vmem:[%s2154 + $0x30] sm:$0xff]
        %v2162 = vld [vmem:[%s2154 + $0x38] sm:$0xff]
        %v2163 = vld [vmem:[%s2154 + $0x40] sm:$0xff]
        %v2164 = vld [vmem:[%s2154 + $0x48] sm:$0xff]
        %v2165 = vld [vmem:[%s2154 + $0x50] sm:$0xff]
        %v2166 = vld [vmem:[%s2154 + $0x58] sm:$0xff]
        %v2167 = vld [vmem:[%s2154 + $0x60] sm:$0xff]
        %v2168 = vld [vmem:[%s2154 + $0x68] sm:$0xff]
        %v2169 = vld [vmem:[%s2154 + $0x70] sm:$0xff]
        %v2170 = vld [vmem:[%s2154 + $0x78] sm:$0xff]
        %v2171 = vrot.slane %v1472, 5
        %v2172 = vrot.slane %v1473, 4
        %v2173 = vsel %vm1481, %v2172, %v2171
        %v2174 = vrot.slane %v1474, 3
        %v2175 = vsel %vm1484, %v2174, %v2173
        %v2176 = vrot.slane %v1475, 2
        %v2177 = vsel %vm1487, %v2176, %v2175
        %v2178 = vrot.slane %v1476, 1
        %v2179 = vsel %vm1490, %v2178, %v2177
        %v2180 = vsel %vm1493, %v1477, %v2179
        %v2181 = vrot.slane %v1478, 7
        %v2182 = vsel %vm1496, %v2181, %v2180
        %v2183 = vrot.slane %v1479, 6
        %v2184 = vsel %vm1499, %v2183, %v2182
        %v2185 = vpack.c.b16 %v2184, %v2184
        %v2203 = vunpack.c.l.b16 %v2155
        %v2204 = vunpack.c.h.b16 %v2155
        %v2205 = vunpack.c.l.b16 %v2156
        %v2206 = vunpack.c.h.b16 %v2156
        %v2207 = vunpack.c.l.b16 %v2157
        %v2208 = vunpack.c.h.b16 %v2157
        %v2209 = vunpack.c.l.b16 %v2158
        %v2210 = vunpack.c.h.b16 %v2158
        %v2211 = vunpack.c.l.b16 %v2159
        %v2212 = vunpack.c.h.b16 %v2159
        %v2213 = vunpack.c.l.b16 %v2160
        %v2214 = vunpack.c.h.b16 %v2160
        %v2215 = vunpack.c.l.b16 %v2161
        %v2216 = vunpack.c.h.b16 %v2161
        %v2217 = vunpack.c.l.b16 %v2162
        %v2218 = vunpack.c.h.b16 %v2162
        %v2219 = vunpack.c.l.b16 %v2163
        %v2220 = vunpack.c.h.b16 %v2163
        %v2221 = vunpack.c.l.b16 %v2164
        %v2222 = vunpack.c.h.b16 %v2164
        %v2223 = vunpack.c.l.b16 %v2165
        %v2224 = vunpack.c.h.b16 %v2165
        %v2225 = vunpack.c.l.b16 %v2166
        %v2226 = vunpack.c.h.b16 %v2166
        %v2227 = vunpack.c.l.b16 %v2167
        %v2228 = vunpack.c.h.b16 %v2167
        %v2229 = vunpack.c.l.b16 %v2168
        %v2230 = vunpack.c.h.b16 %v2168
        %v2231 = vunpack.c.l.b16 %v2169
        %v2232 = vunpack.c.h.b16 %v2169
        %v2233 = vunpack.c.l.b16 %v2170
        %v2234 = vunpack.c.h.b16 %v2170
        %v2235 = vpack.c.b16 %v2205, %v2203
        %v2236 = vpack.c.b16 %v2206, %v2204
        %v2237 = vpack.c.b16 %v2209, %v2207
        %v2238 = vpack.c.b16 %v2210, %v2208
        %v2239 = vpack.c.b16 %v2213, %v2211
        %v2240 = vpack.c.b16 %v2214, %v2212
        %v2241 = vpack.c.b16 %v2217, %v2215
        %v2242 = vpack.c.b16 %v2218, %v2216
        %v2243 = vpack.c.b16 %v2221, %v2219
        %v2244 = vpack.c.b16 %v2222, %v2220
        %v2245 = vpack.c.b16 %v2225, %v2223
        %v2246 = vpack.c.b16 %v2226, %v2224
        %v2247 = vpack.c.b16 %v2229, %v2227
        %v2248 = vpack.c.b16 %v2230, %v2228
        %v2249 = vpack.c.b16 %v2233, %v2231
        %v2250 = vpack.c.b16 %v2234, %v2232
        %2267 = vmatpush.bf16.msra.mxu0 %v2249
        %2268 = vmatpush.bf16.msra.mxu0 %v2247
        %2269 = vmatpush.bf16.msra.mxu0 %v2245
        %2270 = vmatpush.bf16.msra.mxu0 %v2243
        %2271 = vmatpush.bf16.msra.mxu0 %v2241
        %2272 = vmatpush.bf16.msra.mxu0 %v2239
        %2273 = vmatpush.bf16.msra.mxu0 %v2237
        %2274 = vmatpush.bf16.msra.mxu0 %v2235
        %2275 = vmatmul.bf16.gmra.mxu0 %v2185
        %v2276 = vpop.f32.mrf.mxu0
        %v2277 = vadd.f32 0.0, %v2276
        %v2278 = vpop.f32.mrf.mxu0
        %2279 = vdwg.mxu0
        %2280 = vmatpush.bf16.msra.mxu0 %v2250
        %2281 = vmatpush.bf16.msra.mxu0 %v2248
        %2282 = vmatpush.bf16.msra.mxu0 %v2246
        %2283 = vmatpush.bf16.msra.mxu0 %v2244
        %2284 = vmatpush.bf16.msra.mxu0 %v2242
        %2285 = vmatpush.bf16.msra.mxu0 %v2240
        %2286 = vmatpush.bf16.msra.mxu0 %v2238
        %2287 = vmatpush.bf16.msra.mxu0 %v2236
        %2288 = vmatmul.bf16.gmra.mxu0 %v2185
        %v2289 = vpop.f32.mrf.mxu0
        %v2290 = vadd.f32 0.0, %v2289
        %v2291 = vpop.f32.mrf.mxu0
        %2292 = vdwg.mxu0
        %v2293 = vadd.f32 %v2152, %v2277
        %v2294 = vadd.f32 %v2153, %v2290
        %s2295 = scalar_lea.vmem %s3, 768
        %v2296 = vld [vmem:[%s2295] sm:$0xff]
        %v2297 = vld [vmem:[%s2295 + $0x8] sm:$0xff]
        %v2298 = vld [vmem:[%s2295 + $0x10] sm:$0xff]
        %v2299 = vld [vmem:[%s2295 + $0x18] sm:$0xff]
        %v2300 = vld [vmem:[%s2295 + $0x20] sm:$0xff]
        %v2301 = vld [vmem:[%s2295 + $0x28] sm:$0xff]
        %v2302 = vld [vmem:[%s2295 + $0x30] sm:$0xff]
        %v2303 = vld [vmem:[%s2295 + $0x38] sm:$0xff]
        %v2304 = vld [vmem:[%s2295 + $0x40] sm:$0xff]
        %v2305 = vld [vmem:[%s2295 + $0x48] sm:$0xff]
        %v2306 = vld [vmem:[%s2295 + $0x50] sm:$0xff]
        %v2307 = vld [vmem:[%s2295 + $0x58] sm:$0xff]
        %v2308 = vld [vmem:[%s2295 + $0x60] sm:$0xff]
        %v2309 = vld [vmem:[%s2295 + $0x68] sm:$0xff]
        %v2310 = vld [vmem:[%s2295 + $0x70] sm:$0xff]
        %v2311 = vld [vmem:[%s2295 + $0x78] sm:$0xff]
        %v2312 = vrot.slane %v1472, 6
        %v2313 = vrot.slane %v1473, 5
        %v2314 = vsel %vm1481, %v2313, %v2312
        %v2315 = vrot.slane %v1474, 4
        %v2316 = vsel %vm1484, %v2315, %v2314
        %v2317 = vrot.slane %v1475, 3
        %v2318 = vsel %vm1487, %v2317, %v2316
        %v2319 = vrot.slane %v1476, 2
        %v2320 = vsel %vm1490, %v2319, %v2318
        %v2321 = vrot.slane %v1477, 1
        %v2322 = vsel %vm1493, %v2321, %v2320
        %v2323 = vsel %vm1496, %v1478, %v2322
        %v2324 = vrot.slane %v1479, 7
        %v2325 = vsel %vm1499, %v2324, %v2323
        %v2326 = vpack.c.b16 %v2325, %v2325
        %v2344 = vunpack.c.l.b16 %v2296
        %v2345 = vunpack.c.h.b16 %v2296
        %v2346 = vunpack.c.l.b16 %v2297
        %v2347 = vunpack.c.h.b16 %v2297
        %v2348 = vunpack.c.l.b16 %v2298
        %v2349 = vunpack.c.h.b16 %v2298
        %v2350 = vunpack.c.l.b16 %v2299
        %v2351 = vunpack.c.h.b16 %v2299
        %v2352 = vunpack.c.l.b16 %v2300
        %v2353 = vunpack.c.h.b16 %v2300
        %v2354 = vunpack.c.l.b16 %v2301
        %v2355 = vunpack.c.h.b16 %v2301
        %v2356 = vunpack.c.l.b16 %v2302
        %v2357 = vunpack.c.h.b16 %v2302
        %v2358 = vunpack.c.l.b16 %v2303
        %v2359 = vunpack.c.h.b16 %v2303
        %v2360 = vunpack.c.l.b16 %v2304
        %v2361 = vunpack.c.h.b16 %v2304
        %v2362 = vunpack.c.l.b16 %v2305
        %v2363 = vunpack.c.h.b16 %v2305
        %v2364 = vunpack.c.l.b16 %v2306
        %v2365 = vunpack.c.h.b16 %v2306
        %v2366 = vunpack.c.l.b16 %v2307
        %v2367 = vunpack.c.h.b16 %v2307
        %v2368 = vunpack.c.l.b16 %v2308
        %v2369 = vunpack.c.h.b16 %v2308
        %v2370 = vunpack.c.l.b16 %v2309
        %v2371 = vunpack.c.h.b16 %v2309
        %v2372 = vunpack.c.l.b16 %v2310
        %v2373 = vunpack.c.h.b16 %v2310
        %v2374 = vunpack.c.l.b16 %v2311
        %v2375 = vunpack.c.h.b16 %v2311
        %v2376 = vpack.c.b16 %v2346, %v2344
        %v2377 = vpack.c.b16 %v2347, %v2345
        %v2378 = vpack.c.b16 %v2350, %v2348
        %v2379 = vpack.c.b16 %v2351, %v2349
        %v2380 = vpack.c.b16 %v2354, %v2352
        %v2381 = vpack.c.b16 %v2355, %v2353
        %v2382 = vpack.c.b16 %v2358, %v2356
        %v2383 = vpack.c.b16 %v2359, %v2357
        %v2384 = vpack.c.b16 %v2362, %v2360
        %v2385 = vpack.c.b16 %v2363, %v2361
        %v2386 = vpack.c.b16 %v2366, %v2364
        %v2387 = vpack.c.b16 %v2367, %v2365
        %v2388 = vpack.c.b16 %v2370, %v2368
        %v2389 = vpack.c.b16 %v2371, %v2369
        %v2390 = vpack.c.b16 %v2374, %v2372
        %v2391 = vpack.c.b16 %v2375, %v2373
        %2408 = vmatpush.bf16.msra.mxu0 %v2390
        %2409 = vmatpush.bf16.msra.mxu0 %v2388
        %2410 = vmatpush.bf16.msra.mxu0 %v2386
        %2411 = vmatpush.bf16.msra.mxu0 %v2384
        %2412 = vmatpush.bf16.msra.mxu0 %v2382
        %2413 = vmatpush.bf16.msra.mxu0 %v2380
        %2414 = vmatpush.bf16.msra.mxu0 %v2378
        %2415 = vmatpush.bf16.msra.mxu0 %v2376
        %2416 = vmatmul.bf16.gmra.mxu0 %v2326
        %v2417 = vpop.f32.mrf.mxu0
        %v2418 = vadd.f32 0.0, %v2417
        %v2419 = vpop.f32.mrf.mxu0
        %2420 = vdwg.mxu0
        %2421 = vmatpush.bf16.msra.mxu0 %v2391
        %2422 = vmatpush.bf16.msra.mxu0 %v2389
        %2423 = vmatpush.bf16.msra.mxu0 %v2387
        %2424 = vmatpush.bf16.msra.mxu0 %v2385
        %2425 = vmatpush.bf16.msra.mxu0 %v2383
        %2426 = vmatpush.bf16.msra.mxu0 %v2381
        %2427 = vmatpush.bf16.msra.mxu0 %v2379
        %2428 = vmatpush.bf16.msra.mxu0 %v2377
        %2429 = vmatmul.bf16.gmra.mxu0 %v2326
        %v2430 = vpop.f32.mrf.mxu0
        %v2431 = vadd.f32 0.0, %v2430
        %v2432 = vpop.f32.mrf.mxu0
        %2433 = vdwg.mxu0
        %v2434 = vadd.f32 %v2293, %v2418
        %v2435 = vadd.f32 %v2294, %v2431
        %s2436 = scalar_lea.vmem %s3, 896
        %v2437 = vld [vmem:[%s2436] sm:$0xff]
        %v2438 = vld [vmem:[%s2436 + $0x8] sm:$0xff]
        %v2439 = vld [vmem:[%s2436 + $0x10] sm:$0xff]
        %v2440 = vld [vmem:[%s2436 + $0x18] sm:$0xff]
        %v2441 = vld [vmem:[%s2436 + $0x20] sm:$0xff]
        %v2442 = vld [vmem:[%s2436 + $0x28] sm:$0xff]
        %v2443 = vld [vmem:[%s2436 + $0x30] sm:$0xff]
        %v2444 = vld [vmem:[%s2436 + $0x38] sm:$0xff]
        %v2445 = vld [vmem:[%s2436 + $0x40] sm:$0xff]
        %v2446 = vld [vmem:[%s2436 + $0x48] sm:$0xff]
        %v2447 = vld [vmem:[%s2436 + $0x50] sm:$0xff]
        %v2448 = vld [vmem:[%s2436 + $0x58] sm:$0xff]
        %v2449 = vld [vmem:[%s2436 + $0x60] sm:$0xff]
        %v2450 = vld [vmem:[%s2436 + $0x68] sm:$0xff]
        %v2451 = vld [vmem:[%s2436 + $0x70] sm:$0xff]
        %v2452 = vld [vmem:[%s2436 + $0x78] sm:$0xff]
        %v2453 = vrot.slane %v1472, 7
        %v2454 = vrot.slane %v1473, 6
        %v2455 = vsel %vm1481, %v2454, %v2453
        %v2456 = vrot.slane %v1474, 5
        %v2457 = vsel %vm1484, %v2456, %v2455
        %v2458 = vrot.slane %v1475, 4
        %v2459 = vsel %vm1487, %v2458, %v2457
        %v2460 = vrot.slane %v1476, 3
        %v2461 = vsel %vm1490, %v2460, %v2459
        %v2462 = vrot.slane %v1477, 2
        %v2463 = vsel %vm1493, %v2462, %v2461
        %v2464 = vrot.slane %v1478, 1
        %v2465 = vsel %vm1496, %v2464, %v2463
        %v2466 = vsel %vm1499, %v1479, %v2465
        %v2467 = vpack.c.b16 %v2466, %v2466
        %v2485 = vunpack.c.l.b16 %v2437
        %v2486 = vunpack.c.h.b16 %v2437
        %v2487 = vunpack.c.l.b16 %v2438
        %v2488 = vunpack.c.h.b16 %v2438
        %v2489 = vunpack.c.l.b16 %v2439
        %v2490 = vunpack.c.h.b16 %v2439
        %v2491 = vunpack.c.l.b16 %v2440
        %v2492 = vunpack.c.h.b16 %v2440
        %v2493 = vunpack.c.l.b16 %v2441
        %v2494 = vunpack.c.h.b16 %v2441
        %v2495 = vunpack.c.l.b16 %v2442
        %v2496 = vunpack.c.h.b16 %v2442
        %v2497 = vunpack.c.l.b16 %v2443
        %v2498 = vunpack.c.h.b16 %v2443
        %v2499 = vunpack.c.l.b16 %v2444
        %v2500 = vunpack.c.h.b16 %v2444
        %v2501 = vunpack.c.l.b16 %v2445
        %v2502 = vunpack.c.h.b16 %v2445
        %v2503 = vunpack.c.l.b16 %v2446
        %v2504 = vunpack.c.h.b16 %v2446
        %v2505 = vunpack.c.l.b16 %v2447
        %v2506 = vunpack.c.h.b16 %v2447
        %v2507 = vunpack.c.l.b16 %v2448
        %v2508 = vunpack.c.h.b16 %v2448
        %v2509 = vunpack.c.l.b16 %v2449
        %v2510 = vunpack.c.h.b16 %v2449
        %v2511 = vunpack.c.l.b16 %v2450
        %v2512 = vunpack.c.h.b16 %v2450
        %v2513 = vunpack.c.l.b16 %v2451
        %v2514 = vunpack.c.h.b16 %v2451
        %v2515 = vunpack.c.l.b16 %v2452
        %v2516 = vunpack.c.h.b16 %v2452
        %v2517 = vpack.c.b16 %v2487, %v2485
        %v2518 = vpack.c.b16 %v2488, %v2486
        %v2519 = vpack.c.b16 %v2491, %v2489
        %v2520 = vpack.c.b16 %v2492, %v2490
        %v2521 = vpack.c.b16 %v2495, %v2493
        %v2522 = vpack.c.b16 %v2496, %v2494
        %v2523 = vpack.c.b16 %v2499, %v2497
        %v2524 = vpack.c.b16 %v2500, %v2498
        %v2525 = vpack.c.b16 %v2503, %v2501
        %v2526 = vpack.c.b16 %v2504, %v2502
        %v2527 = vpack.c.b16 %v2507, %v2505
        %v2528 = vpack.c.b16 %v2508, %v2506
        %v2529 = vpack.c.b16 %v2511, %v2509
        %v2530 = vpack.c.b16 %v2512, %v2510
        %v2531 = vpack.c.b16 %v2515, %v2513
        %v2532 = vpack.c.b16 %v2516, %v2514
        %2549 = vmatpush.bf16.msra.mxu0 %v2531
        %2550 = vmatpush.bf16.msra.mxu0 %v2529
        %2551 = vmatpush.bf16.msra.mxu0 %v2527
        %2552 = vmatpush.bf16.msra.mxu0 %v2525
        %2553 = vmatpush.bf16.msra.mxu0 %v2523
        %2554 = vmatpush.bf16.msra.mxu0 %v2521
        %2555 = vmatpush.bf16.msra.mxu0 %v2519
        %2556 = vmatpush.bf16.msra.mxu0 %v2517
        %2557 = vmatmul.bf16.gmra.mxu0 %v2467
        %v2558 = vpop.f32.mrf.mxu0
        %v2559 = vadd.f32 0.0, %v2558
        %v2560 = vpop.f32.mrf.mxu0
        %2561 = vdwg.mxu0
        %2562 = vmatpush.bf16.msra.mxu0 %v2532
        %2563 = vmatpush.bf16.msra.mxu0 %v2530
        %2564 = vmatpush.bf16.msra.mxu0 %v2528
        %2565 = vmatpush.bf16.msra.mxu0 %v2526
        %2566 = vmatpush.bf16.msra.mxu0 %v2524
        %2567 = vmatpush.bf16.msra.mxu0 %v2522
        %2568 = vmatpush.bf16.msra.mxu0 %v2520
        %2569 = vmatpush.bf16.msra.mxu0 %v2518
        %2570 = vmatmul.bf16.gmra.mxu0 %v2467
        %v2571 = vpop.f32.mrf.mxu0
        %v2572 = vadd.f32 0.0, %v2571
        %v2573 = vpop.f32.mrf.mxu0
        %2574 = vdwg.mxu0
        %v2575 = vadd.f32 %v2434, %v2559
        %v2576 = vadd.f32 %v2435, %v2572
        %v2577 = vpack.c.bf16 %v1408, %v1408
        %v2578 = vpack.c.bf16 %v1410, %v1410
        %v2579 = vpack.c.bf16 %v1412, %v1412
        %v2580 = vpack.c.bf16 %v1414, %v1414
        %v2581 = vpack.c.bf16 %v1416, %v1416
        %v2582 = vpack.c.bf16 %v1418, %v1418
        %v2583 = vpack.c.bf16 %v1420, %v1420
        %v2584 = vpack.c.bf16 %v1422, %v1422
        %s2585 = scalar_lea.vmem %s3, 1024
        %v2586 = vld [vmem:[%s2585] sm:$0xff]
        %v2587 = vld [vmem:[%s2585 + $0x8] sm:$0xff]
        %v2588 = vld [vmem:[%s2585 + $0x10] sm:$0xff]
        %v2589 = vld [vmem:[%s2585 + $0x18] sm:$0xff]
        %v2590 = vld [vmem:[%s2585 + $0x20] sm:$0xff]
        %v2591 = vld [vmem:[%s2585 + $0x28] sm:$0xff]
        %v2592 = vld [vmem:[%s2585 + $0x30] sm:$0xff]
        %v2593 = vld [vmem:[%s2585 + $0x38] sm:$0xff]
        %v2594 = vld [vmem:[%s2585 + $0x40] sm:$0xff]
        %v2595 = vld [vmem:[%s2585 + $0x48] sm:$0xff]
        %v2596 = vld [vmem:[%s2585 + $0x50] sm:$0xff]
        %v2597 = vld [vmem:[%s2585 + $0x58] sm:$0xff]
        %v2598 = vld [vmem:[%s2585 + $0x60] sm:$0xff]
        %v2599 = vld [vmem:[%s2585 + $0x68] sm:$0xff]
        %v2600 = vld [vmem:[%s2585 + $0x70] sm:$0xff]
        %v2601 = vld [vmem:[%s2585 + $0x78] sm:$0xff]
        %v2610 = vunpack.c.l.b16 %v2577
        %v2611 = vunpack.c.l.b16 %v2578
        %v2612 = vunpack.c.l.b16 %v2579
        %v2613 = vunpack.c.l.b16 %v2580
        %v2614 = vunpack.c.l.b16 %v2581
        %v2615 = vunpack.c.l.b16 %v2582
        %v2616 = vunpack.c.l.b16 %v2583
        %v2617 = vunpack.c.l.b16 %v2584
        %v2618 = vrot.slane %v2611, 7
        %v2619 = vsel %vm1481, %v2618, %v2610
        %v2620 = vrot.slane %v2612, 6
        %v2621 = vsel %vm1484, %v2620, %v2619
        %v2622 = vrot.slane %v2613, 5
        %v2623 = vsel %vm1487, %v2622, %v2621
        %v2624 = vrot.slane %v2614, 4
        %v2625 = vsel %vm1490, %v2624, %v2623
        %v2626 = vrot.slane %v2615, 3
        %v2627 = vsel %vm1493, %v2626, %v2625
        %v2628 = vrot.slane %v2616, 2
        %v2629 = vsel %vm1496, %v2628, %v2627
        %v2630 = vrot.slane %v2617, 1
        %v2631 = vsel %vm1499, %v2630, %v2629
        %v2632 = vpack.c.b16 %v2631, %v2631
        %v2650 = vunpack.c.l.b16 %v2586
        %v2651 = vunpack.c.h.b16 %v2586
        %v2652 = vunpack.c.l.b16 %v2587
        %v2653 = vunpack.c.h.b16 %v2587
        %v2654 = vunpack.c.l.b16 %v2588
        %v2655 = vunpack.c.h.b16 %v2588
        %v2656 = vunpack.c.l.b16 %v2589
        %v2657 = vunpack.c.h.b16 %v2589
        %v2658 = vunpack.c.l.b16 %v2590
        %v2659 = vunpack.c.h.b16 %v2590
        %v2660 = vunpack.c.l.b16 %v2591
        %v2661 = vunpack.c.h.b16 %v2591
        %v2662 = vunpack.c.l.b16 %v2592
        %v2663 = vunpack.c.h.b16 %v2592
        %v2664 = vunpack.c.l.b16 %v2593
        %v2665 = vunpack.c.h.b16 %v2593
        %v2666 = vunpack.c.l.b16 %v2594
        %v2667 = vunpack.c.h.b16 %v2594
        %v2668 = vunpack.c.l.b16 %v2595
        %v2669 = vunpack.c.h.b16 %v2595
        %v2670 = vunpack.c.l.b16 %v2596
        %v2671 = vunpack.c.h.b16 %v2596
        %v2672 = vunpack.c.l.b16 %v2597
        %v2673 = vunpack.c.h.b16 %v2597
        %v2674 = vunpack.c.l.b16 %v2598
        %v2675 = vunpack.c.h.b16 %v2598
        %v2676 = vunpack.c.l.b16 %v2599
        %v2677 = vunpack.c.h.b16 %v2599
        %v2678 = vunpack.c.l.b16 %v2600
        %v2679 = vunpack.c.h.b16 %v2600
        %v2680 = vunpack.c.l.b16 %v2601
        %v2681 = vunpack.c.h.b16 %v2601
        %v2682 = vpack.c.b16 %v2652, %v2650
        %v2683 = vpack.c.b16 %v2653, %v2651
        %v2684 = vpack.c.b16 %v2656, %v2654
        %v2685 = vpack.c.b16 %v2657, %v2655
        %v2686 = vpack.c.b16 %v2660, %v2658
        %v2687 = vpack.c.b16 %v2661, %v2659
        %v2688 = vpack.c.b16 %v2664, %v2662
        %v2689 = vpack.c.b16 %v2665, %v2663
        %v2690 = vpack.c.b16 %v2668, %v2666
        %v2691 = vpack.c.b16 %v2669, %v2667
        %v2692 = vpack.c.b16 %v2672, %v2670
        %v2693 = vpack.c.b16 %v2673, %v2671
        %v2694 = vpack.c.b16 %v2676, %v2674
        %v2695 = vpack.c.b16 %v2677, %v2675
        %v2696 = vpack.c.b16 %v2680, %v2678
        %v2697 = vpack.c.b16 %v2681, %v2679
        %2714 = vmatpush.bf16.msra.mxu0 %v2696
        %2715 = vmatpush.bf16.msra.mxu0 %v2694
        %2716 = vmatpush.bf16.msra.mxu0 %v2692
        %2717 = vmatpush.bf16.msra.mxu0 %v2690
        %2718 = vmatpush.bf16.msra.mxu0 %v2688
        %2719 = vmatpush.bf16.msra.mxu0 %v2686
        %2720 = vmatpush.bf16.msra.mxu0 %v2684
        %2721 = vmatpush.bf16.msra.mxu0 %v2682
        %2722 = vmatmul.bf16.gmra.mxu0 %v2632
        %v2723 = vpop.f32.mrf.mxu0
        %v2724 = vadd.f32 0.0, %v2723
        %v2725 = vpop.f32.mrf.mxu0
        %2726 = vdwg.mxu0
        %2727 = vmatpush.bf16.msra.mxu0 %v2697
        %2728 = vmatpush.bf16.msra.mxu0 %v2695
        %2729 = vmatpush.bf16.msra.mxu0 %v2693
        %2730 = vmatpush.bf16.msra.mxu0 %v2691
        %2731 = vmatpush.bf16.msra.mxu0 %v2689
        %2732 = vmatpush.bf16.msra.mxu0 %v2687
        %2733 = vmatpush.bf16.msra.mxu0 %v2685
        %2734 = vmatpush.bf16.msra.mxu0 %v2683
        %2735 = vmatmul.bf16.gmra.mxu0 %v2632
        %v2736 = vpop.f32.mrf.mxu0
        %v2737 = vadd.f32 0.0, %v2736
        %v2738 = vpop.f32.mrf.mxu0
        %2739 = vdwg.mxu0
        %v2740 = vadd.f32 %v2575, %v2724
        %v2741 = vadd.f32 %v2576, %v2737
        %s2742 = scalar_lea.vmem %s3, 1152
        %v2743 = vld [vmem:[%s2742] sm:$0xff]
        %v2744 = vld [vmem:[%s2742 + $0x8] sm:$0xff]
        %v2745 = vld [vmem:[%s2742 + $0x10] sm:$0xff]
        %v2746 = vld [vmem:[%s2742 + $0x18] sm:$0xff]
        %v2747 = vld [vmem:[%s2742 + $0x20] sm:$0xff]
        %v2748 = vld [vmem:[%s2742 + $0x28] sm:$0xff]
        %v2749 = vld [vmem:[%s2742 + $0x30] sm:$0xff]
        %v2750 = vld [vmem:[%s2742 + $0x38] sm:$0xff]
        %v2751 = vld [vmem:[%s2742 + $0x40] sm:$0xff]
        %v2752 = vld [vmem:[%s2742 + $0x48] sm:$0xff]
        %v2753 = vld [vmem:[%s2742 + $0x50] sm:$0xff]
        %v2754 = vld [vmem:[%s2742 + $0x58] sm:$0xff]
        %v2755 = vld [vmem:[%s2742 + $0x60] sm:$0xff]
        %v2756 = vld [vmem:[%s2742 + $0x68] sm:$0xff]
        %v2757 = vld [vmem:[%s2742 + $0x70] sm:$0xff]
        %v2758 = vld [vmem:[%s2742 + $0x78] sm:$0xff]
        %v2759 = vrot.slane %v2610, 1
        %v2760 = vsel %vm1481, %v2611, %v2759
        %v2761 = vrot.slane %v2612, 7
        %v2762 = vsel %vm1484, %v2761, %v2760
        %v2763 = vrot.slane %v2613, 6
        %v2764 = vsel %vm1487, %v2763, %v2762
        %v2765 = vrot.slane %v2614, 5
        %v2766 = vsel %vm1490, %v2765, %v2764
        %v2767 = vrot.slane %v2615, 4
        %v2768 = vsel %vm1493, %v2767, %v2766
        %v2769 = vrot.slane %v2616, 3
        %v2770 = vsel %vm1496, %v2769, %v2768
        %v2771 = vrot.slane %v2617, 2
        %v2772 = vsel %vm1499, %v2771, %v2770
        %v2773 = vpack.c.b16 %v2772, %v2772
        %v2791 = vunpack.c.l.b16 %v2743
        %v2792 = vunpack.c.h.b16 %v2743
        %v2793 = vunpack.c.l.b16 %v2744
        %v2794 = vunpack.c.h.b16 %v2744
        %v2795 = vunpack.c.l.b16 %v2745
        %v2796 = vunpack.c.h.b16 %v2745
        %v2797 = vunpack.c.l.b16 %v2746
        %v2798 = vunpack.c.h.b16 %v2746
        %v2799 = vunpack.c.l.b16 %v2747
        %v2800 = vunpack.c.h.b16 %v2747
        %v2801 = vunpack.c.l.b16 %v2748
        %v2802 = vunpack.c.h.b16 %v2748
        %v2803 = vunpack.c.l.b16 %v2749
        %v2804 = vunpack.c.h.b16 %v2749
        %v2805 = vunpack.c.l.b16 %v2750
        %v2806 = vunpack.c.h.b16 %v2750
        %v2807 = vunpack.c.l.b16 %v2751
        %v2808 = vunpack.c.h.b16 %v2751
        %v2809 = vunpack.c.l.b16 %v2752
        %v2810 = vunpack.c.h.b16 %v2752
        %v2811 = vunpack.c.l.b16 %v2753
        %v2812 = vunpack.c.h.b16 %v2753
        %v2813 = vunpack.c.l.b16 %v2754
        %v2814 = vunpack.c.h.b16 %v2754
        %v2815 = vunpack.c.l.b16 %v2755
        %v2816 = vunpack.c.h.b16 %v2755
        %v2817 = vunpack.c.l.b16 %v2756
        %v2818 = vunpack.c.h.b16 %v2756
        %v2819 = vunpack.c.l.b16 %v2757
        %v2820 = vunpack.c.h.b16 %v2757
        %v2821 = vunpack.c.l.b16 %v2758
        %v2822 = vunpack.c.h.b16 %v2758
        %v2823 = vpack.c.b16 %v2793, %v2791
        %v2824 = vpack.c.b16 %v2794, %v2792
        %v2825 = vpack.c.b16 %v2797, %v2795
        %v2826 = vpack.c.b16 %v2798, %v2796
        %v2827 = vpack.c.b16 %v2801, %v2799
        %v2828 = vpack.c.b16 %v2802, %v2800
        %v2829 = vpack.c.b16 %v2805, %v2803
        %v2830 = vpack.c.b16 %v2806, %v2804
        %v2831 = vpack.c.b16 %v2809, %v2807
        %v2832 = vpack.c.b16 %v2810, %v2808
        %v2833 = vpack.c.b16 %v2813, %v2811
        %v2834 = vpack.c.b16 %v2814, %v2812
        %v2835 = vpack.c.b16 %v2817, %v2815
        %v2836 = vpack.c.b16 %v2818, %v2816
        %v2837 = vpack.c.b16 %v2821, %v2819
        %v2838 = vpack.c.b16 %v2822, %v2820
        %2855 = vmatpush.bf16.msra.mxu0 %v2837
        %2856 = vmatpush.bf16.msra.mxu0 %v2835
        %2857 = vmatpush.bf16.msra.mxu0 %v2833
        %2858 = vmatpush.bf16.msra.mxu0 %v2831
        %2859 = vmatpush.bf16.msra.mxu0 %v2829
        %2860 = vmatpush.bf16.msra.mxu0 %v2827
        %2861 = vmatpush.bf16.msra.mxu0 %v2825
        %2862 = vmatpush.bf16.msra.mxu0 %v2823
        %2863 = vmatmul.bf16.gmra.mxu0 %v2773
        %v2864 = vpop.f32.mrf.mxu0
        %v2865 = vadd.f32 0.0, %v2864
        %v2866 = vpop.f32.mrf.mxu0
        %2867 = vdwg.mxu0
        %2868 = vmatpush.bf16.msra.mxu0 %v2838
        %2869 = vmatpush.bf16.msra.mxu0 %v2836
        %2870 = vmatpush.bf16.msra.mxu0 %v2834
        %2871 = vmatpush.bf16.msra.mxu0 %v2832
        %2872 = vmatpush.bf16.msra.mxu0 %v2830
        %2873 = vmatpush.bf16.msra.mxu0 %v2828
        %2874 = vmatpush.bf16.msra.mxu0 %v2826
        %2875 = vmatpush.bf16.msra.mxu0 %v2824
        %2876 = vmatmul.bf16.gmra.mxu0 %v2773
        %v2877 = vpop.f32.mrf.mxu0
        %v2878 = vadd.f32 0.0, %v2877
        %v2879 = vpop.f32.mrf.mxu0
        %2880 = vdwg.mxu0
        %v2881 = vadd.f32 %v2740, %v2865
        %v2882 = vadd.f32 %v2741, %v2878
        %s2883 = scalar_lea.vmem %s3, 1280
        %v2884 = vld [vmem:[%s2883] sm:$0xff]
        %v2885 = vld [vmem:[%s2883 + $0x8] sm:$0xff]
        %v2886 = vld [vmem:[%s2883 + $0x10] sm:$0xff]
        %v2887 = vld [vmem:[%s2883 + $0x18] sm:$0xff]
        %v2888 = vld [vmem:[%s2883 + $0x20] sm:$0xff]
        %v2889 = vld [vmem:[%s2883 + $0x28] sm:$0xff]
        %v2890 = vld [vmem:[%s2883 + $0x30] sm:$0xff]
        %v2891 = vld [vmem:[%s2883 + $0x38] sm:$0xff]
        %v2892 = vld [vmem:[%s2883 + $0x40] sm:$0xff]
        %v2893 = vld [vmem:[%s2883 + $0x48] sm:$0xff]
        %v2894 = vld [vmem:[%s2883 + $0x50] sm:$0xff]
        %v2895 = vld [vmem:[%s2883 + $0x58] sm:$0xff]
        %v2896 = vld [vmem:[%s2883 + $0x60] sm:$0xff]
        %v2897 = vld [vmem:[%s2883 + $0x68] sm:$0xff]
        %v2898 = vld [vmem:[%s2883 + $0x70] sm:$0xff]
        %v2899 = vld [vmem:[%s2883 + $0x78] sm:$0xff]
        %v2900 = vrot.slane %v2610, 2
        %v2901 = vrot.slane %v2611, 1
        %v2902 = vsel %vm1481, %v2901, %v2900
        %v2903 = vsel %vm1484, %v2612, %v2902
        %v2904 = vrot.slane %v2613, 7
        %v2905 = vsel %vm1487, %v2904, %v2903
        %v2906 = vrot.slane %v2614, 6
        %v2907 = vsel %vm1490, %v2906, %v2905
        %v2908 = vrot.slane %v2615, 5
        %v2909 = vsel %vm1493, %v2908, %v2907
        %v2910 = vrot.slane %v2616, 4
        %v2911 = vsel %vm1496, %v2910, %v2909
        %v2912 = vrot.slane %v2617, 3
        %v2913 = vsel %vm1499, %v2912, %v2911
        %v2914 = vpack.c.b16 %v2913, %v2913
        %v2932 = vunpack.c.l.b16 %v2884
        %v2933 = vunpack.c.h.b16 %v2884
        %v2934 = vunpack.c.l.b16 %v2885
        %v2935 = vunpack.c.h.b16 %v2885
        %v2936 = vunpack.c.l.b16 %v2886
        %v2937 = vunpack.c.h.b16 %v2886
        %v2938 = vunpack.c.l.b16 %v2887
        %v2939 = vunpack.c.h.b16 %v2887
        %v2940 = vunpack.c.l.b16 %v2888
        %v2941 = vunpack.c.h.b16 %v2888
        %v2942 = vunpack.c.l.b16 %v2889
        %v2943 = vunpack.c.h.b16 %v2889
        %v2944 = vunpack.c.l.b16 %v2890
        %v2945 = vunpack.c.h.b16 %v2890
        %v2946 = vunpack.c.l.b16 %v2891
        %v2947 = vunpack.c.h.b16 %v2891
        %v2948 = vunpack.c.l.b16 %v2892
        %v2949 = vunpack.c.h.b16 %v2892
        %v2950 = vunpack.c.l.b16 %v2893
        %v2951 = vunpack.c.h.b16 %v2893
        %v2952 = vunpack.c.l.b16 %v2894
        %v2953 = vunpack.c.h.b16 %v2894
        %v2954 = vunpack.c.l.b16 %v2895
        %v2955 = vunpack.c.h.b16 %v2895
        %v2956 = vunpack.c.l.b16 %v2896
        %v2957 = vunpack.c.h.b16 %v2896
        %v2958 = vunpack.c.l.b16 %v2897
        %v2959 = vunpack.c.h.b16 %v2897
        %v2960 = vunpack.c.l.b16 %v2898
        %v2961 = vunpack.c.h.b16 %v2898
        %v2962 = vunpack.c.l.b16 %v2899
        %v2963 = vunpack.c.h.b16 %v2899
        %v2964 = vpack.c.b16 %v2934, %v2932
        %v2965 = vpack.c.b16 %v2935, %v2933
        %v2966 = vpack.c.b16 %v2938, %v2936
        %v2967 = vpack.c.b16 %v2939, %v2937
        %v2968 = vpack.c.b16 %v2942, %v2940
        %v2969 = vpack.c.b16 %v2943, %v2941
        %v2970 = vpack.c.b16 %v2946, %v2944
        %v2971 = vpack.c.b16 %v2947, %v2945
        %v2972 = vpack.c.b16 %v2950, %v2948
        %v2973 = vpack.c.b16 %v2951, %v2949
        %v2974 = vpack.c.b16 %v2954, %v2952
        %v2975 = vpack.c.b16 %v2955, %v2953
        %v2976 = vpack.c.b16 %v2958, %v2956
        %v2977 = vpack.c.b16 %v2959, %v2957
        %v2978 = vpack.c.b16 %v2962, %v2960
        %v2979 = vpack.c.b16 %v2963, %v2961
        %2996 = vmatpush.bf16.msra.mxu0 %v2978
        %2997 = vmatpush.bf16.msra.mxu0 %v2976
        %2998 = vmatpush.bf16.msra.mxu0 %v2974
        %2999 = vmatpush.bf16.msra.mxu0 %v2972
        %3000 = vmatpush.bf16.msra.mxu0 %v2970
        %3001 = vmatpush.bf16.msra.mxu0 %v2968
        %3002 = vmatpush.bf16.msra.mxu0 %v2966
        %3003 = vmatpush.bf16.msra.mxu0 %v2964
        %3004 = vmatmul.bf16.gmra.mxu0 %v2914
        %v3005 = vpop.f32.mrf.mxu0
        %v3006 = vadd.f32 0.0, %v3005
        %v3007 = vpop.f32.mrf.mxu0
        %3008 = vdwg.mxu0
        %3009 = vmatpush.bf16.msra.mxu0 %v2979
        %3010 = vmatpush.bf16.msra.mxu0 %v2977
        %3011 = vmatpush.bf16.msra.mxu0 %v2975
        %3012 = vmatpush.bf16.msra.mxu0 %v2973
        %3013 = vmatpush.bf16.msra.mxu0 %v2971
        %3014 = vmatpush.bf16.msra.mxu0 %v2969
        %3015 = vmatpush.bf16.msra.mxu0 %v2967
        %3016 = vmatpush.bf16.msra.mxu0 %v2965
        %3017 = vmatmul.bf16.gmra.mxu0 %v2914
        %v3018 = vpop.f32.mrf.mxu0
        %v3019 = vadd.f32 0.0, %v3018
        %v3020 = vpop.f32.mrf.mxu0
        %3021 = vdwg.mxu0
        %v3022 = vadd.f32 %v2881, %v3006
        %v3023 = vadd.f32 %v2882, %v3019
        %s3024 = scalar_lea.vmem %s3, 1408
        %v3025 = vld [vmem:[%s3024] sm:$0xff]
        %v3026 = vld [vmem:[%s3024 + $0x8] sm:$0xff]
        %v3027 = vld [vmem:[%s3024 + $0x10] sm:$0xff]
        %v3028 = vld [vmem:[%s3024 + $0x18] sm:$0xff]
        %v3029 = vld [vmem:[%s3024 + $0x20] sm:$0xff]
        %v3030 = vld [vmem:[%s3024 + $0x28] sm:$0xff]
        %v3031 = vld [vmem:[%s3024 + $0x30] sm:$0xff]
        %v3032 = vld [vmem:[%s3024 + $0x38] sm:$0xff]
        %v3033 = vld [vmem:[%s3024 + $0x40] sm:$0xff]
        %v3034 = vld [vmem:[%s3024 + $0x48] sm:$0xff]
        %v3035 = vld [vmem:[%s3024 + $0x50] sm:$0xff]
        %v3036 = vld [vmem:[%s3024 + $0x58] sm:$0xff]
        %v3037 = vld [vmem:[%s3024 + $0x60] sm:$0xff]
        %v3038 = vld [vmem:[%s3024 + $0x68] sm:$0xff]
        %v3039 = vld [vmem:[%s3024 + $0x70] sm:$0xff]
        %v3040 = vld [vmem:[%s3024 + $0x78] sm:$0xff]
        %v3041 = vrot.slane %v2610, 3
        %v3042 = vrot.slane %v2611, 2
        %v3043 = vsel %vm1481, %v3042, %v3041
        %v3044 = vrot.slane %v2612, 1
        %v3045 = vsel %vm1484, %v3044, %v3043
        %v3046 = vsel %vm1487, %v2613, %v3045
        %v3047 = vrot.slane %v2614, 7
        %v3048 = vsel %vm1490, %v3047, %v3046
        %v3049 = vrot.slane %v2615, 6
        %v3050 = vsel %vm1493, %v3049, %v3048
        %v3051 = vrot.slane %v2616, 5
        %v3052 = vsel %vm1496, %v3051, %v3050
        %v3053 = vrot.slane %v2617, 4
        %v3054 = vsel %vm1499, %v3053, %v3052
        %v3055 = vpack.c.b16 %v3054, %v3054
        %v3073 = vunpack.c.l.b16 %v3025
        %v3074 = vunpack.c.h.b16 %v3025
        %v3075 = vunpack.c.l.b16 %v3026
        %v3076 = vunpack.c.h.b16 %v3026
        %v3077 = vunpack.c.l.b16 %v3027
        %v3078 = vunpack.c.h.b16 %v3027
        %v3079 = vunpack.c.l.b16 %v3028
        %v3080 = vunpack.c.h.b16 %v3028
        %v3081 = vunpack.c.l.b16 %v3029
        %v3082 = vunpack.c.h.b16 %v3029
        %v3083 = vunpack.c.l.b16 %v3030
        %v3084 = vunpack.c.h.b16 %v3030
        %v3085 = vunpack.c.l.b16 %v3031
        %v3086 = vunpack.c.h.b16 %v3031
        %v3087 = vunpack.c.l.b16 %v3032
        %v3088 = vunpack.c.h.b16 %v3032
        %v3089 = vunpack.c.l.b16 %v3033
        %v3090 = vunpack.c.h.b16 %v3033
        %v3091 = vunpack.c.l.b16 %v3034
        %v3092 = vunpack.c.h.b16 %v3034
        %v3093 = vunpack.c.l.b16 %v3035
        %v3094 = vunpack.c.h.b16 %v3035
        %v3095 = vunpack.c.l.b16 %v3036
        %v3096 = vunpack.c.h.b16 %v3036
        %v3097 = vunpack.c.l.b16 %v3037
        %v3098 = vunpack.c.h.b16 %v3037
        %v3099 = vunpack.c.l.b16 %v3038
        %v3100 = vunpack.c.h.b16 %v3038
        %v3101 = vunpack.c.l.b16 %v3039
        %v3102 = vunpack.c.h.b16 %v3039
        %v3103 = vunpack.c.l.b16 %v3040
        %v3104 = vunpack.c.h.b16 %v3040
        %v3105 = vpack.c.b16 %v3075, %v3073
        %v3106 = vpack.c.b16 %v3076, %v3074
        %v3107 = vpack.c.b16 %v3079, %v3077
        %v3108 = vpack.c.b16 %v3080, %v3078
        %v3109 = vpack.c.b16 %v3083, %v3081
        %v3110 = vpack.c.b16 %v3084, %v3082
        %v3111 = vpack.c.b16 %v3087, %v3085
        %v3112 = vpack.c.b16 %v3088, %v3086
        %v3113 = vpack.c.b16 %v3091, %v3089
        %v3114 = vpack.c.b16 %v3092, %v3090
        %v3115 = vpack.c.b16 %v3095, %v3093
        %v3116 = vpack.c.b16 %v3096, %v3094
        %v3117 = vpack.c.b16 %v3099, %v3097
        %v3118 = vpack.c.b16 %v3100, %v3098
        %v3119 = vpack.c.b16 %v3103, %v3101
        %v3120 = vpack.c.b16 %v3104, %v3102
        %3137 = vmatpush.bf16.msra.mxu0 %v3119
        %3138 = vmatpush.bf16.msra.mxu0 %v3117
        %3139 = vmatpush.bf16.msra.mxu0 %v3115
        %3140 = vmatpush.bf16.msra.mxu0 %v3113
        %3141 = vmatpush.bf16.msra.mxu0 %v3111
        %3142 = vmatpush.bf16.msra.mxu0 %v3109
        %3143 = vmatpush.bf16.msra.mxu0 %v3107
        %3144 = vmatpush.bf16.msra.mxu0 %v3105
        %3145 = vmatmul.bf16.gmra.mxu0 %v3055
        %v3146 = vpop.f32.mrf.mxu0
        %v3147 = vadd.f32 0.0, %v3146
        %v3148 = vpop.f32.mrf.mxu0
        %3149 = vdwg.mxu0
        %3150 = vmatpush.bf16.msra.mxu0 %v3120
        %3151 = vmatpush.bf16.msra.mxu0 %v3118
        %3152 = vmatpush.bf16.msra.mxu0 %v3116
        %3153 = vmatpush.bf16.msra.mxu0 %v3114
        %3154 = vmatpush.bf16.msra.mxu0 %v3112
        %3155 = vmatpush.bf16.msra.mxu0 %v3110
        %3156 = vmatpush.bf16.msra.mxu0 %v3108
        %3157 = vmatpush.bf16.msra.mxu0 %v3106
        %3158 = vmatmul.bf16.gmra.mxu0 %v3055
        %v3159 = vpop.f32.mrf.mxu0
        %v3160 = vadd.f32 0.0, %v3159
        %v3161 = vpop.f32.mrf.mxu0
        %3162 = vdwg.mxu0
        %v3163 = vadd.f32 %v3022, %v3147
        %v3164 = vadd.f32 %v3023, %v3160
        %s3165 = scalar_lea.vmem %s3, 1536
        %v3166 = vld [vmem:[%s3165] sm:$0xff]
        %v3167 = vld [vmem:[%s3165 + $0x8] sm:$0xff]
        %v3168 = vld [vmem:[%s3165 + $0x10] sm:$0xff]
        %v3169 = vld [vmem:[%s3165 + $0x18] sm:$0xff]
        %v3170 = vld [vmem:[%s3165 + $0x20] sm:$0xff]
        %v3171 = vld [vmem:[%s3165 + $0x28] sm:$0xff]
        %v3172 = vld [vmem:[%s3165 + $0x30] sm:$0xff]
        %v3173 = vld [vmem:[%s3165 + $0x38] sm:$0xff]
        %v3174 = vld [vmem:[%s3165 + $0x40] sm:$0xff]
        %v3175 = vld [vmem:[%s3165 + $0x48] sm:$0xff]
        %v3176 = vld [vmem:[%s3165 + $0x50] sm:$0xff]
        %v3177 = vld [vmem:[%s3165 + $0x58] sm:$0xff]
        %v3178 = vld [vmem:[%s3165 + $0x60] sm:$0xff]
        %v3179 = vld [vmem:[%s3165 + $0x68] sm:$0xff]
        %v3180 = vld [vmem:[%s3165 + $0x70] sm:$0xff]
        %v3181 = vld [vmem:[%s3165 + $0x78] sm:$0xff]
        %v3182 = vrot.slane %v2610, 4
        %v3183 = vrot.slane %v2611, 3
        %v3184 = vsel %vm1481, %v3183, %v3182
        %v3185 = vrot.slane %v2612, 2
        %v3186 = vsel %vm1484, %v3185, %v3184
        %v3187 = vrot.slane %v2613, 1
        %v3188 = vsel %vm1487, %v3187, %v3186
        %v3189 = vsel %vm1490, %v2614, %v3188
        %v3190 = vrot.slane %v2615, 7
        %v3191 = vsel %vm1493, %v3190, %v3189
        %v3192 = vrot.slane %v2616, 6
        %v3193 = vsel %vm1496, %v3192, %v3191
        %v3194 = vrot.slane %v2617, 5
        %v3195 = vsel %vm1499, %v3194, %v3193
        %v3196 = vpack.c.b16 %v3195, %v3195
        %v3214 = vunpack.c.l.b16 %v3166
        %v3215 = vunpack.c.h.b16 %v3166
        %v3216 = vunpack.c.l.b16 %v3167
        %v3217 = vunpack.c.h.b16 %v3167
        %v3218 = vunpack.c.l.b16 %v3168
        %v3219 = vunpack.c.h.b16 %v3168
        %v3220 = vunpack.c.l.b16 %v3169
        %v3221 = vunpack.c.h.b16 %v3169
        %v3222 = vunpack.c.l.b16 %v3170
        %v3223 = vunpack.c.h.b16 %v3170
        %v3224 = vunpack.c.l.b16 %v3171
        %v3225 = vunpack.c.h.b16 %v3171
        %v3226 = vunpack.c.l.b16 %v3172
        %v3227 = vunpack.c.h.b16 %v3172
        %v3228 = vunpack.c.l.b16 %v3173
        %v3229 = vunpack.c.h.b16 %v3173
        %v3230 = vunpack.c.l.b16 %v3174
        %v3231 = vunpack.c.h.b16 %v3174
        %v3232 = vunpack.c.l.b16 %v3175
        %v3233 = vunpack.c.h.b16 %v3175
        %v3234 = vunpack.c.l.b16 %v3176
        %v3235 = vunpack.c.h.b16 %v3176
        %v3236 = vunpack.c.l.b16 %v3177
        %v3237 = vunpack.c.h.b16 %v3177
        %v3238 = vunpack.c.l.b16 %v3178
        %v3239 = vunpack.c.h.b16 %v3178
        %v3240 = vunpack.c.l.b16 %v3179
        %v3241 = vunpack.c.h.b16 %v3179
        %v3242 = vunpack.c.l.b16 %v3180
        %v3243 = vunpack.c.h.b16 %v3180
        %v3244 = vunpack.c.l.b16 %v3181
        %v3245 = vunpack.c.h.b16 %v3181
        %v3246 = vpack.c.b16 %v3216, %v3214
        %v3247 = vpack.c.b16 %v3217, %v3215
        %v3248 = vpack.c.b16 %v3220, %v3218
        %v3249 = vpack.c.b16 %v3221, %v3219
        %v3250 = vpack.c.b16 %v3224, %v3222
        %v3251 = vpack.c.b16 %v3225, %v3223
        %v3252 = vpack.c.b16 %v3228, %v3226
        %v3253 = vpack.c.b16 %v3229, %v3227
        %v3254 = vpack.c.b16 %v3232, %v3230
        %v3255 = vpack.c.b16 %v3233, %v3231
        %v3256 = vpack.c.b16 %v3236, %v3234
        %v3257 = vpack.c.b16 %v3237, %v3235
        %v3258 = vpack.c.b16 %v3240, %v3238
        %v3259 = vpack.c.b16 %v3241, %v3239
        %v3260 = vpack.c.b16 %v3244, %v3242
        %v3261 = vpack.c.b16 %v3245, %v3243
        %3278 = vmatpush.bf16.msra.mxu0 %v3260
        %3279 = vmatpush.bf16.msra.mxu0 %v3258
        %3280 = vmatpush.bf16.msra.mxu0 %v3256
        %3281 = vmatpush.bf16.msra.mxu0 %v3254
        %3282 = vmatpush.bf16.msra.mxu0 %v3252
        %3283 = vmatpush.bf16.msra.mxu0 %v3250
        %3284 = vmatpush.bf16.msra.mxu0 %v3248
        %3285 = vmatpush.bf16.msra.mxu0 %v3246
        %3286 = vmatmul.bf16.gmra.mxu0 %v3196
        %v3287 = vpop.f32.mrf.mxu0
        %v3288 = vadd.f32 0.0, %v3287
        %v3289 = vpop.f32.mrf.mxu0
        %3290 = vdwg.mxu0
        %3291 = vmatpush.bf16.msra.mxu0 %v3261
        %3292 = vmatpush.bf16.msra.mxu0 %v3259
        %3293 = vmatpush.bf16.msra.mxu0 %v3257
        %3294 = vmatpush.bf16.msra.mxu0 %v3255
        %3295 = vmatpush.bf16.msra.mxu0 %v3253
        %3296 = vmatpush.bf16.msra.mxu0 %v3251
        %3297 = vmatpush.bf16.msra.mxu0 %v3249
        %3298 = vmatpush.bf16.msra.mxu0 %v3247
        %3299 = vmatmul.bf16.gmra.mxu0 %v3196
        %v3300 = vpop.f32.mrf.mxu0
        %v3301 = vadd.f32 0.0, %v3300
        %v3302 = vpop.f32.mrf.mxu0
        %3303 = vdwg.mxu0
        %v3304 = vadd.f32 %v3163, %v3288
        %v3305 = vadd.f32 %v3164, %v3301
        %s3306 = scalar_lea.vmem %s3, 1664
        %v3307 = vld [vmem:[%s3306] sm:$0xff]
        %v3308 = vld [vmem:[%s3306 + $0x8] sm:$0xff]
        %v3309 = vld [vmem:[%s3306 + $0x10] sm:$0xff]
        %v3310 = vld [vmem:[%s3306 + $0x18] sm:$0xff]
        %v3311 = vld [vmem:[%s3306 + $0x20] sm:$0xff]
        %v3312 = vld [vmem:[%s3306 + $0x28] sm:$0xff]
        %v3313 = vld [vmem:[%s3306 + $0x30] sm:$0xff]
        %v3314 = vld [vmem:[%s3306 + $0x38] sm:$0xff]
        %v3315 = vld [vmem:[%s3306 + $0x40] sm:$0xff]
        %v3316 = vld [vmem:[%s3306 + $0x48] sm:$0xff]
        %v3317 = vld [vmem:[%s3306 + $0x50] sm:$0xff]
        %v3318 = vld [vmem:[%s3306 + $0x58] sm:$0xff]
        %v3319 = vld [vmem:[%s3306 + $0x60] sm:$0xff]
        %v3320 = vld [vmem:[%s3306 + $0x68] sm:$0xff]
        %v3321 = vld [vmem:[%s3306 + $0x70] sm:$0xff]
        %v3322 = vld [vmem:[%s3306 + $0x78] sm:$0xff]
        %v3323 = vrot.slane %v2610, 5
        %v3324 = vrot.slane %v2611, 4
        %v3325 = vsel %vm1481, %v3324, %v3323
        %v3326 = vrot.slane %v2612, 3
        %v3327 = vsel %vm1484, %v3326, %v3325
        %v3328 = vrot.slane %v2613, 2
        %v3329 = vsel %vm1487, %v3328, %v3327
        %v3330 = vrot.slane %v2614, 1
        %v3331 = vsel %vm1490, %v3330, %v3329
        %v3332 = vsel %vm1493, %v2615, %v3331
        %v3333 = vrot.slane %v2616, 7
        %v3334 = vsel %vm1496, %v3333, %v3332
        %v3335 = vrot.slane %v2617, 6
        %v3336 = vsel %vm1499, %v3335, %v3334
        %v3337 = vpack.c.b16 %v3336, %v3336
        %v3355 = vunpack.c.l.b16 %v3307
        %v3356 = vunpack.c.h.b16 %v3307
        %v3357 = vunpack.c.l.b16 %v3308
        %v3358 = vunpack.c.h.b16 %v3308
        %v3359 = vunpack.c.l.b16 %v3309
        %v3360 = vunpack.c.h.b16 %v3309
        %v3361 = vunpack.c.l.b16 %v3310
        %v3362 = vunpack.c.h.b16 %v3310
        %v3363 = vunpack.c.l.b16 %v3311
        %v3364 = vunpack.c.h.b16 %v3311
        %v3365 = vunpack.c.l.b16 %v3312
        %v3366 = vunpack.c.h.b16 %v3312
        %v3367 = vunpack.c.l.b16 %v3313
        %v3368 = vunpack.c.h.b16 %v3313
        %v3369 = vunpack.c.l.b16 %v3314
        %v3370 = vunpack.c.h.b16 %v3314
        %v3371 = vunpack.c.l.b16 %v3315
        %v3372 = vunpack.c.h.b16 %v3315
        %v3373 = vunpack.c.l.b16 %v3316
        %v3374 = vunpack.c.h.b16 %v3316
        %v3375 = vunpack.c.l.b16 %v3317
        %v3376 = vunpack.c.h.b16 %v3317
        %v3377 = vunpack.c.l.b16 %v3318
        %v3378 = vunpack.c.h.b16 %v3318
        %v3379 = vunpack.c.l.b16 %v3319
        %v3380 = vunpack.c.h.b16 %v3319
        %v3381 = vunpack.c.l.b16 %v3320
        %v3382 = vunpack.c.h.b16 %v3320
        %v3383 = vunpack.c.l.b16 %v3321
        %v3384 = vunpack.c.h.b16 %v3321
        %v3385 = vunpack.c.l.b16 %v3322
        %v3386 = vunpack.c.h.b16 %v3322
        %v3387 = vpack.c.b16 %v3357, %v3355
        %v3388 = vpack.c.b16 %v3358, %v3356
        %v3389 = vpack.c.b16 %v3361, %v3359
        %v3390 = vpack.c.b16 %v3362, %v3360
        %v3391 = vpack.c.b16 %v3365, %v3363
        %v3392 = vpack.c.b16 %v3366, %v3364
        %v3393 = vpack.c.b16 %v3369, %v3367
        %v3394 = vpack.c.b16 %v3370, %v3368
        %v3395 = vpack.c.b16 %v3373, %v3371
        %v3396 = vpack.c.b16 %v3374, %v3372
        %v3397 = vpack.c.b16 %v3377, %v3375
        %v3398 = vpack.c.b16 %v3378, %v3376
        %v3399 = vpack.c.b16 %v3381, %v3379
        %v3400 = vpack.c.b16 %v3382, %v3380
        %v3401 = vpack.c.b16 %v3385, %v3383
        %v3402 = vpack.c.b16 %v3386, %v3384
        %3419 = vmatpush.bf16.msra.mxu0 %v3401
        %3420 = vmatpush.bf16.msra.mxu0 %v3399
        %3421 = vmatpush.bf16.msra.mxu0 %v3397
        %3422 = vmatpush.bf16.msra.mxu0 %v3395
        %3423 = vmatpush.bf16.msra.mxu0 %v3393
        %3424 = vmatpush.bf16.msra.mxu0 %v3391
        %3425 = vmatpush.bf16.msra.mxu0 %v3389
        %3426 = vmatpush.bf16.msra.mxu0 %v3387
        %3427 = vmatmul.bf16.gmra.mxu0 %v3337
        %v3428 = vpop.f32.mrf.mxu0
        %v3429 = vadd.f32 0.0, %v3428
        %v3430 = vpop.f32.mrf.mxu0
        %3431 = vdwg.mxu0
        %3432 = vmatpush.bf16.msra.mxu0 %v3402
        %3433 = vmatpush.bf16.msra.mxu0 %v3400
        %3434 = vmatpush.bf16.msra.mxu0 %v3398
        %3435 = vmatpush.bf16.msra.mxu0 %v3396
        %3436 = vmatpush.bf16.msra.mxu0 %v3394
        %3437 = vmatpush.bf16.msra.mxu0 %v3392
        %3438 = vmatpush.bf16.msra.mxu0 %v3390
        %3439 = vmatpush.bf16.msra.mxu0 %v3388
        %3440 = vmatmul.bf16.gmra.mxu0 %v3337
        %v3441 = vpop.f32.mrf.mxu0
        %v3442 = vadd.f32 0.0, %v3441
        %v3443 = vpop.f32.mrf.mxu0
        %3444 = vdwg.mxu0
        %v3445 = vadd.f32 %v3304, %v3429
        %v3446 = vadd.f32 %v3305, %v3442
        %s3447 = scalar_lea.vmem %s3, 1792
        %v3448 = vld [vmem:[%s3447] sm:$0xff]
        %v3449 = vld [vmem:[%s3447 + $0x8] sm:$0xff]
        %v3450 = vld [vmem:[%s3447 + $0x10] sm:$0xff]
        %v3451 = vld [vmem:[%s3447 + $0x18] sm:$0xff]
        %v3452 = vld [vmem:[%s3447 + $0x20] sm:$0xff]
        %v3453 = vld [vmem:[%s3447 + $0x28] sm:$0xff]
        %v3454 = vld [vmem:[%s3447 + $0x30] sm:$0xff]
        %v3455 = vld [vmem:[%s3447 + $0x38] sm:$0xff]
        %v3456 = vld [vmem:[%s3447 + $0x40] sm:$0xff]
        %v3457 = vld [vmem:[%s3447 + $0x48] sm:$0xff]
        %v3458 = vld [vmem:[%s3447 + $0x50] sm:$0xff]
        %v3459 = vld [vmem:[%s3447 + $0x58] sm:$0xff]
        %v3460 = vld [vmem:[%s3447 + $0x60] sm:$0xff]
        %v3461 = vld [vmem:[%s3447 + $0x68] sm:$0xff]
        %v3462 = vld [vmem:[%s3447 + $0x70] sm:$0xff]
        %v3463 = vld [vmem:[%s3447 + $0x78] sm:$0xff]
        %v3464 = vrot.slane %v2610, 6
        %v3465 = vrot.slane %v2611, 5
        %v3466 = vsel %vm1481, %v3465, %v3464
        %v3467 = vrot.slane %v2612, 4
        %v3468 = vsel %vm1484, %v3467, %v3466
        %v3469 = vrot.slane %v2613, 3
        %v3470 = vsel %vm1487, %v3469, %v3468
        %v3471 = vrot.slane %v2614, 2
        %v3472 = vsel %vm1490, %v3471, %v3470
        %v3473 = vrot.slane %v2615, 1
        %v3474 = vsel %vm1493, %v3473, %v3472
        %v3475 = vsel %vm1496, %v2616, %v3474
        %v3476 = vrot.slane %v2617, 7
        %v3477 = vsel %vm1499, %v3476, %v3475
        %v3478 = vpack.c.b16 %v3477, %v3477
        %v3496 = vunpack.c.l.b16 %v3448
        %v3497 = vunpack.c.h.b16 %v3448
        %v3498 = vunpack.c.l.b16 %v3449
        %v3499 = vunpack.c.h.b16 %v3449
        %v3500 = vunpack.c.l.b16 %v3450
        %v3501 = vunpack.c.h.b16 %v3450
        %v3502 = vunpack.c.l.b16 %v3451
        %v3503 = vunpack.c.h.b16 %v3451
        %v3504 = vunpack.c.l.b16 %v3452
        %v3505 = vunpack.c.h.b16 %v3452
        %v3506 = vunpack.c.l.b16 %v3453
        %v3507 = vunpack.c.h.b16 %v3453
        %v3508 = vunpack.c.l.b16 %v3454
        %v3509 = vunpack.c.h.b16 %v3454
        %v3510 = vunpack.c.l.b16 %v3455
        %v3511 = vunpack.c.h.b16 %v3455
        %v3512 = vunpack.c.l.b16 %v3456
        %v3513 = vunpack.c.h.b16 %v3456
        %v3514 = vunpack.c.l.b16 %v3457
        %v3515 = vunpack.c.h.b16 %v3457
        %v3516 = vunpack.c.l.b16 %v3458
        %v3517 = vunpack.c.h.b16 %v3458
        %v3518 = vunpack.c.l.b16 %v3459
        %v3519 = vunpack.c.h.b16 %v3459
        %v3520 = vunpack.c.l.b16 %v3460
        %v3521 = vunpack.c.h.b16 %v3460
        %v3522 = vunpack.c.l.b16 %v3461
        %v3523 = vunpack.c.h.b16 %v3461
        %v3524 = vunpack.c.l.b16 %v3462
        %v3525 = vunpack.c.h.b16 %v3462
        %v3526 = vunpack.c.l.b16 %v3463
        %v3527 = vunpack.c.h.b16 %v3463
        %v3528 = vpack.c.b16 %v3498, %v3496
        %v3529 = vpack.c.b16 %v3499, %v3497
        %v3530 = vpack.c.b16 %v3502, %v3500
        %v3531 = vpack.c.b16 %v3503, %v3501
        %v3532 = vpack.c.b16 %v3506, %v3504
        %v3533 = vpack.c.b16 %v3507, %v3505
        %v3534 = vpack.c.b16 %v3510, %v3508
        %v3535 = vpack.c.b16 %v3511, %v3509
        %v3536 = vpack.c.b16 %v3514, %v3512
        %v3537 = vpack.c.b16 %v3515, %v3513
        %v3538 = vpack.c.b16 %v3518, %v3516
        %v3539 = vpack.c.b16 %v3519, %v3517
        %v3540 = vpack.c.b16 %v3522, %v3520
        %v3541 = vpack.c.b16 %v3523, %v3521
        %v3542 = vpack.c.b16 %v3526, %v3524
        %v3543 = vpack.c.b16 %v3527, %v3525
        %3560 = vmatpush.bf16.msra.mxu0 %v3542
        %3561 = vmatpush.bf16.msra.mxu0 %v3540
        %3562 = vmatpush.bf16.msra.mxu0 %v3538
        %3563 = vmatpush.bf16.msra.mxu0 %v3536
        %3564 = vmatpush.bf16.msra.mxu0 %v3534
        %3565 = vmatpush.bf16.msra.mxu0 %v3532
        %3566 = vmatpush.bf16.msra.mxu0 %v3530
        %3567 = vmatpush.bf16.msra.mxu0 %v3528
        %3568 = vmatmul.bf16.gmra.mxu0 %v3478
        %v3569 = vpop.f32.mrf.mxu0
        %v3570 = vadd.f32 0.0, %v3569
        %v3571 = vpop.f32.mrf.mxu0
        %3572 = vdwg.mxu0
        %3573 = vmatpush.bf16.msra.mxu0 %v3543
        %3574 = vmatpush.bf16.msra.mxu0 %v3541
        %3575 = vmatpush.bf16.msra.mxu0 %v3539
        %3576 = vmatpush.bf16.msra.mxu0 %v3537
        %3577 = vmatpush.bf16.msra.mxu0 %v3535
        %3578 = vmatpush.bf16.msra.mxu0 %v3533
        %3579 = vmatpush.bf16.msra.mxu0 %v3531
        %3580 = vmatpush.bf16.msra.mxu0 %v3529
        %3581 = vmatmul.bf16.gmra.mxu0 %v3478
        %v3582 = vpop.f32.mrf.mxu0
        %v3583 = vadd.f32 0.0, %v3582
        %v3584 = vpop.f32.mrf.mxu0
        %3585 = vdwg.mxu0
        %v3586 = vadd.f32 %v3445, %v3570
        %v3587 = vadd.f32 %v3446, %v3583
        %v3588 = vld [vmem:[%s4] sm:$0x3]
        %v3590 = vperm.slane %v3588, 0
        %v3591 = vperm.slane %v3588, 1
        %v3594 = vadd.f32 %v3586, %v3590
        %v3595 = vadd.f32 %v3587, %v3591
        %v3596 = vmax.f32 %v3594, 0.0
        %v3597 = vmax.f32 %v3595, 0.0
        %v3600 = vrot.slane %v3597, 7
        %vm3601 = vcmask 1040384
        %v3602 = vsel %vm3601, %v3596, %v3600
        %v3603 = vsel %vm1481, %v3596, %v3600
        %v3604 = vrot.slane %v3603, 1
        %v3605 = vsel %vm1484, %v3596, %v3600
        %v3606 = vrot.slane %v3605, 2
        %v3607 = vsel %vm1487, %v3596, %v3600
        %v3608 = vrot.slane %v3607, 3
        %v3609 = vsel %vm1490, %v3596, %v3600
        %v3610 = vrot.slane %v3609, 4
        %v3611 = vsel %vm1493, %v3596, %v3600
        %v3612 = vrot.slane %v3611, 5
        %v3613 = vsel %vm1496, %v3596, %v3600
        %v3614 = vrot.slane %v3613, 6
        %vm3615 = vcmask 1046528
        %v3616 = vsel %vm3615, %v3600, %v3596
        %v3617 = vrot.slane %v3616, 7
        %v3626 = vlaneseq
        %vm3627 = vcmp.ge.s32.totalorder %v3626, 0
        %vm3628 = vcmp.lt.s32.totalorder %v3626, 256
        %vm3629 = vmand %vm3627, %vm3628
        %3630 = vst.msk [vmem:[#allocation3] ss:$8 sm:$0x3] %vm3629, %v3602
        %3631 = vst.msk [vmem:[#allocation3] ss:$8 sm:$0x0] %vm3629, %v3602
        %s3632 = scalar_lea.vmem [#allocation3], 16
        %3633 = vst.msk [vmem:[%s3632] ss:$8 sm:$0x3] %vm3629, %v3604
        %3634 = vst.msk [vmem:[%s3632] ss:$8 sm:$0x0] %vm3629, %v3604
        %s3635 = scalar_lea.vmem [#allocation3], 32
        %3636 = vst.msk [vmem:[%s3635] ss:$8 sm:$0x3] %vm3629, %v3606
        %3637 = vst.msk [vmem:[%s3635] ss:$8 sm:$0x0] %vm3629, %v3606
        %s3638 = scalar_lea.vmem [#allocation3], 48
        %3639 = vst.msk [vmem:[%s3638] ss:$8 sm:$0x3] %vm3629, %v3608
        %3640 = vst.msk [vmem:[%s3638] ss:$8 sm:$0x0] %vm3629, %v3608
        %s3641 = scalar_lea.vmem [#allocation3], 64
        %3642 = vst.msk [vmem:[%s3641] ss:$8 sm:$0x3] %vm3629, %v3610
        %3643 = vst.msk [vmem:[%s3641] ss:$8 sm:$0x0] %vm3629, %v3610
        %s3644 = scalar_lea.vmem [#allocation3], 80
        %3645 = vst.msk [vmem:[%s3644] ss:$8 sm:$0x3] %vm3629, %v3612
        %3646 = vst.msk [vmem:[%s3644] ss:$8 sm:$0x0] %vm3629, %v3612
        %s3647 = scalar_lea.vmem [#allocation3], 96
        %3648 = vst.msk [vmem:[%s3647] ss:$8 sm:$0x3] %vm3629, %v3614
        %3649 = vst.msk [vmem:[%s3647] ss:$8 sm:$0x0] %vm3629, %v3614
        %s3650 = scalar_lea.vmem [#allocation3], 112
        %3651 = vst.msk [vmem:[%s3650] ss:$8 sm:$0x3] %vm3629, %v3617
        %3652 = vst.msk [vmem:[%s3650] ss:$8 sm:$0x0] %vm3629, %v3617
        %v3653 = vld [vmem:[#allocation2 + $0x7] sm:$0xff]
        %v3654 = vld [vmem:[#allocation2 + $0xf] sm:$0x7f]
        %v3655 = vld [vmem:[#allocation2 + $0x27] sm:$0xff]
        %v3656 = vld [vmem:[#allocation2 + $0x2f] sm:$0x7f]
        %v3657 = vld [vmem:[#allocation2 + $0x47] sm:$0xff]
        %v3658 = vld [vmem:[#allocation2 + $0x4f] sm:$0x7f]
        %v3659 = vld [vmem:[#allocation2 + $0x67] sm:$0xff]
        %v3660 = vld [vmem:[#allocation2 + $0x6f] sm:$0x7f]
        %v3661 = vld [vmem:[#allocation2 + $0x87] sm:$0xff]
        %v3662 = vld [vmem:[#allocation2 + $0x8f] sm:$0x7f]
        %v3663 = vld [vmem:[#allocation2 + $0xa7] sm:$0xff]
        %v3664 = vld [vmem:[#allocation2 + $0xaf] sm:$0x7f]
        %v3665 = vld [vmem:[#allocation2 + $0xc7] sm:$0xff]
        %v3666 = vld [vmem:[#allocation2 + $0xcf] sm:$0x7f]
        %v3667 = vld [vmem:[#allocation2 + $0xe7] sm:$0xff]
        %v3668 = vld [vmem:[#allocation2 + $0xef] sm:$0x7f]
        %v3669 = vpack.c.bf16 %v3653, %v3653
        %v3670 = vpack.c.bf16 %v3655, %v3655
        %v3671 = vpack.c.bf16 %v3657, %v3657
        %v3672 = vpack.c.bf16 %v3659, %v3659
        %v3673 = vpack.c.bf16 %v3661, %v3661
        %v3674 = vpack.c.bf16 %v3663, %v3663
        %v3675 = vpack.c.bf16 %v3665, %v3665
        %v3676 = vpack.c.bf16 %v3667, %v3667
        %v3677 = vld [vmem:[%s3] sm:$0xff]
        %v3678 = vld [vmem:[%s3 + $0x8] sm:$0xff]
        %v3679 = vld [vmem:[%s3 + $0x10] sm:$0xff]
        %v3680 = vld [vmem:[%s3 + $0x18] sm:$0xff]
        %v3681 = vld [vmem:[%s3 + $0x20] sm:$0xff]
        %v3682 = vld [vmem:[%s3 + $0x28] sm:$0xff]
        %v3683 = vld [vmem:[%s3 + $0x30] sm:$0xff]
        %v3684 = vld [vmem:[%s3 + $0x38] sm:$0xff]
        %v3685 = vld [vmem:[%s3 + $0x40] sm:$0xff]
        %v3686 = vld [vmem:[%s3 + $0x48] sm:$0xff]
        %v3687 = vld [vmem:[%s3 + $0x50] sm:$0xff]
        %v3688 = vld [vmem:[%s3 + $0x58] sm:$0xff]
        %v3689 = vld [vmem:[%s3 + $0x60] sm:$0xff]
        %v3690 = vld [vmem:[%s3 + $0x68] sm:$0xff]
        %v3691 = vld [vmem:[%s3 + $0x70] sm:$0xff]
        %v3692 = vld [vmem:[%s3 + $0x78] sm:$0xff]
        %v3693 = vld [vmem:[%s1447] sm:$0xff]
        %v3694 = vld [vmem:[%s1447 + $0x8] sm:$0xff]
        %v3695 = vld [vmem:[%s1447 + $0x10] sm:$0xff]
        %v3696 = vld [vmem:[%s1447 + $0x18] sm:$0xff]
        %v3697 = vld [vmem:[%s1447 + $0x20] sm:$0xff]
        %v3698 = vld [vmem:[%s1447 + $0x28] sm:$0xff]
        %v3699 = vld [vmem:[%s1447 + $0x30] sm:$0xff]
        %v3700 = vld [vmem:[%s1447 + $0x38] sm:$0xff]
        %v3701 = vld [vmem:[%s1447 + $0x40] sm:$0xff]
        %v3702 = vld [vmem:[%s1447 + $0x48] sm:$0xff]
        %v3703 = vld [vmem:[%s1447 + $0x50] sm:$0xff]
        %v3704 = vld [vmem:[%s1447 + $0x58] sm:$0xff]
        %v3705 = vld [vmem:[%s1447 + $0x60] sm:$0xff]
        %v3706 = vld [vmem:[%s1447 + $0x68] sm:$0xff]
        %v3707 = vld [vmem:[%s1447 + $0x70] sm:$0xff]
        %v3708 = vld [vmem:[%s1447 + $0x78] sm:$0xff]
        %v3717 = vunpack.c.l.b16 %v3669
        %v3718 = vunpack.c.l.b16 %v3670
        %v3719 = vunpack.c.l.b16 %v3671
        %v3720 = vunpack.c.l.b16 %v3672
        %v3721 = vunpack.c.l.b16 %v3673
        %v3722 = vunpack.c.l.b16 %v3674
        %v3723 = vunpack.c.l.b16 %v3675
        %v3724 = vunpack.c.l.b16 %v3676
        %v3725 = vrot.slane %v3717, 1
        %v3726 = vsel %vm1481, %v3718, %v3725
        %v3727 = vrot.slane %v3719, 7
        %v3728 = vsel %vm1484, %v3727, %v3726
        %v3729 = vrot.slane %v3720, 6
        %v3730 = vsel %vm1487, %v3729, %v3728
        %v3731 = vrot.slane %v3721, 5
        %v3732 = vsel %vm1490, %v3731, %v3730
        %v3733 = vrot.slane %v3722, 4
        %v3734 = vsel %vm1493, %v3733, %v3732
        %v3735 = vrot.slane %v3723, 3
        %v3736 = vsel %vm1496, %v3735, %v3734
        %v3737 = vrot.slane %v3724, 2
        %v3738 = vsel %vm1499, %v3737, %v3736
        %v3739 = vpack.c.b16 %v3738, %v3738
        %v3757 = vunpack.c.l.b16 %v3693
        %v3758 = vunpack.c.h.b16 %v3693
        %v3759 = vunpack.c.l.b16 %v3694
        %v3760 = vunpack.c.h.b16 %v3694
        %v3761 = vunpack.c.l.b16 %v3695
        %v3762 = vunpack.c.h.b16 %v3695
        %v3763 = vunpack.c.l.b16 %v3696
        %v3764 = vunpack.c.h.b16 %v3696
        %v3765 = vunpack.c.l.b16 %v3697
        %v3766 = vunpack.c.h.b16 %v3697
        %v3767 = vunpack.c.l.b16 %v3698
        %v3768 = vunpack.c.h.b16 %v3698
        %v3769 = vunpack.c.l.b16 %v3699
        %v3770 = vunpack.c.h.b16 %v3699
        %v3771 = vunpack.c.l.b16 %v3700
        %v3772 = vunpack.c.h.b16 %v3700
        %v3773 = vunpack.c.l.b16 %v3701
        %v3774 = vunpack.c.h.b16 %v3701
        %v3775 = vunpack.c.l.b16 %v3702
        %v3776 = vunpack.c.h.b16 %v3702
        %v3777 = vunpack.c.l.b16 %v3703
        %v3778 = vunpack.c.h.b16 %v3703
        %v3779 = vunpack.c.l.b16 %v3704
        %v3780 = vunpack.c.h.b16 %v3704
        %v3781 = vunpack.c.l.b16 %v3705
        %v3782 = vunpack.c.h.b16 %v3705
        %v3783 = vunpack.c.l.b16 %v3706
        %v3784 = vunpack.c.h.b16 %v3706
        %v3785 = vunpack.c.l.b16 %v3707
        %v3786 = vunpack.c.h.b16 %v3707
        %v3787 = vunpack.c.l.b16 %v3708
        %v3788 = vunpack.c.h.b16 %v3708
        %v3789 = vpack.c.b16 %v3759, %v3757
        %v3790 = vpack.c.b16 %v3760, %v3758
        %v3791 = vpack.c.b16 %v3763, %v3761
        %v3792 = vpack.c.b16 %v3764, %v3762
        %v3793 = vpack.c.b16 %v3767, %v3765
        %v3794 = vpack.c.b16 %v3768, %v3766
        %v3795 = vpack.c.b16 %v3771, %v3769
        %v3796 = vpack.c.b16 %v3772, %v3770
        %v3797 = vpack.c.b16 %v3775, %v3773
        %v3798 = vpack.c.b16 %v3776, %v3774
        %v3799 = vpack.c.b16 %v3779, %v3777
        %v3800 = vpack.c.b16 %v3780, %v3778
        %v3801 = vpack.c.b16 %v3783, %v3781
        %v3802 = vpack.c.b16 %v3784, %v3782
        %v3803 = vpack.c.b16 %v3787, %v3785
        %v3804 = vpack.c.b16 %v3788, %v3786
        %3821 = vmatpush.bf16.msra.mxu0 %v3803
        %3822 = vmatpush.bf16.msra.mxu0 %v3801
        %3823 = vmatpush.bf16.msra.mxu0 %v3799
        %3824 = vmatpush.bf16.msra.mxu0 %v3797
        %3825 = vmatpush.bf16.msra.mxu0 %v3795
        %3826 = vmatpush.bf16.msra.mxu0 %v3793
        %3827 = vmatpush.bf16.msra.mxu0 %v3791
        %3828 = vmatpush.bf16.msra.mxu0 %v3789
        %3829 = vmatmul.bf16.gmra.mxu0 %v3739
        %v3830 = vpop.f32.mrf.mxu0
        %v3831 = vadd.f32 0.0, %v3830
        %v3832 = vpop.f32.mrf.mxu0
        %3833 = vdwg.mxu0
        %3834 = vmatpush.bf16.msra.mxu0 %v3804
        %3835 = vmatpush.bf16.msra.mxu0 %v3802
        %3836 = vmatpush.bf16.msra.mxu0 %v3800
        %3837 = vmatpush.bf16.msra.mxu0 %v3798
        %3838 = vmatpush.bf16.msra.mxu0 %v3796
        %3839 = vmatpush.bf16.msra.mxu0 %v3794
        %3840 = vmatpush.bf16.msra.mxu0 %v3792
        %3841 = vmatpush.bf16.msra.mxu0 %v3790
        %3842 = vmatmul.bf16.gmra.mxu0 %v3739
        %v3843 = vpop.f32.mrf.mxu0
        %v3844 = vadd.f32 0.0, %v3843
        %v3845 = vpop.f32.mrf.mxu0
        %3846 = vdwg.mxu0
        %v3847 = vrot.slane %v3718, 7
        %v3848 = vsel %vm1481, %v3847, %v3717
        %v3849 = vrot.slane %v3719, 6
        %v3850 = vsel %vm1484, %v3849, %v3848
        %v3851 = vrot.slane %v3720, 5
        %v3852 = vsel %vm1487, %v3851, %v3850
        %v3853 = vrot.slane %v3721, 4
        %v3854 = vsel %vm1490, %v3853, %v3852
        %v3855 = vrot.slane %v3722, 3
        %v3856 = vsel %vm1493, %v3855, %v3854
        %v3857 = vrot.slane %v3723, 2
        %v3858 = vsel %vm1496, %v3857, %v3856
        %v3859 = vrot.slane %v3724, 1
        %v3860 = vsel %vm1499, %v3859, %v3858
        %v3861 = vpack.c.b16 %v3860, %v3860
        %v3879 = vunpack.c.l.b16 %v3677
        %v3880 = vunpack.c.h.b16 %v3677
        %v3881 = vunpack.c.l.b16 %v3678
        %v3882 = vunpack.c.h.b16 %v3678
        %v3883 = vunpack.c.l.b16 %v3679
        %v3884 = vunpack.c.h.b16 %v3679
        %v3885 = vunpack.c.l.b16 %v3680
        %v3886 = vunpack.c.h.b16 %v3680
        %v3887 = vunpack.c.l.b16 %v3681
        %v3888 = vunpack.c.h.b16 %v3681
        %v3889 = vunpack.c.l.b16 %v3682
        %v3890 = vunpack.c.h.b16 %v3682
        %v3891 = vunpack.c.l.b16 %v3683
        %v3892 = vunpack.c.h.b16 %v3683
        %v3893 = vunpack.c.l.b16 %v3684
        %v3894 = vunpack.c.h.b16 %v3684
        %v3895 = vunpack.c.l.b16 %v3685
        %v3896 = vunpack.c.h.b16 %v3685
        %v3897 = vunpack.c.l.b16 %v3686
        %v3898 = vunpack.c.h.b16 %v3686
        %v3899 = vunpack.c.l.b16 %v3687
        %v3900 = vunpack.c.h.b16 %v3687
        %v3901 = vunpack.c.l.b16 %v3688
        %v3902 = vunpack.c.h.b16 %v3688
        %v3903 = vunpack.c.l.b16 %v3689
        %v3904 = vunpack.c.h.b16 %v3689
        %v3905 = vunpack.c.l.b16 %v3690
        %v3906 = vunpack.c.h.b16 %v3690
        %v3907 = vunpack.c.l.b16 %v3691
        %v3908 = vunpack.c.h.b16 %v3691
        %v3909 = vunpack.c.l.b16 %v3692
        %v3910 = vunpack.c.h.b16 %v3692
        %v3911 = vpack.c.b16 %v3881, %v3879
        %v3912 = vpack.c.b16 %v3882, %v3880
        %v3913 = vpack.c.b16 %v3885, %v3883
        %v3914 = vpack.c.b16 %v3886, %v3884
        %v3915 = vpack.c.b16 %v3889, %v3887
        %v3916 = vpack.c.b16 %v3890, %v3888
        %v3917 = vpack.c.b16 %v3893, %v3891
        %v3918 = vpack.c.b16 %v3894, %v3892
        %v3919 = vpack.c.b16 %v3897, %v3895
        %v3920 = vpack.c.b16 %v3898, %v3896
        %v3921 = vpack.c.b16 %v3901, %v3899
        %v3922 = vpack.c.b16 %v3902, %v3900
        %v3923 = vpack.c.b16 %v3905, %v3903
        %v3924 = vpack.c.b16 %v3906, %v3904
        %v3925 = vpack.c.b16 %v3909, %v3907
        %v3926 = vpack.c.b16 %v3910, %v3908
        %3943 = vmatpush.bf16.msra.mxu0 %v3925
        %3944 = vmatpush.bf16.msra.mxu0 %v3923
        %3945 = vmatpush.bf16.msra.mxu0 %v3921
        %3946 = vmatpush.bf16.msra.mxu0 %v3919
        %3947 = vmatpush.bf16.msra.mxu0 %v3917
        %3948 = vmatpush.bf16.msra.mxu0 %v3915
        %3949 = vmatpush.bf16.msra.mxu0 %v3913
        %3950 = vmatpush.bf16.msra.mxu0 %v3911
        %3951 = vmatmul.bf16.gmra.mxu0 %v3861
        %v3952 = vpop.f32.mrf.mxu0
        %v3953 = vadd.f32 %v3831, %v3952
        %v3954 = vpop.f32.mrf.mxu0
        %3955 = vdwg.mxu0
        %3956 = vmatpush.bf16.msra.mxu0 %v3926
        %3957 = vmatpush.bf16.msra.mxu0 %v3924
        %3958 = vmatpush.bf16.msra.mxu0 %v3922
        %3959 = vmatpush.bf16.msra.mxu0 %v3920
        %3960 = vmatpush.bf16.msra.mxu0 %v3918
        %3961 = vmatpush.bf16.msra.mxu0 %v3916
        %3962 = vmatpush.bf16.msra.mxu0 %v3914
        %3963 = vmatpush.bf16.msra.mxu0 %v3912
        %3964 = vmatmul.bf16.gmra.mxu0 %v3861
        %v3965 = vpop.f32.mrf.mxu0
        %v3966 = vadd.f32 %v3844, %v3965
        %v3967 = vpop.f32.mrf.mxu0
        %3968 = vdwg.mxu0
        %v3969 = vld [vmem:[%s1731] sm:$0xff]
        %v3970 = vld [vmem:[%s1731 + $0x8] sm:$0xff]
        %v3971 = vld [vmem:[%s1731 + $0x10] sm:$0xff]
        %v3972 = vld [vmem:[%s1731 + $0x18] sm:$0xff]
        %v3973 = vld [vmem:[%s1731 + $0x20] sm:$0xff]
        %v3974 = vld [vmem:[%s1731 + $0x28] sm:$0xff]
        %v3975 = vld [vmem:[%s1731 + $0x30] sm:$0xff]
        %v3976 = vld [vmem:[%s1731 + $0x38] sm:$0xff]
        %v3977 = vld [vmem:[%s1731 + $0x40] sm:$0xff]
        %v3978 = vld [vmem:[%s1731 + $0x48] sm:$0xff]
        %v3979 = vld [vmem:[%s1731 + $0x50] sm:$0xff]
        %v3980 = vld [vmem:[%s1731 + $0x58] sm:$0xff]
        %v3981 = vld [vmem:[%s1731 + $0x60] sm:$0xff]
        %v3982 = vld [vmem:[%s1731 + $0x68] sm:$0xff]
        %v3983 = vld [vmem:[%s1731 + $0x70] sm:$0xff]
        %v3984 = vld [vmem:[%s1731 + $0x78] sm:$0xff]
        %v3985 = vrot.slane %v3717, 2
        %v3986 = vrot.slane %v3718, 1
        %v3987 = vsel %vm1481, %v3986, %v3985
        %v3988 = vsel %vm1484, %v3719, %v3987
        %v3989 = vrot.slane %v3720, 7
        %v3990 = vsel %vm1487, %v3989, %v3988
        %v3991 = vrot.slane %v3721, 6
        %v3992 = vsel %vm1490, %v3991, %v3990
        %v3993 = vrot.slane %v3722, 5
        %v3994 = vsel %vm1493, %v3993, %v3992
        %v3995 = vrot.slane %v3723, 4
        %v3996 = vsel %vm1496, %v3995, %v3994
        %v3997 = vrot.slane %v3724, 3
        %v3998 = vsel %vm1499, %v3997, %v3996
        %v3999 = vpack.c.b16 %v3998, %v3998
        %v4017 = vunpack.c.l.b16 %v3969
        %v4018 = vunpack.c.h.b16 %v3969
        %v4019 = vunpack.c.l.b16 %v3970
        %v4020 = vunpack.c.h.b16 %v3970
        %v4021 = vunpack.c.l.b16 %v3971
        %v4022 = vunpack.c.h.b16 %v3971
        %v4023 = vunpack.c.l.b16 %v3972
        %v4024 = vunpack.c.h.b16 %v3972
        %v4025 = vunpack.c.l.b16 %v3973
        %v4026 = vunpack.c.h.b16 %v3973
        %v4027 = vunpack.c.l.b16 %v3974
        %v4028 = vunpack.c.h.b16 %v3974
        %v4029 = vunpack.c.l.b16 %v3975
        %v4030 = vunpack.c.h.b16 %v3975
        %v4031 = vunpack.c.l.b16 %v3976
        %v4032 = vunpack.c.h.b16 %v3976
        %v4033 = vunpack.c.l.b16 %v3977
        %v4034 = vunpack.c.h.b16 %v3977
        %v4035 = vunpack.c.l.b16 %v3978
        %v4036 = vunpack.c.h.b16 %v3978
        %v4037 = vunpack.c.l.b16 %v3979
        %v4038 = vunpack.c.h.b16 %v3979
        %v4039 = vunpack.c.l.b16 %v3980
        %v4040 = vunpack.c.h.b16 %v3980
        %v4041 = vunpack.c.l.b16 %v3981
        %v4042 = vunpack.c.h.b16 %v3981
        %v4043 = vunpack.c.l.b16 %v3982
        %v4044 = vunpack.c.h.b16 %v3982
        %v4045 = vunpack.c.l.b16 %v3983
        %v4046 = vunpack.c.h.b16 %v3983
        %v4047 = vunpack.c.l.b16 %v3984
        %v4048 = vunpack.c.h.b16 %v3984
        %v4049 = vpack.c.b16 %v4019, %v4017
        %v4050 = vpack.c.b16 %v4020, %v4018
        %v4051 = vpack.c.b16 %v4023, %v4021
        %v4052 = vpack.c.b16 %v4024, %v4022
        %v4053 = vpack.c.b16 %v4027, %v4025
        %v4054 = vpack.c.b16 %v4028, %v4026
        %v4055 = vpack.c.b16 %v4031, %v4029
        %v4056 = vpack.c.b16 %v4032, %v4030
        %v4057 = vpack.c.b16 %v4035, %v4033
        %v4058 = vpack.c.b16 %v4036, %v4034
        %v4059 = vpack.c.b16 %v4039, %v4037
        %v4060 = vpack.c.b16 %v4040, %v4038
        %v4061 = vpack.c.b16 %v4043, %v4041
        %v4062 = vpack.c.b16 %v4044, %v4042
        %v4063 = vpack.c.b16 %v4047, %v4045
        %v4064 = vpack.c.b16 %v4048, %v4046
        %4081 = vmatpush.bf16.msra.mxu0 %v4063
        %4082 = vmatpush.bf16.msra.mxu0 %v4061
        %4083 = vmatpush.bf16.msra.mxu0 %v4059
        %4084 = vmatpush.bf16.msra.mxu0 %v4057
        %4085 = vmatpush.bf16.msra.mxu0 %v4055
        %4086 = vmatpush.bf16.msra.mxu0 %v4053
        %4087 = vmatpush.bf16.msra.mxu0 %v4051
        %4088 = vmatpush.bf16.msra.mxu0 %v4049
        %4089 = vmatmul.bf16.gmra.mxu0 %v3999
        %v4090 = vpop.f32.mrf.mxu0
        %v4091 = vadd.f32 0.0, %v4090
        %v4092 = vpop.f32.mrf.mxu0
        %4093 = vdwg.mxu0
        %4094 = vmatpush.bf16.msra.mxu0 %v4064
        %4095 = vmatpush.bf16.msra.mxu0 %v4062
        %4096 = vmatpush.bf16.msra.mxu0 %v4060
        %4097 = vmatpush.bf16.msra.mxu0 %v4058
        %4098 = vmatpush.bf16.msra.mxu0 %v4056
        %4099 = vmatpush.bf16.msra.mxu0 %v4054
        %4100 = vmatpush.bf16.msra.mxu0 %v4052
        %4101 = vmatpush.bf16.msra.mxu0 %v4050
        %4102 = vmatmul.bf16.gmra.mxu0 %v3999
        %v4103 = vpop.f32.mrf.mxu0
        %v4104 = vadd.f32 0.0, %v4103
        %v4105 = vpop.f32.mrf.mxu0
        %4106 = vdwg.mxu0
        %v4107 = vadd.f32 %v3953, %v4091
        %v4108 = vadd.f32 %v3966, %v4104
        %v4109 = vld [vmem:[%s1872] sm:$0xff]
        %v4110 = vld [vmem:[%s1872 + $0x8] sm:$0xff]
        %v4111 = vld [vmem:[%s1872 + $0x10] sm:$0xff]
        %v4112 = vld [vmem:[%s1872 + $0x18] sm:$0xff]
        %v4113 = vld [vmem:[%s1872 + $0x20] sm:$0xff]
        %v4114 = vld [vmem:[%s1872 + $0x28] sm:$0xff]
        %v4115 = vld [vmem:[%s1872 + $0x30] sm:$0xff]
        %v4116 = vld [vmem:[%s1872 + $0x38] sm:$0xff]
        %v4117 = vld [vmem:[%s1872 + $0x40] sm:$0xff]
        %v4118 = vld [vmem:[%s1872 + $0x48] sm:$0xff]
        %v4119 = vld [vmem:[%s1872 + $0x50] sm:$0xff]
        %v4120 = vld [vmem:[%s1872 + $0x58] sm:$0xff]
        %v4121 = vld [vmem:[%s1872 + $0x60] sm:$0xff]
        %v4122 = vld [vmem:[%s1872 + $0x68] sm:$0xff]
        %v4123 = vld [vmem:[%s1872 + $0x70] sm:$0xff]
        %v4124 = vld [vmem:[%s1872 + $0x78] sm:$0xff]
        %v4125 = vrot.slane %v3717, 3
        %v4126 = vrot.slane %v3718, 2
        %v4127 = vsel %vm1481, %v4126, %v4125
        %v4128 = vrot.slane %v3719, 1
        %v4129 = vsel %vm1484, %v4128, %v4127
        %v4130 = vsel %vm1487, %v3720, %v4129
        %v4131 = vrot.slane %v3721, 7
        %v4132 = vsel %vm1490, %v4131, %v4130
        %v4133 = vrot.slane %v3722, 6
        %v4134 = vsel %vm1493, %v4133, %v4132
        %v4135 = vrot.slane %v3723, 5
        %v4136 = vsel %vm1496, %v4135, %v4134
        %v4137 = vrot.slane %v3724, 4
        %v4138 = vsel %vm1499, %v4137, %v4136
        %v4139 = vpack.c.b16 %v4138, %v4138
        %v4157 = vunpack.c.l.b16 %v4109
        %v4158 = vunpack.c.h.b16 %v4109
        %v4159 = vunpack.c.l.b16 %v4110
        %v4160 = vunpack.c.h.b16 %v4110
        %v4161 = vunpack.c.l.b16 %v4111
        %v4162 = vunpack.c.h.b16 %v4111
        %v4163 = vunpack.c.l.b16 %v4112
        %v4164 = vunpack.c.h.b16 %v4112
        %v4165 = vunpack.c.l.b16 %v4113
        %v4166 = vunpack.c.h.b16 %v4113
        %v4167 = vunpack.c.l.b16 %v4114
        %v4168 = vunpack.c.h.b16 %v4114
        %v4169 = vunpack.c.l.b16 %v4115
        %v4170 = vunpack.c.h.b16 %v4115
        %v4171 = vunpack.c.l.b16 %v4116
        %v4172 = vunpack.c.h.b16 %v4116
        %v4173 = vunpack.c.l.b16 %v4117
        %v4174 = vunpack.c.h.b16 %v4117
        %v4175 = vunpack.c.l.b16 %v4118
        %v4176 = vunpack.c.h.b16 %v4118
        %v4177 = vunpack.c.l.b16 %v4119
        %v4178 = vunpack.c.h.b16 %v4119
        %v4179 = vunpack.c.l.b16 %v4120
        %v4180 = vunpack.c.h.b16 %v4120
        %v4181 = vunpack.c.l.b16 %v4121
        %v4182 = vunpack.c.h.b16 %v4121
        %v4183 = vunpack.c.l.b16 %v4122
        %v4184 = vunpack.c.h.b16 %v4122
        %v4185 = vunpack.c.l.b16 %v4123
        %v4186 = vunpack.c.h.b16 %v4123
        %v4187 = vunpack.c.l.b16 %v4124
        %v4188 = vunpack.c.h.b16 %v4124
        %v4189 = vpack.c.b16 %v4159, %v4157
        %v4190 = vpack.c.b16 %v4160, %v4158
        %v4191 = vpack.c.b16 %v4163, %v4161
        %v4192 = vpack.c.b16 %v4164, %v4162
        %v4193 = vpack.c.b16 %v4167, %v4165
        %v4194 = vpack.c.b16 %v4168, %v4166
        %v4195 = vpack.c.b16 %v4171, %v4169
        %v4196 = vpack.c.b16 %v4172, %v4170
        %v4197 = vpack.c.b16 %v4175, %v4173
        %v4198 = vpack.c.b16 %v4176, %v4174
        %v4199 = vpack.c.b16 %v4179, %v4177
        %v4200 = vpack.c.b16 %v4180, %v4178
        %v4201 = vpack.c.b16 %v4183, %v4181
        %v4202 = vpack.c.b16 %v4184, %v4182
        %v4203 = vpack.c.b16 %v4187, %v4185
        %v4204 = vpack.c.b16 %v4188, %v4186
        %4221 = vmatpush.bf16.msra.mxu0 %v4203
        %4222 = vmatpush.bf16.msra.mxu0 %v4201
        %4223 = vmatpush.bf16.msra.mxu0 %v4199
        %4224 = vmatpush.bf16.msra.mxu0 %v4197
        %4225 = vmatpush.bf16.msra.mxu0 %v4195
        %4226 = vmatpush.bf16.msra.mxu0 %v4193
        %4227 = vmatpush.bf16.msra.mxu0 %v4191
        %4228 = vmatpush.bf16.msra.mxu0 %v4189
        %4229 = vmatmul.bf16.gmra.mxu0 %v4139
        %v4230 = vpop.f32.mrf.mxu0
        %v4231 = vadd.f32 0.0, %v4230
        %v4232 = vpop.f32.mrf.mxu0
        %4233 = vdwg.mxu0
        %4234 = vmatpush.bf16.msra.mxu0 %v4204
        %4235 = vmatpush.bf16.msra.mxu0 %v4202
        %4236 = vmatpush.bf16.msra.mxu0 %v4200
        %4237 = vmatpush.bf16.msra.mxu0 %v4198
        %4238 = vmatpush.bf16.msra.mxu0 %v4196
        %4239 = vmatpush.bf16.msra.mxu0 %v4194
        %4240 = vmatpush.bf16.msra.mxu0 %v4192
        %4241 = vmatpush.bf16.msra.mxu0 %v4190
        %4242 = vmatmul.bf16.gmra.mxu0 %v4139
        %v4243 = vpop.f32.mrf.mxu0
        %v4244 = vadd.f32 0.0, %v4243
        %v4245 = vpop.f32.mrf.mxu0
        %4246 = vdwg.mxu0
        %v4247 = vadd.f32 %v4107, %v4231
        %v4248 = vadd.f32 %v4108, %v4244
        %v4249 = vld [vmem:[%s2013] sm:$0xff]
        %v4250 = vld [vmem:[%s2013 + $0x8] sm:$0xff]
        %v4251 = vld [vmem:[%s2013 + $0x10] sm:$0xff]
        %v4252 = vld [vmem:[%s2013 + $0x18] sm:$0xff]
        %v4253 = vld [vmem:[%s2013 + $0x20] sm:$0xff]
        %v4254 = vld [vmem:[%s2013 + $0x28] sm:$0xff]
        %v4255 = vld [vmem:[%s2013 + $0x30] sm:$0xff]
        %v4256 = vld [vmem:[%s2013 + $0x38] sm:$0xff]
        %v4257 = vld [vmem:[%s2013 + $0x40] sm:$0xff]
        %v4258 = vld [vmem:[%s2013 + $0x48] sm:$0xff]
        %v4259 = vld [vmem:[%s2013 + $0x50] sm:$0xff]
        %v4260 = vld [vmem:[%s2013 + $0x58] sm:$0xff]
        %v4261 = vld [vmem:[%s2013 + $0x60] sm:$0xff]
        %v4262 = vld [vmem:[%s2013 + $0x68] sm:$0xff]
        %v4263 = vld [vmem:[%s2013 + $0x70] sm:$0xff]
        %v4264 = vld [vmem:[%s2013 + $0x78] sm:$0xff]
        %v4265 = vrot.slane %v3717, 4
        %v4266 = vrot.slane %v3718, 3
        %v4267 = vsel %vm1481, %v4266, %v4265
        %v4268 = vrot.slane %v3719, 2
        %v4269 = vsel %vm1484, %v4268, %v4267
        %v4270 = vrot.slane %v3720, 1
        %v4271 = vsel %vm1487, %v4270, %v4269
        %v4272 = vsel %vm1490, %v3721, %v4271
        %v4273 = vrot.slane %v3722, 7
        %v4274 = vsel %vm1493, %v4273, %v4272
        %v4275 = vrot.slane %v3723, 6
        %v4276 = vsel %vm1496, %v4275, %v4274
        %v4277 = vrot.slane %v3724, 5
        %v4278 = vsel %vm1499, %v4277, %v4276
        %v4279 = vpack.c.b16 %v4278, %v4278
        %v4297 = vunpack.c.l.b16 %v4249
        %v4298 = vunpack.c.h.b16 %v4249
        %v4299 = vunpack.c.l.b16 %v4250
        %v4300 = vunpack.c.h.b16 %v4250
        %v4301 = vunpack.c.l.b16 %v4251
        %v4302 = vunpack.c.h.b16 %v4251
        %v4303 = vunpack.c.l.b16 %v4252
        %v4304 = vunpack.c.h.b16 %v4252
        %v4305 = vunpack.c.l.b16 %v4253
        %v4306 = vunpack.c.h.b16 %v4253
        %v4307 = vunpack.c.l.b16 %v4254
        %v4308 = vunpack.c.h.b16 %v4254
        %v4309 = vunpack.c.l.b16 %v4255
        %v4310 = vunpack.c.h.b16 %v4255
        %v4311 = vunpack.c.l.b16 %v4256
        %v4312 = vunpack.c.h.b16 %v4256
        %v4313 = vunpack.c.l.b16 %v4257
        %v4314 = vunpack.c.h.b16 %v4257
        %v4315 = vunpack.c.l.b16 %v4258
        %v4316 = vunpack.c.h.b16 %v4258
        %v4317 = vunpack.c.l.b16 %v4259
        %v4318 = vunpack.c.h.b16 %v4259
        %v4319 = vunpack.c.l.b16 %v4260
        %v4320 = vunpack.c.h.b16 %v4260
        %v4321 = vunpack.c.l.b16 %v4261
        %v4322 = vunpack.c.h.b16 %v4261
        %v4323 = vunpack.c.l.b16 %v4262
        %v4324 = vunpack.c.h.b16 %v4262
        %v4325 = vunpack.c.l.b16 %v4263
        %v4326 = vunpack.c.h.b16 %v4263
        %v4327 = vunpack.c.l.b16 %v4264
        %v4328 = vunpack.c.h.b16 %v4264
        %v4329 = vpack.c.b16 %v4299, %v4297
        %v4330 = vpack.c.b16 %v4300, %v4298
        %v4331 = vpack.c.b16 %v4303, %v4301
        %v4332 = vpack.c.b16 %v4304, %v4302
        %v4333 = vpack.c.b16 %v4307, %v4305
        %v4334 = vpack.c.b16 %v4308, %v4306
        %v4335 = vpack.c.b16 %v4311, %v4309
        %v4336 = vpack.c.b16 %v4312, %v4310
        %v4337 = vpack.c.b16 %v4315, %v4313
        %v4338 = vpack.c.b16 %v4316, %v4314
        %v4339 = vpack.c.b16 %v4319, %v4317
        %v4340 = vpack.c.b16 %v4320, %v4318
        %v4341 = vpack.c.b16 %v4323, %v4321
        %v4342 = vpack.c.b16 %v4324, %v4322
        %v4343 = vpack.c.b16 %v4327, %v4325
        %v4344 = vpack.c.b16 %v4328, %v4326
        %4361 = vmatpush.bf16.msra.mxu0 %v4343
        %4362 = vmatpush.bf16.msra.mxu0 %v4341
        %4363 = vmatpush.bf16.msra.mxu0 %v4339
        %4364 = vmatpush.bf16.msra.mxu0 %v4337
        %4365 = vmatpush.bf16.msra.mxu0 %v4335
        %4366 = vmatpush.bf16.msra.mxu0 %v4333
        %4367 = vmatpush.bf16.msra.mxu0 %v4331
        %4368 = vmatpush.bf16.msra.mxu0 %v4329
        %4369 = vmatmul.bf16.gmra.mxu0 %v4279
        %v4370 = vpop.f32.mrf.mxu0
        %v4371 = vadd.f32 0.0, %v4370
        %v4372 = vpop.f32.mrf.mxu0
        %4373 = vdwg.mxu0
        %4374 = vmatpush.bf16.msra.mxu0 %v4344
        %4375 = vmatpush.bf16.msra.mxu0 %v4342
        %4376 = vmatpush.bf16.msra.mxu0 %v4340
        %4377 = vmatpush.bf16.msra.mxu0 %v4338
        %4378 = vmatpush.bf16.msra.mxu0 %v4336
        %4379 = vmatpush.bf16.msra.mxu0 %v4334
        %4380 = vmatpush.bf16.msra.mxu0 %v4332
        %4381 = vmatpush.bf16.msra.mxu0 %v4330
        %4382 = vmatmul.bf16.gmra.mxu0 %v4279
        %v4383 = vpop.f32.mrf.mxu0
        %v4384 = vadd.f32 0.0, %v4383
        %v4385 = vpop.f32.mrf.mxu0
        %4386 = vdwg.mxu0
        %v4387 = vadd.f32 %v4247, %v4371
        %v4388 = vadd.f32 %v4248, %v4384
        %v4389 = vld [vmem:[%s2154] sm:$0xff]
        %v4390 = vld [vmem:[%s2154 + $0x8] sm:$0xff]
        %v4391 = vld [vmem:[%s2154 + $0x10] sm:$0xff]
        %v4392 = vld [vmem:[%s2154 + $0x18] sm:$0xff]
        %v4393 = vld [vmem:[%s2154 + $0x20] sm:$0xff]
        %v4394 = vld [vmem:[%s2154 + $0x28] sm:$0xff]
        %v4395 = vld [vmem:[%s2154 + $0x30] sm:$0xff]
        %v4396 = vld [vmem:[%s2154 + $0x38] sm:$0xff]
        %v4397 = vld [vmem:[%s2154 + $0x40] sm:$0xff]
        %v4398 = vld [vmem:[%s2154 + $0x48] sm:$0xff]
        %v4399 = vld [vmem:[%s2154 + $0x50] sm:$0xff]
        %v4400 = vld [vmem:[%s2154 + $0x58] sm:$0xff]
        %v4401 = vld [vmem:[%s2154 + $0x60] sm:$0xff]
        %v4402 = vld [vmem:[%s2154 + $0x68] sm:$0xff]
        %v4403 = vld [vmem:[%s2154 + $0x70] sm:$0xff]
        %v4404 = vld [vmem:[%s2154 + $0x78] sm:$0xff]
        %v4405 = vrot.slane %v3717, 5
        %v4406 = vrot.slane %v3718, 4
        %v4407 = vsel %vm1481, %v4406, %v4405
        %v4408 = vrot.slane %v3719, 3
        %v4409 = vsel %vm1484, %v4408, %v4407
        %v4410 = vrot.slane %v3720, 2
        %v4411 = vsel %vm1487, %v4410, %v4409
        %v4412 = vrot.slane %v3721, 1
        %v4413 = vsel %vm1490, %v4412, %v4411
        %v4414 = vsel %vm1493, %v3722, %v4413
        %v4415 = vrot.slane %v3723, 7
        %v4416 = vsel %vm1496, %v4415, %v4414
        %v4417 = vrot.slane %v3724, 6
        %v4418 = vsel %vm1499, %v4417, %v4416
        %v4419 = vpack.c.b16 %v4418, %v4418
        %v4437 = vunpack.c.l.b16 %v4389
        %v4438 = vunpack.c.h.b16 %v4389
        %v4439 = vunpack.c.l.b16 %v4390
        %v4440 = vunpack.c.h.b16 %v4390
        %v4441 = vunpack.c.l.b16 %v4391
        %v4442 = vunpack.c.h.b16 %v4391
        %v4443 = vunpack.c.l.b16 %v4392
        %v4444 = vunpack.c.h.b16 %v4392
        %v4445 = vunpack.c.l.b16 %v4393
        %v4446 = vunpack.c.h.b16 %v4393
        %v4447 = vunpack.c.l.b16 %v4394
        %v4448 = vunpack.c.h.b16 %v4394
        %v4449 = vunpack.c.l.b16 %v4395
        %v4450 = vunpack.c.h.b16 %v4395
        %v4451 = vunpack.c.l.b16 %v4396
        %v4452 = vunpack.c.h.b16 %v4396
        %v4453 = vunpack.c.l.b16 %v4397
        %v4454 = vunpack.c.h.b16 %v4397
        %v4455 = vunpack.c.l.b16 %v4398
        %v4456 = vunpack.c.h.b16 %v4398
        %v4457 = vunpack.c.l.b16 %v4399
        %v4458 = vunpack.c.h.b16 %v4399
        %v4459 = vunpack.c.l.b16 %v4400
        %v4460 = vunpack.c.h.b16 %v4400
        %v4461 = vunpack.c.l.b16 %v4401
        %v4462 = vunpack.c.h.b16 %v4401
        %v4463 = vunpack.c.l.b16 %v4402
        %v4464 = vunpack.c.h.b16 %v4402
        %v4465 = vunpack.c.l.b16 %v4403
        %v4466 = vunpack.c.h.b16 %v4403
        %v4467 = vunpack.c.l.b16 %v4404
        %v4468 = vunpack.c.h.b16 %v4404
        %v4469 = vpack.c.b16 %v4439, %v4437
        %v4470 = vpack.c.b16 %v4440, %v4438
        %v4471 = vpack.c.b16 %v4443, %v4441
        %v4472 = vpack.c.b16 %v4444, %v4442
        %v4473 = vpack.c.b16 %v4447, %v4445
        %v4474 = vpack.c.b16 %v4448, %v4446
        %v4475 = vpack.c.b16 %v4451, %v4449
        %v4476 = vpack.c.b16 %v4452, %v4450
        %v4477 = vpack.c.b16 %v4455, %v4453
        %v4478 = vpack.c.b16 %v4456, %v4454
        %v4479 = vpack.c.b16 %v4459, %v4457
        %v4480 = vpack.c.b16 %v4460, %v4458
        %v4481 = vpack.c.b16 %v4463, %v4461
        %v4482 = vpack.c.b16 %v4464, %v4462
        %v4483 = vpack.c.b16 %v4467, %v4465
        %v4484 = vpack.c.b16 %v4468, %v4466
        %4501 = vmatpush.bf16.msra.mxu0 %v4483
        %4502 = vmatpush.bf16.msra.mxu0 %v4481
        %4503 = vmatpush.bf16.msra.mxu0 %v4479
        %4504 = vmatpush.bf16.msra.mxu0 %v4477
        %4505 = vmatpush.bf16.msra.mxu0 %v4475
        %4506 = vmatpush.bf16.msra.mxu0 %v4473
        %4507 = vmatpush.bf16.msra.mxu0 %v4471
        %4508 = vmatpush.bf16.msra.mxu0 %v4469
        %4509 = vmatmul.bf16.gmra.mxu0 %v4419
        %v4510 = vpop.f32.mrf.mxu0
        %v4511 = vadd.f32 0.0, %v4510
        %v4512 = vpop.f32.mrf.mxu0
        %4513 = vdwg.mxu0
        %4514 = vmatpush.bf16.msra.mxu0 %v4484
        %4515 = vmatpush.bf16.msra.mxu0 %v4482
        %4516 = vmatpush.bf16.msra.mxu0 %v4480
        %4517 = vmatpush.bf16.msra.mxu0 %v4478
        %4518 = vmatpush.bf16.msra.mxu0 %v4476
        %4519 = vmatpush.bf16.msra.mxu0 %v4474
        %4520 = vmatpush.bf16.msra.mxu0 %v4472
        %4521 = vmatpush.bf16.msra.mxu0 %v4470
        %4522 = vmatmul.bf16.gmra.mxu0 %v4419
        %v4523 = vpop.f32.mrf.mxu0
        %v4524 = vadd.f32 0.0, %v4523
        %v4525 = vpop.f32.mrf.mxu0
        %4526 = vdwg.mxu0
        %v4527 = vadd.f32 %v4387, %v4511
        %v4528 = vadd.f32 %v4388, %v4524
        %v4529 = vld [vmem:[%s2295] sm:$0xff]
        %v4530 = vld [vmem:[%s2295 + $0x8] sm:$0xff]
        %v4531 = vld [vmem:[%s2295 + $0x10] sm:$0xff]
        %v4532 = vld [vmem:[%s2295 + $0x18] sm:$0xff]
        %v4533 = vld [vmem:[%s2295 + $0x20] sm:$0xff]
        %v4534 = vld [vmem:[%s2295 + $0x28] sm:$0xff]
        %v4535 = vld [vmem:[%s2295 + $0x30] sm:$0xff]
        %v4536 = vld [vmem:[%s2295 + $0x38] sm:$0xff]
        %v4537 = vld [vmem:[%s2295 + $0x40] sm:$0xff]
        %v4538 = vld [vmem:[%s2295 + $0x48] sm:$0xff]
        %v4539 = vld [vmem:[%s2295 + $0x50] sm:$0xff]
        %v4540 = vld [vmem:[%s2295 + $0x58] sm:$0xff]
        %v4541 = vld [vmem:[%s2295 + $0x60] sm:$0xff]
        %v4542 = vld [vmem:[%s2295 + $0x68] sm:$0xff]
        %v4543 = vld [vmem:[%s2295 + $0x70] sm:$0xff]
        %v4544 = vld [vmem:[%s2295 + $0x78] sm:$0xff]
        %v4545 = vrot.slane %v3717, 6
        %v4546 = vrot.slane %v3718, 5
        %v4547 = vsel %vm1481, %v4546, %v4545
        %v4548 = vrot.slane %v3719, 4
        %v4549 = vsel %vm1484, %v4548, %v4547
        %v4550 = vrot.slane %v3720, 3
        %v4551 = vsel %vm1487, %v4550, %v4549
        %v4552 = vrot.slane %v3721, 2
        %v4553 = vsel %vm1490, %v4552, %v4551
        %v4554 = vrot.slane %v3722, 1
        %v4555 = vsel %vm1493, %v4554, %v4553
        %v4556 = vsel %vm1496, %v3723, %v4555
        %v4557 = vrot.slane %v3724, 7
        %v4558 = vsel %vm1499, %v4557, %v4556
        %v4559 = vpack.c.b16 %v4558, %v4558
        %v4577 = vunpack.c.l.b16 %v4529
        %v4578 = vunpack.c.h.b16 %v4529
        %v4579 = vunpack.c.l.b16 %v4530
        %v4580 = vunpack.c.h.b16 %v4530
        %v4581 = vunpack.c.l.b16 %v4531
        %v4582 = vunpack.c.h.b16 %v4531
        %v4583 = vunpack.c.l.b16 %v4532
        %v4584 = vunpack.c.h.b16 %v4532
        %v4585 = vunpack.c.l.b16 %v4533
        %v4586 = vunpack.c.h.b16 %v4533
        %v4587 = vunpack.c.l.b16 %v4534
        %v4588 = vunpack.c.h.b16 %v4534
        %v4589 = vunpack.c.l.b16 %v4535
        %v4590 = vunpack.c.h.b16 %v4535
        %v4591 = vunpack.c.l.b16 %v4536
        %v4592 = vunpack.c.h.b16 %v4536
        %v4593 = vunpack.c.l.b16 %v4537
        %v4594 = vunpack.c.h.b16 %v4537
        %v4595 = vunpack.c.l.b16 %v4538
        %v4596 = vunpack.c.h.b16 %v4538
        %v4597 = vunpack.c.l.b16 %v4539
        %v4598 = vunpack.c.h.b16 %v4539
        %v4599 = vunpack.c.l.b16 %v4540
        %v4600 = vunpack.c.h.b16 %v4540
        %v4601 = vunpack.c.l.b16 %v4541
        %v4602 = vunpack.c.h.b16 %v4541
        %v4603 = vunpack.c.l.b16 %v4542
        %v4604 = vunpack.c.h.b16 %v4542
        %v4605 = vunpack.c.l.b16 %v4543
        %v4606 = vunpack.c.h.b16 %v4543
        %v4607 = vunpack.c.l.b16 %v4544
        %v4608 = vunpack.c.h.b16 %v4544
        %v4609 = vpack.c.b16 %v4579, %v4577
        %v4610 = vpack.c.b16 %v4580, %v4578
        %v4611 = vpack.c.b16 %v4583, %v4581
        %v4612 = vpack.c.b16 %v4584, %v4582
        %v4613 = vpack.c.b16 %v4587, %v4585
        %v4614 = vpack.c.b16 %v4588, %v4586
        %v4615 = vpack.c.b16 %v4591, %v4589
        %v4616 = vpack.c.b16 %v4592, %v4590
        %v4617 = vpack.c.b16 %v4595, %v4593
        %v4618 = vpack.c.b16 %v4596, %v4594
        %v4619 = vpack.c.b16 %v4599, %v4597
        %v4620 = vpack.c.b16 %v4600, %v4598
        %v4621 = vpack.c.b16 %v4603, %v4601
        %v4622 = vpack.c.b16 %v4604, %v4602
        %v4623 = vpack.c.b16 %v4607, %v4605
        %v4624 = vpack.c.b16 %v4608, %v4606
        %4641 = vmatpush.bf16.msra.mxu0 %v4623
        %4642 = vmatpush.bf16.msra.mxu0 %v4621
        %4643 = vmatpush.bf16.msra.mxu0 %v4619
        %4644 = vmatpush.bf16.msra.mxu0 %v4617
        %4645 = vmatpush.bf16.msra.mxu0 %v4615
        %4646 = vmatpush.bf16.msra.mxu0 %v4613
        %4647 = vmatpush.bf16.msra.mxu0 %v4611
        %4648 = vmatpush.bf16.msra.mxu0 %v4609
        %4649 = vmatmul.bf16.gmra.mxu0 %v4559
        %v4650 = vpop.f32.mrf.mxu0
        %v4651 = vadd.f32 0.0, %v4650
        %v4652 = vpop.f32.mrf.mxu0
        %4653 = vdwg.mxu0
        %4654 = vmatpush.bf16.msra.mxu0 %v4624
        %4655 = vmatpush.bf16.msra.mxu0 %v4622
        %4656 = vmatpush.bf16.msra.mxu0 %v4620
        %4657 = vmatpush.bf16.msra.mxu0 %v4618
        %4658 = vmatpush.bf16.msra.mxu0 %v4616
        %4659 = vmatpush.bf16.msra.mxu0 %v4614
        %4660 = vmatpush.bf16.msra.mxu0 %v4612
        %4661 = vmatpush.bf16.msra.mxu0 %v4610
        %4662 = vmatmul.bf16.gmra.mxu0 %v4559
        %v4663 = vpop.f32.mrf.mxu0
        %v4664 = vadd.f32 0.0, %v4663
        %v4665 = vpop.f32.mrf.mxu0
        %4666 = vdwg.mxu0
        %v4667 = vadd.f32 %v4527, %v4651
        %v4668 = vadd.f32 %v4528, %v4664
        %v4669 = vld [vmem:[%s2436] sm:$0xff]
        %v4670 = vld [vmem:[%s2436 + $0x8] sm:$0xff]
        %v4671 = vld [vmem:[%s2436 + $0x10] sm:$0xff]
        %v4672 = vld [vmem:[%s2436 + $0x18] sm:$0xff]
        %v4673 = vld [vmem:[%s2436 + $0x20] sm:$0xff]
        %v4674 = vld [vmem:[%s2436 + $0x28] sm:$0xff]
        %v4675 = vld [vmem:[%s2436 + $0x30] sm:$0xff]
        %v4676 = vld [vmem:[%s2436 + $0x38] sm:$0xff]
        %v4677 = vld [vmem:[%s2436 + $0x40] sm:$0xff]
        %v4678 = vld [vmem:[%s2436 + $0x48] sm:$0xff]
        %v4679 = vld [vmem:[%s2436 + $0x50] sm:$0xff]
        %v4680 = vld [vmem:[%s2436 + $0x58] sm:$0xff]
        %v4681 = vld [vmem:[%s2436 + $0x60] sm:$0xff]
        %v4682 = vld [vmem:[%s2436 + $0x68] sm:$0xff]
        %v4683 = vld [vmem:[%s2436 + $0x70] sm:$0xff]
        %v4684 = vld [vmem:[%s2436 + $0x78] sm:$0xff]
        %v4685 = vrot.slane %v3717, 7
        %v4686 = vrot.slane %v3718, 6
        %v4687 = vsel %vm1481, %v4686, %v4685
        %v4688 = vrot.slane %v3719, 5
        %v4689 = vsel %vm1484, %v4688, %v4687
        %v4690 = vrot.slane %v3720, 4
        %v4691 = vsel %vm1487, %v4690, %v4689
        %v4692 = vrot.slane %v3721, 3
        %v4693 = vsel %vm1490, %v4692, %v4691
        %v4694 = vrot.slane %v3722, 2
        %v4695 = vsel %vm1493, %v4694, %v4693
        %v4696 = vrot.slane %v3723, 1
        %v4697 = vsel %vm1496, %v4696, %v4695
        %v4698 = vsel %vm1499, %v3724, %v4697
        %v4699 = vpack.c.b16 %v4698, %v4698
        %v4717 = vunpack.c.l.b16 %v4669
        %v4718 = vunpack.c.h.b16 %v4669
        %v4719 = vunpack.c.l.b16 %v4670
        %v4720 = vunpack.c.h.b16 %v4670
        %v4721 = vunpack.c.l.b16 %v4671
        %v4722 = vunpack.c.h.b16 %v4671
        %v4723 = vunpack.c.l.b16 %v4672
        %v4724 = vunpack.c.h.b16 %v4672
        %v4725 = vunpack.c.l.b16 %v4673
        %v4726 = vunpack.c.h.b16 %v4673
        %v4727 = vunpack.c.l.b16 %v4674
        %v4728 = vunpack.c.h.b16 %v4674
        %v4729 = vunpack.c.l.b16 %v4675
        %v4730 = vunpack.c.h.b16 %v4675
        %v4731 = vunpack.c.l.b16 %v4676
        %v4732 = vunpack.c.h.b16 %v4676
        %v4733 = vunpack.c.l.b16 %v4677
        %v4734 = vunpack.c.h.b16 %v4677
        %v4735 = vunpack.c.l.b16 %v4678
        %v4736 = vunpack.c.h.b16 %v4678
        %v4737 = vunpack.c.l.b16 %v4679
        %v4738 = vunpack.c.h.b16 %v4679
        %v4739 = vunpack.c.l.b16 %v4680
        %v4740 = vunpack.c.h.b16 %v4680
        %v4741 = vunpack.c.l.b16 %v4681
        %v4742 = vunpack.c.h.b16 %v4681
        %v4743 = vunpack.c.l.b16 %v4682
        %v4744 = vunpack.c.h.b16 %v4682
        %v4745 = vunpack.c.l.b16 %v4683
        %v4746 = vunpack.c.h.b16 %v4683
        %v4747 = vunpack.c.l.b16 %v4684
        %v4748 = vunpack.c.h.b16 %v4684
        %v4749 = vpack.c.b16 %v4719, %v4717
        %v4750 = vpack.c.b16 %v4720, %v4718
        %v4751 = vpack.c.b16 %v4723, %v4721
        %v4752 = vpack.c.b16 %v4724, %v4722
        %v4753 = vpack.c.b16 %v4727, %v4725
        %v4754 = vpack.c.b16 %v4728, %v4726
        %v4755 = vpack.c.b16 %v4731, %v4729
        %v4756 = vpack.c.b16 %v4732, %v4730
        %v4757 = vpack.c.b16 %v4735, %v4733
        %v4758 = vpack.c.b16 %v4736, %v4734
        %v4759 = vpack.c.b16 %v4739, %v4737
        %v4760 = vpack.c.b16 %v4740, %v4738
        %v4761 = vpack.c.b16 %v4743, %v4741
        %v4762 = vpack.c.b16 %v4744, %v4742
        %v4763 = vpack.c.b16 %v4747, %v4745
        %v4764 = vpack.c.b16 %v4748, %v4746
        %4781 = vmatpush.bf16.msra.mxu0 %v4763
        %4782 = vmatpush.bf16.msra.mxu0 %v4761
        %4783 = vmatpush.bf16.msra.mxu0 %v4759
        %4784 = vmatpush.bf16.msra.mxu0 %v4757
        %4785 = vmatpush.bf16.msra.mxu0 %v4755
        %4786 = vmatpush.bf16.msra.mxu0 %v4753
        %4787 = vmatpush.bf16.msra.mxu0 %v4751
        %4788 = vmatpush.bf16.msra.mxu0 %v4749
        %4789 = vmatmul.bf16.gmra.mxu0 %v4699
        %v4790 = vpop.f32.mrf.mxu0
        %v4791 = vadd.f32 0.0, %v4790
        %v4792 = vpop.f32.mrf.mxu0
        %4793 = vdwg.mxu0
        %4794 = vmatpush.bf16.msra.mxu0 %v4764
        %4795 = vmatpush.bf16.msra.mxu0 %v4762
        %4796 = vmatpush.bf16.msra.mxu0 %v4760
        %4797 = vmatpush.bf16.msra.mxu0 %v4758
        %4798 = vmatpush.bf16.msra.mxu0 %v4756
        %4799 = vmatpush.bf16.msra.mxu0 %v4754
        %4800 = vmatpush.bf16.msra.mxu0 %v4752
        %4801 = vmatpush.bf16.msra.mxu0 %v4750
        %4802 = vmatmul.bf16.gmra.mxu0 %v4699
        %v4803 = vpop.f32.mrf.mxu0
        %v4804 = vadd.f32 0.0, %v4803
        %v4805 = vpop.f32.mrf.mxu0
        %4806 = vdwg.mxu0
        %v4807 = vadd.f32 %v4667, %v4791
        %v4808 = vadd.f32 %v4668, %v4804
        %v4809 = vpack.c.bf16 %v3654, %v3654
        %v4810 = vpack.c.bf16 %v3656, %v3656
        %v4811 = vpack.c.bf16 %v3658, %v3658
        %v4812 = vpack.c.bf16 %v3660, %v3660
        %v4813 = vpack.c.bf16 %v3662, %v3662
        %v4814 = vpack.c.bf16 %v3664, %v3664
        %v4815 = vpack.c.bf16 %v3666, %v3666
        %v4816 = vpack.c.bf16 %v3668, %v3668
        %v4817 = vld [vmem:[%s2585] sm:$0xff]
        %v4818 = vld [vmem:[%s2585 + $0x8] sm:$0xff]
        %v4819 = vld [vmem:[%s2585 + $0x10] sm:$0xff]
        %v4820 = vld [vmem:[%s2585 + $0x18] sm:$0xff]
        %v4821 = vld [vmem:[%s2585 + $0x20] sm:$0xff]
        %v4822 = vld [vmem:[%s2585 + $0x28] sm:$0xff]
        %v4823 = vld [vmem:[%s2585 + $0x30] sm:$0xff]
        %v4824 = vld [vmem:[%s2585 + $0x38] sm:$0xff]
        %v4825 = vld [vmem:[%s2585 + $0x40] sm:$0xff]
        %v4826 = vld [vmem:[%s2585 + $0x48] sm:$0xff]
        %v4827 = vld [vmem:[%s2585 + $0x50] sm:$0xff]
        %v4828 = vld [vmem:[%s2585 + $0x58] sm:$0xff]
        %v4829 = vld [vmem:[%s2585 + $0x60] sm:$0xff]
        %v4830 = vld [vmem:[%s2585 + $0x68] sm:$0xff]
        %v4831 = vld [vmem:[%s2585 + $0x70] sm:$0xff]
        %v4832 = vld [vmem:[%s2585 + $0x78] sm:$0xff]
        %v4841 = vunpack.c.l.b16 %v4809
        %v4842 = vunpack.c.l.b16 %v4810
        %v4843 = vunpack.c.l.b16 %v4811
        %v4844 = vunpack.c.l.b16 %v4812
        %v4845 = vunpack.c.l.b16 %v4813
        %v4846 = vunpack.c.l.b16 %v4814
        %v4847 = vunpack.c.l.b16 %v4815
        %v4848 = vunpack.c.l.b16 %v4816
        %v4849 = vrot.slane %v4842, 7
        %v4850 = vsel %vm1481, %v4849, %v4841
        %v4851 = vrot.slane %v4843, 6
        %v4852 = vsel %vm1484, %v4851, %v4850
        %v4853 = vrot.slane %v4844, 5
        %v4854 = vsel %vm1487, %v4853, %v4852
        %v4855 = vrot.slane %v4845, 4
        %v4856 = vsel %vm1490, %v4855, %v4854
        %v4857 = vrot.slane %v4846, 3
        %v4858 = vsel %vm1493, %v4857, %v4856
        %v4859 = vrot.slane %v4847, 2
        %v4860 = vsel %vm1496, %v4859, %v4858
        %v4861 = vrot.slane %v4848, 1
        %v4862 = vsel %vm1499, %v4861, %v4860
        %v4863 = vpack.c.b16 %v4862, %v4862
        %v4881 = vunpack.c.l.b16 %v4817
        %v4882 = vunpack.c.h.b16 %v4817
        %v4883 = vunpack.c.l.b16 %v4818
        %v4884 = vunpack.c.h.b16 %v4818
        %v4885 = vunpack.c.l.b16 %v4819
        %v4886 = vunpack.c.h.b16 %v4819
        %v4887 = vunpack.c.l.b16 %v4820
        %v4888 = vunpack.c.h.b16 %v4820
        %v4889 = vunpack.c.l.b16 %v4821
        %v4890 = vunpack.c.h.b16 %v4821
        %v4891 = vunpack.c.l.b16 %v4822
        %v4892 = vunpack.c.h.b16 %v4822
        %v4893 = vunpack.c.l.b16 %v4823
        %v4894 = vunpack.c.h.b16 %v4823
        %v4895 = vunpack.c.l.b16 %v4824
        %v4896 = vunpack.c.h.b16 %v4824
        %v4897 = vunpack.c.l.b16 %v4825
        %v4898 = vunpack.c.h.b16 %v4825
        %v4899 = vunpack.c.l.b16 %v4826
        %v4900 = vunpack.c.h.b16 %v4826
        %v4901 = vunpack.c.l.b16 %v4827
        %v4902 = vunpack.c.h.b16 %v4827
        %v4903 = vunpack.c.l.b16 %v4828
        %v4904 = vunpack.c.h.b16 %v4828
        %v4905 = vunpack.c.l.b16 %v4829
        %v4906 = vunpack.c.h.b16 %v4829
        %v4907 = vunpack.c.l.b16 %v4830
        %v4908 = vunpack.c.h.b16 %v4830
        %v4909 = vunpack.c.l.b16 %v4831
        %v4910 = vunpack.c.h.b16 %v4831
        %v4911 = vunpack.c.l.b16 %v4832
        %v4912 = vunpack.c.h.b16 %v4832
        %v4913 = vpack.c.b16 %v4883, %v4881
        %v4914 = vpack.c.b16 %v4884, %v4882
        %v4915 = vpack.c.b16 %v4887, %v4885
        %v4916 = vpack.c.b16 %v4888, %v4886
        %v4917 = vpack.c.b16 %v4891, %v4889
        %v4918 = vpack.c.b16 %v4892, %v4890
        %v4919 = vpack.c.b16 %v4895, %v4893
        %v4920 = vpack.c.b16 %v4896, %v4894
        %v4921 = vpack.c.b16 %v4899, %v4897
        %v4922 = vpack.c.b16 %v4900, %v4898
        %v4923 = vpack.c.b16 %v4903, %v4901
        %v4924 = vpack.c.b16 %v4904, %v4902
        %v4925 = vpack.c.b16 %v4907, %v4905
        %v4926 = vpack.c.b16 %v4908, %v4906
        %v4927 = vpack.c.b16 %v4911, %v4909
        %v4928 = vpack.c.b16 %v4912, %v4910
        %4945 = vmatpush.bf16.msra.mxu0 %v4927
        %4946 = vmatpush.bf16.msra.mxu0 %v4925
        %4947 = vmatpush.bf16.msra.mxu0 %v4923
        %4948 = vmatpush.bf16.msra.mxu0 %v4921
        %4949 = vmatpush.bf16.msra.mxu0 %v4919
        %4950 = vmatpush.bf16.msra.mxu0 %v4917
        %4951 = vmatpush.bf16.msra.mxu0 %v4915
        %4952 = vmatpush.bf16.msra.mxu0 %v4913
        %4953 = vmatmul.bf16.gmra.mxu0 %v4863
        %v4954 = vpop.f32.mrf.mxu0
        %v4955 = vadd.f32 0.0, %v4954
        %v4956 = vpop.f32.mrf.mxu0
        %4957 = vdwg.mxu0
        %4958 = vmatpush.bf16.msra.mxu0 %v4928
        %4959 = vmatpush.bf16.msra.mxu0 %v4926
        %4960 = vmatpush.bf16.msra.mxu0 %v4924
        %4961 = vmatpush.bf16.msra.mxu0 %v4922
        %4962 = vmatpush.bf16.msra.mxu0 %v4920
        %4963 = vmatpush.bf16.msra.mxu0 %v4918
        %4964 = vmatpush.bf16.msra.mxu0 %v4916
        %4965 = vmatpush.bf16.msra.mxu0 %v4914
        %4966 = vmatmul.bf16.gmra.mxu0 %v4863
        %v4967 = vpop.f32.mrf.mxu0
        %v4968 = vadd.f32 0.0, %v4967
        %v4969 = vpop.f32.mrf.mxu0
        %4970 = vdwg.mxu0
        %v4971 = vadd.f32 %v4807, %v4955
        %v4972 = vadd.f32 %v4808, %v4968
        %v4973 = vld [vmem:[%s2742] sm:$0xff]
        %v4974 = vld [vmem:[%s2742 + $0x8] sm:$0xff]
        %v4975 = vld [vmem:[%s2742 + $0x10] sm:$0xff]
        %v4976 = vld [vmem:[%s2742 + $0x18] sm:$0xff]
        %v4977 = vld [vmem:[%s2742 + $0x20] sm:$0xff]
        %v4978 = vld [vmem:[%s2742 + $0x28] sm:$0xff]
        %v4979 = vld [vmem:[%s2742 + $0x30] sm:$0xff]
        %v4980 = vld [vmem:[%s2742 + $0x38] sm:$0xff]
        %v4981 = vld [vmem:[%s2742 + $0x40] sm:$0xff]
        %v4982 = vld [vmem:[%s2742 + $0x48] sm:$0xff]
        %v4983 = vld [vmem:[%s2742 + $0x50] sm:$0xff]
        %v4984 = vld [vmem:[%s2742 + $0x58] sm:$0xff]
        %v4985 = vld [vmem:[%s2742 + $0x60] sm:$0xff]
        %v4986 = vld [vmem:[%s2742 + $0x68] sm:$0xff]
        %v4987 = vld [vmem:[%s2742 + $0x70] sm:$0xff]
        %v4988 = vld [vmem:[%s2742 + $0x78] sm:$0xff]
        %v4989 = vrot.slane %v4841, 1
        %v4990 = vsel %vm1481, %v4842, %v4989
        %v4991 = vrot.slane %v4843, 7
        %v4992 = vsel %vm1484, %v4991, %v4990
        %v4993 = vrot.slane %v4844, 6
        %v4994 = vsel %vm1487, %v4993, %v4992
        %v4995 = vrot.slane %v4845, 5
        %v4996 = vsel %vm1490, %v4995, %v4994
        %v4997 = vrot.slane %v4846, 4
        %v4998 = vsel %vm1493, %v4997, %v4996
        %v4999 = vrot.slane %v4847, 3
        %v5000 = vsel %vm1496, %v4999, %v4998
        %v5001 = vrot.slane %v4848, 2
        %v5002 = vsel %vm1499, %v5001, %v5000
        %v5003 = vpack.c.b16 %v5002, %v5002
        %v5021 = vunpack.c.l.b16 %v4973
        %v5022 = vunpack.c.h.b16 %v4973
        %v5023 = vunpack.c.l.b16 %v4974
        %v5024 = vunpack.c.h.b16 %v4974
        %v5025 = vunpack.c.l.b16 %v4975
        %v5026 = vunpack.c.h.b16 %v4975
        %v5027 = vunpack.c.l.b16 %v4976
        %v5028 = vunpack.c.h.b16 %v4976
        %v5029 = vunpack.c.l.b16 %v4977
        %v5030 = vunpack.c.h.b16 %v4977
        %v5031 = vunpack.c.l.b16 %v4978
        %v5032 = vunpack.c.h.b16 %v4978
        %v5033 = vunpack.c.l.b16 %v4979
        %v5034 = vunpack.c.h.b16 %v4979
        %v5035 = vunpack.c.l.b16 %v4980
        %v5036 = vunpack.c.h.b16 %v4980
        %v5037 = vunpack.c.l.b16 %v4981
        %v5038 = vunpack.c.h.b16 %v4981
        %v5039 = vunpack.c.l.b16 %v4982
        %v5040 = vunpack.c.h.b16 %v4982
        %v5041 = vunpack.c.l.b16 %v4983
        %v5042 = vunpack.c.h.b16 %v4983
        %v5043 = vunpack.c.l.b16 %v4984
        %v5044 = vunpack.c.h.b16 %v4984
        %v5045 = vunpack.c.l.b16 %v4985
        %v5046 = vunpack.c.h.b16 %v4985
        %v5047 = vunpack.c.l.b16 %v4986
        %v5048 = vunpack.c.h.b16 %v4986
        %v5049 = vunpack.c.l.b16 %v4987
        %v5050 = vunpack.c.h.b16 %v4987
        %v5051 = vunpack.c.l.b16 %v4988
        %v5052 = vunpack.c.h.b16 %v4988
        %v5053 = vpack.c.b16 %v5023, %v5021
        %v5054 = vpack.c.b16 %v5024, %v5022
        %v5055 = vpack.c.b16 %v5027, %v5025
        %v5056 = vpack.c.b16 %v5028, %v5026
        %v5057 = vpack.c.b16 %v5031, %v5029
        %v5058 = vpack.c.b16 %v5032, %v5030
        %v5059 = vpack.c.b16 %v5035, %v5033
        %v5060 = vpack.c.b16 %v5036, %v5034
        %v5061 = vpack.c.b16 %v5039, %v5037
        %v5062 = vpack.c.b16 %v5040, %v5038
        %v5063 = vpack.c.b16 %v5043, %v5041
        %v5064 = vpack.c.b16 %v5044, %v5042
        %v5065 = vpack.c.b16 %v5047, %v5045
        %v5066 = vpack.c.b16 %v5048, %v5046
        %v5067 = vpack.c.b16 %v5051, %v5049
        %v5068 = vpack.c.b16 %v5052, %v5050
        %5085 = vmatpush.bf16.msra.mxu0 %v5067
        %5086 = vmatpush.bf16.msra.mxu0 %v5065
        %5087 = vmatpush.bf16.msra.mxu0 %v5063
        %5088 = vmatpush.bf16.msra.mxu0 %v5061
        %5089 = vmatpush.bf16.msra.mxu0 %v5059
        %5090 = vmatpush.bf16.msra.mxu0 %v5057
        %5091 = vmatpush.bf16.msra.mxu0 %v5055
        %5092 = vmatpush.bf16.msra.mxu0 %v5053
        %5093 = vmatmul.bf16.gmra.mxu0 %v5003
        %v5094 = vpop.f32.mrf.mxu0
        %v5095 = vadd.f32 0.0, %v5094
        %v5096 = vpop.f32.mrf.mxu0
        %5097 = vdwg.mxu0
        %5098 = vmatpush.bf16.msra.mxu0 %v5068
        %5099 = vmatpush.bf16.msra.mxu0 %v5066
        %5100 = vmatpush.bf16.msra.mxu0 %v5064
        %5101 = vmatpush.bf16.msra.mxu0 %v5062
        %5102 = vmatpush.bf16.msra.mxu0 %v5060
        %5103 = vmatpush.bf16.msra.mxu0 %v5058
        %5104 = vmatpush.bf16.msra.mxu0 %v5056
        %5105 = vmatpush.bf16.msra.mxu0 %v5054
        %5106 = vmatmul.bf16.gmra.mxu0 %v5003
        %v5107 = vpop.f32.mrf.mxu0
        %v5108 = vadd.f32 0.0, %v5107
        %v5109 = vpop.f32.mrf.mxu0
        %5110 = vdwg.mxu0
        %v5111 = vadd.f32 %v4971, %v5095
        %v5112 = vadd.f32 %v4972, %v5108
        %v5113 = vld [vmem:[%s2883] sm:$0xff]
        %v5114 = vld [vmem:[%s2883 + $0x8] sm:$0xff]
        %v5115 = vld [vmem:[%s2883 + $0x10] sm:$0xff]
        %v5116 = vld [vmem:[%s2883 + $0x18] sm:$0xff]
        %v5117 = vld [vmem:[%s2883 + $0x20] sm:$0xff]
        %v5118 = vld [vmem:[%s2883 + $0x28] sm:$0xff]
        %v5119 = vld [vmem:[%s2883 + $0x30] sm:$0xff]
        %v5120 = vld [vmem:[%s2883 + $0x38] sm:$0xff]
        %v5121 = vld [vmem:[%s2883 + $0x40] sm:$0xff]
        %v5122 = vld [vmem:[%s2883 + $0x48] sm:$0xff]
        %v5123 = vld [vmem:[%s2883 + $0x50] sm:$0xff]
        %v5124 = vld [vmem:[%s2883 + $0x58] sm:$0xff]
        %v5125 = vld [vmem:[%s2883 + $0x60] sm:$0xff]
        %v5126 = vld [vmem:[%s2883 + $0x68] sm:$0xff]
        %v5127 = vld [vmem:[%s2883 + $0x70] sm:$0xff]
        %v5128 = vld [vmem:[%s2883 + $0x78] sm:$0xff]
        %v5129 = vrot.slane %v4841, 2
        %v5130 = vrot.slane %v4842, 1
        %v5131 = vsel %vm1481, %v5130, %v5129
        %v5132 = vsel %vm1484, %v4843, %v5131
        %v5133 = vrot.slane %v4844, 7
        %v5134 = vsel %vm1487, %v5133, %v5132
        %v5135 = vrot.slane %v4845, 6
        %v5136 = vsel %vm1490, %v5135, %v5134
        %v5137 = vrot.slane %v4846, 5
        %v5138 = vsel %vm1493, %v5137, %v5136
        %v5139 = vrot.slane %v4847, 4
        %v5140 = vsel %vm1496, %v5139, %v5138
        %v5141 = vrot.slane %v4848, 3
        %v5142 = vsel %vm1499, %v5141, %v5140
        %v5143 = vpack.c.b16 %v5142, %v5142
        %v5161 = vunpack.c.l.b16 %v5113
        %v5162 = vunpack.c.h.b16 %v5113
        %v5163 = vunpack.c.l.b16 %v5114
        %v5164 = vunpack.c.h.b16 %v5114
        %v5165 = vunpack.c.l.b16 %v5115
        %v5166 = vunpack.c.h.b16 %v5115
        %v5167 = vunpack.c.l.b16 %v5116
        %v5168 = vunpack.c.h.b16 %v5116
        %v5169 = vunpack.c.l.b16 %v5117
        %v5170 = vunpack.c.h.b16 %v5117
        %v5171 = vunpack.c.l.b16 %v5118
        %v5172 = vunpack.c.h.b16 %v5118
        %v5173 = vunpack.c.l.b16 %v5119
        %v5174 = vunpack.c.h.b16 %v5119
        %v5175 = vunpack.c.l.b16 %v5120
        %v5176 = vunpack.c.h.b16 %v5120
        %v5177 = vunpack.c.l.b16 %v5121
        %v5178 = vunpack.c.h.b16 %v5121
        %v5179 = vunpack.c.l.b16 %v5122
        %v5180 = vunpack.c.h.b16 %v5122
        %v5181 = vunpack.c.l.b16 %v5123
        %v5182 = vunpack.c.h.b16 %v5123
        %v5183 = vunpack.c.l.b16 %v5124
        %v5184 = vunpack.c.h.b16 %v5124
        %v5185 = vunpack.c.l.b16 %v5125
        %v5186 = vunpack.c.h.b16 %v5125
        %v5187 = vunpack.c.l.b16 %v5126
        %v5188 = vunpack.c.h.b16 %v5126
        %v5189 = vunpack.c.l.b16 %v5127
        %v5190 = vunpack.c.h.b16 %v5127
        %v5191 = vunpack.c.l.b16 %v5128
        %v5192 = vunpack.c.h.b16 %v5128
        %v5193 = vpack.c.b16 %v5163, %v5161
        %v5194 = vpack.c.b16 %v5164, %v5162
        %v5195 = vpack.c.b16 %v5167, %v5165
        %v5196 = vpack.c.b16 %v5168, %v5166
        %v5197 = vpack.c.b16 %v5171, %v5169
        %v5198 = vpack.c.b16 %v5172, %v5170
        %v5199 = vpack.c.b16 %v5175, %v5173
        %v5200 = vpack.c.b16 %v5176, %v5174
        %v5201 = vpack.c.b16 %v5179, %v5177
        %v5202 = vpack.c.b16 %v5180, %v5178
        %v5203 = vpack.c.b16 %v5183, %v5181
        %v5204 = vpack.c.b16 %v5184, %v5182
        %v5205 = vpack.c.b16 %v5187, %v5185
        %v5206 = vpack.c.b16 %v5188, %v5186
        %v5207 = vpack.c.b16 %v5191, %v5189
        %v5208 = vpack.c.b16 %v5192, %v5190
        %5225 = vmatpush.bf16.msra.mxu0 %v5207
        %5226 = vmatpush.bf16.msra.mxu0 %v5205
        %5227 = vmatpush.bf16.msra.mxu0 %v5203
        %5228 = vmatpush.bf16.msra.mxu0 %v5201
        %5229 = vmatpush.bf16.msra.mxu0 %v5199
        %5230 = vmatpush.bf16.msra.mxu0 %v5197
        %5231 = vmatpush.bf16.msra.mxu0 %v5195
        %5232 = vmatpush.bf16.msra.mxu0 %v5193
        %5233 = vmatmul.bf16.gmra.mxu0 %v5143
        %v5234 = vpop.f32.mrf.mxu0
        %v5235 = vadd.f32 0.0, %v5234
        %v5236 = vpop.f32.mrf.mxu0
        %5237 = vdwg.mxu0
        %5238 = vmatpush.bf16.msra.mxu0 %v5208
        %5239 = vmatpush.bf16.msra.mxu0 %v5206
        %5240 = vmatpush.bf16.msra.mxu0 %v5204
        %5241 = vmatpush.bf16.msra.mxu0 %v5202
        %5242 = vmatpush.bf16.msra.mxu0 %v5200
        %5243 = vmatpush.bf16.msra.mxu0 %v5198
        %5244 = vmatpush.bf16.msra.mxu0 %v5196
        %5245 = vmatpush.bf16.msra.mxu0 %v5194
        %5246 = vmatmul.bf16.gmra.mxu0 %v5143
        %v5247 = vpop.f32.mrf.mxu0
        %v5248 = vadd.f32 0.0, %v5247
        %v5249 = vpop.f32.mrf.mxu0
        %5250 = vdwg.mxu0
        %v5251 = vadd.f32 %v5111, %v5235
        %v5252 = vadd.f32 %v5112, %v5248
        %v5253 = vld [vmem:[%s3024] sm:$0xff]
        %v5254 = vld [vmem:[%s3024 + $0x8] sm:$0xff]
        %v5255 = vld [vmem:[%s3024 + $0x10] sm:$0xff]
        %v5256 = vld [vmem:[%s3024 + $0x18] sm:$0xff]
        %v5257 = vld [vmem:[%s3024 + $0x20] sm:$0xff]
        %v5258 = vld [vmem:[%s3024 + $0x28] sm:$0xff]
        %v5259 = vld [vmem:[%s3024 + $0x30] sm:$0xff]
        %v5260 = vld [vmem:[%s3024 + $0x38] sm:$0xff]
        %v5261 = vld [vmem:[%s3024 + $0x40] sm:$0xff]
        %v5262 = vld [vmem:[%s3024 + $0x48] sm:$0xff]
        %v5263 = vld [vmem:[%s3024 + $0x50] sm:$0xff]
        %v5264 = vld [vmem:[%s3024 + $0x58] sm:$0xff]
        %v5265 = vld [vmem:[%s3024 + $0x60] sm:$0xff]
        %v5266 = vld [vmem:[%s3024 + $0x68] sm:$0xff]
        %v5267 = vld [vmem:[%s3024 + $0x70] sm:$0xff]
        %v5268 = vld [vmem:[%s3024 + $0x78] sm:$0xff]
        %v5269 = vrot.slane %v4841, 3
        %v5270 = vrot.slane %v4842, 2
        %v5271 = vsel %vm1481, %v5270, %v5269
        %v5272 = vrot.slane %v4843, 1
        %v5273 = vsel %vm1484, %v5272, %v5271
        %v5274 = vsel %vm1487, %v4844, %v5273
        %v5275 = vrot.slane %v4845, 7
        %v5276 = vsel %vm1490, %v5275, %v5274
        %v5277 = vrot.slane %v4846, 6
        %v5278 = vsel %vm1493, %v5277, %v5276
        %v5279 = vrot.slane %v4847, 5
        %v5280 = vsel %vm1496, %v5279, %v5278
        %v5281 = vrot.slane %v4848, 4
        %v5282 = vsel %vm1499, %v5281, %v5280
        %v5283 = vpack.c.b16 %v5282, %v5282
        %v5301 = vunpack.c.l.b16 %v5253
        %v5302 = vunpack.c.h.b16 %v5253
        %v5303 = vunpack.c.l.b16 %v5254
        %v5304 = vunpack.c.h.b16 %v5254
        %v5305 = vunpack.c.l.b16 %v5255
        %v5306 = vunpack.c.h.b16 %v5255
        %v5307 = vunpack.c.l.b16 %v5256
        %v5308 = vunpack.c.h.b16 %v5256
        %v5309 = vunpack.c.l.b16 %v5257
        %v5310 = vunpack.c.h.b16 %v5257
        %v5311 = vunpack.c.l.b16 %v5258
        %v5312 = vunpack.c.h.b16 %v5258
        %v5313 = vunpack.c.l.b16 %v5259
        %v5314 = vunpack.c.h.b16 %v5259
        %v5315 = vunpack.c.l.b16 %v5260
        %v5316 = vunpack.c.h.b16 %v5260
        %v5317 = vunpack.c.l.b16 %v5261
        %v5318 = vunpack.c.h.b16 %v5261
        %v5319 = vunpack.c.l.b16 %v5262
        %v5320 = vunpack.c.h.b16 %v5262
        %v5321 = vunpack.c.l.b16 %v5263
        %v5322 = vunpack.c.h.b16 %v5263
        %v5323 = vunpack.c.l.b16 %v5264
        %v5324 = vunpack.c.h.b16 %v5264
        %v5325 = vunpack.c.l.b16 %v5265
        %v5326 = vunpack.c.h.b16 %v5265
        %v5327 = vunpack.c.l.b16 %v5266
        %v5328 = vunpack.c.h.b16 %v5266
        %v5329 = vunpack.c.l.b16 %v5267
        %v5330 = vunpack.c.h.b16 %v5267
        %v5331 = vunpack.c.l.b16 %v5268
        %v5332 = vunpack.c.h.b16 %v5268
        %v5333 = vpack.c.b16 %v5303, %v5301
        %v5334 = vpack.c.b16 %v5304, %v5302
        %v5335 = vpack.c.b16 %v5307, %v5305
        %v5336 = vpack.c.b16 %v5308, %v5306
        %v5337 = vpack.c.b16 %v5311, %v5309
        %v5338 = vpack.c.b16 %v5312, %v5310
        %v5339 = vpack.c.b16 %v5315, %v5313
        %v5340 = vpack.c.b16 %v5316, %v5314
        %v5341 = vpack.c.b16 %v5319, %v5317
        %v5342 = vpack.c.b16 %v5320, %v5318
        %v5343 = vpack.c.b16 %v5323, %v5321
        %v5344 = vpack.c.b16 %v5324, %v5322
        %v5345 = vpack.c.b16 %v5327, %v5325
        %v5346 = vpack.c.b16 %v5328, %v5326
        %v5347 = vpack.c.b16 %v5331, %v5329
        %v5348 = vpack.c.b16 %v5332, %v5330
        %5365 = vmatpush.bf16.msra.mxu0 %v5347
        %5366 = vmatpush.bf16.msra.mxu0 %v5345
        %5367 = vmatpush.bf16.msra.mxu0 %v5343
        %5368 = vmatpush.bf16.msra.mxu0 %v5341
        %5369 = vmatpush.bf16.msra.mxu0 %v5339
        %5370 = vmatpush.bf16.msra.mxu0 %v5337
        %5371 = vmatpush.bf16.msra.mxu0 %v5335
        %5372 = vmatpush.bf16.msra.mxu0 %v5333
        %5373 = vmatmul.bf16.gmra.mxu0 %v5283
        %v5374 = vpop.f32.mrf.mxu0
        %v5375 = vadd.f32 0.0, %v5374
        %v5376 = vpop.f32.mrf.mxu0
        %5377 = vdwg.mxu0
        %5378 = vmatpush.bf16.msra.mxu0 %v5348
        %5379 = vmatpush.bf16.msra.mxu0 %v5346
        %5380 = vmatpush.bf16.msra.mxu0 %v5344
        %5381 = vmatpush.bf16.msra.mxu0 %v5342
        %5382 = vmatpush.bf16.msra.mxu0 %v5340
        %5383 = vmatpush.bf16.msra.mxu0 %v5338
        %5384 = vmatpush.bf16.msra.mxu0 %v5336
        %5385 = vmatpush.bf16.msra.mxu0 %v5334
        %5386 = vmatmul.bf16.gmra.mxu0 %v5283
        %v5387 = vpop.f32.mrf.mxu0
        %v5388 = vadd.f32 0.0, %v5387
        %v5389 = vpop.f32.mrf.mxu0
        %5390 = vdwg.mxu0
        %v5391 = vadd.f32 %v5251, %v5375
        %v5392 = vadd.f32 %v5252, %v5388
        %v5393 = vld [vmem:[%s3165] sm:$0xff]
        %v5394 = vld [vmem:[%s3165 + $0x8] sm:$0xff]
        %v5395 = vld [vmem:[%s3165 + $0x10] sm:$0xff]
        %v5396 = vld [vmem:[%s3165 + $0x18] sm:$0xff]
        %v5397 = vld [vmem:[%s3165 + $0x20] sm:$0xff]
        %v5398 = vld [vmem:[%s3165 + $0x28] sm:$0xff]
        %v5399 = vld [vmem:[%s3165 + $0x30] sm:$0xff]
        %v5400 = vld [vmem:[%s3165 + $0x38] sm:$0xff]
        %v5401 = vld [vmem:[%s3165 + $0x40] sm:$0xff]
        %v5402 = vld [vmem:[%s3165 + $0x48] sm:$0xff]
        %v5403 = vld [vmem:[%s3165 + $0x50] sm:$0xff]
        %v5404 = vld [vmem:[%s3165 + $0x58] sm:$0xff]
        %v5405 = vld [vmem:[%s3165 + $0x60] sm:$0xff]
        %v5406 = vld [vmem:[%s3165 + $0x68] sm:$0xff]
        %v5407 = vld [vmem:[%s3165 + $0x70] sm:$0xff]
        %v5408 = vld [vmem:[%s3165 + $0x78] sm:$0xff]
        %v5409 = vrot.slane %v4841, 4
        %v5410 = vrot.slane %v4842, 3
        %v5411 = vsel %vm1481, %v5410, %v5409
        %v5412 = vrot.slane %v4843, 2
        %v5413 = vsel %vm1484, %v5412, %v5411
        %v5414 = vrot.slane %v4844, 1
        %v5415 = vsel %vm1487, %v5414, %v5413
        %v5416 = vsel %vm1490, %v4845, %v5415
        %v5417 = vrot.slane %v4846, 7
        %v5418 = vsel %vm1493, %v5417, %v5416
        %v5419 = vrot.slane %v4847, 6
        %v5420 = vsel %vm1496, %v5419, %v5418
        %v5421 = vrot.slane %v4848, 5
        %v5422 = vsel %vm1499, %v5421, %v5420
        %v5423 = vpack.c.b16 %v5422, %v5422
        %v5441 = vunpack.c.l.b16 %v5393
        %v5442 = vunpack.c.h.b16 %v5393
        %v5443 = vunpack.c.l.b16 %v5394
        %v5444 = vunpack.c.h.b16 %v5394
        %v5445 = vunpack.c.l.b16 %v5395
        %v5446 = vunpack.c.h.b16 %v5395
        %v5447 = vunpack.c.l.b16 %v5396
        %v5448 = vunpack.c.h.b16 %v5396
        %v5449 = vunpack.c.l.b16 %v5397
        %v5450 = vunpack.c.h.b16 %v5397
        %v5451 = vunpack.c.l.b16 %v5398
        %v5452 = vunpack.c.h.b16 %v5398
        %v5453 = vunpack.c.l.b16 %v5399
        %v5454 = vunpack.c.h.b16 %v5399
        %v5455 = vunpack.c.l.b16 %v5400
        %v5456 = vunpack.c.h.b16 %v5400
        %v5457 = vunpack.c.l.b16 %v5401
        %v5458 = vunpack.c.h.b16 %v5401
        %v5459 = vunpack.c.l.b16 %v5402
        %v5460 = vunpack.c.h.b16 %v5402
        %v5461 = vunpack.c.l.b16 %v5403
        %v5462 = vunpack.c.h.b16 %v5403
        %v5463 = vunpack.c.l.b16 %v5404
        %v5464 = vunpack.c.h.b16 %v5404
        %v5465 = vunpack.c.l.b16 %v5405
        %v5466 = vunpack.c.h.b16 %v5405
        %v5467 = vunpack.c.l.b16 %v5406
        %v5468 = vunpack.c.h.b16 %v5406
        %v5469 = vunpack.c.l.b16 %v5407
        %v5470 = vunpack.c.h.b16 %v5407
        %v5471 = vunpack.c.l.b16 %v5408
        %v5472 = vunpack.c.h.b16 %v5408
        %v5473 = vpack.c.b16 %v5443, %v5441
        %v5474 = vpack.c.b16 %v5444, %v5442
        %v5475 = vpack.c.b16 %v5447, %v5445
        %v5476 = vpack.c.b16 %v5448, %v5446
        %v5477 = vpack.c.b16 %v5451, %v5449
        %v5478 = vpack.c.b16 %v5452, %v5450
        %v5479 = vpack.c.b16 %v5455, %v5453
        %v5480 = vpack.c.b16 %v5456, %v5454
        %v5481 = vpack.c.b16 %v5459, %v5457
        %v5482 = vpack.c.b16 %v5460, %v5458
        %v5483 = vpack.c.b16 %v5463, %v5461
        %v5484 = vpack.c.b16 %v5464, %v5462
        %v5485 = vpack.c.b16 %v5467, %v5465
        %v5486 = vpack.c.b16 %v5468, %v5466
        %v5487 = vpack.c.b16 %v5471, %v5469
        %v5488 = vpack.c.b16 %v5472, %v5470
        %5505 = vmatpush.bf16.msra.mxu0 %v5487
        %5506 = vmatpush.bf16.msra.mxu0 %v5485
        %5507 = vmatpush.bf16.msra.mxu0 %v5483
        %5508 = vmatpush.bf16.msra.mxu0 %v5481
        %5509 = vmatpush.bf16.msra.mxu0 %v5479
        %5510 = vmatpush.bf16.msra.mxu0 %v5477
        %5511 = vmatpush.bf16.msra.mxu0 %v5475
        %5512 = vmatpush.bf16.msra.mxu0 %v5473
        %5513 = vmatmul.bf16.gmra.mxu0 %v5423
        %v5514 = vpop.f32.mrf.mxu0
        %v5515 = vadd.f32 0.0, %v5514
        %v5516 = vpop.f32.mrf.mxu0
        %5517 = vdwg.mxu0
        %5518 = vmatpush.bf16.msra.mxu0 %v5488
        %5519 = vmatpush.bf16.msra.mxu0 %v5486
        %5520 = vmatpush.bf16.msra.mxu0 %v5484
        %5521 = vmatpush.bf16.msra.mxu0 %v5482
        %5522 = vmatpush.bf16.msra.mxu0 %v5480
        %5523 = vmatpush.bf16.msra.mxu0 %v5478
        %5524 = vmatpush.bf16.msra.mxu0 %v5476
        %5525 = vmatpush.bf16.msra.mxu0 %v5474
        %5526 = vmatmul.bf16.gmra.mxu0 %v5423
        %v5527 = vpop.f32.mrf.mxu0
        %v5528 = vadd.f32 0.0, %v5527
        %v5529 = vpop.f32.mrf.mxu0
        %5530 = vdwg.mxu0
        %v5531 = vadd.f32 %v5391, %v5515
        %v5532 = vadd.f32 %v5392, %v5528
        %v5533 = vld [vmem:[%s3306] sm:$0xff]
        %v5534 = vld [vmem:[%s3306 + $0x8] sm:$0xff]
        %v5535 = vld [vmem:[%s3306 + $0x10] sm:$0xff]
        %v5536 = vld [vmem:[%s3306 + $0x18] sm:$0xff]
        %v5537 = vld [vmem:[%s3306 + $0x20] sm:$0xff]
        %v5538 = vld [vmem:[%s3306 + $0x28] sm:$0xff]
        %v5539 = vld [vmem:[%s3306 + $0x30] sm:$0xff]
        %v5540 = vld [vmem:[%s3306 + $0x38] sm:$0xff]
        %v5541 = vld [vmem:[%s3306 + $0x40] sm:$0xff]
        %v5542 = vld [vmem:[%s3306 + $0x48] sm:$0xff]
        %v5543 = vld [vmem:[%s3306 + $0x50] sm:$0xff]
        %v5544 = vld [vmem:[%s3306 + $0x58] sm:$0xff]
        %v5545 = vld [vmem:[%s3306 + $0x60] sm:$0xff]
        %v5546 = vld [vmem:[%s3306 + $0x68] sm:$0xff]
        %v5547 = vld [vmem:[%s3306 + $0x70] sm:$0xff]
        %v5548 = vld [vmem:[%s3306 + $0x78] sm:$0xff]
        %v5549 = vrot.slane %v4841, 5
        %v5550 = vrot.slane %v4842, 4
        %v5551 = vsel %vm1481, %v5550, %v5549
        %v5552 = vrot.slane %v4843, 3
        %v5553 = vsel %vm1484, %v5552, %v5551
        %v5554 = vrot.slane %v4844, 2
        %v5555 = vsel %vm1487, %v5554, %v5553
        %v5556 = vrot.slane %v4845, 1
        %v5557 = vsel %vm1490, %v5556, %v5555
        %v5558 = vsel %vm1493, %v4846, %v5557
        %v5559 = vrot.slane %v4847, 7
        %v5560 = vsel %vm1496, %v5559, %v5558
        %v5561 = vrot.slane %v4848, 6
        %v5562 = vsel %vm1499, %v5561, %v5560
        %v5563 = vpack.c.b16 %v5562, %v5562
        %v5581 = vunpack.c.l.b16 %v5533
        %v5582 = vunpack.c.h.b16 %v5533
        %v5583 = vunpack.c.l.b16 %v5534
        %v5584 = vunpack.c.h.b16 %v5534
        %v5585 = vunpack.c.l.b16 %v5535
        %v5586 = vunpack.c.h.b16 %v5535
        %v5587 = vunpack.c.l.b16 %v5536
        %v5588 = vunpack.c.h.b16 %v5536
        %v5589 = vunpack.c.l.b16 %v5537
        %v5590 = vunpack.c.h.b16 %v5537
        %v5591 = vunpack.c.l.b16 %v5538
        %v5592 = vunpack.c.h.b16 %v5538
        %v5593 = vunpack.c.l.b16 %v5539
        %v5594 = vunpack.c.h.b16 %v5539
        %v5595 = vunpack.c.l.b16 %v5540
        %v5596 = vunpack.c.h.b16 %v5540
        %v5597 = vunpack.c.l.b16 %v5541
        %v5598 = vunpack.c.h.b16 %v5541
        %v5599 = vunpack.c.l.b16 %v5542
        %v5600 = vunpack.c.h.b16 %v5542
        %v5601 = vunpack.c.l.b16 %v5543
        %v5602 = vunpack.c.h.b16 %v5543
        %v5603 = vunpack.c.l.b16 %v5544
        %v5604 = vunpack.c.h.b16 %v5544
        %v5605 = vunpack.c.l.b16 %v5545
        %v5606 = vunpack.c.h.b16 %v5545
        %v5607 = vunpack.c.l.b16 %v5546
        %v5608 = vunpack.c.h.b16 %v5546
        %v5609 = vunpack.c.l.b16 %v5547
        %v5610 = vunpack.c.h.b16 %v5547
        %v5611 = vunpack.c.l.b16 %v5548
        %v5612 = vunpack.c.h.b16 %v5548
        %v5613 = vpack.c.b16 %v5583, %v5581
        %v5614 = vpack.c.b16 %v5584, %v5582
        %v5615 = vpack.c.b16 %v5587, %v5585
        %v5616 = vpack.c.b16 %v5588, %v5586
        %v5617 = vpack.c.b16 %v5591, %v5589
        %v5618 = vpack.c.b16 %v5592, %v5590
        %v5619 = vpack.c.b16 %v5595, %v5593
        %v5620 = vpack.c.b16 %v5596, %v5594
        %v5621 = vpack.c.b16 %v5599, %v5597
        %v5622 = vpack.c.b16 %v5600, %v5598
        %v5623 = vpack.c.b16 %v5603, %v5601
        %v5624 = vpack.c.b16 %v5604, %v5602
        %v5625 = vpack.c.b16 %v5607, %v5605
        %v5626 = vpack.c.b16 %v5608, %v5606
        %v5627 = vpack.c.b16 %v5611, %v5609
        %v5628 = vpack.c.b16 %v5612, %v5610
        %5645 = vmatpush.bf16.msra.mxu0 %v5627
        %5646 = vmatpush.bf16.msra.mxu0 %v5625
        %5647 = vmatpush.bf16.msra.mxu0 %v5623
        %5648 = vmatpush.bf16.msra.mxu0 %v5621
        %5649 = vmatpush.bf16.msra.mxu0 %v5619
        %5650 = vmatpush.bf16.msra.mxu0 %v5617
        %5651 = vmatpush.bf16.msra.mxu0 %v5615
        %5652 = vmatpush.bf16.msra.mxu0 %v5613
        %5653 = vmatmul.bf16.gmra.mxu0 %v5563
        %v5654 = vpop.f32.mrf.mxu0
        %v5655 = vadd.f32 0.0, %v5654
        %v5656 = vpop.f32.mrf.mxu0
        %5657 = vdwg.mxu0
        %5658 = vmatpush.bf16.msra.mxu0 %v5628
        %5659 = vmatpush.bf16.msra.mxu0 %v5626
        %5660 = vmatpush.bf16.msra.mxu0 %v5624
        %5661 = vmatpush.bf16.msra.mxu0 %v5622
        %5662 = vmatpush.bf16.msra.mxu0 %v5620
        %5663 = vmatpush.bf16.msra.mxu0 %v5618
        %5664 = vmatpush.bf16.msra.mxu0 %v5616
        %5665 = vmatpush.bf16.msra.mxu0 %v5614
        %5666 = vmatmul.bf16.gmra.mxu0 %v5563
        %v5667 = vpop.f32.mrf.mxu0
        %v5668 = vadd.f32 0.0, %v5667
        %v5669 = vpop.f32.mrf.mxu0
        %5670 = vdwg.mxu0
        %v5671 = vadd.f32 %v5531, %v5655
        %v5672 = vadd.f32 %v5532, %v5668
        %v5673 = vld [vmem:[%s3447] sm:$0xff]
        %v5674 = vld [vmem:[%s3447 + $0x8] sm:$0xff]
        %v5675 = vld [vmem:[%s3447 + $0x10] sm:$0xff]
        %v5676 = vld [vmem:[%s3447 + $0x18] sm:$0xff]
        %v5677 = vld [vmem:[%s3447 + $0x20] sm:$0xff]
        %v5678 = vld [vmem:[%s3447 + $0x28] sm:$0xff]
        %v5679 = vld [vmem:[%s3447 + $0x30] sm:$0xff]
        %v5680 = vld [vmem:[%s3447 + $0x38] sm:$0xff]
        %v5681 = vld [vmem:[%s3447 + $0x40] sm:$0xff]
        %v5682 = vld [vmem:[%s3447 + $0x48] sm:$0xff]
        %v5683 = vld [vmem:[%s3447 + $0x50] sm:$0xff]
        %v5684 = vld [vmem:[%s3447 + $0x58] sm:$0xff]
        %v5685 = vld [vmem:[%s3447 + $0x60] sm:$0xff]
        %v5686 = vld [vmem:[%s3447 + $0x68] sm:$0xff]
        %v5687 = vld [vmem:[%s3447 + $0x70] sm:$0xff]
        %v5688 = vld [vmem:[%s3447 + $0x78] sm:$0xff]
        %v5689 = vrot.slane %v4841, 6
        %v5690 = vrot.slane %v4842, 5
        %v5691 = vsel %vm1481, %v5690, %v5689
        %v5692 = vrot.slane %v4843, 4
        %v5693 = vsel %vm1484, %v5692, %v5691
        %v5694 = vrot.slane %v4844, 3
        %v5695 = vsel %vm1487, %v5694, %v5693
        %v5696 = vrot.slane %v4845, 2
        %v5697 = vsel %vm1490, %v5696, %v5695
        %v5698 = vrot.slane %v4846, 1
        %v5699 = vsel %vm1493, %v5698, %v5697
        %v5700 = vsel %vm1496, %v4847, %v5699
        %v5701 = vrot.slane %v4848, 7
        %v5702 = vsel %vm1499, %v5701, %v5700
        %v5703 = vpack.c.b16 %v5702, %v5702
        %v5721 = vunpack.c.l.b16 %v5673
        %v5722 = vunpack.c.h.b16 %v5673
        %v5723 = vunpack.c.l.b16 %v5674
        %v5724 = vunpack.c.h.b16 %v5674
        %v5725 = vunpack.c.l.b16 %v5675
        %v5726 = vunpack.c.h.b16 %v5675
        %v5727 = vunpack.c.l.b16 %v5676
        %v5728 = vunpack.c.h.b16 %v5676
        %v5729 = vunpack.c.l.b16 %v5677
        %v5730 = vunpack.c.h.b16 %v5677
        %v5731 = vunpack.c.l.b16 %v5678
        %v5732 = vunpack.c.h.b16 %v5678
        %v5733 = vunpack.c.l.b16 %v5679
        %v5734 = vunpack.c.h.b16 %v5679
        %v5735 = vunpack.c.l.b16 %v5680
        %v5736 = vunpack.c.h.b16 %v5680
        %v5737 = vunpack.c.l.b16 %v5681
        %v5738 = vunpack.c.h.b16 %v5681
        %v5739 = vunpack.c.l.b16 %v5682
        %v5740 = vunpack.c.h.b16 %v5682
        %v5741 = vunpack.c.l.b16 %v5683
        %v5742 = vunpack.c.h.b16 %v5683
        %v5743 = vunpack.c.l.b16 %v5684
        %v5744 = vunpack.c.h.b16 %v5684
        %v5745 = vunpack.c.l.b16 %v5685
        %v5746 = vunpack.c.h.b16 %v5685
        %v5747 = vunpack.c.l.b16 %v5686
        %v5748 = vunpack.c.h.b16 %v5686
        %v5749 = vunpack.c.l.b16 %v5687
        %v5750 = vunpack.c.h.b16 %v5687
        %v5751 = vunpack.c.l.b16 %v5688
        %v5752 = vunpack.c.h.b16 %v5688
        %v5753 = vpack.c.b16 %v5723, %v5721
        %v5754 = vpack.c.b16 %v5724, %v5722
        %v5755 = vpack.c.b16 %v5727, %v5725
        %v5756 = vpack.c.b16 %v5728, %v5726
        %v5757 = vpack.c.b16 %v5731, %v5729
        %v5758 = vpack.c.b16 %v5732, %v5730
        %v5759 = vpack.c.b16 %v5735, %v5733
        %v5760 = vpack.c.b16 %v5736, %v5734
        %v5761 = vpack.c.b16 %v5739, %v5737
        %v5762 = vpack.c.b16 %v5740, %v5738
        %v5763 = vpack.c.b16 %v5743, %v5741
        %v5764 = vpack.c.b16 %v5744, %v5742
        %v5765 = vpack.c.b16 %v5747, %v5745
        %v5766 = vpack.c.b16 %v5748, %v5746
        %v5767 = vpack.c.b16 %v5751, %v5749
        %v5768 = vpack.c.b16 %v5752, %v5750
        %5785 = vmatpush.bf16.msra.mxu0 %v5767
        %5786 = vmatpush.bf16.msra.mxu0 %v5765
        %5787 = vmatpush.bf16.msra.mxu0 %v5763
        %5788 = vmatpush.bf16.msra.mxu0 %v5761
        %5789 = vmatpush.bf16.msra.mxu0 %v5759
        %5790 = vmatpush.bf16.msra.mxu0 %v5757
        %5791 = vmatpush.bf16.msra.mxu0 %v5755
        %5792 = vmatpush.bf16.msra.mxu0 %v5753
        %5793 = vmatmul.bf16.gmra.mxu0 %v5703
        %v5794 = vpop.f32.mrf.mxu0
        %v5795 = vadd.f32 0.0, %v5794
        %v5796 = vpop.f32.mrf.mxu0
        %5797 = vdwg.mxu0
        %5798 = vmatpush.bf16.msra.mxu0 %v5768
        %5799 = vmatpush.bf16.msra.mxu0 %v5766
        %5800 = vmatpush.bf16.msra.mxu0 %v5764
        %5801 = vmatpush.bf16.msra.mxu0 %v5762
        %5802 = vmatpush.bf16.msra.mxu0 %v5760
        %5803 = vmatpush.bf16.msra.mxu0 %v5758
        %5804 = vmatpush.bf16.msra.mxu0 %v5756
        %5805 = vmatpush.bf16.msra.mxu0 %v5754
        %5806 = vmatmul.bf16.gmra.mxu0 %v5703
        %v5807 = vpop.f32.mrf.mxu0
        %v5808 = vadd.f32 0.0, %v5807
        %v5809 = vpop.f32.mrf.mxu0
        %5810 = vdwg.mxu0
        %v5811 = vadd.f32 %v5671, %v5795
        %v5812 = vadd.f32 %v5672, %v5808
        %v5813 = vld [vmem:[%s4] sm:$0x3]
        %v5815 = vperm.slane %v5813, 0
        %v5816 = vperm.slane %v5813, 1
        %v5819 = vadd.f32 %v5811, %v5815
        %v5820 = vadd.f32 %v5812, %v5816
        %v5821 = vmax.f32 %v5819, 0.0
        %v5822 = vmax.f32 %v5820, 0.0
        %v5825 = vrot.slane %v5822, 7
        %v5826 = vsel %vm3601, %v5821, %v5825
        %v5827 = vsel %vm1481, %v5821, %v5825
        %v5828 = vrot.slane %v5827, 1
        %v5829 = vsel %vm1484, %v5821, %v5825
        %v5830 = vrot.slane %v5829, 2
        %v5831 = vsel %vm1487, %v5821, %v5825
        %v5832 = vrot.slane %v5831, 3
        %v5833 = vsel %vm1490, %v5821, %v5825
        %v5834 = vrot.slane %v5833, 4
        %v5835 = vsel %vm1493, %v5821, %v5825
        %v5836 = vrot.slane %v5835, 5
        %v5837 = vsel %vm1496, %v5821, %v5825
        %v5838 = vrot.slane %v5837, 6
        %v5839 = vsel %vm3615, %v5825, %v5821
        %v5840 = vrot.slane %v5839, 7
        %s5849 = scalar_lea.vmem [#allocation3], 1
        %5850 = vst.msk [vmem:[%s5849] ss:$8 sm:$0x3] %vm3629, %v5826
        %5851 = vst.msk [vmem:[%s5849] ss:$8 sm:$0x0] %vm3629, %v5826
        %s5852 = scalar_lea.vmem [#allocation3], 17
        %5853 = vst.msk [vmem:[%s5852] ss:$8 sm:$0x3] %vm3629, %v5828
        %5854 = vst.msk [vmem:[%s5852] ss:$8 sm:$0x0] %vm3629, %v5828
        %s5855 = scalar_lea.vmem [#allocation3], 33
        %5856 = vst.msk [vmem:[%s5855] ss:$8 sm:$0x3] %vm3629, %v5830
        %5857 = vst.msk [vmem:[%s5855] ss:$8 sm:$0x0] %vm3629, %v5830
        %s5858 = scalar_lea.vmem [#allocation3], 49
        %5859 = vst.msk [vmem:[%s5858] ss:$8 sm:$0x3] %vm3629, %v5832
        %5860 = vst.msk [vmem:[%s5858] ss:$8 sm:$0x0] %vm3629, %v5832
        %s5861 = scalar_lea.vmem [#allocation3], 65
        %5862 = vst.msk [vmem:[%s5861] ss:$8 sm:$0x3] %vm3629, %v5834
        %5863 = vst.msk [vmem:[%s5861] ss:$8 sm:$0x0] %vm3629, %v5834
        %s5864 = scalar_lea.vmem [#allocation3], 81
        %5865 = vst.msk [vmem:[%s5864] ss:$8 sm:$0x3] %vm3629, %v5836
        %5866 = vst.msk [vmem:[%s5864] ss:$8 sm:$0x0] %vm3629, %v5836
        %s5867 = scalar_lea.vmem [#allocation3], 97
        %5868 = vst.msk [vmem:[%s5867] ss:$8 sm:$0x3] %vm3629, %v5838
        %5869 = vst.msk [vmem:[%s5867] ss:$8 sm:$0x0] %vm3629, %v5838
        %s5870 = scalar_lea.vmem [#allocation3], 113
        %5871 = vst.msk [vmem:[%s5870] ss:$8 sm:$0x3] %vm3629, %v5840
        %5872 = vst.msk [vmem:[%s5870] ss:$8 sm:$0x0] %vm3629, %v5840
        %v5873 = vld [vmem:[#allocation2 + $0xe] sm:$0xff]
        %v5874 = vld [vmem:[#allocation2 + $0x16] sm:$0x7f]
        %v5875 = vld [vmem:[#allocation2 + $0x2e] sm:$0xff]
        %v5876 = vld [vmem:[#allocation2 + $0x36] sm:$0x7f]
        %v5877 = vld [vmem:[#allocation2 + $0x4e] sm:$0xff]
        %v5878 = vld [vmem:[#allocation2 + $0x56] sm:$0x7f]
        %v5879 = vld [vmem:[#allocation2 + $0x6e] sm:$0xff]
        %v5880 = vld [vmem:[#allocation2 + $0x76] sm:$0x7f]
        %v5881 = vld [vmem:[#allocation2 + $0x8e] sm:$0xff]
        %v5882 = vld [vmem:[#allocation2 + $0x96] sm:$0x7f]
        %v5883 = vld [vmem:[#allocation2 + $0xae] sm:$0xff]
        %v5884 = vld [vmem:[#allocation2 + $0xb6] sm:$0x7f]
        %v5885 = vld [vmem:[#allocation2 + $0xce] sm:$0xff]
        %v5886 = vld [vmem:[#allocation2 + $0xd6] sm:$0x7f]
        %v5887 = vld [vmem:[#allocation2 + $0xee] sm:$0xff]
        %v5888 = vld [vmem:[#allocation2 + $0xf6] sm:$0x7f]
        %v5889 = vpack.c.bf16 %v5873, %v5873
        %v5890 = vpack.c.bf16 %v5875, %v5875
        %v5891 = vpack.c.bf16 %v5877, %v5877
        %v5892 = vpack.c.bf16 %v5879, %v5879
        %v5893 = vpack.c.bf16 %v5881, %v5881
        %v5894 = vpack.c.bf16 %v5883, %v5883
        %v5895 = vpack.c.bf16 %v5885, %v5885
        %v5896 = vpack.c.bf16 %v5887, %v5887
        %v5897 = vld [vmem:[%s3] sm:$0xff]
        %v5898 = vld [vmem:[%s3 + $0x8] sm:$0xff]
        %v5899 = vld [vmem:[%s3 + $0x10] sm:$0xff]
        %v5900 = vld [vmem:[%s3 + $0x18] sm:$0xff]
        %v5901 = vld [vmem:[%s3 + $0x20] sm:$0xff]
        %v5902 = vld [vmem:[%s3 + $0x28] sm:$0xff]
        %v5903 = vld [vmem:[%s3 + $0x30] sm:$0xff]
        %v5904 = vld [vmem:[%s3 + $0x38] sm:$0xff]
        %v5905 = vld [vmem:[%s3 + $0x40] sm:$0xff]
        %v5906 = vld [vmem:[%s3 + $0x48] sm:$0xff]
        %v5907 = vld [vmem:[%s3 + $0x50] sm:$0xff]
        %v5908 = vld [vmem:[%s3 + $0x58] sm:$0xff]
        %v5909 = vld [vmem:[%s3 + $0x60] sm:$0xff]
        %v5910 = vld [vmem:[%s3 + $0x68] sm:$0xff]
        %v5911 = vld [vmem:[%s3 + $0x70] sm:$0xff]
        %v5912 = vld [vmem:[%s3 + $0x78] sm:$0xff]
        %v5913 = vld [vmem:[%s1447] sm:$0xff]
        %v5914 = vld [vmem:[%s1447 + $0x8] sm:$0xff]
        %v5915 = vld [vmem:[%s1447 + $0x10] sm:$0xff]
        %v5916 = vld [vmem:[%s1447 + $0x18] sm:$0xff]
        %v5917 = vld [vmem:[%s1447 + $0x20] sm:$0xff]
        %v5918 = vld [vmem:[%s1447 + $0x28] sm:$0xff]
        %v5919 = vld [vmem:[%s1447 + $0x30] sm:$0xff]
        %v5920 = vld [vmem:[%s1447 + $0x38] sm:$0xff]
        %v5921 = vld [vmem:[%s1447 + $0x40] sm:$0xff]
        %v5922 = vld [vmem:[%s1447 + $0x48] sm:$0xff]
        %v5923 = vld [vmem:[%s1447 + $0x50] sm:$0xff]
        %v5924 = vld [vmem:[%s1447 + $0x58] sm:$0xff]
        %v5925 = vld [vmem:[%s1447 + $0x60] sm:$0xff]
        %v5926 = vld [vmem:[%s1447 + $0x68] sm:$0xff]
        %v5927 = vld [vmem:[%s1447 + $0x70] sm:$0xff]
        %v5928 = vld [vmem:[%s1447 + $0x78] sm:$0xff]
        %v5937 = vunpack.c.l.b16 %v5889
        %v5938 = vunpack.c.l.b16 %v5890
        %v5939 = vunpack.c.l.b16 %v5891
        %v5940 = vunpack.c.l.b16 %v5892
        %v5941 = vunpack.c.l.b16 %v5893
        %v5942 = vunpack.c.l.b16 %v5894
        %v5943 = vunpack.c.l.b16 %v5895
        %v5944 = vunpack.c.l.b16 %v5896
        %v5945 = vrot.slane %v5937, 1
        %v5946 = vsel %vm1481, %v5938, %v5945
        %v5947 = vrot.slane %v5939, 7
        %v5948 = vsel %vm1484, %v5947, %v5946
        %v5949 = vrot.slane %v5940, 6
        %v5950 = vsel %vm1487, %v5949, %v5948
        %v5951 = vrot.slane %v5941, 5
        %v5952 = vsel %vm1490, %v5951, %v5950
        %v5953 = vrot.slane %v5942, 4
        %v5954 = vsel %vm1493, %v5953, %v5952
        %v5955 = vrot.slane %v5943, 3
        %v5956 = vsel %vm1496, %v5955, %v5954
        %v5957 = vrot.slane %v5944, 2
        %v5958 = vsel %vm1499, %v5957, %v5956
        %v5959 = vpack.c.b16 %v5958, %v5958
        %v5977 = vunpack.c.l.b16 %v5913
        %v5978 = vunpack.c.h.b16 %v5913
        %v5979 = vunpack.c.l.b16 %v5914
        %v5980 = vunpack.c.h.b16 %v5914
        %v5981 = vunpack.c.l.b16 %v5915
        %v5982 = vunpack.c.h.b16 %v5915
        %v5983 = vunpack.c.l.b16 %v5916
        %v5984 = vunpack.c.h.b16 %v5916
        %v5985 = vunpack.c.l.b16 %v5917
        %v5986 = vunpack.c.h.b16 %v5917
        %v5987 = vunpack.c.l.b16 %v5918
        %v5988 = vunpack.c.h.b16 %v5918
        %v5989 = vunpack.c.l.b16 %v5919
        %v5990 = vunpack.c.h.b16 %v5919
        %v5991 = vunpack.c.l.b16 %v5920
        %v5992 = vunpack.c.h.b16 %v5920
        %v5993 = vunpack.c.l.b16 %v5921
        %v5994 = vunpack.c.h.b16 %v5921
        %v5995 = vunpack.c.l.b16 %v5922
        %v5996 = vunpack.c.h.b16 %v5922
        %v5997 = vunpack.c.l.b16 %v5923
        %v5998 = vunpack.c.h.b16 %v5923
        %v5999 = vunpack.c.l.b16 %v5924
        %v6000 = vunpack.c.h.b16 %v5924
        %v6001 = vunpack.c.l.b16 %v5925
        %v6002 = vunpack.c.h.b16 %v5925
        %v6003 = vunpack.c.l.b16 %v5926
        %v6004 = vunpack.c.h.b16 %v5926
        %v6005 = vunpack.c.l.b16 %v5927
        %v6006 = vunpack.c.h.b16 %v5927
        %v6007 = vunpack.c.l.b16 %v5928
        %v6008 = vunpack.c.h.b16 %v5928
        %v6009 = vpack.c.b16 %v5979, %v5977
        %v6010 = vpack.c.b16 %v5980, %v5978
        %v6011 = vpack.c.b16 %v5983, %v5981
        %v6012 = vpack.c.b16 %v5984, %v5982
        %v6013 = vpack.c.b16 %v5987, %v5985
        %v6014 = vpack.c.b16 %v5988, %v5986
        %v6015 = vpack.c.b16 %v5991, %v5989
        %v6016 = vpack.c.b16 %v5992, %v5990
        %v6017 = vpack.c.b16 %v5995, %v5993
        %v6018 = vpack.c.b16 %v5996, %v5994
        %v6019 = vpack.c.b16 %v5999, %v5997
        %v6020 = vpack.c.b16 %v6000, %v5998
        %v6021 = vpack.c.b16 %v6003, %v6001
        %v6022 = vpack.c.b16 %v6004, %v6002
        %v6023 = vpack.c.b16 %v6007, %v6005
        %v6024 = vpack.c.b16 %v6008, %v6006
        %6041 = vmatpush.bf16.msra.mxu0 %v6023
        %6042 = vmatpush.bf16.msra.mxu0 %v6021
        %6043 = vmatpush.bf16.msra.mxu0 %v6019
        %6044 = vmatpush.bf16.msra.mxu0 %v6017
        %6045 = vmatpush.bf16.msra.mxu0 %v6015
        %6046 = vmatpush.bf16.msra.mxu0 %v6013
        %6047 = vmatpush.bf16.msra.mxu0 %v6011
        %6048 = vmatpush.bf16.msra.mxu0 %v6009
        %6049 = vmatmul.bf16.gmra.mxu0 %v5959
        %v6050 = vpop.f32.mrf.mxu0
        %v6051 = vadd.f32 0.0, %v6050
        %v6052 = vpop.f32.mrf.mxu0
        %6053 = vdwg.mxu0
        %6054 = vmatpush.bf16.msra.mxu0 %v6024
        %6055 = vmatpush.bf16.msra.mxu0 %v6022
        %6056 = vmatpush.bf16.msra.mxu0 %v6020
        %6057 = vmatpush.bf16.msra.mxu0 %v6018
        %6058 = vmatpush.bf16.msra.mxu0 %v6016
        %6059 = vmatpush.bf16.msra.mxu0 %v6014
        %6060 = vmatpush.bf16.msra.mxu0 %v6012
        %6061 = vmatpush.bf16.msra.mxu0 %v6010
        %6062 = vmatmul.bf16.gmra.mxu0 %v5959
        %v6063 = vpop.f32.mrf.mxu0
        %v6064 = vadd.f32 0.0, %v6063
        %v6065 = vpop.f32.mrf.mxu0
        %6066 = vdwg.mxu0
        %v6067 = vrot.slane %v5938, 7
        %v6068 = vsel %vm1481, %v6067, %v5937
        %v6069 = vrot.slane %v5939, 6
        %v6070 = vsel %vm1484, %v6069, %v6068
        %v6071 = vrot.slane %v5940, 5
        %v6072 = vsel %vm1487, %v6071, %v6070
        %v6073 = vrot.slane %v5941, 4
        %v6074 = vsel %vm1490, %v6073, %v6072
        %v6075 = vrot.slane %v5942, 3
        %v6076 = vsel %vm1493, %v6075, %v6074
        %v6077 = vrot.slane %v5943, 2
        %v6078 = vsel %vm1496, %v6077, %v6076
        %v6079 = vrot.slane %v5944, 1
        %v6080 = vsel %vm1499, %v6079, %v6078
        %v6081 = vpack.c.b16 %v6080, %v6080
        %v6099 = vunpack.c.l.b16 %v5897
        %v6100 = vunpack.c.h.b16 %v5897
        %v6101 = vunpack.c.l.b16 %v5898
        %v6102 = vunpack.c.h.b16 %v5898
        %v6103 = vunpack.c.l.b16 %v5899
        %v6104 = vunpack.c.h.b16 %v5899
        %v6105 = vunpack.c.l.b16 %v5900
        %v6106 = vunpack.c.h.b16 %v5900
        %v6107 = vunpack.c.l.b16 %v5901
        %v6108 = vunpack.c.h.b16 %v5901
        %v6109 = vunpack.c.l.b16 %v5902
        %v6110 = vunpack.c.h.b16 %v5902
        %v6111 = vunpack.c.l.b16 %v5903
        %v6112 = vunpack.c.h.b16 %v5903
        %v6113 = vunpack.c.l.b16 %v5904
        %v6114 = vunpack.c.h.b16 %v5904
        %v6115 = vunpack.c.l.b16 %v5905
        %v6116 = vunpack.c.h.b16 %v5905
        %v6117 = vunpack.c.l.b16 %v5906
        %v6118 = vunpack.c.h.b16 %v5906
        %v6119 = vunpack.c.l.b16 %v5907
        %v6120 = vunpack.c.h.b16 %v5907
        %v6121 = vunpack.c.l.b16 %v5908
        %v6122 = vunpack.c.h.b16 %v5908
        %v6123 = vunpack.c.l.b16 %v5909
        %v6124 = vunpack.c.h.b16 %v5909
        %v6125 = vunpack.c.l.b16 %v5910
        %v6126 = vunpack.c.h.b16 %v5910
        %v6127 = vunpack.c.l.b16 %v5911
        %v6128 = vunpack.c.h.b16 %v5911
        %v6129 = vunpack.c.l.b16 %v5912
        %v6130 = vunpack.c.h.b16 %v5912
        %v6131 = vpack.c.b16 %v6101, %v6099
        %v6132 = vpack.c.b16 %v6102, %v6100
        %v6133 = vpack.c.b16 %v6105, %v6103
        %v6134 = vpack.c.b16 %v6106, %v6104
        %v6135 = vpack.c.b16 %v6109, %v6107
        %v6136 = vpack.c.b16 %v6110, %v6108
        %v6137 = vpack.c.b16 %v6113, %v6111
        %v6138 = vpack.c.b16 %v6114, %v6112
        %v6139 = vpack.c.b16 %v6117, %v6115
        %v6140 = vpack.c.b16 %v6118, %v6116
        %v6141 = vpack.c.b16 %v6121, %v6119
        %v6142 = vpack.c.b16 %v6122, %v6120
        %v6143 = vpack.c.b16 %v6125, %v6123
        %v6144 = vpack.c.b16 %v6126, %v6124
        %v6145 = vpack.c.b16 %v6129, %v6127
        %v6146 = vpack.c.b16 %v6130, %v6128
        %6163 = vmatpush.bf16.msra.mxu0 %v6145
        %6164 = vmatpush.bf16.msra.mxu0 %v6143
        %6165 = vmatpush.bf16.msra.mxu0 %v6141
        %6166 = vmatpush.bf16.msra.mxu0 %v6139
        %6167 = vmatpush.bf16.msra.mxu0 %v6137
        %6168 = vmatpush.bf16.msra.mxu0 %v6135
        %6169 = vmatpush.bf16.msra.mxu0 %v6133
        %6170 = vmatpush.bf16.msra.mxu0 %v6131
        %6171 = vmatmul.bf16.gmra.mxu0 %v6081
        %v6172 = vpop.f32.mrf.mxu0
        %v6173 = vadd.f32 %v6051, %v6172
        %v6174 = vpop.f32.mrf.mxu0
        %6175 = vdwg.mxu0
        %6176 = vmatpush.bf16.msra.mxu0 %v6146
        %6177 = vmatpush.bf16.msra.mxu0 %v6144
        %6178 = vmatpush.bf16.msra.mxu0 %v6142
        %6179 = vmatpush.bf16.msra.mxu0 %v6140
        %6180 = vmatpush.bf16.msra.mxu0 %v6138
        %6181 = vmatpush.bf16.msra.mxu0 %v6136
        %6182 = vmatpush.bf16.msra.mxu0 %v6134
        %6183 = vmatpush.bf16.msra.mxu0 %v6132
        %6184 = vmatmul.bf16.gmra.mxu0 %v6081
        %v6185 = vpop.f32.mrf.mxu0
        %v6186 = vadd.f32 %v6064, %v6185
        %v6187 = vpop.f32.mrf.mxu0
        %6188 = vdwg.mxu0
        %v6189 = vld [vmem:[%s1731] sm:$0xff]
        %v6190 = vld [vmem:[%s1731 + $0x8] sm:$0xff]
        %v6191 = vld [vmem:[%s1731 + $0x10] sm:$0xff]
        %v6192 = vld [vmem:[%s1731 + $0x18] sm:$0xff]
        %v6193 = vld [vmem:[%s1731 + $0x20] sm:$0xff]
        %v6194 = vld [vmem:[%s1731 + $0x28] sm:$0xff]
        %v6195 = vld [vmem:[%s1731 + $0x30] sm:$0xff]
        %v6196 = vld [vmem:[%s1731 + $0x38] sm:$0xff]
        %v6197 = vld [vmem:[%s1731 + $0x40] sm:$0xff]
        %v6198 = vld [vmem:[%s1731 + $0x48] sm:$0xff]
        %v6199 = vld [vmem:[%s1731 + $0x50] sm:$0xff]
        %v6200 = vld [vmem:[%s1731 + $0x58] sm:$0xff]
        %v6201 = vld [vmem:[%s1731 + $0x60] sm:$0xff]
        %v6202 = vld [vmem:[%s1731 + $0x68] sm:$0xff]
        %v6203 = vld [vmem:[%s1731 + $0x70] sm:$0xff]
        %v6204 = vld [vmem:[%s1731 + $0x78] sm:$0xff]
        %v6205 = vrot.slane %v5937, 2
        %v6206 = vrot.slane %v5938, 1
        %v6207 = vsel %vm1481, %v6206, %v6205
        %v6208 = vsel %vm1484, %v5939, %v6207
        %v6209 = vrot.slane %v5940, 7
        %v6210 = vsel %vm1487, %v6209, %v6208
        %v6211 = vrot.slane %v5941, 6
        %v6212 = vsel %vm1490, %v6211, %v6210
        %v6213 = vrot.slane %v5942, 5
        %v6214 = vsel %vm1493, %v6213, %v6212
        %v6215 = vrot.slane %v5943, 4
        %v6216 = vsel %vm1496, %v6215, %v6214
        %v6217 = vrot.slane %v5944, 3
        %v6218 = vsel %vm1499, %v6217, %v6216
        %v6219 = vpack.c.b16 %v6218, %v6218
        %v6237 = vunpack.c.l.b16 %v6189
        %v6238 = vunpack.c.h.b16 %v6189
        %v6239 = vunpack.c.l.b16 %v6190
        %v6240 = vunpack.c.h.b16 %v6190
        %v6241 = vunpack.c.l.b16 %v6191
        %v6242 = vunpack.c.h.b16 %v6191
        %v6243 = vunpack.c.l.b16 %v6192
        %v6244 = vunpack.c.h.b16 %v6192
        %v6245 = vunpack.c.l.b16 %v6193
        %v6246 = vunpack.c.h.b16 %v6193
        %v6247 = vunpack.c.l.b16 %v6194
        %v6248 = vunpack.c.h.b16 %v6194
        %v6249 = vunpack.c.l.b16 %v6195
        %v6250 = vunpack.c.h.b16 %v6195
        %v6251 = vunpack.c.l.b16 %v6196
        %v6252 = vunpack.c.h.b16 %v6196
        %v6253 = vunpack.c.l.b16 %v6197
        %v6254 = vunpack.c.h.b16 %v6197
        %v6255 = vunpack.c.l.b16 %v6198
        %v6256 = vunpack.c.h.b16 %v6198
        %v6257 = vunpack.c.l.b16 %v6199
        %v6258 = vunpack.c.h.b16 %v6199
        %v6259 = vunpack.c.l.b16 %v6200
        %v6260 = vunpack.c.h.b16 %v6200
        %v6261 = vunpack.c.l.b16 %v6201
        %v6262 = vunpack.c.h.b16 %v6201
        %v6263 = vunpack.c.l.b16 %v6202
        %v6264 = vunpack.c.h.b16 %v6202
        %v6265 = vunpack.c.l.b16 %v6203
        %v6266 = vunpack.c.h.b16 %v6203
        %v6267 = vunpack.c.l.b16 %v6204
        %v6268 = vunpack.c.h.b16 %v6204
        %v6269 = vpack.c.b16 %v6239, %v6237
        %v6270 = vpack.c.b16 %v6240, %v6238
        %v6271 = vpack.c.b16 %v6243, %v6241
        %v6272 = vpack.c.b16 %v6244, %v6242
        %v6273 = vpack.c.b16 %v6247, %v6245
        %v6274 = vpack.c.b16 %v6248, %v6246
        %v6275 = vpack.c.b16 %v6251, %v6249
        %v6276 = vpack.c.b16 %v6252, %v6250
        %v6277 = vpack.c.b16 %v6255, %v6253
        %v6278 = vpack.c.b16 %v6256, %v6254
        %v6279 = vpack.c.b16 %v6259, %v6257
        %v6280 = vpack.c.b16 %v6260, %v6258
        %v6281 = vpack.c.b16 %v6263, %v6261
        %v6282 = vpack.c.b16 %v6264, %v6262
        %v6283 = vpack.c.b16 %v6267, %v6265
        %v6284 = vpack.c.b16 %v6268, %v6266
        %6301 = vmatpush.bf16.msra.mxu0 %v6283
        %6302 = vmatpush.bf16.msra.mxu0 %v6281
        %6303 = vmatpush.bf16.msra.mxu0 %v6279
        %6304 = vmatpush.bf16.msra.mxu0 %v6277
        %6305 = vmatpush.bf16.msra.mxu0 %v6275
        %6306 = vmatpush.bf16.msra.mxu0 %v6273
        %6307 = vmatpush.bf16.msra.mxu0 %v6271
        %6308 = vmatpush.bf16.msra.mxu0 %v6269
        %6309 = vmatmul.bf16.gmra.mxu0 %v6219
        %v6310 = vpop.f32.mrf.mxu0
        %v6311 = vadd.f32 0.0, %v6310
        %v6312 = vpop.f32.mrf.mxu0
        %6313 = vdwg.mxu0
        %6314 = vmatpush.bf16.msra.mxu0 %v6284
        %6315 = vmatpush.bf16.msra.mxu0 %v6282
        %6316 = vmatpush.bf16.msra.mxu0 %v6280
        %6317 = vmatpush.bf16.msra.mxu0 %v6278
        %6318 = vmatpush.bf16.msra.mxu0 %v6276
        %6319 = vmatpush.bf16.msra.mxu0 %v6274
        %6320 = vmatpush.bf16.msra.mxu0 %v6272
        %6321 = vmatpush.bf16.msra.mxu0 %v6270
        %6322 = vmatmul.bf16.gmra.mxu0 %v6219
        %v6323 = vpop.f32.mrf.mxu0
        %v6324 = vadd.f32 0.0, %v6323
        %v6325 = vpop.f32.mrf.mxu0
        %6326 = vdwg.mxu0
        %v6327 = vadd.f32 %v6173, %v6311
        %v6328 = vadd.f32 %v6186, %v6324
        %v6329 = vld [vmem:[%s1872] sm:$0xff]
        %v6330 = vld [vmem:[%s1872 + $0x8] sm:$0xff]
        %v6331 = vld [vmem:[%s1872 + $0x10] sm:$0xff]
        %v6332 = vld [vmem:[%s1872 + $0x18] sm:$0xff]
        %v6333 = vld [vmem:[%s1872 + $0x20] sm:$0xff]
        %v6334 = vld [vmem:[%s1872 + $0x28] sm:$0xff]
        %v6335 = vld [vmem:[%s1872 + $0x30] sm:$0xff]
        %v6336 = vld [vmem:[%s1872 + $0x38] sm:$0xff]
        %v6337 = vld [vmem:[%s1872 + $0x40] sm:$0xff]
        %v6338 = vld [vmem:[%s1872 + $0x48] sm:$0xff]
        %v6339 = vld [vmem:[%s1872 + $0x50] sm:$0xff]
        %v6340 = vld [vmem:[%s1872 + $0x58] sm:$0xff]
        %v6341 = vld [vmem:[%s1872 + $0x60] sm:$0xff]
        %v6342 = vld [vmem:[%s1872 + $0x68] sm:$0xff]
        %v6343 = vld [vmem:[%s1872 + $0x70] sm:$0xff]
        %v6344 = vld [vmem:[%s1872 + $0x78] sm:$0xff]
        %v6345 = vrot.slane %v5937, 3
        %v6346 = vrot.slane %v5938, 2
        %v6347 = vsel %vm1481, %v6346, %v6345
        %v6348 = vrot.slane %v5939, 1
        %v6349 = vsel %vm1484, %v6348, %v6347
        %v6350 = vsel %vm1487, %v5940, %v6349
        %v6351 = vrot.slane %v5941, 7
        %v6352 = vsel %vm1490, %v6351, %v6350
        %v6353 = vrot.slane %v5942, 6
        %v6354 = vsel %vm1493, %v6353, %v6352
        %v6355 = vrot.slane %v5943, 5
        %v6356 = vsel %vm1496, %v6355, %v6354
        %v6357 = vrot.slane %v5944, 4
        %v6358 = vsel %vm1499, %v6357, %v6356
        %v6359 = vpack.c.b16 %v6358, %v6358
        %v6377 = vunpack.c.l.b16 %v6329
        %v6378 = vunpack.c.h.b16 %v6329
        %v6379 = vunpack.c.l.b16 %v6330
        %v6380 = vunpack.c.h.b16 %v6330
        %v6381 = vunpack.c.l.b16 %v6331
        %v6382 = vunpack.c.h.b16 %v6331
        %v6383 = vunpack.c.l.b16 %v6332
        %v6384 = vunpack.c.h.b16 %v6332
        %v6385 = vunpack.c.l.b16 %v6333
        %v6386 = vunpack.c.h.b16 %v6333
        %v6387 = vunpack.c.l.b16 %v6334
        %v6388 = vunpack.c.h.b16 %v6334
        %v6389 = vunpack.c.l.b16 %v6335
        %v6390 = vunpack.c.h.b16 %v6335
        %v6391 = vunpack.c.l.b16 %v6336
        %v6392 = vunpack.c.h.b16 %v6336
        %v6393 = vunpack.c.l.b16 %v6337
        %v6394 = vunpack.c.h.b16 %v6337
        %v6395 = vunpack.c.l.b16 %v6338
        %v6396 = vunpack.c.h.b16 %v6338
        %v6397 = vunpack.c.l.b16 %v6339
        %v6398 = vunpack.c.h.b16 %v6339
        %v6399 = vunpack.c.l.b16 %v6340
        %v6400 = vunpack.c.h.b16 %v6340
        %v6401 = vunpack.c.l.b16 %v6341
        %v6402 = vunpack.c.h.b16 %v6341
        %v6403 = vunpack.c.l.b16 %v6342
        %v6404 = vunpack.c.h.b16 %v6342
        %v6405 = vunpack.c.l.b16 %v6343
        %v6406 = vunpack.c.h.b16 %v6343
        %v6407 = vunpack.c.l.b16 %v6344
        %v6408 = vunpack.c.h.b16 %v6344
        %v6409 = vpack.c.b16 %v6379, %v6377
        %v6410 = vpack.c.b16 %v6380, %v6378
        %v6411 = vpack.c.b16 %v6383, %v6381
        %v6412 = vpack.c.b16 %v6384, %v6382
        %v6413 = vpack.c.b16 %v6387, %v6385
        %v6414 = vpack.c.b16 %v6388, %v6386
        %v6415 = vpack.c.b16 %v6391, %v6389
        %v6416 = vpack.c.b16 %v6392, %v6390
        %v6417 = vpack.c.b16 %v6395, %v6393
        %v6418 = vpack.c.b16 %v6396, %v6394
        %v6419 = vpack.c.b16 %v6399, %v6397
        %v6420 = vpack.c.b16 %v6400, %v6398
        %v6421 = vpack.c.b16 %v6403, %v6401
        %v6422 = vpack.c.b16 %v6404, %v6402
        %v6423 = vpack.c.b16 %v6407, %v6405
        %v6424 = vpack.c.b16 %v6408, %v6406
        %6441 = vmatpush.bf16.msra.mxu0 %v6423
        %6442 = vmatpush.bf16.msra.mxu0 %v6421
        %6443 = vmatpush.bf16.msra.mxu0 %v6419
        %6444 = vmatpush.bf16.msra.mxu0 %v6417
        %6445 = vmatpush.bf16.msra.mxu0 %v6415
        %6446 = vmatpush.bf16.msra.mxu0 %v6413
        %6447 = vmatpush.bf16.msra.mxu0 %v6411
        %6448 = vmatpush.bf16.msra.mxu0 %v6409
        %6449 = vmatmul.bf16.gmra.mxu0 %v6359
        %v6450 = vpop.f32.mrf.mxu0
        %v6451 = vadd.f32 0.0, %v6450
        %v6452 = vpop.f32.mrf.mxu0
        %6453 = vdwg.mxu0
        %6454 = vmatpush.bf16.msra.mxu0 %v6424
        %6455 = vmatpush.bf16.msra.mxu0 %v6422
        %6456 = vmatpush.bf16.msra.mxu0 %v6420
        %6457 = vmatpush.bf16.msra.mxu0 %v6418
        %6458 = vmatpush.bf16.msra.mxu0 %v6416
        %6459 = vmatpush.bf16.msra.mxu0 %v6414
        %6460 = vmatpush.bf16.msra.mxu0 %v6412
        %6461 = vmatpush.bf16.msra.mxu0 %v6410
        %6462 = vmatmul.bf16.gmra.mxu0 %v6359
        %v6463 = vpop.f32.mrf.mxu0
        %v6464 = vadd.f32 0.0, %v6463
        %v6465 = vpop.f32.mrf.mxu0
        %6466 = vdwg.mxu0
        %v6467 = vadd.f32 %v6327, %v6451
        %v6468 = vadd.f32 %v6328, %v6464
        %v6469 = vld [vmem:[%s2013] sm:$0xff]
        %v6470 = vld [vmem:[%s2013 + $0x8] sm:$0xff]
        %v6471 = vld [vmem:[%s2013 + $0x10] sm:$0xff]
        %v6472 = vld [vmem:[%s2013 + $0x18] sm:$0xff]
        %v6473 = vld [vmem:[%s2013 + $0x20] sm:$0xff]
        %v6474 = vld [vmem:[%s2013 + $0x28] sm:$0xff]
        %v6475 = vld [vmem:[%s2013 + $0x30] sm:$0xff]
        %v6476 = vld [vmem:[%s2013 + $0x38] sm:$0xff]
        %v6477 = vld [vmem:[%s2013 + $0x40] sm:$0xff]
        %v6478 = vld [vmem:[%s2013 + $0x48] sm:$0xff]
        %v6479 = vld [vmem:[%s2013 + $0x50] sm:$0xff]
        %v6480 = vld [vmem:[%s2013 + $0x58] sm:$0xff]
        %v6481 = vld [vmem:[%s2013 + $0x60] sm:$0xff]
        %v6482 = vld [vmem:[%s2013 + $0x68] sm:$0xff]
        %v6483 = vld [vmem:[%s2013 + $0x70] sm:$0xff]
        %v6484 = vld [vmem:[%s2013 + $0x78] sm:$0xff]
        %v6485 = vrot.slane %v5937, 4
        %v6486 = vrot.slane %v5938, 3
        %v6487 = vsel %vm1481, %v6486, %v6485
        %v6488 = vrot.slane %v5939, 2
        %v6489 = vsel %vm1484, %v6488, %v6487
        %v6490 = vrot.slane %v5940, 1
        %v6491 = vsel %vm1487, %v6490, %v6489
        %v6492 = vsel %vm1490, %v5941, %v6491
        %v6493 = vrot.slane %v5942, 7
        %v6494 = vsel %vm1493, %v6493, %v6492
        %v6495 = vrot.slane %v5943, 6
        %v6496 = vsel %vm1496, %v6495, %v6494
        %v6497 = vrot.slane %v5944, 5
        %v6498 = vsel %vm1499, %v6497, %v6496
        %v6499 = vpack.c.b16 %v6498, %v6498
        %v6517 = vunpack.c.l.b16 %v6469
        %v6518 = vunpack.c.h.b16 %v6469
        %v6519 = vunpack.c.l.b16 %v6470
        %v6520 = vunpack.c.h.b16 %v6470
        %v6521 = vunpack.c.l.b16 %v6471
        %v6522 = vunpack.c.h.b16 %v6471
        %v6523 = vunpack.c.l.b16 %v6472
        %v6524 = vunpack.c.h.b16 %v6472
        %v6525 = vunpack.c.l.b16 %v6473
        %v6526 = vunpack.c.h.b16 %v6473
        %v6527 = vunpack.c.l.b16 %v6474
        %v6528 = vunpack.c.h.b16 %v6474
        %v6529 = vunpack.c.l.b16 %v6475
        %v6530 = vunpack.c.h.b16 %v6475
        %v6531 = vunpack.c.l.b16 %v6476
        %v6532 = vunpack.c.h.b16 %v6476
        %v6533 = vunpack.c.l.b16 %v6477
        %v6534 = vunpack.c.h.b16 %v6477
        %v6535 = vunpack.c.l.b16 %v6478
        %v6536 = vunpack.c.h.b16 %v6478
        %v6537 = vunpack.c.l.b16 %v6479
        %v6538 = vunpack.c.h.b16 %v6479
        %v6539 = vunpack.c.l.b16 %v6480
        %v6540 = vunpack.c.h.b16 %v6480
        %v6541 = vunpack.c.l.b16 %v6481
        %v6542 = vunpack.c.h.b16 %v6481
        %v6543 = vunpack.c.l.b16 %v6482
        %v6544 = vunpack.c.h.b16 %v6482
        %v6545 = vunpack.c.l.b16 %v6483
        %v6546 = vunpack.c.h.b16 %v6483
        %v6547 = vunpack.c.l.b16 %v6484
        %v6548 = vunpack.c.h.b16 %v6484
        %v6549 = vpack.c.b16 %v6519, %v6517
        %v6550 = vpack.c.b16 %v6520, %v6518
        %v6551 = vpack.c.b16 %v6523, %v6521
        %v6552 = vpack.c.b16 %v6524, %v6522
        %v6553 = vpack.c.b16 %v6527, %v6525
        %v6554 = vpack.c.b16 %v6528, %v6526
        %v6555 = vpack.c.b16 %v6531, %v6529
        %v6556 = vpack.c.b16 %v6532, %v6530
        %v6557 = vpack.c.b16 %v6535, %v6533
        %v6558 = vpack.c.b16 %v6536, %v6534
        %v6559 = vpack.c.b16 %v6539, %v6537
        %v6560 = vpack.c.b16 %v6540, %v6538
        %v6561 = vpack.c.b16 %v6543, %v6541
        %v6562 = vpack.c.b16 %v6544, %v6542
        %v6563 = vpack.c.b16 %v6547, %v6545
        %v6564 = vpack.c.b16 %v6548, %v6546
        %6581 = vmatpush.bf16.msra.mxu0 %v6563
        %6582 = vmatpush.bf16.msra.mxu0 %v6561
        %6583 = vmatpush.bf16.msra.mxu0 %v6559
        %6584 = vmatpush.bf16.msra.mxu0 %v6557
        %6585 = vmatpush.bf16.msra.mxu0 %v6555
        %6586 = vmatpush.bf16.msra.mxu0 %v6553
        %6587 = vmatpush.bf16.msra.mxu0 %v6551
        %6588 = vmatpush.bf16.msra.mxu0 %v6549
        %6589 = vmatmul.bf16.gmra.mxu0 %v6499
        %v6590 = vpop.f32.mrf.mxu0
        %v6591 = vadd.f32 0.0, %v6590
        %v6592 = vpop.f32.mrf.mxu0
        %6593 = vdwg.mxu0
        %6594 = vmatpush.bf16.msra.mxu0 %v6564
        %6595 = vmatpush.bf16.msra.mxu0 %v6562
        %6596 = vmatpush.bf16.msra.mxu0 %v6560
        %6597 = vmatpush.bf16.msra.mxu0 %v6558
        %6598 = vmatpush.bf16.msra.mxu0 %v6556
        %6599 = vmatpush.bf16.msra.mxu0 %v6554
        %6600 = vmatpush.bf16.msra.mxu0 %v6552
        %6601 = vmatpush.bf16.msra.mxu0 %v6550
        %6602 = vmatmul.bf16.gmra.mxu0 %v6499
        %v6603 = vpop.f32.mrf.mxu0
        %v6604 = vadd.f32 0.0, %v6603
        %v6605 = vpop.f32.mrf.mxu0
        %6606 = vdwg.mxu0
        %v6607 = vadd.f32 %v6467, %v6591
        %v6608 = vadd.f32 %v6468, %v6604
        %v6609 = vld [vmem:[%s2154] sm:$0xff]
        %v6610 = vld [vmem:[%s2154 + $0x8] sm:$0xff]
        %v6611 = vld [vmem:[%s2154 + $0x10] sm:$0xff]
        %v6612 = vld [vmem:[%s2154 + $0x18] sm:$0xff]
        %v6613 = vld [vmem:[%s2154 + $0x20] sm:$0xff]
        %v6614 = vld [vmem:[%s2154 + $0x28] sm:$0xff]
        %v6615 = vld [vmem:[%s2154 + $0x30] sm:$0xff]
        %v6616 = vld [vmem:[%s2154 + $0x38] sm:$0xff]
        %v6617 = vld [vmem:[%s2154 + $0x40] sm:$0xff]
        %v6618 = vld [vmem:[%s2154 + $0x48] sm:$0xff]
        %v6619 = vld [vmem:[%s2154 + $0x50] sm:$0xff]
        %v6620 = vld [vmem:[%s2154 + $0x58] sm:$0xff]
        %v6621 = vld [vmem:[%s2154 + $0x60] sm:$0xff]
        %v6622 = vld [vmem:[%s2154 + $0x68] sm:$0xff]
        %v6623 = vld [vmem:[%s2154 + $0x70] sm:$0xff]
        %v6624 = vld [vmem:[%s2154 + $0x78] sm:$0xff]
        %v6625 = vrot.slane %v5937, 5
        %v6626 = vrot.slane %v5938, 4
        %v6627 = vsel %vm1481, %v6626, %v6625
        %v6628 = vrot.slane %v5939, 3
        %v6629 = vsel %vm1484, %v6628, %v6627
        %v6630 = vrot.slane %v5940, 2
        %v6631 = vsel %vm1487, %v6630, %v6629
        %v6632 = vrot.slane %v5941, 1
        %v6633 = vsel %vm1490, %v6632, %v6631
        %v6634 = vsel %vm1493, %v5942, %v6633
        %v6635 = vrot.slane %v5943, 7
        %v6636 = vsel %vm1496, %v6635, %v6634
        %v6637 = vrot.slane %v5944, 6
        %v6638 = vsel %vm1499, %v6637, %v6636
        %v6639 = vpack.c.b16 %v6638, %v6638
        %v6657 = vunpack.c.l.b16 %v6609
        %v6658 = vunpack.c.h.b16 %v6609
        %v6659 = vunpack.c.l.b16 %v6610
        %v6660 = vunpack.c.h.b16 %v6610
        %v6661 = vunpack.c.l.b16 %v6611
        %v6662 = vunpack.c.h.b16 %v6611
        %v6663 = vunpack.c.l.b16 %v6612
        %v6664 = vunpack.c.h.b16 %v6612
        %v6665 = vunpack.c.l.b16 %v6613
        %v6666 = vunpack.c.h.b16 %v6613
        %v6667 = vunpack.c.l.b16 %v6614
        %v6668 = vunpack.c.h.b16 %v6614
        %v6669 = vunpack.c.l.b16 %v6615
        %v6670 = vunpack.c.h.b16 %v6615
        %v6671 = vunpack.c.l.b16 %v6616
        %v6672 = vunpack.c.h.b16 %v6616
        %v6673 = vunpack.c.l.b16 %v6617
        %v6674 = vunpack.c.h.b16 %v6617
        %v6675 = vunpack.c.l.b16 %v6618
        %v6676 = vunpack.c.h.b16 %v6618
        %v6677 = vunpack.c.l.b16 %v6619
        %v6678 = vunpack.c.h.b16 %v6619
        %v6679 = vunpack.c.l.b16 %v6620
        %v6680 = vunpack.c.h.b16 %v6620
        %v6681 = vunpack.c.l.b16 %v6621
        %v6682 = vunpack.c.h.b16 %v6621
        %v6683 = vunpack.c.l.b16 %v6622
        %v6684 = vunpack.c.h.b16 %v6622
        %v6685 = vunpack.c.l.b16 %v6623
        %v6686 = vunpack.c.h.b16 %v6623
        %v6687 = vunpack.c.l.b16 %v6624
        %v6688 = vunpack.c.h.b16 %v6624
        %v6689 = vpack.c.b16 %v6659, %v6657
        %v6690 = vpack.c.b16 %v6660, %v6658
        %v6691 = vpack.c.b16 %v6663, %v6661
        %v6692 = vpack.c.b16 %v6664, %v6662
        %v6693 = vpack.c.b16 %v6667, %v6665
        %v6694 = vpack.c.b16 %v6668, %v6666
        %v6695 = vpack.c.b16 %v6671, %v6669
        %v6696 = vpack.c.b16 %v6672, %v6670
        %v6697 = vpack.c.b16 %v6675, %v6673
        %v6698 = vpack.c.b16 %v6676, %v6674
        %v6699 = vpack.c.b16 %v6679, %v6677
        %v6700 = vpack.c.b16 %v6680, %v6678
        %v6701 = vpack.c.b16 %v6683, %v6681
        %v6702 = vpack.c.b16 %v6684, %v6682
        %v6703 = vpack.c.b16 %v6687, %v6685
        %v6704 = vpack.c.b16 %v6688, %v6686
        %6721 = vmatpush.bf16.msra.mxu0 %v6703
        %6722 = vmatpush.bf16.msra.mxu0 %v6701
        %6723 = vmatpush.bf16.msra.mxu0 %v6699
        %6724 = vmatpush.bf16.msra.mxu0 %v6697
        %6725 = vmatpush.bf16.msra.mxu0 %v6695
        %6726 = vmatpush.bf16.msra.mxu0 %v6693
        %6727 = vmatpush.bf16.msra.mxu0 %v6691
        %6728 = vmatpush.bf16.msra.mxu0 %v6689
        %6729 = vmatmul.bf16.gmra.mxu0 %v6639
        %v6730 = vpop.f32.mrf.mxu0
        %v6731 = vadd.f32 0.0, %v6730
        %v6732 = vpop.f32.mrf.mxu0
        %6733 = vdwg.mxu0
        %6734 = vmatpush.bf16.msra.mxu0 %v6704
        %6735 = vmatpush.bf16.msra.mxu0 %v6702
        %6736 = vmatpush.bf16.msra.mxu0 %v6700
        %6737 = vmatpush.bf16.msra.mxu0 %v6698
        %6738 = vmatpush.bf16.msra.mxu0 %v6696
        %6739 = vmatpush.bf16.msra.mxu0 %v6694
        %6740 = vmatpush.bf16.msra.mxu0 %v6692
        %6741 = vmatpush.bf16.msra.mxu0 %v6690
        %6742 = vmatmul.bf16.gmra.mxu0 %v6639
        %v6743 = vpop.f32.mrf.mxu0
        %v6744 = vadd.f32 0.0, %v6743
        %v6745 = vpop.f32.mrf.mxu0
        %6746 = vdwg.mxu0
        %v6747 = vadd.f32 %v6607, %v6731
        %v6748 = vadd.f32 %v6608, %v6744
        %v6749 = vld [vmem:[%s2295] sm:$0xff]
        %v6750 = vld [vmem:[%s2295 + $0x8] sm:$0xff]
        %v6751 = vld [vmem:[%s2295 + $0x10] sm:$0xff]
        %v6752 = vld [vmem:[%s2295 + $0x18] sm:$0xff]
        %v6753 = vld [vmem:[%s2295 + $0x20] sm:$0xff]
        %v6754 = vld [vmem:[%s2295 + $0x28] sm:$0xff]
        %v6755 = vld [vmem:[%s2295 + $0x30] sm:$0xff]
        %v6756 = vld [vmem:[%s2295 + $0x38] sm:$0xff]
        %v6757 = vld [vmem:[%s2295 + $0x40] sm:$0xff]
        %v6758 = vld [vmem:[%s2295 + $0x48] sm:$0xff]
        %v6759 = vld [vmem:[%s2295 + $0x50] sm:$0xff]
        %v6760 = vld [vmem:[%s2295 + $0x58] sm:$0xff]
        %v6761 = vld [vmem:[%s2295 + $0x60] sm:$0xff]
        %v6762 = vld [vmem:[%s2295 + $0x68] sm:$0xff]
        %v6763 = vld [vmem:[%s2295 + $0x70] sm:$0xff]
        %v6764 = vld [vmem:[%s2295 + $0x78] sm:$0xff]
        %v6765 = vrot.slane %v5937, 6
        %v6766 = vrot.slane %v5938, 5
        %v6767 = vsel %vm1481, %v6766, %v6765
        %v6768 = vrot.slane %v5939, 4
        %v6769 = vsel %vm1484, %v6768, %v6767
        %v6770 = vrot.slane %v5940, 3
        %v6771 = vsel %vm1487, %v6770, %v6769
        %v6772 = vrot.slane %v5941, 2
        %v6773 = vsel %vm1490, %v6772, %v6771
        %v6774 = vrot.slane %v5942, 1
        %v6775 = vsel %vm1493, %v6774, %v6773
        %v6776 = vsel %vm1496, %v5943, %v6775
        %v6777 = vrot.slane %v5944, 7
        %v6778 = vsel %vm1499, %v6777, %v6776
        %v6779 = vpack.c.b16 %v6778, %v6778
        %v6797 = vunpack.c.l.b16 %v6749
        %v6798 = vunpack.c.h.b16 %v6749
        %v6799 = vunpack.c.l.b16 %v6750
        %v6800 = vunpack.c.h.b16 %v6750
        %v6801 = vunpack.c.l.b16 %v6751
        %v6802 = vunpack.c.h.b16 %v6751
        %v6803 = vunpack.c.l.b16 %v6752
        %v6804 = vunpack.c.h.b16 %v6752
        %v6805 = vunpack.c.l.b16 %v6753
        %v6806 = vunpack.c.h.b16 %v6753
        %v6807 = vunpack.c.l.b16 %v6754
        %v6808 = vunpack.c.h.b16 %v6754
        %v6809 = vunpack.c.l.b16 %v6755
        %v6810 = vunpack.c.h.b16 %v6755
        %v6811 = vunpack.c.l.b16 %v6756
        %v6812 = vunpack.c.h.b16 %v6756
        %v6813 = vunpack.c.l.b16 %v6757
        %v6814 = vunpack.c.h.b16 %v6757
        %v6815 = vunpack.c.l.b16 %v6758
        %v6816 = vunpack.c.h.b16 %v6758
        %v6817 = vunpack.c.l.b16 %v6759
        %v6818 = vunpack.c.h.b16 %v6759
        %v6819 = vunpack.c.l.b16 %v6760
        %v6820 = vunpack.c.h.b16 %v6760
        %v6821 = vunpack.c.l.b16 %v6761
        %v6822 = vunpack.c.h.b16 %v6761
        %v6823 = vunpack.c.l.b16 %v6762
        %v6824 = vunpack.c.h.b16 %v6762
        %v6825 = vunpack.c.l.b16 %v6763
        %v6826 = vunpack.c.h.b16 %v6763
        %v6827 = vunpack.c.l.b16 %v6764
        %v6828 = vunpack.c.h.b16 %v6764
        %v6829 = vpack.c.b16 %v6799, %v6797
        %v6830 = vpack.c.b16 %v6800, %v6798
        %v6831 = vpack.c.b16 %v6803, %v6801
        %v6832 = vpack.c.b16 %v6804, %v6802
        %v6833 = vpack.c.b16 %v6807, %v6805
        %v6834 = vpack.c.b16 %v6808, %v6806
        %v6835 = vpack.c.b16 %v6811, %v6809
        %v6836 = vpack.c.b16 %v6812, %v6810
        %v6837 = vpack.c.b16 %v6815, %v6813
        %v6838 = vpack.c.b16 %v6816, %v6814
        %v6839 = vpack.c.b16 %v6819, %v6817
        %v6840 = vpack.c.b16 %v6820, %v6818
        %v6841 = vpack.c.b16 %v6823, %v6821
        %v6842 = vpack.c.b16 %v6824, %v6822
        %v6843 = vpack.c.b16 %v6827, %v6825
        %v6844 = vpack.c.b16 %v6828, %v6826
        %6861 = vmatpush.bf16.msra.mxu0 %v6843
        %6862 = vmatpush.bf16.msra.mxu0 %v6841
        %6863 = vmatpush.bf16.msra.mxu0 %v6839
        %6864 = vmatpush.bf16.msra.mxu0 %v6837
        %6865 = vmatpush.bf16.msra.mxu0 %v6835
        %6866 = vmatpush.bf16.msra.mxu0 %v6833
        %6867 = vmatpush.bf16.msra.mxu0 %v6831
        %6868 = vmatpush.bf16.msra.mxu0 %v6829
        %6869 = vmatmul.bf16.gmra.mxu0 %v6779
        %v6870 = vpop.f32.mrf.mxu0
        %v6871 = vadd.f32 0.0, %v6870
        %v6872 = vpop.f32.mrf.mxu0
        %6873 = vdwg.mxu0
        %6874 = vmatpush.bf16.msra.mxu0 %v6844
        %6875 = vmatpush.bf16.msra.mxu0 %v6842
        %6876 = vmatpush.bf16.msra.mxu0 %v6840
        %6877 = vmatpush.bf16.msra.mxu0 %v6838
        %6878 = vmatpush.bf16.msra.mxu0 %v6836
        %6879 = vmatpush.bf16.msra.mxu0 %v6834
        %6880 = vmatpush.bf16.msra.mxu0 %v6832
        %6881 = vmatpush.bf16.msra.mxu0 %v6830
        %6882 = vmatmul.bf16.gmra.mxu0 %v6779
        %v6883 = vpop.f32.mrf.mxu0
        %v6884 = vadd.f32 0.0, %v6883
        %v6885 = vpop.f32.mrf.mxu0
        %6886 = vdwg.mxu0
        %v6887 = vadd.f32 %v6747, %v6871
        %v6888 = vadd.f32 %v6748, %v6884
        %v6889 = vld [vmem:[%s2436] sm:$0xff]
        %v6890 = vld [vmem:[%s2436 + $0x8] sm:$0xff]
        %v6891 = vld [vmem:[%s2436 + $0x10] sm:$0xff]
        %v6892 = vld [vmem:[%s2436 + $0x18] sm:$0xff]
        %v6893 = vld [vmem:[%s2436 + $0x20] sm:$0xff]
        %v6894 = vld [vmem:[%s2436 + $0x28] sm:$0xff]
        %v6895 = vld [vmem:[%s2436 + $0x30] sm:$0xff]
        %v6896 = vld [vmem:[%s2436 + $0x38] sm:$0xff]
        %v6897 = vld [vmem:[%s2436 + $0x40] sm:$0xff]
        %v6898 = vld [vmem:[%s2436 + $0x48] sm:$0xff]
        %v6899 = vld [vmem:[%s2436 + $0x50] sm:$0xff]
        %v6900 = vld [vmem:[%s2436 + $0x58] sm:$0xff]
        %v6901 = vld [vmem:[%s2436 + $0x60] sm:$0xff]
        %v6902 = vld [vmem:[%s2436 + $0x68] sm:$0xff]
        %v6903 = vld [vmem:[%s2436 + $0x70] sm:$0xff]
        %v6904 = vld [vmem:[%s2436 + $0x78] sm:$0xff]
        %v6905 = vrot.slane %v5937, 7
        %v6906 = vrot.slane %v5938, 6
        %v6907 = vsel %vm1481, %v6906, %v6905
        %v6908 = vrot.slane %v5939, 5
        %v6909 = vsel %vm1484, %v6908, %v6907
        %v6910 = vrot.slane %v5940, 4
        %v6911 = vsel %vm1487, %v6910, %v6909
        %v6912 = vrot.slane %v5941, 3
        %v6913 = vsel %vm1490, %v6912, %v6911
        %v6914 = vrot.slane %v5942, 2
        %v6915 = vsel %vm1493, %v6914, %v6913
        %v6916 = vrot.slane %v5943, 1
        %v6917 = vsel %vm1496, %v6916, %v6915
        %v6918 = vsel %vm1499, %v5944, %v6917
        %v6919 = vpack.c.b16 %v6918, %v6918
        %v6937 = vunpack.c.l.b16 %v6889
        %v6938 = vunpack.c.h.b16 %v6889
        %v6939 = vunpack.c.l.b16 %v6890
        %v6940 = vunpack.c.h.b16 %v6890
        %v6941 = vunpack.c.l.b16 %v6891
        %v6942 = vunpack.c.h.b16 %v6891
        %v6943 = vunpack.c.l.b16 %v6892
        %v6944 = vunpack.c.h.b16 %v6892
        %v6945 = vunpack.c.l.b16 %v6893
        %v6946 = vunpack.c.h.b16 %v6893
        %v6947 = vunpack.c.l.b16 %v6894
        %v6948 = vunpack.c.h.b16 %v6894
        %v6949 = vunpack.c.l.b16 %v6895
        %v6950 = vunpack.c.h.b16 %v6895
        %v6951 = vunpack.c.l.b16 %v6896
        %v6952 = vunpack.c.h.b16 %v6896
        %v6953 = vunpack.c.l.b16 %v6897
        %v6954 = vunpack.c.h.b16 %v6897
        %v6955 = vunpack.c.l.b16 %v6898
        %v6956 = vunpack.c.h.b16 %v6898
        %v6957 = vunpack.c.l.b16 %v6899
        %v6958 = vunpack.c.h.b16 %v6899
        %v6959 = vunpack.c.l.b16 %v6900
        %v6960 = vunpack.c.h.b16 %v6900
        %v6961 = vunpack.c.l.b16 %v6901
        %v6962 = vunpack.c.h.b16 %v6901
        %v6963 = vunpack.c.l.b16 %v6902
        %v6964 = vunpack.c.h.b16 %v6902
        %v6965 = vunpack.c.l.b16 %v6903
        %v6966 = vunpack.c.h.b16 %v6903
        %v6967 = vunpack.c.l.b16 %v6904
        %v6968 = vunpack.c.h.b16 %v6904
        %v6969 = vpack.c.b16 %v6939, %v6937
        %v6970 = vpack.c.b16 %v6940, %v6938
        %v6971 = vpack.c.b16 %v6943, %v6941
        %v6972 = vpack.c.b16 %v6944, %v6942
        %v6973 = vpack.c.b16 %v6947, %v6945
        %v6974 = vpack.c.b16 %v6948, %v6946
        %v6975 = vpack.c.b16 %v6951, %v6949
        %v6976 = vpack.c.b16 %v6952, %v6950
        %v6977 = vpack.c.b16 %v6955, %v6953
        %v6978 = vpack.c.b16 %v6956, %v6954
        %v6979 = vpack.c.b16 %v6959, %v6957
        %v6980 = vpack.c.b16 %v6960, %v6958
        %v6981 = vpack.c.b16 %v6963, %v6961
        %v6982 = vpack.c.b16 %v6964, %v6962
        %v6983 = vpack.c.b16 %v6967, %v6965
        %v6984 = vpack.c.b16 %v6968, %v6966
        %7001 = vmatpush.bf16.msra.mxu0 %v6983
        %7002 = vmatpush.bf16.msra.mxu0 %v6981
        %7003 = vmatpush.bf16.msra.mxu0 %v6979
        %7004 = vmatpush.bf16.msra.mxu0 %v6977
        %7005 = vmatpush.bf16.msra.mxu0 %v6975
        %7006 = vmatpush.bf16.msra.mxu0 %v6973
        %7007 = vmatpush.bf16.msra.mxu0 %v6971
        %7008 = vmatpush.bf16.msra.mxu0 %v6969
        %7009 = vmatmul.bf16.gmra.mxu0 %v6919
        %v7010 = vpop.f32.mrf.mxu0
        %v7011 = vadd.f32 0.0, %v7010
        %v7012 = vpop.f32.mrf.mxu0
        %7013 = vdwg.mxu0
        %7014 = vmatpush.bf16.msra.mxu0 %v6984
        %7015 = vmatpush.bf16.msra.mxu0 %v6982
        %7016 = vmatpush.bf16.msra.mxu0 %v6980
        %7017 = vmatpush.bf16.msra.mxu0 %v6978
        %7018 = vmatpush.bf16.msra.mxu0 %v6976
        %7019 = vmatpush.bf16.msra.mxu0 %v6974
        %7020 = vmatpush.bf16.msra.mxu0 %v6972
        %7021 = vmatpush.bf16.msra.mxu0 %v6970
        %7022 = vmatmul.bf16.gmra.mxu0 %v6919
        %v7023 = vpop.f32.mrf.mxu0
        %v7024 = vadd.f32 0.0, %v7023
        %v7025 = vpop.f32.mrf.mxu0
        %7026 = vdwg.mxu0
        %v7027 = vadd.f32 %v6887, %v7011
        %v7028 = vadd.f32 %v6888, %v7024
        %v7029 = vpack.c.bf16 %v5874, %v5874
        %v7030 = vpack.c.bf16 %v5876, %v5876
        %v7031 = vpack.c.bf16 %v5878, %v5878
        %v7032 = vpack.c.bf16 %v5880, %v5880
        %v7033 = vpack.c.bf16 %v5882, %v5882
        %v7034 = vpack.c.bf16 %v5884, %v5884
        %v7035 = vpack.c.bf16 %v5886, %v5886
        %v7036 = vpack.c.bf16 %v5888, %v5888
        %v7037 = vld [vmem:[%s2585] sm:$0xff]
        %v7038 = vld [vmem:[%s2585 + $0x8] sm:$0xff]
        %v7039 = vld [vmem:[%s2585 + $0x10] sm:$0xff]
        %v7040 = vld [vmem:[%s2585 + $0x18] sm:$0xff]
        %v7041 = vld [vmem:[%s2585 + $0x20] sm:$0xff]
        %v7042 = vld [vmem:[%s2585 + $0x28] sm:$0xff]
        %v7043 = vld [vmem:[%s2585 + $0x30] sm:$0xff]
        %v7044 = vld [vmem:[%s2585 + $0x38] sm:$0xff]
        %v7045 = vld [vmem:[%s2585 + $0x40] sm:$0xff]
        %v7046 = vld [vmem:[%s2585 + $0x48] sm:$0xff]
        %v7047 = vld [vmem:[%s2585 + $0x50] sm:$0xff]
        %v7048 = vld [vmem:[%s2585 + $0x58] sm:$0xff]
        %v7049 = vld [vmem:[%s2585 + $0x60] sm:$0xff]
        %v7050 = vld [vmem:[%s2585 + $0x68] sm:$0xff]
        %v7051 = vld [vmem:[%s2585 + $0x70] sm:$0xff]
        %v7052 = vld [vmem:[%s2585 + $0x78] sm:$0xff]
        %v7061 = vunpack.c.l.b16 %v7029
        %v7062 = vunpack.c.l.b16 %v7030
        %v7063 = vunpack.c.l.b16 %v7031
        %v7064 = vunpack.c.l.b16 %v7032
        %v7065 = vunpack.c.l.b16 %v7033
        %v7066 = vunpack.c.l.b16 %v7034
        %v7067 = vunpack.c.l.b16 %v7035
        %v7068 = vunpack.c.l.b16 %v7036
        %v7069 = vrot.slane %v7062, 7
        %v7070 = vsel %vm1481, %v7069, %v7061
        %v7071 = vrot.slane %v7063, 6
        %v7072 = vsel %vm1484, %v7071, %v7070
        %v7073 = vrot.slane %v7064, 5
        %v7074 = vsel %vm1487, %v7073, %v7072
        %v7075 = vrot.slane %v7065, 4
        %v7076 = vsel %vm1490, %v7075, %v7074
        %v7077 = vrot.slane %v7066, 3
        %v7078 = vsel %vm1493, %v7077, %v7076
        %v7079 = vrot.slane %v7067, 2
        %v7080 = vsel %vm1496, %v7079, %v7078
        %v7081 = vrot.slane %v7068, 1
        %v7082 = vsel %vm1499, %v7081, %v7080
        %v7083 = vpack.c.b16 %v7082, %v7082
        %v7101 = vunpack.c.l.b16 %v7037
        %v7102 = vunpack.c.h.b16 %v7037
        %v7103 = vunpack.c.l.b16 %v7038
        %v7104 = vunpack.c.h.b16 %v7038
        %v7105 = vunpack.c.l.b16 %v7039
        %v7106 = vunpack.c.h.b16 %v7039
        %v7107 = vunpack.c.l.b16 %v7040
        %v7108 = vunpack.c.h.b16 %v7040
        %v7109 = vunpack.c.l.b16 %v7041
        %v7110 = vunpack.c.h.b16 %v7041
        %v7111 = vunpack.c.l.b16 %v7042
        %v7112 = vunpack.c.h.b16 %v7042
        %v7113 = vunpack.c.l.b16 %v7043
        %v7114 = vunpack.c.h.b16 %v7043
        %v7115 = vunpack.c.l.b16 %v7044
        %v7116 = vunpack.c.h.b16 %v7044
        %v7117 = vunpack.c.l.b16 %v7045
        %v7118 = vunpack.c.h.b16 %v7045
        %v7119 = vunpack.c.l.b16 %v7046
        %v7120 = vunpack.c.h.b16 %v7046
        %v7121 = vunpack.c.l.b16 %v7047
        %v7122 = vunpack.c.h.b16 %v7047
        %v7123 = vunpack.c.l.b16 %v7048
        %v7124 = vunpack.c.h.b16 %v7048
        %v7125 = vunpack.c.l.b16 %v7049
        %v7126 = vunpack.c.h.b16 %v7049
        %v7127 = vunpack.c.l.b16 %v7050
        %v7128 = vunpack.c.h.b16 %v7050
        %v7129 = vunpack.c.l.b16 %v7051
        %v7130 = vunpack.c.h.b16 %v7051
        %v7131 = vunpack.c.l.b16 %v7052
        %v7132 = vunpack.c.h.b16 %v7052
        %v7133 = vpack.c.b16 %v7103, %v7101
        %v7134 = vpack.c.b16 %v7104, %v7102
        %v7135 = vpack.c.b16 %v7107, %v7105
        %v7136 = vpack.c.b16 %v7108, %v7106
        %v7137 = vpack.c.b16 %v7111, %v7109
        %v7138 = vpack.c.b16 %v7112, %v7110
        %v7139 = vpack.c.b16 %v7115, %v7113
        %v7140 = vpack.c.b16 %v7116, %v7114
        %v7141 = vpack.c.b16 %v7119, %v7117
        %v7142 = vpack.c.b16 %v7120, %v7118
        %v7143 = vpack.c.b16 %v7123, %v7121
        %v7144 = vpack.c.b16 %v7124, %v7122
        %v7145 = vpack.c.b16 %v7127, %v7125
        %v7146 = vpack.c.b16 %v7128, %v7126
        %v7147 = vpack.c.b16 %v7131, %v7129
        %v7148 = vpack.c.b16 %v7132, %v7130
        %7165 = vmatpush.bf16.msra.mxu0 %v7147
        %7166 = vmatpush.bf16.msra.mxu0 %v7145
        %7167 = vmatpush.bf16.msra.mxu0 %v7143
        %7168 = vmatpush.bf16.msra.mxu0 %v7141
        %7169 = vmatpush.bf16.msra.mxu0 %v7139
        %7170 = vmatpush.bf16.msra.mxu0 %v7137
        %7171 = vmatpush.bf16.msra.mxu0 %v7135
        %7172 = vmatpush.bf16.msra.mxu0 %v7133
        %7173 = vmatmul.bf16.gmra.mxu0 %v7083
        %v7174 = vpop.f32.mrf.mxu0
        %v7175 = vadd.f32 0.0, %v7174
        %v7176 = vpop.f32.mrf.mxu0
        %7177 = vdwg.mxu0
        %7178 = vmatpush.bf16.msra.mxu0 %v7148
        %7179 = vmatpush.bf16.msra.mxu0 %v7146
        %7180 = vmatpush.bf16.msra.mxu0 %v7144
        %7181 = vmatpush.bf16.msra.mxu0 %v7142
        %7182 = vmatpush.bf16.msra.mxu0 %v7140
        %7183 = vmatpush.bf16.msra.mxu0 %v7138
        %7184 = vmatpush.bf16.msra.mxu0 %v7136
        %7185 = vmatpush.bf16.msra.mxu0 %v7134
        %7186 = vmatmul.bf16.gmra.mxu0 %v7083
        %v7187 = vpop.f32.mrf.mxu0
        %v7188 = vadd.f32 0.0, %v7187
        %v7189 = vpop.f32.mrf.mxu0
        %7190 = vdwg.mxu0
        %v7191 = vadd.f32 %v7027, %v7175
        %v7192 = vadd.f32 %v7028, %v7188
        %v7193 = vld [vmem:[%s2742] sm:$0xff]
        %v7194 = vld [vmem:[%s2742 + $0x8] sm:$0xff]
        %v7195 = vld [vmem:[%s2742 + $0x10] sm:$0xff]
        %v7196 = vld [vmem:[%s2742 + $0x18] sm:$0xff]
        %v7197 = vld [vmem:[%s2742 + $0x20] sm:$0xff]
        %v7198 = vld [vmem:[%s2742 + $0x28] sm:$0xff]
        %v7199 = vld [vmem:[%s2742 + $0x30] sm:$0xff]
        %v7200 = vld [vmem:[%s2742 + $0x38] sm:$0xff]
        %v7201 = vld [vmem:[%s2742 + $0x40] sm:$0xff]
        %v7202 = vld [vmem:[%s2742 + $0x48] sm:$0xff]
        %v7203 = vld [vmem:[%s2742 + $0x50] sm:$0xff]
        %v7204 = vld [vmem:[%s2742 + $0x58] sm:$0xff]
        %v7205 = vld [vmem:[%s2742 + $0x60] sm:$0xff]
        %v7206 = vld [vmem:[%s2742 + $0x68] sm:$0xff]
        %v7207 = vld [vmem:[%s2742 + $0x70] sm:$0xff]
        %v7208 = vld [vmem:[%s2742 + $0x78] sm:$0xff]
        %v7209 = vrot.slane %v7061, 1
        %v7210 = vsel %vm1481, %v7062, %v7209
        %v7211 = vrot.slane %v7063, 7
        %v7212 = vsel %vm1484, %v7211, %v7210
        %v7213 = vrot.slane %v7064, 6
        %v7214 = vsel %vm1487, %v7213, %v7212
        %v7215 = vrot.slane %v7065, 5
        %v7216 = vsel %vm1490, %v7215, %v7214
        %v7217 = vrot.slane %v7066, 4
        %v7218 = vsel %vm1493, %v7217, %v7216
        %v7219 = vrot.slane %v7067, 3
        %v7220 = vsel %vm1496, %v7219, %v7218
        %v7221 = vrot.slane %v7068, 2
        %v7222 = vsel %vm1499, %v7221, %v7220
        %v7223 = vpack.c.b16 %v7222, %v7222
        %v7241 = vunpack.c.l.b16 %v7193
        %v7242 = vunpack.c.h.b16 %v7193
        %v7243 = vunpack.c.l.b16 %v7194
        %v7244 = vunpack.c.h.b16 %v7194
        %v7245 = vunpack.c.l.b16 %v7195
        %v7246 = vunpack.c.h.b16 %v7195
        %v7247 = vunpack.c.l.b16 %v7196
        %v7248 = vunpack.c.h.b16 %v7196
        %v7249 = vunpack.c.l.b16 %v7197
        %v7250 = vunpack.c.h.b16 %v7197
        %v7251 = vunpack.c.l.b16 %v7198
        %v7252 = vunpack.c.h.b16 %v7198
        %v7253 = vunpack.c.l.b16 %v7199
        %v7254 = vunpack.c.h.b16 %v7199
        %v7255 = vunpack.c.l.b16 %v7200
        %v7256 = vunpack.c.h.b16 %v7200
        %v7257 = vunpack.c.l.b16 %v7201
        %v7258 = vunpack.c.h.b16 %v7201
        %v7259 = vunpack.c.l.b16 %v7202
        %v7260 = vunpack.c.h.b16 %v7202
        %v7261 = vunpack.c.l.b16 %v7203
        %v7262 = vunpack.c.h.b16 %v7203
        %v7263 = vunpack.c.l.b16 %v7204
        %v7264 = vunpack.c.h.b16 %v7204
        %v7265 = vunpack.c.l.b16 %v7205
        %v7266 = vunpack.c.h.b16 %v7205
        %v7267 = vunpack.c.l.b16 %v7206
        %v7268 = vunpack.c.h.b16 %v7206
        %v7269 = vunpack.c.l.b16 %v7207
        %v7270 = vunpack.c.h.b16 %v7207
        %v7271 = vunpack.c.l.b16 %v7208
        %v7272 = vunpack.c.h.b16 %v7208
        %v7273 = vpack.c.b16 %v7243, %v7241
        %v7274 = vpack.c.b16 %v7244, %v7242
        %v7275 = vpack.c.b16 %v7247, %v7245
        %v7276 = vpack.c.b16 %v7248, %v7246
        %v7277 = vpack.c.b16 %v7251, %v7249
        %v7278 = vpack.c.b16 %v7252, %v7250
        %v7279 = vpack.c.b16 %v7255, %v7253
        %v7280 = vpack.c.b16 %v7256, %v7254
        %v7281 = vpack.c.b16 %v7259, %v7257
        %v7282 = vpack.c.b16 %v7260, %v7258
        %v7283 = vpack.c.b16 %v7263, %v7261
        %v7284 = vpack.c.b16 %v7264, %v7262
        %v7285 = vpack.c.b16 %v7267, %v7265
        %v7286 = vpack.c.b16 %v7268, %v7266
        %v7287 = vpack.c.b16 %v7271, %v7269
        %v7288 = vpack.c.b16 %v7272, %v7270
        %7305 = vmatpush.bf16.msra.mxu0 %v7287
        %7306 = vmatpush.bf16.msra.mxu0 %v7285
        %7307 = vmatpush.bf16.msra.mxu0 %v7283
        %7308 = vmatpush.bf16.msra.mxu0 %v7281
        %7309 = vmatpush.bf16.msra.mxu0 %v7279
        %7310 = vmatpush.bf16.msra.mxu0 %v7277
        %7311 = vmatpush.bf16.msra.mxu0 %v7275
        %7312 = vmatpush.bf16.msra.mxu0 %v7273
        %7313 = vmatmul.bf16.gmra.mxu0 %v7223
        %v7314 = vpop.f32.mrf.mxu0
        %v7315 = vadd.f32 0.0, %v7314
        %v7316 = vpop.f32.mrf.mxu0
        %7317 = vdwg.mxu0
        %7318 = vmatpush.bf16.msra.mxu0 %v7288
        %7319 = vmatpush.bf16.msra.mxu0 %v7286
        %7320 = vmatpush.bf16.msra.mxu0 %v7284
        %7321 = vmatpush.bf16.msra.mxu0 %v7282
        %7322 = vmatpush.bf16.msra.mxu0 %v7280
        %7323 = vmatpush.bf16.msra.mxu0 %v7278
        %7324 = vmatpush.bf16.msra.mxu0 %v7276
        %7325 = vmatpush.bf16.msra.mxu0 %v7274
        %7326 = vmatmul.bf16.gmra.mxu0 %v7223
        %v7327 = vpop.f32.mrf.mxu0
        %v7328 = vadd.f32 0.0, %v7327
        %v7329 = vpop.f32.mrf.mxu0
        %7330 = vdwg.mxu0
        %v7331 = vadd.f32 %v7191, %v7315
        %v7332 = vadd.f32 %v7192, %v7328
        %v7333 = vld [vmem:[%s2883] sm:$0xff]
        %v7334 = vld [vmem:[%s2883 + $0x8] sm:$0xff]
        %v7335 = vld [vmem:[%s2883 + $0x10] sm:$0xff]
        %v7336 = vld [vmem:[%s2883 + $0x18] sm:$0xff]
        %v7337 = vld [vmem:[%s2883 + $0x20] sm:$0xff]
        %v7338 = vld [vmem:[%s2883 + $0x28] sm:$0xff]
        %v7339 = vld [vmem:[%s2883 + $0x30] sm:$0xff]
        %v7340 = vld [vmem:[%s2883 + $0x38] sm:$0xff]
        %v7341 = vld [vmem:[%s2883 + $0x40] sm:$0xff]
        %v7342 = vld [vmem:[%s2883 + $0x48] sm:$0xff]
        %v7343 = vld [vmem:[%s2883 + $0x50] sm:$0xff]
        %v7344 = vld [vmem:[%s2883 + $0x58] sm:$0xff]
        %v7345 = vld [vmem:[%s2883 + $0x60] sm:$0xff]
        %v7346 = vld [vmem:[%s2883 + $0x68] sm:$0xff]
        %v7347 = vld [vmem:[%s2883 + $0x70] sm:$0xff]
        %v7348 = vld [vmem:[%s2883 + $0x78] sm:$0xff]
        %v7349 = vrot.slane %v7061, 2
        %v7350 = vrot.slane %v7062, 1
        %v7351 = vsel %vm1481, %v7350, %v7349
        %v7352 = vsel %vm1484, %v7063, %v7351
        %v7353 = vrot.slane %v7064, 7
        %v7354 = vsel %vm1487, %v7353, %v7352
        %v7355 = vrot.slane %v7065, 6
        %v7356 = vsel %vm1490, %v7355, %v7354
        %v7357 = vrot.slane %v7066, 5
        %v7358 = vsel %vm1493, %v7357, %v7356
        %v7359 = vrot.slane %v7067, 4
        %v7360 = vsel %vm1496, %v7359, %v7358
        %v7361 = vrot.slane %v7068, 3
        %v7362 = vsel %vm1499, %v7361, %v7360
        %v7363 = vpack.c.b16 %v7362, %v7362
        %v7381 = vunpack.c.l.b16 %v7333
        %v7382 = vunpack.c.h.b16 %v7333
        %v7383 = vunpack.c.l.b16 %v7334
        %v7384 = vunpack.c.h.b16 %v7334
        %v7385 = vunpack.c.l.b16 %v7335
        %v7386 = vunpack.c.h.b16 %v7335
        %v7387 = vunpack.c.l.b16 %v7336
        %v7388 = vunpack.c.h.b16 %v7336
        %v7389 = vunpack.c.l.b16 %v7337
        %v7390 = vunpack.c.h.b16 %v7337
        %v7391 = vunpack.c.l.b16 %v7338
        %v7392 = vunpack.c.h.b16 %v7338
        %v7393 = vunpack.c.l.b16 %v7339
        %v7394 = vunpack.c.h.b16 %v7339
        %v7395 = vunpack.c.l.b16 %v7340
        %v7396 = vunpack.c.h.b16 %v7340
        %v7397 = vunpack.c.l.b16 %v7341
        %v7398 = vunpack.c.h.b16 %v7341
        %v7399 = vunpack.c.l.b16 %v7342
        %v7400 = vunpack.c.h.b16 %v7342
        %v7401 = vunpack.c.l.b16 %v7343
        %v7402 = vunpack.c.h.b16 %v7343
        %v7403 = vunpack.c.l.b16 %v7344
        %v7404 = vunpack.c.h.b16 %v7344
        %v7405 = vunpack.c.l.b16 %v7345
        %v7406 = vunpack.c.h.b16 %v7345
        %v7407 = vunpack.c.l.b16 %v7346
        %v7408 = vunpack.c.h.b16 %v7346
        %v7409 = vunpack.c.l.b16 %v7347
        %v7410 = vunpack.c.h.b16 %v7347
        %v7411 = vunpack.c.l.b16 %v7348
        %v7412 = vunpack.c.h.b16 %v7348
        %v7413 = vpack.c.b16 %v7383, %v7381
        %v7414 = vpack.c.b16 %v7384, %v7382
        %v7415 = vpack.c.b16 %v7387, %v7385
        %v7416 = vpack.c.b16 %v7388, %v7386
        %v7417 = vpack.c.b16 %v7391, %v7389
        %v7418 = vpack.c.b16 %v7392, %v7390
        %v7419 = vpack.c.b16 %v7395, %v7393
        %v7420 = vpack.c.b16 %v7396, %v7394
        %v7421 = vpack.c.b16 %v7399, %v7397
        %v7422 = vpack.c.b16 %v7400, %v7398
        %v7423 = vpack.c.b16 %v7403, %v7401
        %v7424 = vpack.c.b16 %v7404, %v7402
        %v7425 = vpack.c.b16 %v7407, %v7405
        %v7426 = vpack.c.b16 %v7408, %v7406
        %v7427 = vpack.c.b16 %v7411, %v7409
        %v7428 = vpack.c.b16 %v7412, %v7410
        %7445 = vmatpush.bf16.msra.mxu0 %v7427
        %7446 = vmatpush.bf16.msra.mxu0 %v7425
        %7447 = vmatpush.bf16.msra.mxu0 %v7423
        %7448 = vmatpush.bf16.msra.mxu0 %v7421
        %7449 = vmatpush.bf16.msra.mxu0 %v7419
        %7450 = vmatpush.bf16.msra.mxu0 %v7417
        %7451 = vmatpush.bf16.msra.mxu0 %v7415
        %7452 = vmatpush.bf16.msra.mxu0 %v7413
        %7453 = vmatmul.bf16.gmra.mxu0 %v7363
        %v7454 = vpop.f32.mrf.mxu0
        %v7455 = vadd.f32 0.0, %v7454
        %v7456 = vpop.f32.mrf.mxu0
        %7457 = vdwg.mxu0
        %7458 = vmatpush.bf16.msra.mxu0 %v7428
        %7459 = vmatpush.bf16.msra.mxu0 %v7426
        %7460 = vmatpush.bf16.msra.mxu0 %v7424
        %7461 = vmatpush.bf16.msra.mxu0 %v7422
        %7462 = vmatpush.bf16.msra.mxu0 %v7420
        %7463 = vmatpush.bf16.msra.mxu0 %v7418
        %7464 = vmatpush.bf16.msra.mxu0 %v7416
        %7465 = vmatpush.bf16.msra.mxu0 %v7414
        %7466 = vmatmul.bf16.gmra.mxu0 %v7363
        %v7467 = vpop.f32.mrf.mxu0
        %v7468 = vadd.f32 0.0, %v7467
        %v7469 = vpop.f32.mrf.mxu0
        %7470 = vdwg.mxu0
        %v7471 = vadd.f32 %v7331, %v7455
        %v7472 = vadd.f32 %v7332, %v7468
        %v7473 = vld [vmem:[%s3024] sm:$0xff]
        %v7474 = vld [vmem:[%s3024 + $0x8] sm:$0xff]
        %v7475 = vld [vmem:[%s3024 + $0x10] sm:$0xff]
        %v7476 = vld [vmem:[%s3024 + $0x18] sm:$0xff]
        %v7477 = vld [vmem:[%s3024 + $0x20] sm:$0xff]
        %v7478 = vld [vmem:[%s3024 + $0x28] sm:$0xff]
        %v7479 = vld [vmem:[%s3024 + $0x30] sm:$0xff]
        %v7480 = vld [vmem:[%s3024 + $0x38] sm:$0xff]
        %v7481 = vld [vmem:[%s3024 + $0x40] sm:$0xff]
        %v7482 = vld [vmem:[%s3024 + $0x48] sm:$0xff]
        %v7483 = vld [vmem:[%s3024 + $0x50] sm:$0xff]
        %v7484 = vld [vmem:[%s3024 + $0x58] sm:$0xff]
        %v7485 = vld [vmem:[%s3024 + $0x60] sm:$0xff]
        %v7486 = vld [vmem:[%s3024 + $0x68] sm:$0xff]
        %v7487 = vld [vmem:[%s3024 + $0x70] sm:$0xff]
        %v7488 = vld [vmem:[%s3024 + $0x78] sm:$0xff]
        %v7489 = vrot.slane %v7061, 3
        %v7490 = vrot.slane %v7062, 2
        %v7491 = vsel %vm1481, %v7490, %v7489
        %v7492 = vrot.slane %v7063, 1
        %v7493 = vsel %vm1484, %v7492, %v7491
        %v7494 = vsel %vm1487, %v7064, %v7493
        %v7495 = vrot.slane %v7065, 7
        %v7496 = vsel %vm1490, %v7495, %v7494
        %v7497 = vrot.slane %v7066, 6
        %v7498 = vsel %vm1493, %v7497, %v7496
        %v7499 = vrot.slane %v7067, 5
        %v7500 = vsel %vm1496, %v7499, %v7498
        %v7501 = vrot.slane %v7068, 4
        %v7502 = vsel %vm1499, %v7501, %v7500
        %v7503 = vpack.c.b16 %v7502, %v7502
        %v7521 = vunpack.c.l.b16 %v7473
        %v7522 = vunpack.c.h.b16 %v7473
        %v7523 = vunpack.c.l.b16 %v7474
        %v7524 = vunpack.c.h.b16 %v7474
        %v7525 = vunpack.c.l.b16 %v7475
        %v7526 = vunpack.c.h.b16 %v7475
        %v7527 = vunpack.c.l.b16 %v7476
        %v7528 = vunpack.c.h.b16 %v7476
        %v7529 = vunpack.c.l.b16 %v7477
        %v7530 = vunpack.c.h.b16 %v7477
        %v7531 = vunpack.c.l.b16 %v7478
        %v7532 = vunpack.c.h.b16 %v7478
        %v7533 = vunpack.c.l.b16 %v7479
        %v7534 = vunpack.c.h.b16 %v7479
        %v7535 = vunpack.c.l.b16 %v7480
        %v7536 = vunpack.c.h.b16 %v7480
        %v7537 = vunpack.c.l.b16 %v7481
        %v7538 = vunpack.c.h.b16 %v7481
        %v7539 = vunpack.c.l.b16 %v7482
        %v7540 = vunpack.c.h.b16 %v7482
        %v7541 = vunpack.c.l.b16 %v7483
        %v7542 = vunpack.c.h.b16 %v7483
        %v7543 = vunpack.c.l.b16 %v7484
        %v7544 = vunpack.c.h.b16 %v7484
        %v7545 = vunpack.c.l.b16 %v7485
        %v7546 = vunpack.c.h.b16 %v7485
        %v7547 = vunpack.c.l.b16 %v7486
        %v7548 = vunpack.c.h.b16 %v7486
        %v7549 = vunpack.c.l.b16 %v7487
        %v7550 = vunpack.c.h.b16 %v7487
        %v7551 = vunpack.c.l.b16 %v7488
        %v7552 = vunpack.c.h.b16 %v7488
        %v7553 = vpack.c.b16 %v7523, %v7521
        %v7554 = vpack.c.b16 %v7524, %v7522
        %v7555 = vpack.c.b16 %v7527, %v7525
        %v7556 = vpack.c.b16 %v7528, %v7526
        %v7557 = vpack.c.b16 %v7531, %v7529
        %v7558 = vpack.c.b16 %v7532, %v7530
        %v7559 = vpack.c.b16 %v7535, %v7533
        %v7560 = vpack.c.b16 %v7536, %v7534
        %v7561 = vpack.c.b16 %v7539, %v7537
        %v7562 = vpack.c.b16 %v7540, %v7538
        %v7563 = vpack.c.b16 %v7543, %v7541
        %v7564 = vpack.c.b16 %v7544, %v7542
        %v7565 = vpack.c.b16 %v7547, %v7545
        %v7566 = vpack.c.b16 %v7548, %v7546
        %v7567 = vpack.c.b16 %v7551, %v7549
        %v7568 = vpack.c.b16 %v7552, %v7550
        %7585 = vmatpush.bf16.msra.mxu0 %v7567
        %7586 = vmatpush.bf16.msra.mxu0 %v7565
        %7587 = vmatpush.bf16.msra.mxu0 %v7563
        %7588 = vmatpush.bf16.msra.mxu0 %v7561
        %7589 = vmatpush.bf16.msra.mxu0 %v7559
        %7590 = vmatpush.bf16.msra.mxu0 %v7557
        %7591 = vmatpush.bf16.msra.mxu0 %v7555
        %7592 = vmatpush.bf16.msra.mxu0 %v7553
        %7593 = vmatmul.bf16.gmra.mxu0 %v7503
        %v7594 = vpop.f32.mrf.mxu0
        %v7595 = vadd.f32 0.0, %v7594
        %v7596 = vpop.f32.mrf.mxu0
        %7597 = vdwg.mxu0
        %7598 = vmatpush.bf16.msra.mxu0 %v7568
        %7599 = vmatpush.bf16.msra.mxu0 %v7566
        %7600 = vmatpush.bf16.msra.mxu0 %v7564
        %7601 = vmatpush.bf16.msra.mxu0 %v7562
        %7602 = vmatpush.bf16.msra.mxu0 %v7560
        %7603 = vmatpush.bf16.msra.mxu0 %v7558
        %7604 = vmatpush.bf16.msra.mxu0 %v7556
        %7605 = vmatpush.bf16.msra.mxu0 %v7554
        %7606 = vmatmul.bf16.gmra.mxu0 %v7503
        %v7607 = vpop.f32.mrf.mxu0
        %v7608 = vadd.f32 0.0, %v7607
        %v7609 = vpop.f32.mrf.mxu0
        %7610 = vdwg.mxu0
        %v7611 = vadd.f32 %v7471, %v7595
        %v7612 = vadd.f32 %v7472, %v7608
        %v7613 = vld [vmem:[%s3165] sm:$0xff]
        %v7614 = vld [vmem:[%s3165 + $0x8] sm:$0xff]
        %v7615 = vld [vmem:[%s3165 + $0x10] sm:$0xff]
        %v7616 = vld [vmem:[%s3165 + $0x18] sm:$0xff]
        %v7617 = vld [vmem:[%s3165 + $0x20] sm:$0xff]
        %v7618 = vld [vmem:[%s3165 + $0x28] sm:$0xff]
        %v7619 = vld [vmem:[%s3165 + $0x30] sm:$0xff]
        %v7620 = vld [vmem:[%s3165 + $0x38] sm:$0xff]
        %v7621 = vld [vmem:[%s3165 + $0x40] sm:$0xff]
        %v7622 = vld [vmem:[%s3165 + $0x48] sm:$0xff]
        %v7623 = vld [vmem:[%s3165 + $0x50] sm:$0xff]
        %v7624 = vld [vmem:[%s3165 + $0x58] sm:$0xff]
        %v7625 = vld [vmem:[%s3165 + $0x60] sm:$0xff]
        %v7626 = vld [vmem:[%s3165 + $0x68] sm:$0xff]
        %v7627 = vld [vmem:[%s3165 + $0x70] sm:$0xff]
        %v7628 = vld [vmem:[%s3165 + $0x78] sm:$0xff]
        %v7629 = vrot.slane %v7061, 4
        %v7630 = vrot.slane %v7062, 3
        %v7631 = vsel %vm1481, %v7630, %v7629
        %v7632 = vrot.slane %v7063, 2
        %v7633 = vsel %vm1484, %v7632, %v7631
        %v7634 = vrot.slane %v7064, 1
        %v7635 = vsel %vm1487, %v7634, %v7633
        %v7636 = vsel %vm1490, %v7065, %v7635
        %v7637 = vrot.slane %v7066, 7
        %v7638 = vsel %vm1493, %v7637, %v7636
        %v7639 = vrot.slane %v7067, 6
        %v7640 = vsel %vm1496, %v7639, %v7638
        %v7641 = vrot.slane %v7068, 5
        %v7642 = vsel %vm1499, %v7641, %v7640
        %v7643 = vpack.c.b16 %v7642, %v7642
        %v7661 = vunpack.c.l.b16 %v7613
        %v7662 = vunpack.c.h.b16 %v7613
        %v7663 = vunpack.c.l.b16 %v7614
        %v7664 = vunpack.c.h.b16 %v7614
        %v7665 = vunpack.c.l.b16 %v7615
        %v7666 = vunpack.c.h.b16 %v7615
        %v7667 = vunpack.c.l.b16 %v7616
        %v7668 = vunpack.c.h.b16 %v7616
        %v7669 = vunpack.c.l.b16 %v7617
        %v7670 = vunpack.c.h.b16 %v7617
        %v7671 = vunpack.c.l.b16 %v7618
        %v7672 = vunpack.c.h.b16 %v7618
        %v7673 = vunpack.c.l.b16 %v7619
        %v7674 = vunpack.c.h.b16 %v7619
        %v7675 = vunpack.c.l.b16 %v7620
        %v7676 = vunpack.c.h.b16 %v7620
        %v7677 = vunpack.c.l.b16 %v7621
        %v7678 = vunpack.c.h.b16 %v7621
        %v7679 = vunpack.c.l.b16 %v7622
        %v7680 = vunpack.c.h.b16 %v7622
        %v7681 = vunpack.c.l.b16 %v7623
        %v7682 = vunpack.c.h.b16 %v7623
        %v7683 = vunpack.c.l.b16 %v7624
        %v7684 = vunpack.c.h.b16 %v7624
        %v7685 = vunpack.c.l.b16 %v7625
        %v7686 = vunpack.c.h.b16 %v7625
        %v7687 = vunpack.c.l.b16 %v7626
        %v7688 = vunpack.c.h.b16 %v7626
        %v7689 = vunpack.c.l.b16 %v7627
        %v7690 = vunpack.c.h.b16 %v7627
        %v7691 = vunpack.c.l.b16 %v7628
        %v7692 = vunpack.c.h.b16 %v7628
        %v7693 = vpack.c.b16 %v7663, %v7661
        %v7694 = vpack.c.b16 %v7664, %v7662
        %v7695 = vpack.c.b16 %v7667, %v7665
        %v7696 = vpack.c.b16 %v7668, %v7666
        %v7697 = vpack.c.b16 %v7671, %v7669
        %v7698 = vpack.c.b16 %v7672, %v7670
        %v7699 = vpack.c.b16 %v7675, %v7673
        %v7700 = vpack.c.b16 %v7676, %v7674
        %v7701 = vpack.c.b16 %v7679, %v7677
        %v7702 = vpack.c.b16 %v7680, %v7678
        %v7703 = vpack.c.b16 %v7683, %v7681
        %v7704 = vpack.c.b16 %v7684, %v7682
        %v7705 = vpack.c.b16 %v7687, %v7685
        %v7706 = vpack.c.b16 %v7688, %v7686
        %v7707 = vpack.c.b16 %v7691, %v7689
        %v7708 = vpack.c.b16 %v7692, %v7690
        %7725 = vmatpush.bf16.msra.mxu0 %v7707
        %7726 = vmatpush.bf16.msra.mxu0 %v7705
        %7727 = vmatpush.bf16.msra.mxu0 %v7703
        %7728 = vmatpush.bf16.msra.mxu0 %v7701
        %7729 = vmatpush.bf16.msra.mxu0 %v7699
        %7730 = vmatpush.bf16.msra.mxu0 %v7697
        %7731 = vmatpush.bf16.msra.mxu0 %v7695
        %7732 = vmatpush.bf16.msra.mxu0 %v7693
        %7733 = vmatmul.bf16.gmra.mxu0 %v7643
        %v7734 = vpop.f32.mrf.mxu0
        %v7735 = vadd.f32 0.0, %v7734
        %v7736 = vpop.f32.mrf.mxu0
        %7737 = vdwg.mxu0
        %7738 = vmatpush.bf16.msra.mxu0 %v7708
        %7739 = vmatpush.bf16.msra.mxu0 %v7706
        %7740 = vmatpush.bf16.msra.mxu0 %v7704
        %7741 = vmatpush.bf16.msra.mxu0 %v7702
        %7742 = vmatpush.bf16.msra.mxu0 %v7700
        %7743 = vmatpush.bf16.msra.mxu0 %v7698
        %7744 = vmatpush.bf16.msra.mxu0 %v7696
        %7745 = vmatpush.bf16.msra.mxu0 %v7694
        %7746 = vmatmul.bf16.gmra.mxu0 %v7643
        %v7747 = vpop.f32.mrf.mxu0
        %v7748 = vadd.f32 0.0, %v7747
        %v7749 = vpop.f32.mrf.mxu0
        %7750 = vdwg.mxu0
        %v7751 = vadd.f32 %v7611, %v7735
        %v7752 = vadd.f32 %v7612, %v7748
        %v7753 = vld [vmem:[%s3306] sm:$0xff]
        %v7754 = vld [vmem:[%s3306 + $0x8] sm:$0xff]
        %v7755 = vld [vmem:[%s3306 + $0x10] sm:$0xff]
        %v7756 = vld [vmem:[%s3306 + $0x18] sm:$0xff]
        %v7757 = vld [vmem:[%s3306 + $0x20] sm:$0xff]
        %v7758 = vld [vmem:[%s3306 + $0x28] sm:$0xff]
        %v7759 = vld [vmem:[%s3306 + $0x30] sm:$0xff]
        %v7760 = vld [vmem:[%s3306 + $0x38] sm:$0xff]
        %v7761 = vld [vmem:[%s3306 + $0x40] sm:$0xff]
        %v7762 = vld [vmem:[%s3306 + $0x48] sm:$0xff]
        %v7763 = vld [vmem:[%s3306 + $0x50] sm:$0xff]
        %v7764 = vld [vmem:[%s3306 + $0x58] sm:$0xff]
        %v7765 = vld [vmem:[%s3306 + $0x60] sm:$0xff]
        %v7766 = vld [vmem:[%s3306 + $0x68] sm:$0xff]
        %v7767 = vld [vmem:[%s3306 + $0x70] sm:$0xff]
        %v7768 = vld [vmem:[%s3306 + $0x78] sm:$0xff]
        %v7769 = vrot.slane %v7061, 5
        %v7770 = vrot.slane %v7062, 4
        %v7771 = vsel %vm1481, %v7770, %v7769
        %v7772 = vrot.slane %v7063, 3
        %v7773 = vsel %vm1484, %v7772, %v7771
        %v7774 = vrot.slane %v7064, 2
        %v7775 = vsel %vm1487, %v7774, %v7773
        %v7776 = vrot.slane %v7065, 1
        %v7777 = vsel %vm1490, %v7776, %v7775
        %v7778 = vsel %vm1493, %v7066, %v7777
        %v7779 = vrot.slane %v7067, 7
        %v7780 = vsel %vm1496, %v7779, %v7778
        %v7781 = vrot.slane %v7068, 6
        %v7782 = vsel %vm1499, %v7781, %v7780
        %v7783 = vpack.c.b16 %v7782, %v7782
        %v7801 = vunpack.c.l.b16 %v7753
        %v7802 = vunpack.c.h.b16 %v7753
        %v7803 = vunpack.c.l.b16 %v7754
        %v7804 = vunpack.c.h.b16 %v7754
        %v7805 = vunpack.c.l.b16 %v7755
        %v7806 = vunpack.c.h.b16 %v7755
        %v7807 = vunpack.c.l.b16 %v7756
        %v7808 = vunpack.c.h.b16 %v7756
        %v7809 = vunpack.c.l.b16 %v7757
        %v7810 = vunpack.c.h.b16 %v7757
        %v7811 = vunpack.c.l.b16 %v7758
        %v7812 = vunpack.c.h.b16 %v7758
        %v7813 = vunpack.c.l.b16 %v7759
        %v7814 = vunpack.c.h.b16 %v7759
        %v7815 = vunpack.c.l.b16 %v7760
        %v7816 = vunpack.c.h.b16 %v7760
        %v7817 = vunpack.c.l.b16 %v7761
        %v7818 = vunpack.c.h.b16 %v7761
        %v7819 = vunpack.c.l.b16 %v7762
        %v7820 = vunpack.c.h.b16 %v7762
        %v7821 = vunpack.c.l.b16 %v7763
        %v7822 = vunpack.c.h.b16 %v7763
        %v7823 = vunpack.c.l.b16 %v7764
        %v7824 = vunpack.c.h.b16 %v7764
        %v7825 = vunpack.c.l.b16 %v7765
        %v7826 = vunpack.c.h.b16 %v7765
        %v7827 = vunpack.c.l.b16 %v7766
        %v7828 = vunpack.c.h.b16 %v7766
        %v7829 = vunpack.c.l.b16 %v7767
        %v7830 = vunpack.c.h.b16 %v7767
        %v7831 = vunpack.c.l.b16 %v7768
        %v7832 = vunpack.c.h.b16 %v7768
        %v7833 = vpack.c.b16 %v7803, %v7801
        %v7834 = vpack.c.b16 %v7804, %v7802
        %v7835 = vpack.c.b16 %v7807, %v7805
        %v7836 = vpack.c.b16 %v7808, %v7806
        %v7837 = vpack.c.b16 %v7811, %v7809
        %v7838 = vpack.c.b16 %v7812, %v7810
        %v7839 = vpack.c.b16 %v7815, %v7813
        %v7840 = vpack.c.b16 %v7816, %v7814
        %v7841 = vpack.c.b16 %v7819, %v7817
        %v7842 = vpack.c.b16 %v7820, %v7818
        %v7843 = vpack.c.b16 %v7823, %v7821
        %v7844 = vpack.c.b16 %v7824, %v7822
        %v7845 = vpack.c.b16 %v7827, %v7825
        %v7846 = vpack.c.b16 %v7828, %v7826
        %v7847 = vpack.c.b16 %v7831, %v7829
        %v7848 = vpack.c.b16 %v7832, %v7830
        %7865 = vmatpush.bf16.msra.mxu0 %v7847
        %7866 = vmatpush.bf16.msra.mxu0 %v7845
        %7867 = vmatpush.bf16.msra.mxu0 %v7843
        %7868 = vmatpush.bf16.msra.mxu0 %v7841
        %7869 = vmatpush.bf16.msra.mxu0 %v7839
        %7870 = vmatpush.bf16.msra.mxu0 %v7837
        %7871 = vmatpush.bf16.msra.mxu0 %v7835
        %7872 = vmatpush.bf16.msra.mxu0 %v7833
        %7873 = vmatmul.bf16.gmra.mxu0 %v7783
        %v7874 = vpop.f32.mrf.mxu0
        %v7875 = vadd.f32 0.0, %v7874
        %v7876 = vpop.f32.mrf.mxu0
        %7877 = vdwg.mxu0
        %7878 = vmatpush.bf16.msra.mxu0 %v7848
        %7879 = vmatpush.bf16.msra.mxu0 %v7846
        %7880 = vmatpush.bf16.msra.mxu0 %v7844
        %7881 = vmatpush.bf16.msra.mxu0 %v7842
        %7882 = vmatpush.bf16.msra.mxu0 %v7840
        %7883 = vmatpush.bf16.msra.mxu0 %v7838
        %7884 = vmatpush.bf16.msra.mxu0 %v7836
        %7885 = vmatpush.bf16.msra.mxu0 %v7834
        %7886 = vmatmul.bf16.gmra.mxu0 %v7783
        %v7887 = vpop.f32.mrf.mxu0
        %v7888 = vadd.f32 0.0, %v7887
        %v7889 = vpop.f32.mrf.mxu0
        %7890 = vdwg.mxu0
        %v7891 = vadd.f32 %v7751, %v7875
        %v7892 = vadd.f32 %v7752, %v7888
        %v7893 = vld [vmem:[%s3447] sm:$0xff]
        %v7894 = vld [vmem:[%s3447 + $0x8] sm:$0xff]
        %v7895 = vld [vmem:[%s3447 + $0x10] sm:$0xff]
        %v7896 = vld [vmem:[%s3447 + $0x18] sm:$0xff]
        %v7897 = vld [vmem:[%s3447 + $0x20] sm:$0xff]
        %v7898 = vld [vmem:[%s3447 + $0x28] sm:$0xff]
        %v7899 = vld [vmem:[%s3447 + $0x30] sm:$0xff]
        %v7900 = vld [vmem:[%s3447 + $0x38] sm:$0xff]
        %v7901 = vld [vmem:[%s3447 + $0x40] sm:$0xff]
        %v7902 = vld [vmem:[%s3447 + $0x48] sm:$0xff]
        %v7903 = vld [vmem:[%s3447 + $0x50] sm:$0xff]
        %v7904 = vld [vmem:[%s3447 + $0x58] sm:$0xff]
        %v7905 = vld [vmem:[%s3447 + $0x60] sm:$0xff]
        %v7906 = vld [vmem:[%s3447 + $0x68] sm:$0xff]
        %v7907 = vld [vmem:[%s3447 + $0x70] sm:$0xff]
        %v7908 = vld [vmem:[%s3447 + $0x78] sm:$0xff]
        %v7909 = vrot.slane %v7061, 6
        %v7910 = vrot.slane %v7062, 5
        %v7911 = vsel %vm1481, %v7910, %v7909
        %v7912 = vrot.slane %v7063, 4
        %v7913 = vsel %vm1484, %v7912, %v7911
        %v7914 = vrot.slane %v7064, 3
        %v7915 = vsel %vm1487, %v7914, %v7913
        %v7916 = vrot.slane %v7065, 2
        %v7917 = vsel %vm1490, %v7916, %v7915
        %v7918 = vrot.slane %v7066, 1
        %v7919 = vsel %vm1493, %v7918, %v7917
        %v7920 = vsel %vm1496, %v7067, %v7919
        %v7921 = vrot.slane %v7068, 7
        %v7922 = vsel %vm1499, %v7921, %v7920
        %v7923 = vpack.c.b16 %v7922, %v7922
        %v7941 = vunpack.c.l.b16 %v7893
        %v7942 = vunpack.c.h.b16 %v7893
        %v7943 = vunpack.c.l.b16 %v7894
        %v7944 = vunpack.c.h.b16 %v7894
        %v7945 = vunpack.c.l.b16 %v7895
        %v7946 = vunpack.c.h.b16 %v7895
        %v7947 = vunpack.c.l.b16 %v7896
        %v7948 = vunpack.c.h.b16 %v7896
        %v7949 = vunpack.c.l.b16 %v7897
        %v7950 = vunpack.c.h.b16 %v7897
        %v7951 = vunpack.c.l.b16 %v7898
        %v7952 = vunpack.c.h.b16 %v7898
        %v7953 = vunpack.c.l.b16 %v7899
        %v7954 = vunpack.c.h.b16 %v7899
        %v7955 = vunpack.c.l.b16 %v7900
        %v7956 = vunpack.c.h.b16 %v7900
        %v7957 = vunpack.c.l.b16 %v7901
        %v7958 = vunpack.c.h.b16 %v7901
        %v7959 = vunpack.c.l.b16 %v7902
        %v7960 = vunpack.c.h.b16 %v7902
        %v7961 = vunpack.c.l.b16 %v7903
        %v7962 = vunpack.c.h.b16 %v7903
        %v7963 = vunpack.c.l.b16 %v7904
        %v7964 = vunpack.c.h.b16 %v7904
        %v7965 = vunpack.c.l.b16 %v7905
        %v7966 = vunpack.c.h.b16 %v7905
        %v7967 = vunpack.c.l.b16 %v7906
        %v7968 = vunpack.c.h.b16 %v7906
        %v7969 = vunpack.c.l.b16 %v7907
        %v7970 = vunpack.c.h.b16 %v7907
        %v7971 = vunpack.c.l.b16 %v7908
        %v7972 = vunpack.c.h.b16 %v7908
        %v7973 = vpack.c.b16 %v7943, %v7941
        %v7974 = vpack.c.b16 %v7944, %v7942
        %v7975 = vpack.c.b16 %v7947, %v7945
        %v7976 = vpack.c.b16 %v7948, %v7946
        %v7977 = vpack.c.b16 %v7951, %v7949
        %v7978 = vpack.c.b16 %v7952, %v7950
        %v7979 = vpack.c.b16 %v7955, %v7953
        %v7980 = vpack.c.b16 %v7956, %v7954
        %v7981 = vpack.c.b16 %v7959, %v7957
        %v7982 = vpack.c.b16 %v7960, %v7958
        %v7983 = vpack.c.b16 %v7963, %v7961
        %v7984 = vpack.c.b16 %v7964, %v7962
        %v7985 = vpack.c.b16 %v7967, %v7965
        %v7986 = vpack.c.b16 %v7968, %v7966
        %v7987 = vpack.c.b16 %v7971, %v7969
        %v7988 = vpack.c.b16 %v7972, %v7970
        %8005 = vmatpush.bf16.msra.mxu0 %v7987
        %8006 = vmatpush.bf16.msra.mxu0 %v7985
        %8007 = vmatpush.bf16.msra.mxu0 %v7983
        %8008 = vmatpush.bf16.msra.mxu0 %v7981
        %8009 = vmatpush.bf16.msra.mxu0 %v7979
        %8010 = vmatpush.bf16.msra.mxu0 %v7977
        %8011 = vmatpush.bf16.msra.mxu0 %v7975
        %8012 = vmatpush.bf16.msra.mxu0 %v7973
        %8013 = vmatmul.bf16.gmra.mxu0 %v7923
        %v8014 = vpop.f32.mrf.mxu0
        %v8015 = vadd.f32 0.0, %v8014
        %v8016 = vpop.f32.mrf.mxu0
        %8017 = vdwg.mxu0
        %8018 = vmatpush.bf16.msra.mxu0 %v7988
        %8019 = vmatpush.bf16.msra.mxu0 %v7986
        %8020 = vmatpush.bf16.msra.mxu0 %v7984
        %8021 = vmatpush.bf16.msra.mxu0 %v7982
        %8022 = vmatpush.bf16.msra.mxu0 %v7980
        %8023 = vmatpush.bf16.msra.mxu0 %v7978
        %8024 = vmatpush.bf16.msra.mxu0 %v7976
        %8025 = vmatpush.bf16.msra.mxu0 %v7974
        %8026 = vmatmul.bf16.gmra.mxu0 %v7923
        %v8027 = vpop.f32.mrf.mxu0
        %v8028 = vadd.f32 0.0, %v8027
        %v8029 = vpop.f32.mrf.mxu0
        %8030 = vdwg.mxu0
        %v8031 = vadd.f32 %v7891, %v8015
        %v8032 = vadd.f32 %v7892, %v8028
        %v8033 = vld [vmem:[%s4] sm:$0x3]
        %v8035 = vperm.slane %v8033, 0
        %v8036 = vperm.slane %v8033, 1
        %v8039 = vadd.f32 %v8031, %v8035
        %v8040 = vadd.f32 %v8032, %v8036
        %v8041 = vmax.f32 %v8039, 0.0
        %v8042 = vmax.f32 %v8040, 0.0
        %v8045 = vrot.slane %v8042, 7
        %v8046 = vsel %vm3601, %v8041, %v8045
        %v8047 = vsel %vm1481, %v8041, %v8045
        %v8048 = vrot.slane %v8047, 1
        %v8049 = vsel %vm1484, %v8041, %v8045
        %v8050 = vrot.slane %v8049, 2
        %v8051 = vsel %vm1487, %v8041, %v8045
        %v8052 = vrot.slane %v8051, 3
        %v8053 = vsel %vm1490, %v8041, %v8045
        %v8054 = vrot.slane %v8053, 4
        %v8055 = vsel %vm1493, %v8041, %v8045
        %v8056 = vrot.slane %v8055, 5
        %v8057 = vsel %vm1496, %v8041, %v8045
        %v8058 = vrot.slane %v8057, 6
        %v8059 = vsel %vm3615, %v8045, %v8041
        %v8060 = vrot.slane %v8059, 7
        %s8069 = scalar_lea.vmem [#allocation3], 2
        %8070 = vst.msk [vmem:[%s8069] ss:$8 sm:$0x3] %vm3629, %v8046
        %8071 = vst.msk [vmem:[%s8069] ss:$8 sm:$0x0] %vm3629, %v8046
        %s8072 = scalar_lea.vmem [#allocation3], 18
        %8073 = vst.msk [vmem:[%s8072] ss:$8 sm:$0x3] %vm3629, %v8048
        %8074 = vst.msk [vmem:[%s8072] ss:$8 sm:$0x0] %vm3629, %v8048
        %s8075 = scalar_lea.vmem [#allocation3], 34
        %8076 = vst.msk [vmem:[%s8075] ss:$8 sm:$0x3] %vm3629, %v8050
        %8077 = vst.msk [vmem:[%s8075] ss:$8 sm:$0x0] %vm3629, %v8050
        %s8078 = scalar_lea.vmem [#allocation3], 50
        %8079 = vst.msk [vmem:[%s8078] ss:$8 sm:$0x3] %vm3629, %v8052
        %8080 = vst.msk [vmem:[%s8078] ss:$8 sm:$0x0] %vm3629, %v8052
        %s8081 = scalar_lea.vmem [#allocation3], 66
        %8082 = vst.msk [vmem:[%s8081] ss:$8 sm:$0x3] %vm3629, %v8054
        %8083 = vst.msk [vmem:[%s8081] ss:$8 sm:$0x0] %vm3629, %v8054
        %s8084 = scalar_lea.vmem [#allocation3], 82
        %8085 = vst.msk [vmem:[%s8084] ss:$8 sm:$0x3] %vm3629, %v8056
        %8086 = vst.msk [vmem:[%s8084] ss:$8 sm:$0x0] %vm3629, %v8056
        %s8087 = scalar_lea.vmem [#allocation3], 98
        %8088 = vst.msk [vmem:[%s8087] ss:$8 sm:$0x3] %vm3629, %v8058
        %8089 = vst.msk [vmem:[%s8087] ss:$8 sm:$0x0] %vm3629, %v8058
        %s8090 = scalar_lea.vmem [#allocation3], 114
        %8091 = vst.msk [vmem:[%s8090] ss:$8 sm:$0x3] %vm3629, %v8060
        %8092 = vst.msk [vmem:[%s8090] ss:$8 sm:$0x0] %vm3629, %v8060
        %v8093 = vld [vmem:[#allocation3] sm:$0x7]
        %v8094 = vld [vmem:[#allocation3 + $0x8] sm:$0x7]
        %v8095 = vld [vmem:[#allocation3 + $0x10] sm:$0x7]
        %v8096 = vld [vmem:[#allocation3 + $0x18] sm:$0x7]
        %v8097 = vld [vmem:[#allocation3 + $0x20] sm:$0x7]
        %v8098 = vld [vmem:[#allocation3 + $0x28] sm:$0x7]
        %v8099 = vld [vmem:[#allocation3 + $0x30] sm:$0x7]
        %v8100 = vld [vmem:[#allocation3 + $0x38] sm:$0x7]
        %v8101 = vld [vmem:[#allocation3 + $0x40] sm:$0x7]
        %v8102 = vld [vmem:[#allocation3 + $0x48] sm:$0x7]
        %v8103 = vld [vmem:[#allocation3 + $0x50] sm:$0x7]
        %v8104 = vld [vmem:[#allocation3 + $0x58] sm:$0x7]
        %v8105 = vld [vmem:[#allocation3 + $0x60] sm:$0x7]
        %v8106 = vld [vmem:[#allocation3 + $0x68] sm:$0x7]
        %v8107 = vld [vmem:[#allocation3 + $0x70] sm:$0x7]
        %v8108 = vld [vmem:[#allocation3 + $0x78] sm:$0x7]
        %v8109 = vpack.c.bf16 %v8093, %v8093
        %v8110 = vpack.c.bf16 %v8094, %v8094
        %v8111 = vpack.c.bf16 %v8095, %v8095
        %v8112 = vpack.c.bf16 %v8096, %v8096
        %v8113 = vpack.c.bf16 %v8097, %v8097
        %v8114 = vpack.c.bf16 %v8098, %v8098
        %v8115 = vpack.c.bf16 %v8099, %v8099
        %v8116 = vpack.c.bf16 %v8100, %v8100
        %v8117 = vpack.c.bf16 %v8101, %v8101
        %v8118 = vpack.c.bf16 %v8102, %v8102
        %v8119 = vpack.c.bf16 %v8103, %v8103
        %v8120 = vpack.c.bf16 %v8104, %v8104
        %v8121 = vpack.c.bf16 %v8105, %v8105
        %v8122 = vpack.c.bf16 %v8106, %v8106
        %v8123 = vpack.c.bf16 %v8107, %v8107
        %v8124 = vpack.c.bf16 %v8108, %v8108
        %v8125 = vld [vmem:[%s5] sm:$0xff]
        %v8126 = vld [vmem:[%s5 + $0x8] sm:$0xff]
        %v8127 = vld [vmem:[%s5 + $0x10] sm:$0xff]
        %v8128 = vld [vmem:[%s5 + $0x18] sm:$0xff]
        %v8129 = vld [vmem:[%s5 + $0x20] sm:$0xff]
        %v8130 = vld [vmem:[%s5 + $0x28] sm:$0xff]
        %v8131 = vld [vmem:[%s5 + $0x30] sm:$0xff]
        %v8132 = vld [vmem:[%s5 + $0x38] sm:$0xff]
        %v8133 = vld [vmem:[%s5 + $0x40] sm:$0xff]
        %v8134 = vld [vmem:[%s5 + $0x48] sm:$0xff]
        %v8135 = vld [vmem:[%s5 + $0x50] sm:$0xff]
        %v8136 = vld [vmem:[%s5 + $0x58] sm:$0xff]
        %v8137 = vld [vmem:[%s5 + $0x60] sm:$0xff]
        %v8138 = vld [vmem:[%s5 + $0x68] sm:$0xff]
        %v8139 = vld [vmem:[%s5 + $0x70] sm:$0xff]
        %v8140 = vld [vmem:[%s5 + $0x78] sm:$0xff]
        %v8141 = vld [vmem:[%s5 + $0x80] sm:$0xff]
        %v8142 = vld [vmem:[%s5 + $0x88] sm:$0xff]
        %v8143 = vld [vmem:[%s5 + $0x90] sm:$0xff]
        %v8144 = vld [vmem:[%s5 + $0x98] sm:$0xff]
        %v8145 = vld [vmem:[%s5 + $0xa0] sm:$0xff]
        %v8146 = vld [vmem:[%s5 + $0xa8] sm:$0xff]
        %v8147 = vld [vmem:[%s5 + $0xb0] sm:$0xff]
        %v8148 = vld [vmem:[%s5 + $0xb8] sm:$0xff]
        %v8149 = vld [vmem:[%s5 + $0xc0] sm:$0xff]
        %v8150 = vld [vmem:[%s5 + $0xc8] sm:$0xff]
        %v8151 = vld [vmem:[%s5 + $0xd0] sm:$0xff]
        %v8152 = vld [vmem:[%s5 + $0xd8] sm:$0xff]
        %v8153 = vld [vmem:[%s5 + $0xe0] sm:$0xff]
        %v8154 = vld [vmem:[%s5 + $0xe8] sm:$0xff]
        %v8155 = vld [vmem:[%s5 + $0xf0] sm:$0xff]
        %v8156 = vld [vmem:[%s5 + $0xf8] sm:$0xff]
        %v8157 = vld [vmem:[%s5 + $0x100] sm:$0xff]
        %v8158 = vld [vmem:[%s5 + $0x108] sm:$0xff]
        %v8159 = vld [vmem:[%s5 + $0x110] sm:$0xff]
        %v8160 = vld [vmem:[%s5 + $0x118] sm:$0xff]
        %v8161 = vld [vmem:[%s5 + $0x120] sm:$0xff]
        %v8162 = vld [vmem:[%s5 + $0x128] sm:$0xff]
        %v8163 = vld [vmem:[%s5 + $0x130] sm:$0xff]
        %v8164 = vld [vmem:[%s5 + $0x138] sm:$0xff]
        %v8165 = vld [vmem:[%s5 + $0x140] sm:$0xff]
        %v8166 = vld [vmem:[%s5 + $0x148] sm:$0xff]
        %v8167 = vld [vmem:[%s5 + $0x150] sm:$0xff]
        %v8168 = vld [vmem:[%s5 + $0x158] sm:$0xff]
        %v8169 = vld [vmem:[%s5 + $0x160] sm:$0xff]
        %v8170 = vld [vmem:[%s5 + $0x168] sm:$0xff]
        %v8171 = vld [vmem:[%s5 + $0x170] sm:$0xff]
        %v8172 = vld [vmem:[%s5 + $0x178] sm:$0xff]
        %v8173 = vld [vmem:[%s5 + $0x180] sm:$0xff]
        %v8174 = vld [vmem:[%s5 + $0x188] sm:$0xff]
        %v8175 = vld [vmem:[%s5 + $0x190] sm:$0xff]
        %v8176 = vld [vmem:[%s5 + $0x198] sm:$0xff]
        %v8177 = vld [vmem:[%s5 + $0x1a0] sm:$0xff]
        %v8178 = vld [vmem:[%s5 + $0x1a8] sm:$0xff]
        %v8179 = vld [vmem:[%s5 + $0x1b0] sm:$0xff]
        %v8180 = vld [vmem:[%s5 + $0x1b8] sm:$0xff]
        %v8181 = vld [vmem:[%s5 + $0x1c0] sm:$0xff]
        %v8182 = vld [vmem:[%s5 + $0x1c8] sm:$0xff]
        %v8183 = vld [vmem:[%s5 + $0x1d0] sm:$0xff]
        %v8184 = vld [vmem:[%s5 + $0x1d8] sm:$0xff]
        %v8185 = vld [vmem:[%s5 + $0x1e0] sm:$0xff]
        %v8186 = vld [vmem:[%s5 + $0x1e8] sm:$0xff]
        %v8187 = vld [vmem:[%s5 + $0x1f0] sm:$0xff]
        %v8188 = vld [vmem:[%s5 + $0x1f8] sm:$0xff]
        %s8189 = scalar_lea.vmem %s5, 512
        %v8190 = vld [vmem:[%s8189] sm:$0xff]
        %v8191 = vld [vmem:[%s8189 + $0x8] sm:$0xff]
        %v8192 = vld [vmem:[%s8189 + $0x10] sm:$0xff]
        %v8193 = vld [vmem:[%s8189 + $0x18] sm:$0xff]
        %v8194 = vld [vmem:[%s8189 + $0x20] sm:$0xff]
        %v8195 = vld [vmem:[%s8189 + $0x28] sm:$0xff]
        %v8196 = vld [vmem:[%s8189 + $0x30] sm:$0xff]
        %v8197 = vld [vmem:[%s8189 + $0x38] sm:$0xff]
        %v8198 = vld [vmem:[%s8189 + $0x40] sm:$0xff]
        %v8199 = vld [vmem:[%s8189 + $0x48] sm:$0xff]
        %v8200 = vld [vmem:[%s8189 + $0x50] sm:$0xff]
        %v8201 = vld [vmem:[%s8189 + $0x58] sm:$0xff]
        %v8202 = vld [vmem:[%s8189 + $0x60] sm:$0xff]
        %v8203 = vld [vmem:[%s8189 + $0x68] sm:$0xff]
        %v8204 = vld [vmem:[%s8189 + $0x70] sm:$0xff]
        %v8205 = vld [vmem:[%s8189 + $0x78] sm:$0xff]
        %v8206 = vld [vmem:[%s8189 + $0x80] sm:$0xff]
        %v8207 = vld [vmem:[%s8189 + $0x88] sm:$0xff]
        %v8208 = vld [vmem:[%s8189 + $0x90] sm:$0xff]
        %v8209 = vld [vmem:[%s8189 + $0x98] sm:$0xff]
        %v8210 = vld [vmem:[%s8189 + $0xa0] sm:$0xff]
        %v8211 = vld [vmem:[%s8189 + $0xa8] sm:$0xff]
        %v8212 = vld [vmem:[%s8189 + $0xb0] sm:$0xff]
        %v8213 = vld [vmem:[%s8189 + $0xb8] sm:$0xff]
        %v8214 = vld [vmem:[%s8189 + $0xc0] sm:$0xff]
        %v8215 = vld [vmem:[%s8189 + $0xc8] sm:$0xff]
        %v8216 = vld [vmem:[%s8189 + $0xd0] sm:$0xff]
        %v8217 = vld [vmem:[%s8189 + $0xd8] sm:$0xff]
        %v8218 = vld [vmem:[%s8189 + $0xe0] sm:$0xff]
        %v8219 = vld [vmem:[%s8189 + $0xe8] sm:$0xff]
        %v8220 = vld [vmem:[%s8189 + $0xf0] sm:$0xff]
        %v8221 = vld [vmem:[%s8189 + $0xf8] sm:$0xff]
        %v8222 = vld [vmem:[%s8189 + $0x100] sm:$0xff]
        %v8223 = vld [vmem:[%s8189 + $0x108] sm:$0xff]
        %v8224 = vld [vmem:[%s8189 + $0x110] sm:$0xff]
        %v8225 = vld [vmem:[%s8189 + $0x118] sm:$0xff]
        %v8226 = vld [vmem:[%s8189 + $0x120] sm:$0xff]
        %v8227 = vld [vmem:[%s8189 + $0x128] sm:$0xff]
        %v8228 = vld [vmem:[%s8189 + $0x130] sm:$0xff]
        %v8229 = vld [vmem:[%s8189 + $0x138] sm:$0xff]
        %v8230 = vld [vmem:[%s8189 + $0x140] sm:$0xff]
        %v8231 = vld [vmem:[%s8189 + $0x148] sm:$0xff]
        %v8232 = vld [vmem:[%s8189 + $0x150] sm:$0xff]
        %v8233 = vld [vmem:[%s8189 + $0x158] sm:$0xff]
        %v8234 = vld [vmem:[%s8189 + $0x160] sm:$0xff]
        %v8235 = vld [vmem:[%s8189 + $0x168] sm:$0xff]
        %v8236 = vld [vmem:[%s8189 + $0x170] sm:$0xff]
        %v8237 = vld [vmem:[%s8189 + $0x178] sm:$0xff]
        %v8238 = vld [vmem:[%s8189 + $0x180] sm:$0xff]
        %v8239 = vld [vmem:[%s8189 + $0x188] sm:$0xff]
        %v8240 = vld [vmem:[%s8189 + $0x190] sm:$0xff]
        %v8241 = vld [vmem:[%s8189 + $0x198] sm:$0xff]
        %v8242 = vld [vmem:[%s8189 + $0x1a0] sm:$0xff]
        %v8243 = vld [vmem:[%s8189 + $0x1a8] sm:$0xff]
        %v8244 = vld [vmem:[%s8189 + $0x1b0] sm:$0xff]
        %v8245 = vld [vmem:[%s8189 + $0x1b8] sm:$0xff]
        %v8246 = vld [vmem:[%s8189 + $0x1c0] sm:$0xff]
        %v8247 = vld [vmem:[%s8189 + $0x1c8] sm:$0xff]
        %v8248 = vld [vmem:[%s8189 + $0x1d0] sm:$0xff]
        %v8249 = vld [vmem:[%s8189 + $0x1d8] sm:$0xff]
        %v8250 = vld [vmem:[%s8189 + $0x1e0] sm:$0xff]
        %v8251 = vld [vmem:[%s8189 + $0x1e8] sm:$0xff]
        %v8252 = vld [vmem:[%s8189 + $0x1f0] sm:$0xff]
        %v8253 = vld [vmem:[%s8189 + $0x1f8] sm:$0xff]
        %v8270 = vunpack.c.l.b16 %v8109
        %v8271 = vunpack.c.l.b16 %v8110
        %v8272 = vunpack.c.l.b16 %v8111
        %v8273 = vunpack.c.l.b16 %v8112
        %v8274 = vunpack.c.l.b16 %v8113
        %v8275 = vunpack.c.l.b16 %v8114
        %v8276 = vunpack.c.l.b16 %v8115
        %v8277 = vunpack.c.l.b16 %v8116
        %v8278 = vunpack.c.l.b16 %v8117
        %v8279 = vunpack.c.l.b16 %v8118
        %v8280 = vunpack.c.l.b16 %v8119
        %v8281 = vunpack.c.l.b16 %v8120
        %v8282 = vunpack.c.l.b16 %v8121
        %v8283 = vunpack.c.l.b16 %v8122
        %v8284 = vunpack.c.l.b16 %v8123
        %v8285 = vunpack.c.l.b16 %v8124
        %v8286 = vrot.slane %v8270, 1
        %v8287 = vsel %vm1481, %v8272, %v8286
        %v8288 = vrot.slane %v8274, 7
        %v8289 = vsel %vm1484, %v8288, %v8287
        %v8290 = vrot.slane %v8276, 6
        %v8291 = vsel %vm1487, %v8290, %v8289
        %v8292 = vrot.slane %v8278, 5
        %v8293 = vsel %vm1490, %v8292, %v8291
        %v8294 = vrot.slane %v8280, 4
        %v8295 = vsel %vm1493, %v8294, %v8293
        %v8296 = vrot.slane %v8282, 3
        %v8297 = vsel %vm1496, %v8296, %v8295
        %v8298 = vrot.slane %v8284, 2
        %v8299 = vsel %vm1499, %v8298, %v8297
        %v8300 = vrot.slane %v8271, 1
        %v8301 = vsel %vm1481, %v8273, %v8300
        %v8302 = vrot.slane %v8275, 7
        %v8303 = vsel %vm1484, %v8302, %v8301
        %v8304 = vrot.slane %v8277, 6
        %v8305 = vsel %vm1487, %v8304, %v8303
        %v8306 = vrot.slane %v8279, 5
        %v8307 = vsel %vm1490, %v8306, %v8305
        %v8308 = vrot.slane %v8281, 4
        %v8309 = vsel %vm1493, %v8308, %v8307
        %v8310 = vrot.slane %v8283, 3
        %v8311 = vsel %vm1496, %v8310, %v8309
        %v8312 = vrot.slane %v8285, 2
        %v8313 = vsel %vm1499, %v8312, %v8311
        %v8314 = vpack.c.b16 %v8299, %v8299
        %v8315 = vpack.c.b16 %v8313, %v8313
        %v8382 = vunpack.c.l.b16 %v8190
        %v8383 = vunpack.c.h.b16 %v8190
        %v8384 = vunpack.c.l.b16 %v8191
        %v8385 = vunpack.c.h.b16 %v8191
        %v8386 = vunpack.c.l.b16 %v8192
        %v8387 = vunpack.c.h.b16 %v8192
        %v8388 = vunpack.c.l.b16 %v8193
        %v8389 = vunpack.c.h.b16 %v8193
        %v8390 = vunpack.c.l.b16 %v8194
        %v8391 = vunpack.c.h.b16 %v8194
        %v8392 = vunpack.c.l.b16 %v8195
        %v8393 = vunpack.c.h.b16 %v8195
        %v8394 = vunpack.c.l.b16 %v8196
        %v8395 = vunpack.c.h.b16 %v8196
        %v8396 = vunpack.c.l.b16 %v8197
        %v8397 = vunpack.c.h.b16 %v8197
        %v8398 = vunpack.c.l.b16 %v8198
        %v8399 = vunpack.c.h.b16 %v8198
        %v8400 = vunpack.c.l.b16 %v8199
        %v8401 = vunpack.c.h.b16 %v8199
        %v8402 = vunpack.c.l.b16 %v8200
        %v8403 = vunpack.c.h.b16 %v8200
        %v8404 = vunpack.c.l.b16 %v8201
        %v8405 = vunpack.c.h.b16 %v8201
        %v8406 = vunpack.c.l.b16 %v8202
        %v8407 = vunpack.c.h.b16 %v8202
        %v8408 = vunpack.c.l.b16 %v8203
        %v8409 = vunpack.c.h.b16 %v8203
        %v8410 = vunpack.c.l.b16 %v8204
        %v8411 = vunpack.c.h.b16 %v8204
        %v8412 = vunpack.c.l.b16 %v8205
        %v8413 = vunpack.c.h.b16 %v8205
        %v8414 = vunpack.c.l.b16 %v8206
        %v8415 = vunpack.c.h.b16 %v8206
        %v8416 = vunpack.c.l.b16 %v8207
        %v8417 = vunpack.c.h.b16 %v8207
        %v8418 = vunpack.c.l.b16 %v8208
        %v8419 = vunpack.c.h.b16 %v8208
        %v8420 = vunpack.c.l.b16 %v8209
        %v8421 = vunpack.c.h.b16 %v8209
        %v8422 = vunpack.c.l.b16 %v8210
        %v8423 = vunpack.c.h.b16 %v8210
        %v8424 = vunpack.c.l.b16 %v8211
        %v8425 = vunpack.c.h.b16 %v8211
        %v8426 = vunpack.c.l.b16 %v8212
        %v8427 = vunpack.c.h.b16 %v8212
        %v8428 = vunpack.c.l.b16 %v8213
        %v8429 = vunpack.c.h.b16 %v8213
        %v8430 = vunpack.c.l.b16 %v8214
        %v8431 = vunpack.c.h.b16 %v8214
        %v8432 = vunpack.c.l.b16 %v8215
        %v8433 = vunpack.c.h.b16 %v8215
        %v8434 = vunpack.c.l.b16 %v8216
        %v8435 = vunpack.c.h.b16 %v8216
        %v8436 = vunpack.c.l.b16 %v8217
        %v8437 = vunpack.c.h.b16 %v8217
        %v8438 = vunpack.c.l.b16 %v8218
        %v8439 = vunpack.c.h.b16 %v8218
        %v8440 = vunpack.c.l.b16 %v8219
        %v8441 = vunpack.c.h.b16 %v8219
        %v8442 = vunpack.c.l.b16 %v8220
        %v8443 = vunpack.c.h.b16 %v8220
        %v8444 = vunpack.c.l.b16 %v8221
        %v8445 = vunpack.c.h.b16 %v8221
        %v8446 = vunpack.c.l.b16 %v8222
        %v8447 = vunpack.c.h.b16 %v8222
        %v8448 = vunpack.c.l.b16 %v8223
        %v8449 = vunpack.c.h.b16 %v8223
        %v8450 = vunpack.c.l.b16 %v8224
        %v8451 = vunpack.c.h.b16 %v8224
        %v8452 = vunpack.c.l.b16 %v8225
        %v8453 = vunpack.c.h.b16 %v8225
        %v8454 = vunpack.c.l.b16 %v8226
        %v8455 = vunpack.c.h.b16 %v8226
        %v8456 = vunpack.c.l.b16 %v8227
        %v8457 = vunpack.c.h.b16 %v8227
        %v8458 = vunpack.c.l.b16 %v8228
        %v8459 = vunpack.c.h.b16 %v8228
        %v8460 = vunpack.c.l.b16 %v8229
        %v8461 = vunpack.c.h.b16 %v8229
        %v8462 = vunpack.c.l.b16 %v8230
        %v8463 = vunpack.c.h.b16 %v8230
        %v8464 = vunpack.c.l.b16 %v8231
        %v8465 = vunpack.c.h.b16 %v8231
        %v8466 = vunpack.c.l.b16 %v8232
        %v8467 = vunpack.c.h.b16 %v8232
        %v8468 = vunpack.c.l.b16 %v8233
        %v8469 = vunpack.c.h.b16 %v8233
        %v8470 = vunpack.c.l.b16 %v8234
        %v8471 = vunpack.c.h.b16 %v8234
        %v8472 = vunpack.c.l.b16 %v8235
        %v8473 = vunpack.c.h.b16 %v8235
        %v8474 = vunpack.c.l.b16 %v8236
        %v8475 = vunpack.c.h.b16 %v8236
        %v8476 = vunpack.c.l.b16 %v8237
        %v8477 = vunpack.c.h.b16 %v8237
        %v8478 = vunpack.c.l.b16 %v8238
        %v8479 = vunpack.c.h.b16 %v8238
        %v8480 = vunpack.c.l.b16 %v8239
        %v8481 = vunpack.c.h.b16 %v8239
        %v8482 = vunpack.c.l.b16 %v8240
        %v8483 = vunpack.c.h.b16 %v8240
        %v8484 = vunpack.c.l.b16 %v8241
        %v8485 = vunpack.c.h.b16 %v8241
        %v8486 = vunpack.c.l.b16 %v8242
        %v8487 = vunpack.c.h.b16 %v8242
        %v8488 = vunpack.c.l.b16 %v8243
        %v8489 = vunpack.c.h.b16 %v8243
        %v8490 = vunpack.c.l.b16 %v8244
        %v8491 = vunpack.c.h.b16 %v8244
        %v8492 = vunpack.c.l.b16 %v8245
        %v8493 = vunpack.c.h.b16 %v8245
        %v8494 = vunpack.c.l.b16 %v8246
        %v8495 = vunpack.c.h.b16 %v8246
        %v8496 = vunpack.c.l.b16 %v8247
        %v8497 = vunpack.c.h.b16 %v8247
        %v8498 = vunpack.c.l.b16 %v8248
        %v8499 = vunpack.c.h.b16 %v8248
        %v8500 = vunpack.c.l.b16 %v8249
        %v8501 = vunpack.c.h.b16 %v8249
        %v8502 = vunpack.c.l.b16 %v8250
        %v8503 = vunpack.c.h.b16 %v8250
        %v8504 = vunpack.c.l.b16 %v8251
        %v8505 = vunpack.c.h.b16 %v8251
        %v8506 = vunpack.c.l.b16 %v8252
        %v8507 = vunpack.c.h.b16 %v8252
        %v8508 = vunpack.c.l.b16 %v8253
        %v8509 = vunpack.c.h.b16 %v8253
        %v8510 = vpack.c.b16 %v8386, %v8382
        %v8511 = vpack.c.b16 %v8387, %v8383
        %v8512 = vpack.c.b16 %v8388, %v8384
        %v8513 = vpack.c.b16 %v8389, %v8385
        %v8514 = vpack.c.b16 %v8394, %v8390
        %v8515 = vpack.c.b16 %v8395, %v8391
        %v8516 = vpack.c.b16 %v8396, %v8392
        %v8517 = vpack.c.b16 %v8397, %v8393
        %v8518 = vpack.c.b16 %v8402, %v8398
        %v8519 = vpack.c.b16 %v8403, %v8399
        %v8520 = vpack.c.b16 %v8404, %v8400
        %v8521 = vpack.c.b16 %v8405, %v8401
        %v8522 = vpack.c.b16 %v8410, %v8406
        %v8523 = vpack.c.b16 %v8411, %v8407
        %v8524 = vpack.c.b16 %v8412, %v8408
        %v8525 = vpack.c.b16 %v8413, %v8409
        %v8526 = vpack.c.b16 %v8418, %v8414
        %v8527 = vpack.c.b16 %v8419, %v8415
        %v8528 = vpack.c.b16 %v8420, %v8416
        %v8529 = vpack.c.b16 %v8421, %v8417
        %v8530 = vpack.c.b16 %v8426, %v8422
        %v8531 = vpack.c.b16 %v8427, %v8423
        %v8532 = vpack.c.b16 %v8428, %v8424
        %v8533 = vpack.c.b16 %v8429, %v8425
        %v8534 = vpack.c.b16 %v8434, %v8430
        %v8535 = vpack.c.b16 %v8435, %v8431
        %v8536 = vpack.c.b16 %v8436, %v8432
        %v8537 = vpack.c.b16 %v8437, %v8433
        %v8538 = vpack.c.b16 %v8442, %v8438
        %v8539 = vpack.c.b16 %v8443, %v8439
        %v8540 = vpack.c.b16 %v8444, %v8440
        %v8541 = vpack.c.b16 %v8445, %v8441
        %v8542 = vpack.c.b16 %v8450, %v8446
        %v8543 = vpack.c.b16 %v8451, %v8447
        %v8544 = vpack.c.b16 %v8452, %v8448
        %v8545 = vpack.c.b16 %v8453, %v8449
        %v8546 = vpack.c.b16 %v8458, %v8454
        %v8547 = vpack.c.b16 %v8459, %v8455
        %v8548 = vpack.c.b16 %v8460, %v8456
        %v8549 = vpack.c.b16 %v8461, %v8457
        %v8550 = vpack.c.b16 %v8466, %v8462
        %v8551 = vpack.c.b16 %v8467, %v8463
        %v8552 = vpack.c.b16 %v8468, %v8464
        %v8553 = vpack.c.b16 %v8469, %v8465
        %v8554 = vpack.c.b16 %v8474, %v8470
        %v8555 = vpack.c.b16 %v8475, %v8471
        %v8556 = vpack.c.b16 %v8476, %v8472
        %v8557 = vpack.c.b16 %v8477, %v8473
        %v8558 = vpack.c.b16 %v8482, %v8478
        %v8559 = vpack.c.b16 %v8483, %v8479
        %v8560 = vpack.c.b16 %v8484, %v8480
        %v8561 = vpack.c.b16 %v8485, %v8481
        %v8562 = vpack.c.b16 %v8490, %v8486
        %v8563 = vpack.c.b16 %v8491, %v8487
        %v8564 = vpack.c.b16 %v8492, %v8488
        %v8565 = vpack.c.b16 %v8493, %v8489
        %v8566 = vpack.c.b16 %v8498, %v8494
        %v8567 = vpack.c.b16 %v8499, %v8495
        %v8568 = vpack.c.b16 %v8500, %v8496
        %v8569 = vpack.c.b16 %v8501, %v8497
        %v8570 = vpack.c.b16 %v8506, %v8502
        %v8571 = vpack.c.b16 %v8507, %v8503
        %v8572 = vpack.c.b16 %v8508, %v8504
        %v8573 = vpack.c.b16 %v8509, %v8505
        %8638 = vmatpush.bf16.msra.mxu0 %v8538
        %8639 = vmatpush.bf16.msra.mxu0 %v8534
        %8640 = vmatpush.bf16.msra.mxu0 %v8530
        %8641 = vmatpush.bf16.msra.mxu0 %v8526
        %8642 = vmatpush.bf16.msra.mxu0 %v8522
        %8643 = vmatpush.bf16.msra.mxu0 %v8518
        %8644 = vmatpush.bf16.msra.mxu0 %v8514
        %8645 = vmatpush.bf16.msra.mxu0 %v8510
        %8646 = vmatmul.bf16.gmra.mxu0 %v8314
        %v8647 = vpop.f32.mrf.mxu0
        %v8648 = vadd.f32 0.0, %v8647
        %v8649 = vpop.f32.mrf.mxu0
        %8650 = vdwg.mxu0
        %8651 = vmatpush.bf16.msra.mxu0 %v8570
        %8652 = vmatpush.bf16.msra.mxu0 %v8566
        %8653 = vmatpush.bf16.msra.mxu0 %v8562
        %8654 = vmatpush.bf16.msra.mxu0 %v8558
        %8655 = vmatpush.bf16.msra.mxu0 %v8554
        %8656 = vmatpush.bf16.msra.mxu0 %v8550
        %8657 = vmatpush.bf16.msra.mxu0 %v8546
        %8658 = vmatpush.bf16.msra.mxu0 %v8542
        %8659 = vmatmul.bf16.gmra.mxu0 %v8315
        %v8660 = vpop.f32.mrf.mxu0
        %v8661 = vadd.f32 %v8648, %v8660
        %v8662 = vpop.f32.mrf.mxu0
        %8663 = vdwg.mxu0
        %8664 = vmatpush.bf16.msra.mxu0 %v8539
        %8665 = vmatpush.bf16.msra.mxu0 %v8535
        %8666 = vmatpush.bf16.msra.mxu0 %v8531
        %8667 = vmatpush.bf16.msra.mxu0 %v8527
        %8668 = vmatpush.bf16.msra.mxu0 %v8523
        %8669 = vmatpush.bf16.msra.mxu0 %v8519
        %8670 = vmatpush.bf16.msra.mxu0 %v8515
        %8671 = vmatpush.bf16.msra.mxu0 %v8511
        %8672 = vmatmul.bf16.gmra.mxu0 %v8314
        %v8673 = vpop.f32.mrf.mxu0
        %v8674 = vadd.f32 0.0, %v8673
        %v8675 = vpop.f32.mrf.mxu0
        %8676 = vdwg.mxu0
        %8677 = vmatpush.bf16.msra.mxu0 %v8571
        %8678 = vmatpush.bf16.msra.mxu0 %v8567
        %8679 = vmatpush.bf16.msra.mxu0 %v8563
        %8680 = vmatpush.bf16.msra.mxu0 %v8559
        %8681 = vmatpush.bf16.msra.mxu0 %v8555
        %8682 = vmatpush.bf16.msra.mxu0 %v8551
        %8683 = vmatpush.bf16.msra.mxu0 %v8547
        %8684 = vmatpush.bf16.msra.mxu0 %v8543
        %8685 = vmatmul.bf16.gmra.mxu0 %v8315
        %v8686 = vpop.f32.mrf.mxu0
        %v8687 = vadd.f32 %v8674, %v8686
        %v8688 = vpop.f32.mrf.mxu0
        %8689 = vdwg.mxu0
        %8690 = vmatpush.bf16.msra.mxu0 %v8540
        %8691 = vmatpush.bf16.msra.mxu0 %v8536
        %8692 = vmatpush.bf16.msra.mxu0 %v8532
        %8693 = vmatpush.bf16.msra.mxu0 %v8528
        %8694 = vmatpush.bf16.msra.mxu0 %v8524
        %8695 = vmatpush.bf16.msra.mxu0 %v8520
        %8696 = vmatpush.bf16.msra.mxu0 %v8516
        %8697 = vmatpush.bf16.msra.mxu0 %v8512
        %8698 = vmatmul.bf16.gmra.mxu0 %v8314
        %v8699 = vpop.f32.mrf.mxu0
        %v8700 = vadd.f32 0.0, %v8699
        %v8701 = vpop.f32.mrf.mxu0
        %8702 = vdwg.mxu0
        %8703 = vmatpush.bf16.msra.mxu0 %v8572
        %8704 = vmatpush.bf16.msra.mxu0 %v8568
        %8705 = vmatpush.bf16.msra.mxu0 %v8564
        %8706 = vmatpush.bf16.msra.mxu0 %v8560
        %8707 = vmatpush.bf16.msra.mxu0 %v8556
        %8708 = vmatpush.bf16.msra.mxu0 %v8552
        %8709 = vmatpush.bf16.msra.mxu0 %v8548
        %8710 = vmatpush.bf16.msra.mxu0 %v8544
        %8711 = vmatmul.bf16.gmra.mxu0 %v8315
        %v8712 = vpop.f32.mrf.mxu0
        %v8713 = vadd.f32 %v8700, %v8712
        %v8714 = vpop.f32.mrf.mxu0
        %8715 = vdwg.mxu0
        %8716 = vmatpush.bf16.msra.mxu0 %v8541
        %8717 = vmatpush.bf16.msra.mxu0 %v8537
        %8718 = vmatpush.bf16.msra.mxu0 %v8533
        %8719 = vmatpush.bf16.msra.mxu0 %v8529
        %8720 = vmatpush.bf16.msra.mxu0 %v8525
        %8721 = vmatpush.bf16.msra.mxu0 %v8521
        %8722 = vmatpush.bf16.msra.mxu0 %v8517
        %8723 = vmatpush.bf16.msra.mxu0 %v8513
        %8724 = vmatmul.bf16.gmra.mxu0 %v8314
        %v8725 = vpop.f32.mrf.mxu0
        %v8726 = vadd.f32 0.0, %v8725
        %v8727 = vpop.f32.mrf.mxu0
        %8728 = vdwg.mxu0
        %8729 = vmatpush.bf16.msra.mxu0 %v8573
        %8730 = vmatpush.bf16.msra.mxu0 %v8569
        %8731 = vmatpush.bf16.msra.mxu0 %v8565
        %8732 = vmatpush.bf16.msra.mxu0 %v8561
        %8733 = vmatpush.bf16.msra.mxu0 %v8557
        %8734 = vmatpush.bf16.msra.mxu0 %v8553
        %8735 = vmatpush.bf16.msra.mxu0 %v8549
        %8736 = vmatpush.bf16.msra.mxu0 %v8545
        %8737 = vmatmul.bf16.gmra.mxu0 %v8315
        %v8738 = vpop.f32.mrf.mxu0
        %v8739 = vadd.f32 %v8726, %v8738
        %v8740 = vpop.f32.mrf.mxu0
        %8741 = vdwg.mxu0
        %v8742 = vrot.slane %v8272, 7
        %v8743 = vsel %vm1481, %v8742, %v8270
        %v8744 = vrot.slane %v8274, 6
        %v8745 = vsel %vm1484, %v8744, %v8743
        %v8746 = vrot.slane %v8276, 5
        %v8747 = vsel %vm1487, %v8746, %v8745
        %v8748 = vrot.slane %v8278, 4
        %v8749 = vsel %vm1490, %v8748, %v8747
        %v8750 = vrot.slane %v8280, 3
        %v8751 = vsel %vm1493, %v8750, %v8749
        %v8752 = vrot.slane %v8282, 2
        %v8753 = vsel %vm1496, %v8752, %v8751
        %v8754 = vrot.slane %v8284, 1
        %v8755 = vsel %vm1499, %v8754, %v8753
        %v8756 = vrot.slane %v8273, 7
        %v8757 = vsel %vm1481, %v8756, %v8271
        %v8758 = vrot.slane %v8275, 6
        %v8759 = vsel %vm1484, %v8758, %v8757
        %v8760 = vrot.slane %v8277, 5
        %v8761 = vsel %vm1487, %v8760, %v8759
        %v8762 = vrot.slane %v8279, 4
        %v8763 = vsel %vm1490, %v8762, %v8761
        %v8764 = vrot.slane %v8281, 3
        %v8765 = vsel %vm1493, %v8764, %v8763
        %v8766 = vrot.slane %v8283, 2
        %v8767 = vsel %vm1496, %v8766, %v8765
        %v8768 = vrot.slane %v8285, 1
        %v8769 = vsel %vm1499, %v8768, %v8767
        %v8770 = vpack.c.b16 %v8755, %v8755
        %v8771 = vpack.c.b16 %v8769, %v8769
        %v8838 = vunpack.c.l.b16 %v8125
        %v8839 = vunpack.c.h.b16 %v8125
        %v8840 = vunpack.c.l.b16 %v8126
        %v8841 = vunpack.c.h.b16 %v8126
        %v8842 = vunpack.c.l.b16 %v8127
        %v8843 = vunpack.c.h.b16 %v8127
        %v8844 = vunpack.c.l.b16 %v8128
        %v8845 = vunpack.c.h.b16 %v8128
        %v8846 = vunpack.c.l.b16 %v8129
        %v8847 = vunpack.c.h.b16 %v8129
        %v8848 = vunpack.c.l.b16 %v8130
        %v8849 = vunpack.c.h.b16 %v8130
        %v8850 = vunpack.c.l.b16 %v8131
        %v8851 = vunpack.c.h.b16 %v8131
        %v8852 = vunpack.c.l.b16 %v8132
        %v8853 = vunpack.c.h.b16 %v8132
        %v8854 = vunpack.c.l.b16 %v8133
        %v8855 = vunpack.c.h.b16 %v8133
        %v8856 = vunpack.c.l.b16 %v8134
        %v8857 = vunpack.c.h.b16 %v8134
        %v8858 = vunpack.c.l.b16 %v8135
        %v8859 = vunpack.c.h.b16 %v8135
        %v8860 = vunpack.c.l.b16 %v8136
        %v8861 = vunpack.c.h.b16 %v8136
        %v8862 = vunpack.c.l.b16 %v8137
        %v8863 = vunpack.c.h.b16 %v8137
        %v8864 = vunpack.c.l.b16 %v8138
        %v8865 = vunpack.c.h.b16 %v8138
        %v8866 = vunpack.c.l.b16 %v8139
        %v8867 = vunpack.c.h.b16 %v8139
        %v8868 = vunpack.c.l.b16 %v8140
        %v8869 = vunpack.c.h.b16 %v8140
        %v8870 = vunpack.c.l.b16 %v8141
        %v8871 = vunpack.c.h.b16 %v8141
        %v8872 = vunpack.c.l.b16 %v8142
        %v8873 = vunpack.c.h.b16 %v8142
        %v8874 = vunpack.c.l.b16 %v8143
        %v8875 = vunpack.c.h.b16 %v8143
        %v8876 = vunpack.c.l.b16 %v8144
        %v8877 = vunpack.c.h.b16 %v8144
        %v8878 = vunpack.c.l.b16 %v8145
        %v8879 = vunpack.c.h.b16 %v8145
        %v8880 = vunpack.c.l.b16 %v8146
        %v8881 = vunpack.c.h.b16 %v8146
        %v8882 = vunpack.c.l.b16 %v8147
        %v8883 = vunpack.c.h.b16 %v8147
        %v8884 = vunpack.c.l.b16 %v8148
        %v8885 = vunpack.c.h.b16 %v8148
        %v8886 = vunpack.c.l.b16 %v8149
        %v8887 = vunpack.c.h.b16 %v8149
        %v8888 = vunpack.c.l.b16 %v8150
        %v8889 = vunpack.c.h.b16 %v8150
        %v8890 = vunpack.c.l.b16 %v8151
        %v8891 = vunpack.c.h.b16 %v8151
        %v8892 = vunpack.c.l.b16 %v8152
        %v8893 = vunpack.c.h.b16 %v8152
        %v8894 = vunpack.c.l.b16 %v8153
        %v8895 = vunpack.c.h.b16 %v8153
        %v8896 = vunpack.c.l.b16 %v8154
        %v8897 = vunpack.c.h.b16 %v8154
        %v8898 = vunpack.c.l.b16 %v8155
        %v8899 = vunpack.c.h.b16 %v8155
        %v8900 = vunpack.c.l.b16 %v8156
        %v8901 = vunpack.c.h.b16 %v8156
        %v8902 = vunpack.c.l.b16 %v8157
        %v8903 = vunpack.c.h.b16 %v8157
        %v8904 = vunpack.c.l.b16 %v8158
        %v8905 = vunpack.c.h.b16 %v8158
        %v8906 = vunpack.c.l.b16 %v8159
        %v8907 = vunpack.c.h.b16 %v8159
        %v8908 = vunpack.c.l.b16 %v8160
        %v8909 = vunpack.c.h.b16 %v8160
        %v8910 = vunpack.c.l.b16 %v8161
        %v8911 = vunpack.c.h.b16 %v8161
        %v8912 = vunpack.c.l.b16 %v8162
        %v8913 = vunpack.c.h.b16 %v8162
        %v8914 = vunpack.c.l.b16 %v8163
        %v8915 = vunpack.c.h.b16 %v8163
        %v8916 = vunpack.c.l.b16 %v8164
        %v8917 = vunpack.c.h.b16 %v8164
        %v8918 = vunpack.c.l.b16 %v8165
        %v8919 = vunpack.c.h.b16 %v8165
        %v8920 = vunpack.c.l.b16 %v8166
        %v8921 = vunpack.c.h.b16 %v8166
        %v8922 = vunpack.c.l.b16 %v8167
        %v8923 = vunpack.c.h.b16 %v8167
        %v8924 = vunpack.c.l.b16 %v8168
        %v8925 = vunpack.c.h.b16 %v8168
        %v8926 = vunpack.c.l.b16 %v8169
        %v8927 = vunpack.c.h.b16 %v8169
        %v8928 = vunpack.c.l.b16 %v8170
        %v8929 = vunpack.c.h.b16 %v8170
        %v8930 = vunpack.c.l.b16 %v8171
        %v8931 = vunpack.c.h.b16 %v8171
        %v8932 = vunpack.c.l.b16 %v8172
        %v8933 = vunpack.c.h.b16 %v8172
        %v8934 = vunpack.c.l.b16 %v8173
        %v8935 = vunpack.c.h.b16 %v8173
        %v8936 = vunpack.c.l.b16 %v8174
        %v8937 = vunpack.c.h.b16 %v8174
        %v8938 = vunpack.c.l.b16 %v8175
        %v8939 = vunpack.c.h.b16 %v8175
        %v8940 = vunpack.c.l.b16 %v8176
        %v8941 = vunpack.c.h.b16 %v8176
        %v8942 = vunpack.c.l.b16 %v8177
        %v8943 = vunpack.c.h.b16 %v8177
        %v8944 = vunpack.c.l.b16 %v8178
        %v8945 = vunpack.c.h.b16 %v8178
        %v8946 = vunpack.c.l.b16 %v8179
        %v8947 = vunpack.c.h.b16 %v8179
        %v8948 = vunpack.c.l.b16 %v8180
        %v8949 = vunpack.c.h.b16 %v8180
        %v8950 = vunpack.c.l.b16 %v8181
        %v8951 = vunpack.c.h.b16 %v8181
        %v8952 = vunpack.c.l.b16 %v8182
        %v8953 = vunpack.c.h.b16 %v8182
        %v8954 = vunpack.c.l.b16 %v8183
        %v8955 = vunpack.c.h.b16 %v8183
        %v8956 = vunpack.c.l.b16 %v8184
        %v8957 = vunpack.c.h.b16 %v8184
        %v8958 = vunpack.c.l.b16 %v8185
        %v8959 = vunpack.c.h.b16 %v8185
        %v8960 = vunpack.c.l.b16 %v8186
        %v8961 = vunpack.c.h.b16 %v8186
        %v8962 = vunpack.c.l.b16 %v8187
        %v8963 = vunpack.c.h.b16 %v8187
        %v8964 = vunpack.c.l.b16 %v8188
        %v8965 = vunpack.c.h.b16 %v8188
        %v8966 = vpack.c.b16 %v8842, %v8838
        %v8967 = vpack.c.b16 %v8843, %v8839
        %v8968 = vpack.c.b16 %v8844, %v8840
        %v8969 = vpack.c.b16 %v8845, %v8841
        %v8970 = vpack.c.b16 %v8850, %v8846
        %v8971 = vpack.c.b16 %v8851, %v8847
        %v8972 = vpack.c.b16 %v8852, %v8848
        %v8973 = vpack.c.b16 %v8853, %v8849
        %v8974 = vpack.c.b16 %v8858, %v8854
        %v8975 = vpack.c.b16 %v8859, %v8855
        %v8976 = vpack.c.b16 %v8860, %v8856
        %v8977 = vpack.c.b16 %v8861, %v8857
        %v8978 = vpack.c.b16 %v8866, %v8862
        %v8979 = vpack.c.b16 %v8867, %v8863
        %v8980 = vpack.c.b16 %v8868, %v8864
        %v8981 = vpack.c.b16 %v8869, %v8865
        %v8982 = vpack.c.b16 %v8874, %v8870
        %v8983 = vpack.c.b16 %v8875, %v8871
        %v8984 = vpack.c.b16 %v8876, %v8872
        %v8985 = vpack.c.b16 %v8877, %v8873
        %v8986 = vpack.c.b16 %v8882, %v8878
        %v8987 = vpack.c.b16 %v8883, %v8879
        %v8988 = vpack.c.b16 %v8884, %v8880
        %v8989 = vpack.c.b16 %v8885, %v8881
        %v8990 = vpack.c.b16 %v8890, %v8886
        %v8991 = vpack.c.b16 %v8891, %v8887
        %v8992 = vpack.c.b16 %v8892, %v8888
        %v8993 = vpack.c.b16 %v8893, %v8889
        %v8994 = vpack.c.b16 %v8898, %v8894
        %v8995 = vpack.c.b16 %v8899, %v8895
        %v8996 = vpack.c.b16 %v8900, %v8896
        %v8997 = vpack.c.b16 %v8901, %v8897
        %v8998 = vpack.c.b16 %v8906, %v8902
        %v8999 = vpack.c.b16 %v8907, %v8903
        %v9000 = vpack.c.b16 %v8908, %v8904
        %v9001 = vpack.c.b16 %v8909, %v8905
        %v9002 = vpack.c.b16 %v8914, %v8910
        %v9003 = vpack.c.b16 %v8915, %v8911
        %v9004 = vpack.c.b16 %v8916, %v8912
        %v9005 = vpack.c.b16 %v8917, %v8913
        %v9006 = vpack.c.b16 %v8922, %v8918
        %v9007 = vpack.c.b16 %v8923, %v8919
        %v9008 = vpack.c.b16 %v8924, %v8920
        %v9009 = vpack.c.b16 %v8925, %v8921
        %v9010 = vpack.c.b16 %v8930, %v8926
        %v9011 = vpack.c.b16 %v8931, %v8927
        %v9012 = vpack.c.b16 %v8932, %v8928
        %v9013 = vpack.c.b16 %v8933, %v8929
        %v9014 = vpack.c.b16 %v8938, %v8934
        %v9015 = vpack.c.b16 %v8939, %v8935
        %v9016 = vpack.c.b16 %v8940, %v8936
        %v9017 = vpack.c.b16 %v8941, %v8937
        %v9018 = vpack.c.b16 %v8946, %v8942
        %v9019 = vpack.c.b16 %v8947, %v8943
        %v9020 = vpack.c.b16 %v8948, %v8944
        %v9021 = vpack.c.b16 %v8949, %v8945
        %v9022 = vpack.c.b16 %v8954, %v8950
        %v9023 = vpack.c.b16 %v8955, %v8951
        %v9024 = vpack.c.b16 %v8956, %v8952
        %v9025 = vpack.c.b16 %v8957, %v8953
        %v9026 = vpack.c.b16 %v8962, %v8958
        %v9027 = vpack.c.b16 %v8963, %v8959
        %v9028 = vpack.c.b16 %v8964, %v8960
        %v9029 = vpack.c.b16 %v8965, %v8961
        %9094 = vmatpush.bf16.msra.mxu0 %v8994
        %9095 = vmatpush.bf16.msra.mxu0 %v8990
        %9096 = vmatpush.bf16.msra.mxu0 %v8986
        %9097 = vmatpush.bf16.msra.mxu0 %v8982
        %9098 = vmatpush.bf16.msra.mxu0 %v8978
        %9099 = vmatpush.bf16.msra.mxu0 %v8974
        %9100 = vmatpush.bf16.msra.mxu0 %v8970
        %9101 = vmatpush.bf16.msra.mxu0 %v8966
        %9102 = vmatmul.bf16.gmra.mxu0 %v8770
        %v9103 = vpop.f32.mrf.mxu0
        %v9104 = vadd.f32 %v8661, %v9103
        %v9105 = vpop.f32.mrf.mxu0
        %9106 = vdwg.mxu0
        %9107 = vmatpush.bf16.msra.mxu0 %v9026
        %9108 = vmatpush.bf16.msra.mxu0 %v9022
        %9109 = vmatpush.bf16.msra.mxu0 %v9018
        %9110 = vmatpush.bf16.msra.mxu0 %v9014
        %9111 = vmatpush.bf16.msra.mxu0 %v9010
        %9112 = vmatpush.bf16.msra.mxu0 %v9006
        %9113 = vmatpush.bf16.msra.mxu0 %v9002
        %9114 = vmatpush.bf16.msra.mxu0 %v8998
        %9115 = vmatmul.bf16.gmra.mxu0 %v8771
        %v9116 = vpop.f32.mrf.mxu0
        %v9117 = vadd.f32 %v9104, %v9116
        %v9118 = vpop.f32.mrf.mxu0
        %9119 = vdwg.mxu0
        %9120 = vmatpush.bf16.msra.mxu0 %v8995
        %9121 = vmatpush.bf16.msra.mxu0 %v8991
        %9122 = vmatpush.bf16.msra.mxu0 %v8987
        %9123 = vmatpush.bf16.msra.mxu0 %v8983
        %9124 = vmatpush.bf16.msra.mxu0 %v8979
        %9125 = vmatpush.bf16.msra.mxu0 %v8975
        %9126 = vmatpush.bf16.msra.mxu0 %v8971
        %9127 = vmatpush.bf16.msra.mxu0 %v8967
        %9128 = vmatmul.bf16.gmra.mxu0 %v8770
        %v9129 = vpop.f32.mrf.mxu0
        %v9130 = vadd.f32 %v8687, %v9129
        %v9131 = vpop.f32.mrf.mxu0
        %9132 = vdwg.mxu0
        %9133 = vmatpush.bf16.msra.mxu0 %v9027
        %9134 = vmatpush.bf16.msra.mxu0 %v9023
        %9135 = vmatpush.bf16.msra.mxu0 %v9019
        %9136 = vmatpush.bf16.msra.mxu0 %v9015
        %9137 = vmatpush.bf16.msra.mxu0 %v9011
        %9138 = vmatpush.bf16.msra.mxu0 %v9007
        %9139 = vmatpush.bf16.msra.mxu0 %v9003
        %9140 = vmatpush.bf16.msra.mxu0 %v8999
        %9141 = vmatmul.bf16.gmra.mxu0 %v8771
        %v9142 = vpop.f32.mrf.mxu0
        %v9143 = vadd.f32 %v9130, %v9142
        %v9144 = vpop.f32.mrf.mxu0
        %9145 = vdwg.mxu0
        %9146 = vmatpush.bf16.msra.mxu0 %v8996
        %9147 = vmatpush.bf16.msra.mxu0 %v8992
        %9148 = vmatpush.bf16.msra.mxu0 %v8988
        %9149 = vmatpush.bf16.msra.mxu0 %v8984
        %9150 = vmatpush.bf16.msra.mxu0 %v8980
        %9151 = vmatpush.bf16.msra.mxu0 %v8976
        %9152 = vmatpush.bf16.msra.mxu0 %v8972
        %9153 = vmatpush.bf16.msra.mxu0 %v8968
        %9154 = vmatmul.bf16.gmra.mxu0 %v8770
        %v9155 = vpop.f32.mrf.mxu0
        %v9156 = vadd.f32 %v8713, %v9155
        %v9157 = vpop.f32.mrf.mxu0
        %9158 = vdwg.mxu0
        %9159 = vmatpush.bf16.msra.mxu0 %v9028
        %9160 = vmatpush.bf16.msra.mxu0 %v9024
        %9161 = vmatpush.bf16.msra.mxu0 %v9020
        %9162 = vmatpush.bf16.msra.mxu0 %v9016
        %9163 = vmatpush.bf16.msra.mxu0 %v9012
        %9164 = vmatpush.bf16.msra.mxu0 %v9008
        %9165 = vmatpush.bf16.msra.mxu0 %v9004
        %9166 = vmatpush.bf16.msra.mxu0 %v9000
        %9167 = vmatmul.bf16.gmra.mxu0 %v8771
        %v9168 = vpop.f32.mrf.mxu0
        %v9169 = vadd.f32 %v9156, %v9168
        %v9170 = vpop.f32.mrf.mxu0
        %9171 = vdwg.mxu0
        %9172 = vmatpush.bf16.msra.mxu0 %v8997
        %9173 = vmatpush.bf16.msra.mxu0 %v8993
        %9174 = vmatpush.bf16.msra.mxu0 %v8989
        %9175 = vmatpush.bf16.msra.mxu0 %v8985
        %9176 = vmatpush.bf16.msra.mxu0 %v8981
        %9177 = vmatpush.bf16.msra.mxu0 %v8977
        %9178 = vmatpush.bf16.msra.mxu0 %v8973
        %9179 = vmatpush.bf16.msra.mxu0 %v8969
        %9180 = vmatmul.bf16.gmra.mxu0 %v8770
        %v9181 = vpop.f32.mrf.mxu0
        %v9182 = vadd.f32 %v8739, %v9181
        %v9183 = vpop.f32.mrf.mxu0
        %9184 = vdwg.mxu0
        %9185 = vmatpush.bf16.msra.mxu0 %v9029
        %9186 = vmatpush.bf16.msra.mxu0 %v9025
        %9187 = vmatpush.bf16.msra.mxu0 %v9021
        %9188 = vmatpush.bf16.msra.mxu0 %v9017
        %9189 = vmatpush.bf16.msra.mxu0 %v9013
        %9190 = vmatpush.bf16.msra.mxu0 %v9009
        %9191 = vmatpush.bf16.msra.mxu0 %v9005
        %9192 = vmatpush.bf16.msra.mxu0 %v9001
        %9193 = vmatmul.bf16.gmra.mxu0 %v8771
        %v9194 = vpop.f32.mrf.mxu0
        %v9195 = vadd.f32 %v9182, %v9194
        %v9196 = vpop.f32.mrf.mxu0
        %9197 = vdwg.mxu0
        %s9198 = scalar_lea.vmem %s5, 1024
        %v9199 = vld [vmem:[%s9198] sm:$0xff]
        %v9200 = vld [vmem:[%s9198 + $0x8] sm:$0xff]
        %v9201 = vld [vmem:[%s9198 + $0x10] sm:$0xff]
        %v9202 = vld [vmem:[%s9198 + $0x18] sm:$0xff]
        %v9203 = vld [vmem:[%s9198 + $0x20] sm:$0xff]
        %v9204 = vld [vmem:[%s9198 + $0x28] sm:$0xff]
        %v9205 = vld [vmem:[%s9198 + $0x30] sm:$0xff]
        %v9206 = vld [vmem:[%s9198 + $0x38] sm:$0xff]
        %v9207 = vld [vmem:[%s9198 + $0x40] sm:$0xff]
        %v9208 = vld [vmem:[%s9198 + $0x48] sm:$0xff]
        %v9209 = vld [vmem:[%s9198 + $0x50] sm:$0xff]
        %v9210 = vld [vmem:[%s9198 + $0x58] sm:$0xff]
        %v9211 = vld [vmem:[%s9198 + $0x60] sm:$0xff]
        %v9212 = vld [vmem:[%s9198 + $0x68] sm:$0xff]
        %v9213 = vld [vmem:[%s9198 + $0x70] sm:$0xff]
        %v9214 = vld [vmem:[%s9198 + $0x78] sm:$0xff]
        %v9215 = vld [vmem:[%s9198 + $0x80] sm:$0xff]
        %v9216 = vld [vmem:[%s9198 + $0x88] sm:$0xff]
        %v9217 = vld [vmem:[%s9198 + $0x90] sm:$0xff]
        %v9218 = vld [vmem:[%s9198 + $0x98] sm:$0xff]
        %v9219 = vld [vmem:[%s9198 + $0xa0] sm:$0xff]
        %v9220 = vld [vmem:[%s9198 + $0xa8] sm:$0xff]
        %v9221 = vld [vmem:[%s9198 + $0xb0] sm:$0xff]
        %v9222 = vld [vmem:[%s9198 + $0xb8] sm:$0xff]
        %v9223 = vld [vmem:[%s9198 + $0xc0] sm:$0xff]
        %v9224 = vld [vmem:[%s9198 + $0xc8] sm:$0xff]
        %v9225 = vld [vmem:[%s9198 + $0xd0] sm:$0xff]
        %v9226 = vld [vmem:[%s9198 + $0xd8] sm:$0xff]
        %v9227 = vld [vmem:[%s9198 + $0xe0] sm:$0xff]
        %v9228 = vld [vmem:[%s9198 + $0xe8] sm:$0xff]
        %v9229 = vld [vmem:[%s9198 + $0xf0] sm:$0xff]
        %v9230 = vld [vmem:[%s9198 + $0xf8] sm:$0xff]
        %v9231 = vld [vmem:[%s9198 + $0x100] sm:$0xff]
        %v9232 = vld [vmem:[%s9198 + $0x108] sm:$0xff]
        %v9233 = vld [vmem:[%s9198 + $0x110] sm:$0xff]
        %v9234 = vld [vmem:[%s9198 + $0x118] sm:$0xff]
        %v9235 = vld [vmem:[%s9198 + $0x120] sm:$0xff]
        %v9236 = vld [vmem:[%s9198 + $0x128] sm:$0xff]
        %v9237 = vld [vmem:[%s9198 + $0x130] sm:$0xff]
        %v9238 = vld [vmem:[%s9198 + $0x138] sm:$0xff]
        %v9239 = vld [vmem:[%s9198 + $0x140] sm:$0xff]
        %v9240 = vld [vmem:[%s9198 + $0x148] sm:$0xff]
        %v9241 = vld [vmem:[%s9198 + $0x150] sm:$0xff]
        %v9242 = vld [vmem:[%s9198 + $0x158] sm:$0xff]
        %v9243 = vld [vmem:[%s9198 + $0x160] sm:$0xff]
        %v9244 = vld [vmem:[%s9198 + $0x168] sm:$0xff]
        %v9245 = vld [vmem:[%s9198 + $0x170] sm:$0xff]
        %v9246 = vld [vmem:[%s9198 + $0x178] sm:$0xff]
        %v9247 = vld [vmem:[%s9198 + $0x180] sm:$0xff]
        %v9248 = vld [vmem:[%s9198 + $0x188] sm:$0xff]
        %v9249 = vld [vmem:[%s9198 + $0x190] sm:$0xff]
        %v9250 = vld [vmem:[%s9198 + $0x198] sm:$0xff]
        %v9251 = vld [vmem:[%s9198 + $0x1a0] sm:$0xff]
        %v9252 = vld [vmem:[%s9198 + $0x1a8] sm:$0xff]
        %v9253 = vld [vmem:[%s9198 + $0x1b0] sm:$0xff]
        %v9254 = vld [vmem:[%s9198 + $0x1b8] sm:$0xff]
        %v9255 = vld [vmem:[%s9198 + $0x1c0] sm:$0xff]
        %v9256 = vld [vmem:[%s9198 + $0x1c8] sm:$0xff]
        %v9257 = vld [vmem:[%s9198 + $0x1d0] sm:$0xff]
        %v9258 = vld [vmem:[%s9198 + $0x1d8] sm:$0xff]
        %v9259 = vld [vmem:[%s9198 + $0x1e0] sm:$0xff]
        %v9260 = vld [vmem:[%s9198 + $0x1e8] sm:$0xff]
        %v9261 = vld [vmem:[%s9198 + $0x1f0] sm:$0xff]
        %v9262 = vld [vmem:[%s9198 + $0x1f8] sm:$0xff]
        %v9263 = vrot.slane %v8270, 2
        %v9264 = vrot.slane %v8272, 1
        %v9265 = vsel %vm1481, %v9264, %v9263
        %v9266 = vsel %vm1484, %v8274, %v9265
        %v9267 = vrot.slane %v8276, 7
        %v9268 = vsel %vm1487, %v9267, %v9266
        %v9269 = vrot.slane %v8278, 6
        %v9270 = vsel %vm1490, %v9269, %v9268
        %v9271 = vrot.slane %v8280, 5
        %v9272 = vsel %vm1493, %v9271, %v9270
        %v9273 = vrot.slane %v8282, 4
        %v9274 = vsel %vm1496, %v9273, %v9272
        %v9275 = vrot.slane %v8284, 3
        %v9276 = vsel %vm1499, %v9275, %v9274
        %v9277 = vrot.slane %v8271, 2
        %v9278 = vrot.slane %v8273, 1
        %v9279 = vsel %vm1481, %v9278, %v9277
        %v9280 = vsel %vm1484, %v8275, %v9279
        %v9281 = vrot.slane %v8277, 7
        %v9282 = vsel %vm1487, %v9281, %v9280
        %v9283 = vrot.slane %v8279, 6
        %v9284 = vsel %vm1490, %v9283, %v9282
        %v9285 = vrot.slane %v8281, 5
        %v9286 = vsel %vm1493, %v9285, %v9284
        %v9287 = vrot.slane %v8283, 4
        %v9288 = vsel %vm1496, %v9287, %v9286
        %v9289 = vrot.slane %v8285, 3
        %v9290 = vsel %vm1499, %v9289, %v9288
        %v9291 = vpack.c.b16 %v9276, %v9276
        %v9292 = vpack.c.b16 %v9290, %v9290
        %v9359 = vunpack.c.l.b16 %v9199
        %v9360 = vunpack.c.h.b16 %v9199
        %v9361 = vunpack.c.l.b16 %v9200
        %v9362 = vunpack.c.h.b16 %v9200
        %v9363 = vunpack.c.l.b16 %v9201
        %v9364 = vunpack.c.h.b16 %v9201
        %v9365 = vunpack.c.l.b16 %v9202
        %v9366 = vunpack.c.h.b16 %v9202
        %v9367 = vunpack.c.l.b16 %v9203
        %v9368 = vunpack.c.h.b16 %v9203
        %v9369 = vunpack.c.l.b16 %v9204
        %v9370 = vunpack.c.h.b16 %v9204
        %v9371 = vunpack.c.l.b16 %v9205
        %v9372 = vunpack.c.h.b16 %v9205
        %v9373 = vunpack.c.l.b16 %v9206
        %v9374 = vunpack.c.h.b16 %v9206
        %v9375 = vunpack.c.l.b16 %v9207
        %v9376 = vunpack.c.h.b16 %v9207
        %v9377 = vunpack.c.l.b16 %v9208
        %v9378 = vunpack.c.h.b16 %v9208
        %v9379 = vunpack.c.l.b16 %v9209
        %v9380 = vunpack.c.h.b16 %v9209
        %v9381 = vunpack.c.l.b16 %v9210
        %v9382 = vunpack.c.h.b16 %v9210
        %v9383 = vunpack.c.l.b16 %v9211
        %v9384 = vunpack.c.h.b16 %v9211
        %v9385 = vunpack.c.l.b16 %v9212
        %v9386 = vunpack.c.h.b16 %v9212
        %v9387 = vunpack.c.l.b16 %v9213
        %v9388 = vunpack.c.h.b16 %v9213
        %v9389 = vunpack.c.l.b16 %v9214
        %v9390 = vunpack.c.h.b16 %v9214
        %v9391 = vunpack.c.l.b16 %v9215
        %v9392 = vunpack.c.h.b16 %v9215
        %v9393 = vunpack.c.l.b16 %v9216
        %v9394 = vunpack.c.h.b16 %v9216
        %v9395 = vunpack.c.l.b16 %v9217
        %v9396 = vunpack.c.h.b16 %v9217
        %v9397 = vunpack.c.l.b16 %v9218
        %v9398 = vunpack.c.h.b16 %v9218
        %v9399 = vunpack.c.l.b16 %v9219
        %v9400 = vunpack.c.h.b16 %v9219
        %v9401 = vunpack.c.l.b16 %v9220
        %v9402 = vunpack.c.h.b16 %v9220
        %v9403 = vunpack.c.l.b16 %v9221
        %v9404 = vunpack.c.h.b16 %v9221
        %v9405 = vunpack.c.l.b16 %v9222
        %v9406 = vunpack.c.h.b16 %v9222
        %v9407 = vunpack.c.l.b16 %v9223
        %v9408 = vunpack.c.h.b16 %v9223
        %v9409 = vunpack.c.l.b16 %v9224
        %v9410 = vunpack.c.h.b16 %v9224
        %v9411 = vunpack.c.l.b16 %v9225
        %v9412 = vunpack.c.h.b16 %v9225
        %v9413 = vunpack.c.l.b16 %v9226
        %v9414 = vunpack.c.h.b16 %v9226
        %v9415 = vunpack.c.l.b16 %v9227
        %v9416 = vunpack.c.h.b16 %v9227
        %v9417 = vunpack.c.l.b16 %v9228
        %v9418 = vunpack.c.h.b16 %v9228
        %v9419 = vunpack.c.l.b16 %v9229
        %v9420 = vunpack.c.h.b16 %v9229
        %v9421 = vunpack.c.l.b16 %v9230
        %v9422 = vunpack.c.h.b16 %v9230
        %v9423 = vunpack.c.l.b16 %v9231
        %v9424 = vunpack.c.h.b16 %v9231
        %v9425 = vunpack.c.l.b16 %v9232
        %v9426 = vunpack.c.h.b16 %v9232
        %v9427 = vunpack.c.l.b16 %v9233
        %v9428 = vunpack.c.h.b16 %v9233
        %v9429 = vunpack.c.l.b16 %v9234
        %v9430 = vunpack.c.h.b16 %v9234
        %v9431 = vunpack.c.l.b16 %v9235
        %v9432 = vunpack.c.h.b16 %v9235
        %v9433 = vunpack.c.l.b16 %v9236
        %v9434 = vunpack.c.h.b16 %v9236
        %v9435 = vunpack.c.l.b16 %v9237
        %v9436 = vunpack.c.h.b16 %v9237
        %v9437 = vunpack.c.l.b16 %v9238
        %v9438 = vunpack.c.h.b16 %v9238
        %v9439 = vunpack.c.l.b16 %v9239
        %v9440 = vunpack.c.h.b16 %v9239
        %v9441 = vunpack.c.l.b16 %v9240
        %v9442 = vunpack.c.h.b16 %v9240
        %v9443 = vunpack.c.l.b16 %v9241
        %v9444 = vunpack.c.h.b16 %v9241
        %v9445 = vunpack.c.l.b16 %v9242
        %v9446 = vunpack.c.h.b16 %v9242
        %v9447 = vunpack.c.l.b16 %v9243
        %v9448 = vunpack.c.h.b16 %v9243
        %v9449 = vunpack.c.l.b16 %v9244
        %v9450 = vunpack.c.h.b16 %v9244
        %v9451 = vunpack.c.l.b16 %v9245
        %v9452 = vunpack.c.h.b16 %v9245
        %v9453 = vunpack.c.l.b16 %v9246
        %v9454 = vunpack.c.h.b16 %v9246
        %v9455 = vunpack.c.l.b16 %v9247
        %v9456 = vunpack.c.h.b16 %v9247
        %v9457 = vunpack.c.l.b16 %v9248
        %v9458 = vunpack.c.h.b16 %v9248
        %v9459 = vunpack.c.l.b16 %v9249
        %v9460 = vunpack.c.h.b16 %v9249
        %v9461 = vunpack.c.l.b16 %v9250
        %v9462 = vunpack.c.h.b16 %v9250
        %v9463 = vunpack.c.l.b16 %v9251
        %v9464 = vunpack.c.h.b16 %v9251
        %v9465 = vunpack.c.l.b16 %v9252
        %v9466 = vunpack.c.h.b16 %v9252
        %v9467 = vunpack.c.l.b16 %v9253
        %v9468 = vunpack.c.h.b16 %v9253
        %v9469 = vunpack.c.l.b16 %v9254
        %v9470 = vunpack.c.h.b16 %v9254
        %v9471 = vunpack.c.l.b16 %v9255
        %v9472 = vunpack.c.h.b16 %v9255
        %v9473 = vunpack.c.l.b16 %v9256
        %v9474 = vunpack.c.h.b16 %v9256
        %v9475 = vunpack.c.l.b16 %v9257
        %v9476 = vunpack.c.h.b16 %v9257
        %v9477 = vunpack.c.l.b16 %v9258
        %v9478 = vunpack.c.h.b16 %v9258
        %v9479 = vunpack.c.l.b16 %v9259
        %v9480 = vunpack.c.h.b16 %v9259
        %v9481 = vunpack.c.l.b16 %v9260
        %v9482 = vunpack.c.h.b16 %v9260
        %v9483 = vunpack.c.l.b16 %v9261
        %v9484 = vunpack.c.h.b16 %v9261
        %v9485 = vunpack.c.l.b16 %v9262
        %v9486 = vunpack.c.h.b16 %v9262
        %v9487 = vpack.c.b16 %v9363, %v9359
        %v9488 = vpack.c.b16 %v9364, %v9360
        %v9489 = vpack.c.b16 %v9365, %v9361
        %v9490 = vpack.c.b16 %v9366, %v9362
        %v9491 = vpack.c.b16 %v9371, %v9367
        %v9492 = vpack.c.b16 %v9372, %v9368
        %v9493 = vpack.c.b16 %v9373, %v9369
        %v9494 = vpack.c.b16 %v9374, %v9370
        %v9495 = vpack.c.b16 %v9379, %v9375
        %v9496 = vpack.c.b16 %v9380, %v9376
        %v9497 = vpack.c.b16 %v9381, %v9377
        %v9498 = vpack.c.b16 %v9382, %v9378
        %v9499 = vpack.c.b16 %v9387, %v9383
        %v9500 = vpack.c.b16 %v9388, %v9384
        %v9501 = vpack.c.b16 %v9389, %v9385
        %v9502 = vpack.c.b16 %v9390, %v9386
        %v9503 = vpack.c.b16 %v9395, %v9391
        %v9504 = vpack.c.b16 %v9396, %v9392
        %v9505 = vpack.c.b16 %v9397, %v9393
        %v9506 = vpack.c.b16 %v9398, %v9394
        %v9507 = vpack.c.b16 %v9403, %v9399
        %v9508 = vpack.c.b16 %v9404, %v9400
        %v9509 = vpack.c.b16 %v9405, %v9401
        %v9510 = vpack.c.b16 %v9406, %v9402
        %v9511 = vpack.c.b16 %v9411, %v9407
        %v9512 = vpack.c.b16 %v9412, %v9408
        %v9513 = vpack.c.b16 %v9413, %v9409
        %v9514 = vpack.c.b16 %v9414, %v9410
        %v9515 = vpack.c.b16 %v9419, %v9415
        %v9516 = vpack.c.b16 %v9420, %v9416
        %v9517 = vpack.c.b16 %v9421, %v9417
        %v9518 = vpack.c.b16 %v9422, %v9418
        %v9519 = vpack.c.b16 %v9427, %v9423
        %v9520 = vpack.c.b16 %v9428, %v9424
        %v9521 = vpack.c.b16 %v9429, %v9425
        %v9522 = vpack.c.b16 %v9430, %v9426
        %v9523 = vpack.c.b16 %v9435, %v9431
        %v9524 = vpack.c.b16 %v9436, %v9432
        %v9525 = vpack.c.b16 %v9437, %v9433
        %v9526 = vpack.c.b16 %v9438, %v9434
        %v9527 = vpack.c.b16 %v9443, %v9439
        %v9528 = vpack.c.b16 %v9444, %v9440
        %v9529 = vpack.c.b16 %v9445, %v9441
        %v9530 = vpack.c.b16 %v9446, %v9442
        %v9531 = vpack.c.b16 %v9451, %v9447
        %v9532 = vpack.c.b16 %v9452, %v9448
        %v9533 = vpack.c.b16 %v9453, %v9449
        %v9534 = vpack.c.b16 %v9454, %v9450
        %v9535 = vpack.c.b16 %v9459, %v9455
        %v9536 = vpack.c.b16 %v9460, %v9456
        %v9537 = vpack.c.b16 %v9461, %v9457
        %v9538 = vpack.c.b16 %v9462, %v9458
        %v9539 = vpack.c.b16 %v9467, %v9463
        %v9540 = vpack.c.b16 %v9468, %v9464
        %v9541 = vpack.c.b16 %v9469, %v9465
        %v9542 = vpack.c.b16 %v9470, %v9466
        %v9543 = vpack.c.b16 %v9475, %v9471
        %v9544 = vpack.c.b16 %v9476, %v9472
        %v9545 = vpack.c.b16 %v9477, %v9473
        %v9546 = vpack.c.b16 %v9478, %v9474
        %v9547 = vpack.c.b16 %v9483, %v9479
        %v9548 = vpack.c.b16 %v9484, %v9480
        %v9549 = vpack.c.b16 %v9485, %v9481
        %v9550 = vpack.c.b16 %v9486, %v9482
        %9615 = vmatpush.bf16.msra.mxu0 %v9515
        %9616 = vmatpush.bf16.msra.mxu0 %v9511
        %9617 = vmatpush.bf16.msra.mxu0 %v9507
        %9618 = vmatpush.bf16.msra.mxu0 %v9503
        %9619 = vmatpush.bf16.msra.mxu0 %v9499
        %9620 = vmatpush.bf16.msra.mxu0 %v9495
        %9621 = vmatpush.bf16.msra.mxu0 %v9491
        %9622 = vmatpush.bf16.msra.mxu0 %v9487
        %9623 = vmatmul.bf16.gmra.mxu0 %v9291
        %v9624 = vpop.f32.mrf.mxu0
        %v9625 = vadd.f32 0.0, %v9624
        %v9626 = vpop.f32.mrf.mxu0
        %9627 = vdwg.mxu0
        %9628 = vmatpush.bf16.msra.mxu0 %v9547
        %9629 = vmatpush.bf16.msra.mxu0 %v9543
        %9630 = vmatpush.bf16.msra.mxu0 %v9539
        %9631 = vmatpush.bf16.msra.mxu0 %v9535
        %9632 = vmatpush.bf16.msra.mxu0 %v9531
        %9633 = vmatpush.bf16.msra.mxu0 %v9527
        %9634 = vmatpush.bf16.msra.mxu0 %v9523
        %9635 = vmatpush.bf16.msra.mxu0 %v9519
        %9636 = vmatmul.bf16.gmra.mxu0 %v9292
        %v9637 = vpop.f32.mrf.mxu0
        %v9638 = vadd.f32 %v9625, %v9637
        %v9639 = vpop.f32.mrf.mxu0
        %9640 = vdwg.mxu0
        %9641 = vmatpush.bf16.msra.mxu0 %v9516
        %9642 = vmatpush.bf16.msra.mxu0 %v9512
        %9643 = vmatpush.bf16.msra.mxu0 %v9508
        %9644 = vmatpush.bf16.msra.mxu0 %v9504
        %9645 = vmatpush.bf16.msra.mxu0 %v9500
        %9646 = vmatpush.bf16.msra.mxu0 %v9496
        %9647 = vmatpush.bf16.msra.mxu0 %v9492
        %9648 = vmatpush.bf16.msra.mxu0 %v9488
        %9649 = vmatmul.bf16.gmra.mxu0 %v9291
        %v9650 = vpop.f32.mrf.mxu0
        %v9651 = vadd.f32 0.0, %v9650
        %v9652 = vpop.f32.mrf.mxu0
        %9653 = vdwg.mxu0
        %9654 = vmatpush.bf16.msra.mxu0 %v9548
        %9655 = vmatpush.bf16.msra.mxu0 %v9544
        %9656 = vmatpush.bf16.msra.mxu0 %v9540
        %9657 = vmatpush.bf16.msra.mxu0 %v9536
        %9658 = vmatpush.bf16.msra.mxu0 %v9532
        %9659 = vmatpush.bf16.msra.mxu0 %v9528
        %9660 = vmatpush.bf16.msra.mxu0 %v9524
        %9661 = vmatpush.bf16.msra.mxu0 %v9520
        %9662 = vmatmul.bf16.gmra.mxu0 %v9292
        %v9663 = vpop.f32.mrf.mxu0
        %v9664 = vadd.f32 %v9651, %v9663
        %v9665 = vpop.f32.mrf.mxu0
        %9666 = vdwg.mxu0
        %9667 = vmatpush.bf16.msra.mxu0 %v9517
        %9668 = vmatpush.bf16.msra.mxu0 %v9513
        %9669 = vmatpush.bf16.msra.mxu0 %v9509
        %9670 = vmatpush.bf16.msra.mxu0 %v9505
        %9671 = vmatpush.bf16.msra.mxu0 %v9501
        %9672 = vmatpush.bf16.msra.mxu0 %v9497
        %9673 = vmatpush.bf16.msra.mxu0 %v9493
        %9674 = vmatpush.bf16.msra.mxu0 %v9489
        %9675 = vmatmul.bf16.gmra.mxu0 %v9291
        %v9676 = vpop.f32.mrf.mxu0
        %v9677 = vadd.f32 0.0, %v9676
        %v9678 = vpop.f32.mrf.mxu0
        %9679 = vdwg.mxu0
        %9680 = vmatpush.bf16.msra.mxu0 %v9549
        %9681 = vmatpush.bf16.msra.mxu0 %v9545
        %9682 = vmatpush.bf16.msra.mxu0 %v9541
        %9683 = vmatpush.bf16.msra.mxu0 %v9537
        %9684 = vmatpush.bf16.msra.mxu0 %v9533
        %9685 = vmatpush.bf16.msra.mxu0 %v9529
        %9686 = vmatpush.bf16.msra.mxu0 %v9525
        %9687 = vmatpush.bf16.msra.mxu0 %v9521
        %9688 = vmatmul.bf16.gmra.mxu0 %v9292
        %v9689 = vpop.f32.mrf.mxu0
        %v9690 = vadd.f32 %v9677, %v9689
        %v9691 = vpop.f32.mrf.mxu0
        %9692 = vdwg.mxu0
        %9693 = vmatpush.bf16.msra.mxu0 %v9518
        %9694 = vmatpush.bf16.msra.mxu0 %v9514
        %9695 = vmatpush.bf16.msra.mxu0 %v9510
        %9696 = vmatpush.bf16.msra.mxu0 %v9506
        %9697 = vmatpush.bf16.msra.mxu0 %v9502
        %9698 = vmatpush.bf16.msra.mxu0 %v9498
        %9699 = vmatpush.bf16.msra.mxu0 %v9494
        %9700 = vmatpush.bf16.msra.mxu0 %v9490
        %9701 = vmatmul.bf16.gmra.mxu0 %v9291
        %v9702 = vpop.f32.mrf.mxu0
        %v9703 = vadd.f32 0.0, %v9702
        %v9704 = vpop.f32.mrf.mxu0
        %9705 = vdwg.mxu0
        %9706 = vmatpush.bf16.msra.mxu0 %v9550
        %9707 = vmatpush.bf16.msra.mxu0 %v9546
        %9708 = vmatpush.bf16.msra.mxu0 %v9542
        %9709 = vmatpush.bf16.msra.mxu0 %v9538
        %9710 = vmatpush.bf16.msra.mxu0 %v9534
        %9711 = vmatpush.bf16.msra.mxu0 %v9530
        %9712 = vmatpush.bf16.msra.mxu0 %v9526
        %9713 = vmatpush.bf16.msra.mxu0 %v9522
        %9714 = vmatmul.bf16.gmra.mxu0 %v9292
        %v9715 = vpop.f32.mrf.mxu0
        %v9716 = vadd.f32 %v9703, %v9715
        %v9717 = vpop.f32.mrf.mxu0
        %9718 = vdwg.mxu0
        %v9719 = vadd.f32 %v9117, %v9638
        %v9720 = vadd.f32 %v9143, %v9664
        %v9721 = vadd.f32 %v9169, %v9690
        %v9722 = vadd.f32 %v9195, %v9716
        %v9723 = vld [vmem:[%s6] sm:$0xf]
        %v9725 = vperm.slane %v9723, 0
        %v9726 = vperm.slane %v9723, 1
        %v9727 = vperm.slane %v9723, 2
        %v9728 = vperm.slane %v9723, 3
        %v9733 = vadd.f32 %v9719, %v9725
        %v9734 = vadd.f32 %v9720, %v9726
        %v9735 = vadd.f32 %v9721, %v9727
        %v9736 = vadd.f32 %v9722, %v9728
        %v9737 = vmax.f32 %v9733, 0.0
        %v9738 = vmax.f32 %v9734, 0.0
        %v9739 = vmax.f32 %v9735, 0.0
        %v9740 = vmax.f32 %v9736, 0.0
        %v9741 = vadd.f32 %v9737, 0.0
        %v9742 = vadd.f32 %v9738, 0.0
        %v9743 = vadd.f32 %v9739, 0.0
        %v9744 = vadd.f32 %v9740, 0.0
        %v9745 = vpack.c.bf16 %v9741, %v9741
        %v9746 = vpack.c.bf16 %v9742, %v9742
        %v9747 = vpack.c.bf16 %v9743, %v9743
        %v9748 = vpack.c.bf16 %v9744, %v9744
        %v9749 = vld [vmem:[%s7] sm:$0xf]
        %v9750 = vld [vmem:[%s7 + $0x4] sm:$0xf]
        %v9751 = vld [vmem:[%s7 + $0x8] sm:$0xf]
        %v9752 = vld [vmem:[%s7 + $0xc] sm:$0xf]
        %v9753 = vld [vmem:[%s7 + $0x10] sm:$0xf]
        %v9754 = vld [vmem:[%s7 + $0x14] sm:$0xf]
        %v9755 = vld [vmem:[%s7 + $0x18] sm:$0xf]
        %v9756 = vld [vmem:[%s7 + $0x1c] sm:$0xf]
        %v9757 = vld [vmem:[%s7 + $0x20] sm:$0xf]
        %v9758 = vld [vmem:[%s7 + $0x24] sm:$0xf]
        %v9759 = vld [vmem:[%s7 + $0x28] sm:$0xf]
        %v9760 = vld [vmem:[%s7 + $0x2c] sm:$0xf]
        %v9761 = vld [vmem:[%s7 + $0x30] sm:$0xf]
        %v9762 = vld [vmem:[%s7 + $0x34] sm:$0xf]
        %v9763 = vld [vmem:[%s7 + $0x38] sm:$0xf]
        %v9764 = vld [vmem:[%s7 + $0x3c] sm:$0xf]
        %v9765 = vld [vmem:[%s7 + $0x40] sm:$0xf]
        %v9766 = vld [vmem:[%s7 + $0x44] sm:$0xf]
        %v9767 = vld [vmem:[%s7 + $0x48] sm:$0xf]
        %v9768 = vld [vmem:[%s7 + $0x4c] sm:$0xf]
        %v9769 = vld [vmem:[%s7 + $0x50] sm:$0xf]
        %v9770 = vld [vmem:[%s7 + $0x54] sm:$0xf]
        %v9771 = vld [vmem:[%s7 + $0x58] sm:$0xf]
        %v9772 = vld [vmem:[%s7 + $0x5c] sm:$0xf]
        %v9773 = vld [vmem:[%s7 + $0x60] sm:$0xf]
        %v9774 = vld [vmem:[%s7 + $0x64] sm:$0xf]
        %v9775 = vld [vmem:[%s7 + $0x68] sm:$0xf]
        %v9776 = vld [vmem:[%s7 + $0x6c] sm:$0xf]
        %v9777 = vld [vmem:[%s7 + $0x70] sm:$0xf]
        %v9778 = vld [vmem:[%s7 + $0x74] sm:$0xf]
        %v9779 = vld [vmem:[%s7 + $0x78] sm:$0xf]
        %v9780 = vld [vmem:[%s7 + $0x7c] sm:$0xf]
        %v9781 = vld [vmem:[%s7 + $0x80] sm:$0xf]
        %v9782 = vld [vmem:[%s7 + $0x84] sm:$0xf]
        %v9783 = vld [vmem:[%s7 + $0x88] sm:$0xf]
        %v9784 = vld [vmem:[%s7 + $0x8c] sm:$0xf]
        %v9785 = vld [vmem:[%s7 + $0x90] sm:$0xf]
        %v9786 = vld [vmem:[%s7 + $0x94] sm:$0xf]
        %v9787 = vld [vmem:[%s7 + $0x98] sm:$0xf]
        %v9788 = vld [vmem:[%s7 + $0x9c] sm:$0xf]
        %v9789 = vld [vmem:[%s7 + $0xa0] sm:$0xf]
        %v9790 = vld [vmem:[%s7 + $0xa4] sm:$0xf]
        %v9791 = vld [vmem:[%s7 + $0xa8] sm:$0xf]
        %v9792 = vld [vmem:[%s7 + $0xac] sm:$0xf]
        %v9793 = vld [vmem:[%s7 + $0xb0] sm:$0xf]
        %v9794 = vld [vmem:[%s7 + $0xb4] sm:$0xf]
        %v9795 = vld [vmem:[%s7 + $0xb8] sm:$0xf]
        %v9796 = vld [vmem:[%s7 + $0xbc] sm:$0xf]
        %v9797 = vld [vmem:[%s7 + $0xc0] sm:$0xf]
        %v9798 = vld [vmem:[%s7 + $0xc4] sm:$0xf]
        %v9799 = vld [vmem:[%s7 + $0xc8] sm:$0xf]
        %v9800 = vld [vmem:[%s7 + $0xcc] sm:$0xf]
        %v9801 = vld [vmem:[%s7 + $0xd0] sm:$0xf]
        %v9802 = vld [vmem:[%s7 + $0xd4] sm:$0xf]
        %v9803 = vld [vmem:[%s7 + $0xd8] sm:$0xf]
        %v9804 = vld [vmem:[%s7 + $0xdc] sm:$0xf]
        %v9805 = vld [vmem:[%s7 + $0xe0] sm:$0xf]
        %v9806 = vld [vmem:[%s7 + $0xe4] sm:$0xf]
        %v9807 = vld [vmem:[%s7 + $0xe8] sm:$0xf]
        %v9808 = vld [vmem:[%s7 + $0xec] sm:$0xf]
        %v9809 = vld [vmem:[%s7 + $0xf0] sm:$0xf]
        %v9810 = vld [vmem:[%s7 + $0xf4] sm:$0xf]
        %v9811 = vld [vmem:[%s7 + $0xf8] sm:$0xf]
        %v9812 = vld [vmem:[%s7 + $0xfc] sm:$0xf]
        %v9813 = vld [vmem:[%s8] sm:$0x1]
        %v9815 = vperm.slane %v9813, 0
        %v9881 = vunpack.c.l.b16 %v9749
        %v9882 = vunpack.c.l.b16 %v9750
        %v9883 = vunpack.c.l.b16 %v9751
        %v9884 = vunpack.c.l.b16 %v9752
        %v9885 = vunpack.c.l.b16 %v9753
        %v9886 = vunpack.c.l.b16 %v9754
        %v9887 = vunpack.c.l.b16 %v9755
        %v9888 = vunpack.c.l.b16 %v9756
        %v9889 = vunpack.c.l.b16 %v9757
        %v9890 = vunpack.c.l.b16 %v9758
        %v9891 = vunpack.c.l.b16 %v9759
        %v9892 = vunpack.c.l.b16 %v9760
        %v9893 = vunpack.c.l.b16 %v9761
        %v9894 = vunpack.c.l.b16 %v9762
        %v9895 = vunpack.c.l.b16 %v9763
        %v9896 = vunpack.c.l.b16 %v9764
        %v9897 = vunpack.c.l.b16 %v9765
        %v9898 = vunpack.c.l.b16 %v9766
        %v9899 = vunpack.c.l.b16 %v9767
        %v9900 = vunpack.c.l.b16 %v9768
        %v9901 = vunpack.c.l.b16 %v9769
        %v9902 = vunpack.c.l.b16 %v9770
        %v9903 = vunpack.c.l.b16 %v9771
        %v9904 = vunpack.c.l.b16 %v9772
        %v9905 = vunpack.c.l.b16 %v9773
        %v9906 = vunpack.c.l.b16 %v9774
        %v9907 = vunpack.c.l.b16 %v9775
        %v9908 = vunpack.c.l.b16 %v9776
        %v9909 = vunpack.c.l.b16 %v9777
        %v9910 = vunpack.c.l.b16 %v9778
        %v9911 = vunpack.c.l.b16 %v9779
        %v9912 = vunpack.c.l.b16 %v9780
        %v9913 = vunpack.c.l.b16 %v9781
        %v9914 = vunpack.c.l.b16 %v9782
        %v9915 = vunpack.c.l.b16 %v9783
        %v9916 = vunpack.c.l.b16 %v9784
        %v9917 = vunpack.c.l.b16 %v9785
        %v9918 = vunpack.c.l.b16 %v9786
        %v9919 = vunpack.c.l.b16 %v9787
        %v9920 = vunpack.c.l.b16 %v9788
        %v9921 = vunpack.c.l.b16 %v9789
        %v9922 = vunpack.c.l.b16 %v9790
        %v9923 = vunpack.c.l.b16 %v9791
        %v9924 = vunpack.c.l.b16 %v9792
        %v9925 = vunpack.c.l.b16 %v9793
        %v9926 = vunpack.c.l.b16 %v9794
        %v9927 = vunpack.c.l.b16 %v9795
        %v9928 = vunpack.c.l.b16 %v9796
        %v9929 = vunpack.c.l.b16 %v9797
        %v9930 = vunpack.c.l.b16 %v9798
        %v9931 = vunpack.c.l.b16 %v9799
        %v9932 = vunpack.c.l.b16 %v9800
        %v9933 = vunpack.c.l.b16 %v9801
        %v9934 = vunpack.c.l.b16 %v9802
        %v9935 = vunpack.c.l.b16 %v9803
        %v9936 = vunpack.c.l.b16 %v9804
        %v9937 = vunpack.c.l.b16 %v9805
        %v9938 = vunpack.c.l.b16 %v9806
        %v9939 = vunpack.c.l.b16 %v9807
        %v9940 = vunpack.c.l.b16 %v9808
        %v9941 = vunpack.c.l.b16 %v9809
        %v9942 = vunpack.c.l.b16 %v9810
        %v9943 = vunpack.c.l.b16 %v9811
        %v9944 = vunpack.c.l.b16 %v9812
        %v9945 = vpack.c.b16 %v9882, %v9881
        %v9946 = vpack.c.b16 %v9884, %v9883
        %v9947 = vpack.c.b16 %v9886, %v9885
        %v9948 = vpack.c.b16 %v9888, %v9887
        %v9949 = vpack.c.b16 %v9890, %v9889
        %v9950 = vpack.c.b16 %v9892, %v9891
        %v9951 = vpack.c.b16 %v9894, %v9893
        %v9952 = vpack.c.b16 %v9896, %v9895
        %v9953 = vpack.c.b16 %v9898, %v9897
        %v9954 = vpack.c.b16 %v9900, %v9899
        %v9955 = vpack.c.b16 %v9902, %v9901
        %v9956 = vpack.c.b16 %v9904, %v9903
        %v9957 = vpack.c.b16 %v9906, %v9905
        %v9958 = vpack.c.b16 %v9908, %v9907
        %v9959 = vpack.c.b16 %v9910, %v9909
        %v9960 = vpack.c.b16 %v9912, %v9911
        %v9961 = vpack.c.b16 %v9914, %v9913
        %v9962 = vpack.c.b16 %v9916, %v9915
        %v9963 = vpack.c.b16 %v9918, %v9917
        %v9964 = vpack.c.b16 %v9920, %v9919
        %v9965 = vpack.c.b16 %v9922, %v9921
        %v9966 = vpack.c.b16 %v9924, %v9923
        %v9967 = vpack.c.b16 %v9926, %v9925
        %v9968 = vpack.c.b16 %v9928, %v9927
        %v9969 = vpack.c.b16 %v9930, %v9929
        %v9970 = vpack.c.b16 %v9932, %v9931
        %v9971 = vpack.c.b16 %v9934, %v9933
        %v9972 = vpack.c.b16 %v9936, %v9935
        %v9973 = vpack.c.b16 %v9938, %v9937
        %v9974 = vpack.c.b16 %v9940, %v9939
        %v9975 = vpack.c.b16 %v9942, %v9941
        %v9976 = vpack.c.b16 %v9944, %v9943
        %10009 = vmatpush.bf16.msra.mxu0 %v9952
        %10010 = vmatpush.bf16.msra.mxu0 %v9951
        %10011 = vmatpush.bf16.msra.mxu0 %v9950
        %10012 = vmatpush.bf16.msra.mxu0 %v9949
        %10013 = vmatpush.bf16.msra.mxu0 %v9948
        %10014 = vmatpush.bf16.msra.mxu0 %v9947
        %10015 = vmatpush.bf16.msra.mxu0 %v9946
        %10016 = vmatpush.bf16.msra.mxu0 %v9945
        %10017 = vmatmul.bf16.gmra.mxu0 %v9745
        %v10018 = vpop.f32.mrf.mxu0
        %v10019 = vadd.f32 %v9815, %v10018
        %v10020 = vpop.f32.mrf.mxu0
        %10021 = vdwg.mxu0
        %10022 = vmatpush.bf16.msra.mxu0 %v9960
        %10023 = vmatpush.bf16.msra.mxu0 %v9959
        %10024 = vmatpush.bf16.msra.mxu0 %v9958
        %10025 = vmatpush.bf16.msra.mxu0 %v9957
        %10026 = vmatpush.bf16.msra.mxu0 %v9956
        %10027 = vmatpush.bf16.msra.mxu0 %v9955
        %10028 = vmatpush.bf16.msra.mxu0 %v9954
        %10029 = vmatpush.bf16.msra.mxu0 %v9953
        %10030 = vmatmul.bf16.gmra.mxu0 %v9746
        %v10031 = vpop.f32.mrf.mxu0
        %v10032 = vadd.f32 %v10019, %v10031
        %v10033 = vpop.f32.mrf.mxu0
        %10034 = vdwg.mxu0
        %10035 = vmatpush.bf16.msra.mxu0 %v9968
        %10036 = vmatpush.bf16.msra.mxu0 %v9967
        %10037 = vmatpush.bf16.msra.mxu0 %v9966
        %10038 = vmatpush.bf16.msra.mxu0 %v9965
        %10039 = vmatpush.bf16.msra.mxu0 %v9964
        %10040 = vmatpush.bf16.msra.mxu0 %v9963
        %10041 = vmatpush.bf16.msra.mxu0 %v9962
        %10042 = vmatpush.bf16.msra.mxu0 %v9961
        %10043 = vmatmul.bf16.gmra.mxu0 %v9747
        %v10044 = vpop.f32.mrf.mxu0
        %v10045 = vadd.f32 %v10032, %v10044
        %v10046 = vpop.f32.mrf.mxu0
        %10047 = vdwg.mxu0
        %10048 = vmatpush.bf16.msra.mxu0 %v9976
        %10049 = vmatpush.bf16.msra.mxu0 %v9975
        %10050 = vmatpush.bf16.msra.mxu0 %v9974
        %10051 = vmatpush.bf16.msra.mxu0 %v9973
        %10052 = vmatpush.bf16.msra.mxu0 %v9972
        %10053 = vmatpush.bf16.msra.mxu0 %v9971
        %10054 = vmatpush.bf16.msra.mxu0 %v9970
        %10055 = vmatpush.bf16.msra.mxu0 %v9969
        %10056 = vmatmul.bf16.gmra.mxu0 %v9748
        %v10057 = vpop.f32.mrf.mxu0
        %v10058 = vadd.f32 %v10045, %v10057
        %v10059 = vpop.f32.mrf.mxu0
        %10060 = vdwg.mxu0
        %10061 = vst [vmem:[%s328] sm:$0xff] %v10058
        %s10062 = sand.u32 %s225, 1
        %s10063 = scalar_lea.sflag [#allocation5], %s10062
        %s10064 = sand.u32 %s225, 1
        %s10065 = smul.addr %s10064, 8
        %s10066 = scalar_lea.vmem [#allocation4], %s10065
        // Predicated region
        $region57: #{cnn_1d_forward.1} parent=55 // pred_check
          %p10067 = pneg %p235
        $region58: #{cnn_1d_forward.1} parent=55 // pred_check_branch
          %10069 = sbr.rel (%p10067) target = $region60
        $region59: #{cnn_1d_forward.1} parent=55 // pred_region
          %10071 = vsyncadd %s10063, 0
          %s10072 = smul.addr %s23, 8
          %s10073 = scalar_lea.hbm %s9, %s10072
          %s10075 = sshll.u32 %s10066, 4
          %s10076 = int_to_ptr.vmem [resolvable:$true] %s10075
          %s10077 = sshll.u32 %s10073, 4
          %s10078 = int_to_ptr.hbm [resolvable:$true] %s10077
          %10080 = dma.vmem_to_hbm [thread:$0]  %s10076, 128, %s10078, %s10063
        $region60: #{cnn_1d_forward.1} parent=55 // pred_fallthru
          _
      $region56: #{cnn_1d_forward.1} parent=5 // pred_fallthru
        _
      %p10081 = scmp.le.s32.totalorder 2, %s18
      // Predicated region
      $region61: #{cnn_1d_forward.1} parent=5 // pred_check
        %p10082 = pneg %p10081
      $region62: #{cnn_1d_forward.1} parent=5 // pred_check_branch
        %10084 = sbr.rel (%p10082) target = $region64
      $region63: #{cnn_1d_forward.1} parent=5 // pred_region
        %s10085 = ssub.s32 %s18, 2
        // Predicated region
        $region65: #{cnn_1d_forward.1} parent=63 // pred_check
          %p10086 = pneg %p241
        $region66: #{cnn_1d_forward.1} parent=63 // pred_check_branch
          %10088 = sbr.rel (%p10086) target = $region68
        $region67: #{cnn_1d_forward.1} parent=63 // pred_region
          %s10089 = sand.u32 %s226, 1
          %s10090 = scalar_lea.sflag [#allocation5], %s10089
          %s10091 = sand.u32 %s226, 1
          %s10092 = smul.addr %s10091, 8
          %s10093 = scalar_lea.vmem [#allocation4], %s10092
          %10095 = dma.done %s10090, 128
        $region68: #{cnn_1d_forward.1} parent=63 // pred_fallthru
          _
      $region64: #{cnn_1d_forward.1} parent=5 // pred_fallthru
        _
    $region6: #{cnn_1d_forward.1} parent=1 // loop_footer
      %s22 = sadd.s32 1, %s18
    $region7: #{cnn_1d_forward.1} parent=1 // loop_footer_branch
      %17 = sbr.rel target = $region3
    $region8: #{cnn_1d_forward.1} parent=1 // loop_exit
      _
    %10096 = vsyncpa [#allocation5], 1
    %s10097 = scalar_lea.sflag [#allocation5], 1
    %10098 = vsyncpa %s10097, 1

</llo_original>
